<compile_context>
chip_gen: v7x
topology: tpu7x:2x2x1
jax: 0.10.0
libtpu: 0.0.40
codegen_flags: <defaults>
</compile_context>

<pallas_src>
import functools

import numpy as np
import jax
import jax.numpy as jnp
from jax import lax
from jax.experimental import pallas as pl
from jax.experimental.pallas import tpu as pltpu


# ----------------------------------------------------------------------------
# small helpers
# ----------------------------------------------------------------------------

def _round_up(x, m):
    return (x + m - 1) // m * m


def _maybe_cast(w, dtype):
    dtype = jnp.dtype(dtype)
    return w if jnp.dtype(w.dtype) == dtype else w.astype(dtype)


def _tpu_vmem_capacity_bytes():
    try:
        cap = int(pltpu.get_tpu_info().vmem_capacity_bytes)
        if cap > 0:
            return cap
    except Exception:
        pass
    return 64 << 20  # v7x per-TensorCore VMEM = smallest of v5e/v6e/v7x


def _layer_norm(x, gamma, beta, eps):
    # f32 layernorm; rsqrt goes to the EUP (its own VLIW slot).
    mean = jnp.mean(x, axis=-1, keepdims=True)
    xc = x - mean
    var = jnp.mean(xc * xc, axis=-1, keepdims=True)
    return xc * lax.rsqrt(var + eps) * gamma + beta


def _const_spec(shape):
    # Constant-index resident weight: single buffer (no pointless double-buffer).
    ndim = len(shape)
    return pl.BlockSpec(shape, lambda i, _n=ndim: (0,) * _n,
                        pipeline_mode=pl.Buffered(1))


# ----------------------------------------------------------------------------
# fused post-LN transformer encoder layer (self-attn + FFN + 2 layernorms)
# ----------------------------------------------------------------------------

def _encoder_math(x_ref, wqkv_ref, bqkv_ref, wo_ref, bo_ref,
                  g1_ref, be1_ref, w1_ref, fb1_ref,
                  w2_ref, fb2_ref, g2_ref, be2_ref,
                  *, n_head, mxu_dtype, ln_eps):
    tb, S, D = x_ref.shape
    dh = D // n_head
    scale = 1.0 / float(np.sqrt(dh))

    x = x_ref[...].astype(jnp.float32).reshape(tb * S, D)         # [tb*S, D]
    xc = x.astype(mxu_dtype)

    # ---- self-attention ----------------------------------------------------
    # fused QKV projection: MXU M-dim is tb*S rows, f32 accumulation.
    qkv = jnp.dot(xc, wqkv_ref[...].astype(mxu_dtype),
                  preferred_element_type=jnp.float32) + bqkv_ref[...]
    q = (qkv[:, :D] * scale).astype(mxu_dtype).reshape(tb, S, D)
    k = qkv[:, D:2 * D].astype(mxu_dtype).reshape(tb, S, D)
    v = qkv[:, 2 * D:].astype(mxu_dtype).reshape(tb, S, D)

    # per-head attention, batched over the tb sequences; contexts are
    # concatenated so the output projection is ONE K=D matmul.
    # TODO(synk): if dh is not a multiple of 128 these lane slices relayout;
    # a dh-padded / head-permuted QKV layout would make them free.
    ctx_heads = []
    for h in range(n_head):
        sl = slice(h * dh, (h + 1) * dh)
        s = jnp.einsum('bqd,bkd->bqk', q[..., sl], k[..., sl],
                       preferred_element_type=jnp.float32)        # [tb, S, S]
        s = s - jnp.max(s, axis=-1, keepdims=True)
        p = jnp.exp(s)
        # approx reciprocal (EUP) -- ~12-bit, inside the 5e-2 numerics contract
        p = p * pl.reciprocal(jnp.sum(p, axis=-1, keepdims=True), approx=True)
        ctx_heads.append(jnp.einsum('bqk,bkd->bqd', p.astype(mxu_dtype),
                                    v[..., sl],
                                    preferred_element_type=jnp.float32))
    ctx = jnp.concatenate(ctx_heads, axis=-1).reshape(tb * S, D)  # [tb*S, D]
    attn = jnp.dot(ctx.astype(mxu_dtype), wo_ref[...].astype(mxu_dtype),
                   preferred_element_type=jnp.float32) + bo_ref[...]

    # residual + LayerNorm1 (post-LN, PyTorch default norm_first=False)
    y = _layer_norm(x + attn, g1_ref[...], be1_ref[...], ln_eps)

    # ---- feed-forward (relu) -------------------------------------------------
    hdn = jnp.dot(y.astype(mxu_dtype), w1_ref[...].astype(mxu_dtype),
                  preferred_element_type=jnp.float32) + fb1_ref[...]
    hdn = jnp.maximum(hdn, 0.0)
    ff = jnp.dot(hdn.astype(mxu_dtype), w2_ref[...].astype(mxu_dtype),
                 preferred_element_type=jnp.float32) + fb2_ref[...]

    # residual + LayerNorm2
    z = _layer_norm(y + ff, g2_ref[...], be2_ref[...], ln_eps)
    return z.reshape(tb, S, D)                                    # [tb, S, D] f32


def _encoder_layer_kernel(x_ref, wqkv_ref, bqkv_ref, wo_ref, bo_ref,
                          g1_ref, be1_ref, w1_ref, fb1_ref,
                          w2_ref, fb2_ref, g2_ref, be2_ref,
                          o_ref, *, n_head, mxu_dtype, ln_eps):
    z = _encoder_math(x_ref, wqkv_ref, bqkv_ref, wo_ref, bo_ref,
                      g1_ref, be1_ref, w1_ref, fb1_ref,
                      w2_ref, fb2_ref, g2_ref, be2_ref,
                      n_head=n_head, mxu_dtype=mxu_dtype, ln_eps=ln_eps)
    o_ref[...] = z.astype(o_ref.dtype)


def _encoder_layer_pool_kernel(x_ref, wqkv_ref, bqkv_ref, wo_ref, bo_ref,
                               g1_ref, be1_ref, w1_ref, fb1_ref,
                               w2_ref, fb2_ref, g2_ref, be2_ref,
                               fcw_ref, fcb_ref,
                               o_ref, out_ref, *, n_head, mxu_dtype, ln_eps,
                               aggr, use_abs, inv_len):
    z = _encoder_math(x_ref, wqkv_ref, bqkv_ref, wo_ref, bo_ref,
                      g1_ref, be1_ref, w1_ref, fb1_ref,
                      w2_ref, fb2_ref, g2_ref, be2_ref,
                      n_head=n_head, mxu_dtype=mxu_dtype, ln_eps=ln_eps)
    o_ref[...] = z.astype(o_ref.dtype)

    # fused aggregation + fc (+ optional abs): no separate HBM re-read pass.
    if aggr == 'mean':
        pooled = jnp.sum(z, axis=1) * inv_len                     # [tb, D]
    else:  # 'first' == visual_feats[0] in the seq-major PyTorch layout
        pooled = z[:, 0, :]
    out = jnp.dot(pooled.astype(mxu_dtype), fcw_ref[...].astype(mxu_dtype),
                  preferred_element_type=jnp.float32) + fcb_ref[...]
    if use_abs:
        out = jnp.abs(out)
    out_ref[...] = out.astype(out_ref.dtype)


def _encoder_layer(x, p, *, n_head, mxu_dtype, tb, vmem_limit, out_dtype,
                   ln_eps=1e-5, fuse_pool=False, fc_w=None, fc_b=None,
                   aggr='mean', use_abs=False):
    Bp, S, D = x.shape
    F = p['w1'].shape[1]
    assert D % n_head == 0, "feat_dim must be divisible by n_head"
    assert Bp % tb == 0

    wqkv = _maybe_cast(p['wqkv'], mxu_dtype)
    wo = _maybe_cast(p['wo'], mxu_dtype)
    w1 = _maybe_cast(p['w1'], mxu_dtype)
    w2 = _maybe_cast(p['w2'], mxu_dtype)

    in_specs = [
        pl.BlockSpec((tb, S, D), lambda i: (i, 0, 0)),            # x (streamed)
        _const_spec((D, 3 * D)), _const_spec((1, 3 * D)),         # wqkv, bqkv
        _const_spec((D, D)), _const_spec((1, D)),                 # wo, bo
        _const_spec((1, D)), _const_spec((1, D)),                 # g1, beta1
        _const_spec((D, F)), _const_spec((1, F)),                 # w1, fb1
        _const_spec((F, D)), _const_spec((1, D)),                 # w2, fb2
        _const_spec((1, D)), _const_spec((1, D)),                 # g2, beta2
    ]
    args = [x, wqkv, p['bqkv'], wo, p['bo'], p['g1'], p['beta1'],
            w1, p['fb1'], w2, p['fb2'], p['g2'], p['beta2']]

    if fuse_pool:
        E = fc_w.shape[1]
        in_specs += [_const_spec((D, E)), _const_spec((1, E))]
        args += [_maybe_cast(fc_w, mxu_dtype), fc_b]
        kernel = functools.partial(
            _encoder_layer_pool_kernel, n_head=n_head,
            mxu_dtype=jnp.dtype(mxu_dtype), ln_eps=ln_eps,
            aggr=aggr, use_abs=use_abs, inv_len=1.0 / S)
        out_shape = (jax.ShapeDtypeStruct((Bp, S, D), out_dtype),
                     jax.ShapeDtypeStruct((Bp, E), jnp.float32))
        out_specs = (pl.BlockSpec((tb, S, D), lambda i: (i, 0, 0)),
                     pl.BlockSpec((tb, E), lambda i: (i, 0)))
    else:
        kernel = functools.partial(
            _encoder_layer_kernel, n_head=n_head,
            mxu_dtype=jnp.dtype(mxu_dtype), ln_eps=ln_eps)
        out_shape = jax.ShapeDtypeStruct((Bp, S, D), out_dtype)
        out_specs = pl.BlockSpec((tb, S, D), lambda i: (i, 0, 0))

    return pl.pallas_call(
        kernel,
        out_shape=out_shape,
        grid_spec=pltpu.PrefetchScalarGridSpec(
            num_scalar_prefetch=0,
            grid=(Bp // tb,),
            in_specs=in_specs,
            out_specs=out_specs),
        compiler_params=pltpu.CompilerParams(
            dimension_semantics=("parallel",),
            vmem_limit_bytes=vmem_limit),
    )(*args)


# ----------------------------------------------------------------------------
# batch-tile / VMEM planning (generation-aware)
# ----------------------------------------------------------------------------

def _plan(B, S, D, F, E, mxu_bytes, act_bytes=4):
    """Pick the batch tile TB and the vmem_limit request."""
    cap = _tpu_vmem_capacity_bytes()
    budget = int(cap * 0.80)                      # never over-request physical VMEM
    headroom = 6 << 20                            # compiler scratch / misc

    # resident weights (single-buffered via Buffered(1))
    w_bytes = ((D * 3 * D + D * D + D * F + F * D + D * E) * mxu_bytes
               + (3 * D + 6 * D + F + D + E) * 4)

    # per-sequence bytes: streamed tiles (double-buffered) + f32 intermediates
    per_seq = (2 * S * D * act_bytes * 2          # x tile + feats-out tile, 2 bufs
               + S * 3 * D * (4 + mxu_bytes)      # qkv f32 + q/k/v mxu copies
               + 2 * S * S * 4                    # attention scores / probs
               + 4 * S * D * 4                    # ctx, attn, y, z (f32)
               + 2 * S * D * mxu_bytes            # mxu copies of ctx / y
               + S * F * (4 + mxu_bytes)          # ffn hidden f32 + mxu copy
               + S * D * 4                        # ffn output
               + 2 * E * 4)                       # pooled-out rows, 2 bufs

    tb_target = pl.cdiv(256, S)                   # fill 2x256 MXU rows (>=128 for v5e)
    tb_vmem = (budget - headroom - w_bytes) // max(per_seq, 1)
    tb = max(1, min(tb_target, tb_vmem, B))
    tb = _round_up(tb, 8)                         # pooled (tb, E) block: 8-row aligned
    vmem_limit = int(min(max(w_bytes + tb * per_seq + headroom, 32 << 20), budget))
    return tb, vmem_limit


# ----------------------------------------------------------------------------
# parameter prep + full forward
# ----------------------------------------------------------------------------

def prepare_params(params, mxu_dtype=jnp.bfloat16):
    """Pre-cast matmul weights to the MXU dtype once (avoids per-call casts)."""
    mxu_dtype = jnp.dtype(mxu_dtype)
    layers = []
    for p in params['layers']:
        q = dict(p)
        for k in ('wqkv', 'wo', 'w1', 'w2'):
            q[k] = _maybe_cast(p[k], mxu_dtype)
        layers.append(q)
    out = dict(params)
    out['layers'] = layers
    out['fc_w'] = _maybe_cast(params['fc_w'], mxu_dtype)
    return out


def transformer_post_processing(visual_feats, params, *, n_head=4, aggr='mean',
                                order_embeddings=False,
                                mxu_dtype=jnp.bfloat16):
    """Inference forward of TransformerPostProcessing.

    visual_feats: [B, S, feat_dim] float32.
    Returns (out [B, embed_size], encoded_feats [B, S, feat_dim]).
    """
    if aggr == 'gated':
        # TODO(synk): gated aggregation (gate_fn/node_fn MLPs + bmm) not ported.
        raise NotImplementedError("aggr='gated' is not implemented")
    # TODO(synk): PositionalEncodingImageBoxes (pos_encoding) and the
    # src_key_padding_mask path (visual_feats_len) are not implemented;
    # dropout is inference-mode identity.
    layers = params['layers']
    assert len(layers) >= 1, "need at least one transformer layer"

    mxu_dtype = jnp.dtype(mxu_dtype)
    params = prepare_params(params, mxu_dtype)    # no-op if already pre-cast

    B, S, D = visual_feats.shape
    F = layers[0]['w1'].shape[1]
    E = params['fc_w'].shape[1]

    tb, vmem_limit = _plan(B, S, D, F, E, mxu_dtype.itemsize)
    Bp = _round_up(B, tb)
    feats = visual_feats
    if Bp != B:
        feats = jnp.pad(feats, ((0, Bp - B), (0, 0), (0, 0)))

    out = None
    n_layers = len(layers)
    for li, p in enumerate(layers):
        if li == n_layers - 1:
            # last layer: fuse pooling + fc, return feats in the input dtype
            feats, out = _encoder_layer(
                feats, p, n_head=n_head, mxu_dtype=mxu_dtype, tb=tb,
                vmem_limit=vmem_limit, out_dtype=visual_feats.dtype,
                fuse_pool=True, fc_w=params['fc_w'], fc_b=params['fc_b'],
                aggr=aggr, use_abs=order_embeddings)
        else:
            # intermediate layers: keep activations bf16 in HBM (half traffic)
            feats = _encoder_layer(
                feats, p, n_head=n_head, mxu_dtype=mxu_dtype, tb=tb,
                vmem_limit=vmem_limit, out_dtype=mxu_dtype)
    return out[:B], feats[:B]


# ----------------------------------------------------------------------------
# parameter init + pure-JAX f32 reference (mirrors the PyTorch module)
# ----------------------------------------------------------------------------

def _xavier(key, fan_in, fan_out):
    r = float(np.sqrt(6.0 / (fan_in + fan_out)))
    return jax.random.uniform(key, (fan_in, fan_out), jnp.float32, -r, r)


def init_params(key, *, num_layers, feat_dim, embed_size, n_head=4,
                dim_feedforward=2048):
    D, F, E = feat_dim, dim_feedforward, embed_size
    del n_head  # head count only affects the forward split, not the shapes
    keys = jax.random.split(key, num_layers + 1)
    layers = []
    for lk in keys[:num_layers]:
        ks = jax.random.split(lk, 12)
        layers.append(dict(
            wqkv=_xavier(ks[0], D, 3 * D),
            bqkv=0.02 * jax.random.normal(ks[1], (1, 3 * D), jnp.float32),
            wo=_xavier(ks[2], D, D),
            bo=0.02 * jax.random.normal(ks[3], (1, D), jnp.float32),
            g1=1.0 + 0.1 * jax.random.normal(ks[4], (1, D), jnp.float32),
            beta1=0.1 * jax.random.normal(ks[5], (1, D), jnp.float32),
            w1=_xavier(ks[6], D, F),
            fb1=0.02 * jax.random.normal(ks[7], (1, F), jnp.float32),
            w2=_xavier(ks[8], F, D),
            fb2=0.02 * jax.random.normal(ks[9], (1, D), jnp.float32),
            g2=1.0 + 0.1 * jax.random.normal(ks[10], (1, D), jnp.float32),
            beta2=0.1 * jax.random.normal(ks[11], (1, D), jnp.float32),
        ))
    kf = jax.random.split(keys[-1], 2)
    return dict(layers=layers,
                fc_w=_xavier(kf[0], D, E),
                fc_b=0.02 * jax.random.normal(kf[1], (1, E), jnp.float32))


def reference_forward(x, params, *, n_head, aggr='mean', order_embeddings=False,
                      eps=1e-5):
    B, S, D = x.shape
    dh = D // n_head

    def ln(t, g, b):
        m = jnp.mean(t, axis=-1, keepdims=True)
        c = t - m
        v = jnp.mean(c * c, axis=-1, keepdims=True)
        return c * jax.lax.rsqrt(v + eps) * g + b

    h = x
    for p in params['layers']:
        qkv = jnp.einsum('bsd,de->bse', h, p['wqkv']) + p['bqkv']
        q = (qkv[..., :D] / np.sqrt(dh)).reshape(B, S, n_head, dh)
        k = qkv[..., D:2 * D].reshape(B, S, n_head, dh)
        v = qkv[..., 2 * D:].reshape(B, S, n_head, dh)
        s = jnp.einsum('bqhd,bkhd->bhqk', q, k)
        a = jax.nn.softmax(s, axis=-1)
        ctx = jnp.einsum('bhqk,bkhd->bqhd', a, v).reshape(B, S, D)
        attn = jnp.einsum('bsd,de->bse', ctx, p['wo']) + p['bo']
        y = ln(h + attn, p['g1'], p['beta1'])
        ff = jnp.maximum(jnp.einsum('bsd,df->bsf', y, p['w1']) + p['fb1'], 0.0)
        ff = jnp.einsum('bsf,fd->bsd', ff, p['w2']) + p['fb2']
        h = ln(y + ff, p['g2'], p['beta2'])
    pooled = h.mean(axis=1) if aggr == 'mean' else h[:, 0]
    out = pooled @ params['fc_w'] + params['fc_b']
    if order_embeddings:
        out = jnp.abs(out)
    return out, h


# ----------------------------------------------------------------------------
# self-test
# ----------------------------------------------------------------------------

if __name__ == "__main__":
    key = jax.random.PRNGKey(0)
    k_x, k_p = jax.random.split(key)

    B, S, D, E = 2, 8, 64, 32          # batch, regions, feat_dim, embed_size
    n_head, num_layers, ffn = 4, 2, 2048

    visual_feats = jax.random.normal(k_x, (B, S, D), jnp.float32)
    params_f32 = init_params(k_p, num_layers=num_layers, feat_dim=D,
                             embed_size=E, n_head=n_head, dim_feedforward=ffn)
    # pre-cast matmul weights to bf16 once (outside the forward path)
    params = prepare_params(params_f32, jnp.bfloat16)

    out, feats = transformer_post_processing(
        visual_feats, params, n_head=n_head, aggr='mean',
        order_embeddings=True)
    out = jax.block_until_ready(out)
    feats = jax.block_until_ready(feats)

    ref_out, ref_feats = reference_forward(
        visual_feats, params_f32, n_head=n_head, aggr='mean',
        order_embeddings=True)

    # bf16 MXU inputs / bf16 inter-layer activations with f32 accumulation,
    # compared against a pure-f32 reference.
    np.testing.assert_allclose(np.asarray(out), np.asarray(ref_out),
                               rtol=5e-2, atol=5e-2)
    np.testing.assert_allclose(np.asarray(feats), np.asarray(ref_feats),
                               rtol=5e-2, atol=5e-2)

    print("KERNEL_OK")
</pallas_src>

<mosaic_0001>
module attributes {stable_mosaic.version = 11 : i64} {
  func.func @_encoder_layer_kernel(%arg0: i32, %arg1: memref<8x8x64xf32, #tpu.memory_space<vmem>>, %arg2: memref<64x192xbf16, #tpu.memory_space<vmem>>, %arg3: memref<1x192xf32, #tpu.memory_space<vmem>>, %arg4: memref<64x64xbf16, #tpu.memory_space<vmem>>, %arg5: memref<1x64xf32, #tpu.memory_space<vmem>>, %arg6: memref<1x64xf32, #tpu.memory_space<vmem>>, %arg7: memref<1x64xf32, #tpu.memory_space<vmem>>, %arg8: memref<64x2048xbf16, #tpu.memory_space<vmem>>, %arg9: memref<1x2048xf32, #tpu.memory_space<vmem>>, %arg10: memref<2048x64xbf16, #tpu.memory_space<vmem>>, %arg11: memref<1x64xf32, #tpu.memory_space<vmem>>, %arg12: memref<1x64xf32, #tpu.memory_space<vmem>>, %arg13: memref<1x64xf32, #tpu.memory_space<vmem>>, %arg14: memref<8x8x64xbf16, #tpu.memory_space<vmem>>) attributes {dimension_semantics = [#tpu.dimension_semantics<parallel>], iteration_bounds = array<i64: 1>, scalar_prefetch = 0 : i64, scratch_operands = 0 : i64, tpu.core_type = #tpu.core_type<tc>, window_params = [{transform_indices = @transform_0, window_bounds = array<i64: 8, 8, 64>}, {pipeline_mode = #tpu.pipeline_mode<synchronous>, transform_indices = @transform_1, window_bounds = array<i64: 64, 192>}, {pipeline_mode = #tpu.pipeline_mode<synchronous>, transform_indices = @transform_2, window_bounds = array<i64: 1, 192>}, {pipeline_mode = #tpu.pipeline_mode<synchronous>, transform_indices = @transform_3, window_bounds = array<i64: 64, 64>}, {pipeline_mode = #tpu.pipeline_mode<synchronous>, transform_indices = @transform_4, window_bounds = array<i64: 1, 64>}, {pipeline_mode = #tpu.pipeline_mode<synchronous>, transform_indices = @transform_5, window_bounds = array<i64: 1, 64>}, {pipeline_mode = #tpu.pipeline_mode<synchronous>, transform_indices = @transform_6, window_bounds = array<i64: 1, 64>}, {pipeline_mode = #tpu.pipeline_mode<synchronous>, transform_indices = @transform_7, window_bounds = array<i64: 64, 2048>}, {pipeline_mode = #tpu.pipeline_mode<synchronous>, transform_indices = @transform_8, window_bounds = array<i64: 1, 2048>}, {pipeline_mode = #tpu.pipeline_mode<synchronous>, transform_indices = @transform_9, window_bounds = array<i64: 2048, 64>}, {pipeline_mode = #tpu.pipeline_mode<synchronous>, transform_indices = @transform_10, window_bounds = array<i64: 1, 64>}, {pipeline_mode = #tpu.pipeline_mode<synchronous>, transform_indices = @transform_11, window_bounds = array<i64: 1, 64>}, {pipeline_mode = #tpu.pipeline_mode<synchronous>, transform_indices = @transform_12, window_bounds = array<i64: 1, 64>}, {transform_indices = @transform_13, window_bounds = array<i64: 8, 8, 64>}]} {
    %c0 = arith.constant 0 : index
    %c0_0 = arith.constant 0 : index
    %c0_1 = arith.constant 0 : index
    %0 = vector.load %arg1[%c0, %c0_0, %c0_1] : memref<8x8x64xf32, #tpu.memory_space<vmem>>, vector<8x8x64xf32>
    %1 = vector.shape_cast %0 : vector<8x8x64xf32> to vector<64x64xf32>
    %2 = arith.truncf %1 : vector<64x64xf32> to vector<64x64xbf16>
    %c0_2 = arith.constant 0 : index
    %c0_3 = arith.constant 0 : index
    %3 = vector.load %arg2[%c0_2, %c0_3] : memref<64x192xbf16, #tpu.memory_space<vmem>>, vector<64x192xbf16>
    %cst = arith.constant dense<0.000000e+00> : vector<64x192xf32>
    %4 = tpu.matmul %2, %3, %cst {dimension_numbers = #tpu.dot_dimension_numbers<[1], [0], [0], [1], [0, 0, 1, 1], [], []>} : vector<64x64xbf16>, vector<64x192xbf16>, vector<64x192xf32> -> vector<64x192xf32>
    %c0_4 = arith.constant 0 : index
    %c0_5 = arith.constant 0 : index
    %5 = vector.load %arg3[%c0_4, %c0_5] : memref<1x192xf32, #tpu.memory_space<vmem>>, vector<1x192xf32>
    %6 = vector.broadcast %5 : vector<1x192xf32> to vector<64x192xf32>
    %7 = arith.addf %4, %6 : vector<64x192xf32>
    %8 = vector.extract_strided_slice %7 {offsets = [0, 0], sizes = [64, 64], strides = [1, 1]} : vector<64x192xf32> to vector<64x64xf32>
    %cst_6 = arith.constant 2.500000e-01 : f32
    %9 = vector.broadcast %cst_6 : f32 to vector<64x64xf32>
    %10 = arith.mulf %8, %9 : vector<64x64xf32>
    %11 = arith.truncf %10 : vector<64x64xf32> to vector<64x64xbf16>
    %12 = vector.shape_cast %11 : vector<64x64xbf16> to vector<8x8x64xbf16>
    %13 = vector.extract_strided_slice %7 {offsets = [0, 64], sizes = [64, 64], strides = [1, 1]} : vector<64x192xf32> to vector<64x64xf32>
    %14 = arith.truncf %13 : vector<64x64xf32> to vector<64x64xbf16>
    %15 = vector.shape_cast %14 : vector<64x64xbf16> to vector<8x8x64xbf16>
    %16 = vector.extract_strided_slice %7 {offsets = [0, 128], sizes = [64, 64], strides = [1, 1]} : vector<64x192xf32> to vector<64x64xf32>
    %17 = arith.truncf %16 : vector<64x64xf32> to vector<64x64xbf16>
    %18 = vector.shape_cast %17 : vector<64x64xbf16> to vector<8x8x64xbf16>
    %19 = vector.extract_strided_slice %12 {offsets = [0, 0, 0], sizes = [8, 8, 16], strides = [1, 1, 1]} : vector<8x8x64xbf16> to vector<8x8x16xbf16>
    %20 = vector.extract_strided_slice %15 {offsets = [0, 0, 0], sizes = [8, 8, 16], strides = [1, 1, 1]} : vector<8x8x64xbf16> to vector<8x8x16xbf16>
    "tpu.trace_start"() <{level = 10 : i32, message = "bqd,bkd->bqk"}> : () -> ()
    %cst_7 = arith.constant dense<0.000000e+00> : vector<8x8x8xf32>
    %21 = tpu.matmul %19, %20, %cst_7 {dimension_numbers = #tpu.dot_dimension_numbers<[2], [2], [1], [1], [0, 0, 0, 1, 1, 1], [0], [0]>} : vector<8x8x16xbf16>, vector<8x8x16xbf16>, vector<8x8x8xf32> -> vector<8x8x8xf32>
    "tpu.trace_stop"() : () -> ()
    %cst_8 = arith.constant dense<0xFF800000> : vector<8x8xf32>
    %22 = vector.multi_reduction <maximumf>, %21, %cst_8 [2] : vector<8x8x8xf32> to vector<8x8xf32>
    %23 = vector.shape_cast %22 : vector<8x8xf32> to vector<8x8x1xf32>
    %24 = vector.broadcast %23 : vector<8x8x1xf32> to vector<8x8x8xf32>
    %25 = arith.subf %21, %24 : vector<8x8x8xf32>
    %26 = math.exp %25 : vector<8x8x8xf32>
    %cst_9 = arith.constant dense<0.000000e+00> : vector<8x8xf32>
    %27 = vector.multi_reduction <add>, %26, %cst_9 [2] : vector<8x8x8xf32> to vector<8x8xf32>
    %28 = vector.shape_cast %27 : vector<8x8xf32> to vector<8x8x1xf32>
    %29 = tpu.reciprocal %28 {approx = true} : vector<8x8x1xf32> -> vector<8x8x1xf32>
    %30 = vector.broadcast %29 : vector<8x8x1xf32> to vector<8x8x8xf32>
    %31 = arith.mulf %26, %30 : vector<8x8x8xf32>
    %32 = arith.truncf %31 : vector<8x8x8xf32> to vector<8x8x8xbf16>
    %33 = vector.extract_strided_slice %18 {offsets = [0, 0, 0], sizes = [8, 8, 16], strides = [1, 1, 1]} : vector<8x8x64xbf16> to vector<8x8x16xbf16>
    "tpu.trace_start"() <{level = 10 : i32, message = "bqk,bkd->bqd"}> : () -> ()
    %cst_10 = arith.constant dense<0.000000e+00> : vector<8x8x16xf32>
    %34 = tpu.matmul %32, %33, %cst_10 {dimension_numbers = #tpu.dot_dimension_numbers<[2], [1], [1], [2], [0, 0, 0, 1, 1, 2], [0], [0]>} : vector<8x8x8xbf16>, vector<8x8x16xbf16>, vector<8x8x16xf32> -> vector<8x8x16xf32>
    "tpu.trace_stop"() : () -> ()
    %35 = vector.extract_strided_slice %12 {offsets = [0, 0, 16], sizes = [8, 8, 16], strides = [1, 1, 1]} : vector<8x8x64xbf16> to vector<8x8x16xbf16>
    %36 = vector.extract_strided_slice %15 {offsets = [0, 0, 16], sizes = [8, 8, 16], strides = [1, 1, 1]} : vector<8x8x64xbf16> to vector<8x8x16xbf16>
    "tpu.trace_start"() <{level = 10 : i32, message = "bqd,bkd->bqk"}> : () -> ()
    %cst_11 = arith.constant dense<0.000000e+00> : vector<8x8x8xf32>
    %37 = tpu.matmul %35, %36, %cst_11 {dimension_numbers = #tpu.dot_dimension_numbers<[2], [2], [1], [1], [0, 0, 0, 1, 1, 1], [0], [0]>} : vector<8x8x16xbf16>, vector<8x8x16xbf16>, vector<8x8x8xf32> -> vector<8x8x8xf32>
    "tpu.trace_stop"() : () -> ()
    %cst_12 = arith.constant dense<0xFF800000> : vector<8x8xf32>
    %38 = vector.multi_reduction <maximumf>, %37, %cst_12 [2] : vector<8x8x8xf32> to vector<8x8xf32>
    %39 = vector.shape_cast %38 : vector<8x8xf32> to vector<8x8x1xf32>
    %40 = vector.broadcast %39 : vector<8x8x1xf32> to vector<8x8x8xf32>
    %41 = arith.subf %37, %40 : vector<8x8x8xf32>
    %42 = math.exp %41 : vector<8x8x8xf32>
    %cst_13 = arith.constant dense<0.000000e+00> : vector<8x8xf32>
    %43 = vector.multi_reduction <add>, %42, %cst_13 [2] : vector<8x8x8xf32> to vector<8x8xf32>
    %44 = vector.shape_cast %43 : vector<8x8xf32> to vector<8x8x1xf32>
    %45 = tpu.reciprocal %44 {approx = true} : vector<8x8x1xf32> -> vector<8x8x1xf32>
    %46 = vector.broadcast %45 : vector<8x8x1xf32> to vector<8x8x8xf32>
    %47 = arith.mulf %42, %46 : vector<8x8x8xf32>
    %48 = arith.truncf %47 : vector<8x8x8xf32> to vector<8x8x8xbf16>
    %49 = vector.extract_strided_slice %18 {offsets = [0, 0, 16], sizes = [8, 8, 16], strides = [1, 1, 1]} : vector<8x8x64xbf16> to vector<8x8x16xbf16>
    "tpu.trace_start"() <{level = 10 : i32, message = "bqk,bkd->bqd"}> : () -> ()
    %cst_14 = arith.constant dense<0.000000e+00> : vector<8x8x16xf32>
    %50 = tpu.matmul %48, %49, %cst_14 {dimension_numbers = #tpu.dot_dimension_numbers<[2], [1], [1], [2], [0, 0, 0, 1, 1, 2], [0], [0]>} : vector<8x8x8xbf16>, vector<8x8x16xbf16>, vector<8x8x16xf32> -> vector<8x8x16xf32>
    "tpu.trace_stop"() : () -> ()
    %51 = vector.extract_strided_slice %12 {offsets = [0, 0, 32], sizes = [8, 8, 16], strides = [1, 1, 1]} : vector<8x8x64xbf16> to vector<8x8x16xbf16>
    %52 = vector.extract_strided_slice %15 {offsets = [0, 0, 32], sizes = [8, 8, 16], strides = [1, 1, 1]} : vector<8x8x64xbf16> to vector<8x8x16xbf16>
    "tpu.trace_start"() <{level = 10 : i32, message = "bqd,bkd->bqk"}> : () -> ()
    %cst_15 = arith.constant dense<0.000000e+00> : vector<8x8x8xf32>
    %53 = tpu.matmul %51, %52, %cst_15 {dimension_numbers = #tpu.dot_dimension_numbers<[2], [2], [1], [1], [0, 0, 0, 1, 1, 1], [0], [0]>} : vector<8x8x16xbf16>, vector<8x8x16xbf16>, vector<8x8x8xf32> -> vector<8x8x8xf32>
    "tpu.trace_stop"() : () -> ()
    %cst_16 = arith.constant dense<0xFF800000> : vector<8x8xf32>
    %54 = vector.multi_reduction <maximumf>, %53, %cst_16 [2] : vector<8x8x8xf32> to vector<8x8xf32>
    %55 = vector.shape_cast %54 : vector<8x8xf32> to vector<8x8x1xf32>
    %56 = vector.broadcast %55 : vector<8x8x1xf32> to vector<8x8x8xf32>
    %57 = arith.subf %53, %56 : vector<8x8x8xf32>
    %58 = math.exp %57 : vector<8x8x8xf32>
    %cst_17 = arith.constant dense<0.000000e+00> : vector<8x8xf32>
    %59 = vector.multi_reduction <add>, %58, %cst_17 [2] : vector<8x8x8xf32> to vector<8x8xf32>
    %60 = vector.shape_cast %59 : vector<8x8xf32> to vector<8x8x1xf32>
    %61 = tpu.reciprocal %60 {approx = true} : vector<8x8x1xf32> -> vector<8x8x1xf32>
    %62 = vector.broadcast %61 : vector<8x8x1xf32> to vector<8x8x8xf32>
    %63 = arith.mulf %58, %62 : vector<8x8x8xf32>
    %64 = arith.truncf %63 : vector<8x8x8xf32> to vector<8x8x8xbf16>
    %65 = vector.extract_strided_slice %18 {offsets = [0, 0, 32], sizes = [8, 8, 16], strides = [1, 1, 1]} : vector<8x8x64xbf16> to vector<8x8x16xbf16>
    "tpu.trace_start"() <{level = 10 : i32, message = "bqk,bkd->bqd"}> : () -> ()
    %cst_18 = arith.constant dense<0.000000e+00> : vector<8x8x16xf32>
    %66 = tpu.matmul %64, %65, %cst_18 {dimension_numbers = #tpu.dot_dimension_numbers<[2], [1], [1], [2], [0, 0, 0, 1, 1, 2], [0], [0]>} : vector<8x8x8xbf16>, vector<8x8x16xbf16>, vector<8x8x16xf32> -> vector<8x8x16xf32>
    "tpu.trace_stop"() : () -> ()
    %67 = vector.extract_strided_slice %12 {offsets = [0, 0, 48], sizes = [8, 8, 16], strides = [1, 1, 1]} : vector<8x8x64xbf16> to vector<8x8x16xbf16>
    %68 = vector.extract_strided_slice %15 {offsets = [0, 0, 48], sizes = [8, 8, 16], strides = [1, 1, 1]} : vector<8x8x64xbf16> to vector<8x8x16xbf16>
    "tpu.trace_start"() <{level = 10 : i32, message = "bqd,bkd->bqk"}> : () -> ()
    %cst_19 = arith.constant dense<0.000000e+00> : vector<8x8x8xf32>
    %69 = tpu.matmul %67, %68, %cst_19 {dimension_numbers = #tpu.dot_dimension_numbers<[2], [2], [1], [1], [0, 0, 0, 1, 1, 1], [0], [0]>} : vector<8x8x16xbf16>, vector<8x8x16xbf16>, vector<8x8x8xf32> -> vector<8x8x8xf32>
    "tpu.trace_stop"() : () -> ()
    %cst_20 = arith.constant dense<0xFF800000> : vector<8x8xf32>
    %70 = vector.multi_reduction <maximumf>, %69, %cst_20 [2] : vector<8x8x8xf32> to vector<8x8xf32>
    %71 = vector.shape_cast %70 : vector<8x8xf32> to vector<8x8x1xf32>
    %72 = vector.broadcast %71 : vector<8x8x1xf32> to vector<8x8x8xf32>
    %73 = arith.subf %69, %72 : vector<8x8x8xf32>
    %74 = math.exp %73 : vector<8x8x8xf32>
    %cst_21 = arith.constant dense<0.000000e+00> : vector<8x8xf32>
    %75 = vector.multi_reduction <add>, %74, %cst_21 [2] : vector<8x8x8xf32> to vector<8x8xf32>
    %76 = vector.shape_cast %75 : vector<8x8xf32> to vector<8x8x1xf32>
    %77 = tpu.reciprocal %76 {approx = true} : vector<8x8x1xf32> -> vector<8x8x1xf32>
    %78 = vector.broadcast %77 : vector<8x8x1xf32> to vector<8x8x8xf32>
    %79 = arith.mulf %74, %78 : vector<8x8x8xf32>
    %80 = arith.truncf %79 : vector<8x8x8xf32> to vector<8x8x8xbf16>
    %81 = vector.extract_strided_slice %18 {offsets = [0, 0, 48], sizes = [8, 8, 16], strides = [1, 1, 1]} : vector<8x8x64xbf16> to vector<8x8x16xbf16>
    "tpu.trace_start"() <{level = 10 : i32, message = "bqk,bkd->bqd"}> : () -> ()
    %cst_22 = arith.constant dense<0.000000e+00> : vector<8x8x16xf32>
    %82 = tpu.matmul %80, %81, %cst_22 {dimension_numbers = #tpu.dot_dimension_numbers<[2], [1], [1], [2], [0, 0, 0, 1, 1, 2], [0], [0]>} : vector<8x8x8xbf16>, vector<8x8x16xbf16>, vector<8x8x16xf32> -> vector<8x8x16xf32>
    "tpu.trace_stop"() : () -> ()
    %83 = tpu.concatenate %34, %50, %66, %82 in 2 : vector<8x8x16xf32>, vector<8x8x16xf32>, vector<8x8x16xf32>, vector<8x8x16xf32> -> vector<8x8x64xf32>
    %84 = vector.shape_cast %83 : vector<8x8x64xf32> to vector<64x64xf32>
    %85 = arith.truncf %84 : vector<64x64xf32> to vector<64x64xbf16>
    %c0_23 = arith.constant 0 : index
    %c0_24 = arith.constant 0 : index
    %86 = vector.load %arg4[%c0_23, %c0_24] : memref<64x64xbf16, #tpu.memory_space<vmem>>, vector<64x64xbf16>
    %cst_25 = arith.constant dense<0.000000e+00> : vector<64x64xf32>
    %87 = tpu.matmul %85, %86, %cst_25 {dimension_numbers = #tpu.dot_dimension_numbers<[1], [0], [0], [1], [0, 0, 1, 1], [], []>} : vector<64x64xbf16>, vector<64x64xbf16>, vector<64x64xf32> -> vector<64x64xf32>
    %c0_26 = arith.constant 0 : index
    %c0_27 = arith.constant 0 : index
    %88 = vector.load %arg5[%c0_26, %c0_27] : memref<1x64xf32, #tpu.memory_space<vmem>>, vector<1x64xf32>
    %89 = vector.broadcast %88 : vector<1x64xf32> to vector<64x64xf32>
    %90 = arith.addf %87, %89 : vector<64x64xf32>
    %91 = arith.addf %1, %90 : vector<64x64xf32>
    %c0_28 = arith.constant 0 : index
    %c0_29 = arith.constant 0 : index
    %92 = vector.load %arg6[%c0_28, %c0_29] : memref<1x64xf32, #tpu.memory_space<vmem>>, vector<1x64xf32>
    %c0_30 = arith.constant 0 : index
    %c0_31 = arith.constant 0 : index
    %93 = vector.load %arg7[%c0_30, %c0_31] : memref<1x64xf32, #tpu.memory_space<vmem>>, vector<1x64xf32>
    %cst_32 = arith.constant dense<0.000000e+00> : vector<64xf32>
    %94 = vector.multi_reduction <add>, %91, %cst_32 [1] : vector<64x64xf32> to vector<64xf32>
    %95 = vector.shape_cast %94 : vector<64xf32> to vector<64x1xf32>
    %cst_33 = arith.constant 6.400000e+01 : f32
    %96 = vector.broadcast %cst_33 : f32 to vector<64x1xf32>
    %97 = arith.divf %95, %96 : vector<64x1xf32>
    %98 = vector.broadcast %97 : vector<64x1xf32> to vector<64x64xf32>
    %99 = arith.subf %91, %98 : vector<64x64xf32>
    %100 = arith.mulf %99, %99 : vector<64x64xf32>
    %cst_34 = arith.constant dense<0.000000e+00> : vector<64xf32>
    %101 = vector.multi_reduction <add>, %100, %cst_34 [1] : vector<64x64xf32> to vector<64xf32>
    %102 = vector.shape_cast %101 : vector<64xf32> to vector<64x1xf32>
    %cst_35 = arith.constant 6.400000e+01 : f32
    %103 = vector.broadcast %cst_35 : f32 to vector<64x1xf32>
    %104 = arith.divf %102, %103 : vector<64x1xf32>
    %cst_36 = arith.constant 9.99999974E-6 : f32
    %105 = vector.broadcast %cst_36 : f32 to vector<64x1xf32>
    %106 = arith.addf %104, %105 : vector<64x1xf32>
    %107 = math.rsqrt %106 : vector<64x1xf32>
    %108 = vector.broadcast %107 : vector<64x1xf32> to vector<64x64xf32>
    %109 = arith.mulf %99, %108 : vector<64x64xf32>
    %110 = vector.broadcast %92 : vector<1x64xf32> to vector<64x64xf32>
    %111 = arith.mulf %109, %110 : vector<64x64xf32>
    %112 = vector.broadcast %93 : vector<1x64xf32> to vector<64x64xf32>
    %113 = arith.addf %111, %112 : vector<64x64xf32>
    %114 = arith.truncf %113 : vector<64x64xf32> to vector<64x64xbf16>
    %c0_37 = arith.constant 0 : index
    %c0_38 = arith.constant 0 : index
    %115 = vector.load %arg8[%c0_37, %c0_38] : memref<64x2048xbf16, #tpu.memory_space<vmem>>, vector<64x2048xbf16>
    %cst_39 = arith.constant dense<0.000000e+00> : vector<64x2048xf32>
    %116 = tpu.matmul %114, %115, %cst_39 {dimension_numbers = #tpu.dot_dimension_numbers<[1], [0], [0], [1], [0, 0, 1, 1], [], []>} : vector<64x64xbf16>, vector<64x2048xbf16>, vector<64x2048xf32> -> vector<64x2048xf32>
    %c0_40 = arith.constant 0 : index
    %c0_41 = arith.constant 0 : index
    %117 = vector.load %arg9[%c0_40, %c0_41] : memref<1x2048xf32, #tpu.memory_space<vmem>>, vector<1x2048xf32>
    %118 = vector.broadcast %117 : vector<1x2048xf32> to vector<64x2048xf32>
    %119 = arith.addf %116, %118 : vector<64x2048xf32>
    %cst_42 = arith.constant 0.000000e+00 : f32
    %120 = vector.broadcast %cst_42 : f32 to vector<64x2048xf32>
    %121 = arith.maximumf %119, %120 : vector<64x2048xf32>
    %122 = arith.truncf %121 : vector<64x2048xf32> to vector<64x2048xbf16>
    %c0_43 = arith.constant 0 : index
    %c0_44 = arith.constant 0 : index
    %123 = vector.load %arg10[%c0_43, %c0_44] : memref<2048x64xbf16, #tpu.memory_space<vmem>>, vector<2048x64xbf16>
    %cst_45 = arith.constant dense<0.000000e+00> : vector<64x64xf32>
    %124 = tpu.matmul %122, %123, %cst_45 {dimension_numbers = #tpu.dot_dimension_numbers<[1], [0], [0], [1], [0, 0, 1, 1], [], []>} : vector<64x2048xbf16>, vector<2048x64xbf16>, vector<64x64xf32> -> vector<64x64xf32>
    %c0_46 = arith.constant 0 : index
    %c0_47 = arith.constant 0 : index
    %125 = vector.load %arg11[%c0_46, %c0_47] : memref<1x64xf32, #tpu.memory_space<vmem>>, vector<1x64xf32>
    %126 = vector.broadcast %125 : vector<1x64xf32> to vector<64x64xf32>
    %127 = arith.addf %124, %126 : vector<64x64xf32>
    %128 = arith.addf %113, %127 : vector<64x64xf32>
    %c0_48 = arith.constant 0 : index
    %c0_49 = arith.constant 0 : index
    %129 = vector.load %arg12[%c0_48, %c0_49] : memref<1x64xf32, #tpu.memory_space<vmem>>, vector<1x64xf32>
    %c0_50 = arith.constant 0 : index
    %c0_51 = arith.constant 0 : index
    %130 = vector.load %arg13[%c0_50, %c0_51] : memref<1x64xf32, #tpu.memory_space<vmem>>, vector<1x64xf32>
    %cst_52 = arith.constant dense<0.000000e+00> : vector<64xf32>
    %131 = vector.multi_reduction <add>, %128, %cst_52 [1] : vector<64x64xf32> to vector<64xf32>
    %132 = vector.shape_cast %131 : vector<64xf32> to vector<64x1xf32>
    %cst_53 = arith.constant 6.400000e+01 : f32
    %133 = vector.broadcast %cst_53 : f32 to vector<64x1xf32>
    %134 = arith.divf %132, %133 : vector<64x1xf32>
    %135 = vector.broadcast %134 : vector<64x1xf32> to vector<64x64xf32>
    %136 = arith.subf %128, %135 : vector<64x64xf32>
    %137 = arith.mulf %136, %136 : vector<64x64xf32>
    %cst_54 = arith.constant dense<0.000000e+00> : vector<64xf32>
    %138 = vector.multi_reduction <add>, %137, %cst_54 [1] : vector<64x64xf32> to vector<64xf32>
    %139 = vector.shape_cast %138 : vector<64xf32> to vector<64x1xf32>
    %cst_55 = arith.constant 6.400000e+01 : f32
    %140 = vector.broadcast %cst_55 : f32 to vector<64x1xf32>
    %141 = arith.divf %139, %140 : vector<64x1xf32>
    %cst_56 = arith.constant 9.99999974E-6 : f32
    %142 = vector.broadcast %cst_56 : f32 to vector<64x1xf32>
    %143 = arith.addf %141, %142 : vector<64x1xf32>
    %144 = math.rsqrt %143 : vector<64x1xf32>
    %145 = vector.broadcast %144 : vector<64x1xf32> to vector<64x64xf32>
    %146 = arith.mulf %136, %145 : vector<64x64xf32>
    %147 = vector.broadcast %129 : vector<1x64xf32> to vector<64x64xf32>
    %148 = arith.mulf %146, %147 : vector<64x64xf32>
    %149 = vector.broadcast %130 : vector<1x64xf32> to vector<64x64xf32>
    %150 = arith.addf %148, %149 : vector<64x64xf32>
    %151 = vector.shape_cast %150 : vector<64x64xf32> to vector<8x8x64xf32>
    %152 = arith.truncf %151 : vector<8x8x64xf32> to vector<8x8x64xbf16>
    %c0_57 = arith.constant 0 : index
    %c0_58 = arith.constant 0 : index
    %c0_59 = arith.constant 0 : index
    %153 = vector.load %arg14[%c0_57, %c0_58, %c0_59] : memref<8x8x64xbf16, #tpu.memory_space<vmem>>, vector<8x8x64xbf16>
    tpu.vector_store %arg14[%c0_57, %c0_58, %c0_59], %152 {strides = array<i32>} : memref<8x8x64xbf16, #tpu.memory_space<vmem>>, vector<8x8x64xbf16>,
    return
  }
  func.func @transform_0(%arg0: i32) -> (i32, i32, i32) {
    %c0_i32 = arith.constant 0 : i32
    %c0_i32_0 = arith.constant 0 : i32
    %c0_i32_1 = arith.constant 0 : i32
    return %arg0, %c0_i32, %c0_i32_0 : i32, i32, i32
  }
  func.func @transform_1(%arg0: i32) -> (i32, i32) {
    %c0_i32 = arith.constant 0 : i32
    %c0_i32_0 = arith.constant 0 : i32
    %c0_i32_1 = arith.constant 0 : i32
    return %c0_i32, %c0_i32_0 : i32, i32
  }
  func.func @transform_2(%arg0: i32) -> (i32, i32) {
    %c0_i32 = arith.constant 0 : i32
    %c0_i32_0 = arith.constant 0 : i32
    %c0_i32_1 = arith.constant 0 : i32
    return %c0_i32, %c0_i32_0 : i32, i32
  }
  func.func @transform_3(%arg0: i32) -> (i32, i32) {
    %c0_i32 = arith.constant 0 : i32
    %c0_i32_0 = arith.constant 0 : i32
    %c0_i32_1 = arith.constant 0 : i32
    return %c0_i32, %c0_i32_0 : i32, i32
  }
  func.func @transform_4(%arg0: i32) -> (i32, i32) {
    %c0_i32 = arith.constant 0 : i32
    %c0_i32_0 = arith.constant 0 : i32
    %c0_i32_1 = arith.constant 0 : i32
    return %c0_i32, %c0_i32_0 : i32, i32
  }
  func.func @transform_5(%arg0: i32) -> (i32, i32) {
    %c0_i32 = arith.constant 0 : i32
    %c0_i32_0 = arith.constant 0 : i32
    %c0_i32_1 = arith.constant 0 : i32
    return %c0_i32, %c0_i32_0 : i32, i32
  }
  func.func @transform_6(%arg0: i32) -> (i32, i32) {
    %c0_i32 = arith.constant 0 : i32
    %c0_i32_0 = arith.constant 0 : i32
    %c0_i32_1 = arith.constant 0 : i32
    return %c0_i32, %c0_i32_0 : i32, i32
  }
  func.func @transform_7(%arg0: i32) -> (i32, i32) {
    %c0_i32 = arith.constant 0 : i32
    %c0_i32_0 = arith.constant 0 : i32
    %c0_i32_1 = arith.constant 0 : i32
    return %c0_i32, %c0_i32_0 : i32, i32
  }
  func.func @transform_8(%arg0: i32) -> (i32, i32) {
    %c0_i32 = arith.constant 0 : i32
    %c0_i32_0 = arith.constant 0 : i32
    %c0_i32_1 = arith.constant 0 : i32
    return %c0_i32, %c0_i32_0 : i32, i32
  }
  func.func @transform_9(%arg0: i32) -> (i32, i32) {
    %c0_i32 = arith.constant 0 : i32
    %c0_i32_0 = arith.constant 0 : i32
    %c0_i32_1 = arith.constant 0 : i32
    return %c0_i32, %c0_i32_0 : i32, i32
  }
  func.func @transform_10(%arg0: i32) -> (i32, i32) {
    %c0_i32 = arith.constant 0 : i32
    %c0_i32_0 = arith.constant 0 : i32
    %c0_i32_1 = arith.constant 0 : i32
    return %c0_i32, %c0_i32_0 : i32, i32
  }
  func.func @transform_11(%arg0: i32) -> (i32, i32) {
    %c0_i32 = arith.constant 0 : i32
    %c0_i32_0 = arith.constant 0 : i32
    %c0_i32_1 = arith.constant 0 : i32
    return %c0_i32, %c0_i32_0 : i32, i32
  }
  func.func @transform_12(%arg0: i32) -> (i32, i32) {
    %c0_i32 = arith.constant 0 : i32
    %c0_i32_0 = arith.constant 0 : i32
    %c0_i32_1 = arith.constant 0 : i32
    return %c0_i32, %c0_i32_0 : i32, i32
  }
  func.func @transform_13(%arg0: i32) -> (i32, i32, i32) {
    %c0_i32 = arith.constant 0 : i32
    %c0_i32_0 = arith.constant 0 : i32
    %c0_i32_1 = arith.constant 0 : i32
    return %arg0, %c0_i32, %c0_i32_0 : i32, i32, i32
  }
}

</mosaic_0001>

<llo_original>
// kernel: tpu_custom_call.1
$region0: #{tpu_custom_call.1}
  #allocation0 [shape = 'u32[]', space=smem, size = 0x4, offset = 0x4, fixed_abs, tag = 'smem constant byte address 0x4 - core index']
  #allocation1 [shape = 'u32[144,128]{1,0:T(1,128)}', space=vmem, size = 0x12000, scoped, tag = 'internal scratch']
  %s0 = inlined_call_operand.vmem [shape: f32[8,8,64], index: 0, kind: input, shape index: {}]
  %s1 = inlined_call_operand.vmem [shape: bf16[64,192], index: 1, kind: input, shape index: {}]
  %s2 = inlined_call_operand.vmem [shape: f32[1,192], index: 2, kind: input, shape index: {}]
  %s3 = inlined_call_operand.vmem [shape: bf16[64,64], index: 3, kind: input, shape index: {}]
  %s4 = inlined_call_operand.vmem [shape: f32[1,64], index: 4, kind: input, shape index: {}]
  %s5 = inlined_call_operand.vmem [shape: f32[1,64], index: 5, kind: input, shape index: {}]
  %s6 = inlined_call_operand.vmem [shape: f32[1,64], index: 6, kind: input, shape index: {}]
  %s7 = inlined_call_operand.vmem [shape: bf16[64,2048], index: 7, kind: input, shape index: {}]
  %s8 = inlined_call_operand.vmem [shape: f32[1,2048], index: 8, kind: input, shape index: {}]
  %s9 = inlined_call_operand.vmem [shape: bf16[2048,64], index: 9, kind: input, shape index: {}]
  %s10 = inlined_call_operand.vmem [shape: f32[1,64], index: 10, kind: input, shape index: {}]
  %s11 = inlined_call_operand.vmem [shape: f32[1,64], index: 11, kind: input, shape index: {}]
  %s12 = inlined_call_operand.vmem [shape: f32[1,64], index: 12, kind: input, shape index: {}]
  %s13 = inlined_call_operand.hbm [shape: bf16[8,8,64], index: 13, kind: output, shape index: {}]
  %s14 = sld [smem:[#allocation0]]
  $region62: #{tpu_custom_call.1} parent=0
    _
  %s16 = ssub.s32 1, %s14
  %s17 = scalar_select 0, %s16, %s14
  $region1: #{tpu_custom_call.1} parent=0
    #allocation2 [shape = 'u8[16384]{0}', space=vmem, size = 0x4000, scoped, tag = 'output window, operand 0, single buffered']
    #allocation3 [shape = 's32[1]{0}', space=sflag, size = 0x4, scoped, tag = 'scoped memory for tpu_custom_call.1']
    %18 = vsyncpa [#allocation3], 0
    // Predicated region
    $region2: #{tpu_custom_call.1} parent=1 // pred_check
      _
    $region3: #{tpu_custom_call.1} parent=1 // pred_check_branch
      %20 = sbr.rel (0) target = $region5
    $region4: #{tpu_custom_call.1} parent=1 // pred_region
      _
    $region5: #{tpu_custom_call.1} parent=1 // pred_fallthru
      _
    // Predicated region
    $region6: #{tpu_custom_call.1} parent=1 // pred_check
      _
    $region7: #{tpu_custom_call.1} parent=1 // pred_check_branch
      %22 = sbr.rel (0) target = $region9
    $region8: #{tpu_custom_call.1} parent=1 // pred_region
      _
    $region9: #{tpu_custom_call.1} parent=1 // pred_fallthru
      _
    // Predicated region
    $region10: #{tpu_custom_call.1} parent=1 // pred_check
      _
    $region11: #{tpu_custom_call.1} parent=1 // pred_check_branch
      %24 = sbr.rel (0) target = $region13
    $region12: #{tpu_custom_call.1} parent=1 // pred_region
      _
    $region13: #{tpu_custom_call.1} parent=1 // pred_fallthru
      _
    // Predicated region
    $region14: #{tpu_custom_call.1} parent=1 // pred_check
      _
    $region15: #{tpu_custom_call.1} parent=1 // pred_check_branch
      %26 = sbr.rel (0) target = $region17
    $region16: #{tpu_custom_call.1} parent=1 // pred_region
      _
    $region17: #{tpu_custom_call.1} parent=1 // pred_fallthru
      _
    // Predicated region
    $region18: #{tpu_custom_call.1} parent=1 // pred_check
      _
    $region19: #{tpu_custom_call.1} parent=1 // pred_check_branch
      %28 = sbr.rel (0) target = $region21
    $region20: #{tpu_custom_call.1} parent=1 // pred_region
      _
    $region21: #{tpu_custom_call.1} parent=1 // pred_fallthru
      _
    // Predicated region
    $region22: #{tpu_custom_call.1} parent=1 // pred_check
      _
    $region23: #{tpu_custom_call.1} parent=1 // pred_check_branch
      %30 = sbr.rel (0) target = $region25
    $region24: #{tpu_custom_call.1} parent=1 // pred_region
      _
    $region25: #{tpu_custom_call.1} parent=1 // pred_fallthru
      _
    // Predicated region
    $region26: #{tpu_custom_call.1} parent=1 // pred_check
      _
    $region27: #{tpu_custom_call.1} parent=1 // pred_check_branch
      %32 = sbr.rel (0) target = $region29
    $region28: #{tpu_custom_call.1} parent=1 // pred_region
      _
    $region29: #{tpu_custom_call.1} parent=1 // pred_fallthru
      _
    // Predicated region
    $region30: #{tpu_custom_call.1} parent=1 // pred_check
      _
    $region31: #{tpu_custom_call.1} parent=1 // pred_check_branch
      %34 = sbr.rel (0) target = $region33
    $region32: #{tpu_custom_call.1} parent=1 // pred_region
      _
    $region33: #{tpu_custom_call.1} parent=1 // pred_fallthru
      _
    // Predicated region
    $region34: #{tpu_custom_call.1} parent=1 // pred_check
      _
    $region35: #{tpu_custom_call.1} parent=1 // pred_check_branch
      %36 = sbr.rel (0) target = $region37
    $region36: #{tpu_custom_call.1} parent=1 // pred_region
      _
    $region37: #{tpu_custom_call.1} parent=1 // pred_fallthru
      _
    // Predicated region
    $region38: #{tpu_custom_call.1} parent=1 // pred_check
      _
    $region39: #{tpu_custom_call.1} parent=1 // pred_check_branch
      %38 = sbr.rel (0) target = $region41
    $region40: #{tpu_custom_call.1} parent=1 // pred_region
      _
    $region41: #{tpu_custom_call.1} parent=1 // pred_fallthru
      _
    // Predicated region
    $region42: #{tpu_custom_call.1} parent=1 // pred_check
      _
    $region43: #{tpu_custom_call.1} parent=1 // pred_check_branch
      %40 = sbr.rel (0) target = $region45
    $region44: #{tpu_custom_call.1} parent=1 // pred_region
      _
    $region45: #{tpu_custom_call.1} parent=1 // pred_fallthru
      _
    // Predicated region
    $region46: #{tpu_custom_call.1} parent=1 // pred_check
      _
    $region47: #{tpu_custom_call.1} parent=1 // pred_check_branch
      %42 = sbr.rel (0) target = $region49
    $region48: #{tpu_custom_call.1} parent=1 // pred_region
      _
    $region49: #{tpu_custom_call.1} parent=1 // pred_fallthru
      _
    // Predicated region
    $region50: #{tpu_custom_call.1} parent=1 // pred_check
      _
    $region51: #{tpu_custom_call.1} parent=1 // pred_check_branch
      %44 = sbr.rel (0) target = $region53
    $region52: #{tpu_custom_call.1} parent=1 // pred_region
      _
    $region53: #{tpu_custom_call.1} parent=1 // pred_fallthru
      _
    %v46 = vld [vmem:[%s0] sm:$0xff]
    %v47 = vld [vmem:[%s0 + $0x8] sm:$0xff]
    %v48 = vld [vmem:[%s0 + $0x10] sm:$0xff]
    %v49 = vld [vmem:[%s0 + $0x18] sm:$0xff]
    %v50 = vld [vmem:[%s0 + $0x20] sm:$0xff]
    %v51 = vld [vmem:[%s0 + $0x28] sm:$0xff]
    %v52 = vld [vmem:[%s0 + $0x30] sm:$0xff]
    %v53 = vld [vmem:[%s0 + $0x38] sm:$0xff]
    %v54 = vpack.c.bf16 %v47, %v46
    %v55 = vpack.c.bf16 %v49, %v48
    %v56 = vpack.c.bf16 %v51, %v50
    %v57 = vpack.c.bf16 %v53, %v52
    %v58 = vld [vmem:[%s1] sm:$0xff]
    %v59 = vld [vmem:[%s1 + $0x8] sm:$0xff]
    %v60 = vld [vmem:[%s1 + $0x10] sm:$0xff]
    %v61 = vld [vmem:[%s1 + $0x18] sm:$0xff]
    %v62 = vld [vmem:[%s1 + $0x20] sm:$0xff]
    %v63 = vld [vmem:[%s1 + $0x28] sm:$0xff]
    %v64 = vld [vmem:[%s1 + $0x30] sm:$0xff]
    %v65 = vld [vmem:[%s1 + $0x38] sm:$0xff]
    %v66 = vld [vmem:[%s2] sm:$0x3]
    %v68 = vlaneseq
    %v69 = vshrl.u32 %v68, 7
    %v70 = vsub.s32 0, %v69
    %v71 = vrot.slane %v66, %v70
    %v72 = vlaneseq
    %v73 = vshrl.u32 %v72, 7
    %v74 = vsub.s32 1, %v73
    %v75 = vrot.slane %v66, %v74
    %v86 = vunpack.c.l.b16 %v58
    %v87 = vunpack.c.h.b16 %v58
    %v88 = vunpack.c.l.b16 %v59
    %v89 = vunpack.c.h.b16 %v59
    %v90 = vunpack.c.l.b16 %v60
    %v91 = vunpack.c.h.b16 %v60
    %v92 = vunpack.c.l.b16 %v61
    %v93 = vunpack.c.h.b16 %v61
    %v94 = vunpack.c.l.b16 %v62
    %v95 = vunpack.c.h.b16 %v62
    %v96 = vunpack.c.l.b16 %v63
    %v97 = vunpack.c.h.b16 %v63
    %v98 = vunpack.c.l.b16 %v64
    %v99 = vunpack.c.h.b16 %v64
    %v100 = vunpack.c.l.b16 %v65
    %v101 = vunpack.c.h.b16 %v65
    %v102 = vpack.c.b16 %v88, %v86
    %v103 = vpack.c.b16 %v89, %v87
    %v104 = vpack.c.b16 %v92, %v90
    %v105 = vpack.c.b16 %v93, %v91
    %v106 = vpack.c.b16 %v96, %v94
    %v107 = vpack.c.b16 %v97, %v95
    %v108 = vpack.c.b16 %v100, %v98
    %v109 = vpack.c.b16 %v101, %v99
    %vm118 = vcmask 523264
    %v120 = vsel %vm118, %v54, 0
    %v123 = vsel %vm118, %v55, 0
    %v126 = vsel %vm118, %v56, 0
    %v129 = vsel %vm118, %v57, 0
    %131 = vmatprep.subr.bf16.mxu0 %v103
    %132 = vmatpush1.bf16.msra.mxu0 %v102
    %133 = vmatprep.subr.bf16.mxu0 %v105
    %134 = vmatpush1.bf16.msra.mxu0 %v104
    %135 = vmatprep.subr.bf16.mxu0 %v107
    %136 = vmatpush1.bf16.msra.mxu0 %v106
    %137 = vmatprep.subr.bf16.mxu0 %v109
    %138 = vmatpush1.bf16.msra.mxu0 %v108
    %139 = vmatprep.subr.bf16.mxu0 0
    %140 = vmatpush1.bf16.msra.mxu0 0
    %141 = vmatprep.subr.bf16.mxu0 0
    %142 = vmatpush1.bf16.msra.mxu0 0
    %143 = vmatprep.subr.bf16.mxu0 0
    %144 = vmatpush1.bf16.msra.mxu0 0
    %145 = vmatprep.subr.bf16.mxu0 0
    %146 = vmatpush1.bf16.msra.mxu0 0
    %147 = vmatprep.subr.bf16.mxu0 0
    %148 = vmatpush1.bf16.msra.mxu0 0
    %149 = vmatprep.subr.bf16.mxu0 0
    %150 = vmatpush1.bf16.msra.mxu0 0
    %151 = vmatprep.subr.bf16.mxu0 0
    %152 = vmatpush1.bf16.msra.mxu0 0
    %153 = vmatprep.subr.bf16.mxu0 0
    %154 = vmatpush1.bf16.msra.mxu0 0
    %155 = vmatprep.subr.bf16.mxu0 0
    %156 = vmatpush1.bf16.msra.mxu0 0
    %157 = vmatprep.subr.bf16.mxu0 0
    %158 = vmatpush1.bf16.msra.mxu0 0
    %159 = vmatprep.subr.bf16.mxu0 0
    %160 = vmatpush1.bf16.msra.mxu0 0
    %161 = vmatprep.subr.bf16.mxu0 0
    %162 = vmatpush1.bf16.msra.mxu0 0
    %163 = vmatprep.mubr.bf16.mxu0 0
    %164 = vmatmul.mubr.bf16.gmra.mrb[0].mxu0 %v120
    %v165 = vpop.f32.mrb[0].mxu0
    %v166 = vadd.f32 %v71, %v165
    %v167 = vpop.f32.mrb[0].mxu0
    %v168 = vadd.f32 %v75, %v167
    %v169 = vpop.f32.mrb[0].mxu0
    %v170 = vadd.f32 %v71, %v169
    %v171 = vpop.f32.mrb[0].mxu0
    %v172 = vadd.f32 %v75, %v171
    %173 = vmatprep.mubr.bf16.mxu0 0
    %174 = vmatmul.mubr.bf16.gmra.mrb[0].mxu0 %v123
    %v175 = vpop.f32.mrb[0].mxu0
    %v176 = vadd.f32 %v71, %v175
    %v177 = vpop.f32.mrb[0].mxu0
    %v178 = vadd.f32 %v75, %v177
    %v179 = vpop.f32.mrb[0].mxu0
    %v180 = vadd.f32 %v71, %v179
    %v181 = vpop.f32.mrb[0].mxu0
    %v182 = vadd.f32 %v75, %v181
    %183 = vmatprep.mubr.bf16.mxu0 0
    %184 = vmatmul.mubr.bf16.gmra.mrb[0].mxu0 %v126
    %v185 = vpop.f32.mrb[0].mxu0
    %v186 = vadd.f32 %v71, %v185
    %v187 = vpop.f32.mrb[0].mxu0
    %v188 = vadd.f32 %v75, %v187
    %v189 = vpop.f32.mrb[0].mxu0
    %v190 = vadd.f32 %v71, %v189
    %v191 = vpop.f32.mrb[0].mxu0
    %v192 = vadd.f32 %v75, %v191
    %193 = vmatprep.mubr.bf16.mxu0 0
    %194 = vmatmul.mubr.bf16.gmra.mrb[0].mxu0 %v129
    %v195 = vpop.f32.mrb[0].mxu0
    %v196 = vadd.f32 %v71, %v195
    %v197 = vpop.f32.mrb[0].mxu0
    %v198 = vadd.f32 %v75, %v197
    %v199 = vpop.f32.mrb[0].mxu0
    %v200 = vadd.f32 %v71, %v199
    %v201 = vpop.f32.mrb[0].mxu0
    %v202 = vadd.f32 %v75, %v201
    %203 = vdwg.mxu0
    %v204 = vmul.f32 %v166, 0.25
    %v205 = vmul.f32 %v170, 0.25
    %v206 = vmul.f32 %v176, 0.25
    %v207 = vmul.f32 %v180, 0.25
    %v208 = vmul.f32 %v186, 0.25
    %v209 = vmul.f32 %v190, 0.25
    %v210 = vmul.f32 %v196, 0.25
    %v211 = vmul.f32 %v200, 0.25
    %v212 = vpack.c.bf16 %v205, %v204
    %v213 = vpack.c.bf16 %v207, %v206
    %v214 = vpack.c.bf16 %v209, %v208
    %v215 = vpack.c.bf16 %v211, %v210
    %v220 = vunpack.c.l.b16 %v212
    %v221 = vunpack.c.h.b16 %v212
    %v222 = vunpack.c.l.b16 %v213
    %v223 = vunpack.c.h.b16 %v213
    %v224 = vunpack.c.l.b16 %v214
    %v225 = vunpack.c.h.b16 %v214
    %v226 = vunpack.c.l.b16 %v215
    %v227 = vunpack.c.h.b16 %v215
    %v228 = vpack.c.b16 %v220, %v220
    %v229 = vpack.c.b16 %v221, %v221
    %v230 = vpack.c.b16 %v222, %v222
    %v231 = vpack.c.b16 %v223, %v223
    %v232 = vpack.c.b16 %v224, %v224
    %v233 = vpack.c.b16 %v225, %v225
    %v234 = vpack.c.b16 %v226, %v226
    %v235 = vpack.c.b16 %v227, %v227
    %v236 = vpack.c.bf16 %v170, %v166
    %v237 = vpack.c.bf16 %v180, %v176
    %v238 = vpack.c.bf16 %v190, %v186
    %v239 = vpack.c.bf16 %v200, %v196
    %v244 = vunpack.c.l.b16 %v236
    %v245 = vunpack.c.h.b16 %v236
    %v246 = vunpack.c.l.b16 %v237
    %v247 = vunpack.c.h.b16 %v237
    %v248 = vunpack.c.l.b16 %v238
    %v249 = vunpack.c.h.b16 %v238
    %v250 = vunpack.c.l.b16 %v239
    %v251 = vunpack.c.h.b16 %v239
    %v252 = vpack.c.bf16 %v172, %v168
    %v253 = vpack.c.bf16 %v182, %v178
    %v254 = vpack.c.bf16 %v192, %v188
    %v255 = vpack.c.bf16 %v202, %v198
    %v260 = vunpack.c.l.b16 %v252
    %v261 = vunpack.c.h.b16 %v252
    %v262 = vunpack.c.l.b16 %v253
    %v263 = vunpack.c.h.b16 %v253
    %v264 = vunpack.c.l.b16 %v254
    %v265 = vunpack.c.h.b16 %v254
    %v266 = vunpack.c.l.b16 %v255
    %v267 = vunpack.c.h.b16 %v255
    %v268 = vpack.c.b16 %v260, %v260
    %v269 = vpack.c.b16 %v261, %v261
    %v270 = vpack.c.b16 %v262, %v262
    %v271 = vpack.c.b16 %v263, %v263
    %v272 = vpack.c.b16 %v264, %v264
    %v273 = vpack.c.b16 %v265, %v265
    %v274 = vpack.c.b16 %v266, %v266
    %v275 = vpack.c.b16 %v267, %v267
    %v276 = vpack.c.b16 %v244, %v244
    %277 = vrot.lane.b32.xlu0 %v276, 64
    %v278 = vpop.permute.xlu0 %277
    %vm279 = vcmask 130048
    %v281 = vsel %vm279, %v228, 0
    %v284 = vsel %vm279, %v278, 0
    %286 = vmatprep.subr.bf16.mxu0 0
    %287 = vmatpush1.bf16.xpose.msra.mxu0 %v284
    %288 = vmatprep.subr.bf16.mxu0 0
    %289 = vmatpush1.bf16.xpose.msra.mxu0 0
    %290 = vmatprep.subr.bf16.mxu0 0
    %291 = vmatpush1.bf16.xpose.msra.mxu0 0
    %292 = vmatprep.subr.bf16.mxu0 0
    %293 = vmatpush1.bf16.xpose.msra.mxu0 0
    %294 = vmatprep.subr.bf16.mxu0 0
    %295 = vmatpush1.bf16.xpose.msra.mxu0 0
    %296 = vmatprep.subr.bf16.mxu0 0
    %297 = vmatpush1.bf16.xpose.msra.mxu0 0
    %298 = vmatprep.subr.bf16.mxu0 0
    %299 = vmatpush1.bf16.xpose.msra.mxu0 0
    %300 = vmatprep.subr.bf16.mxu0 0
    %301 = vmatpush1.bf16.xpose.msra.mxu0 0
    %302 = vmatprep.subr.bf16.mxu0 0
    %303 = vmatpush1.bf16.xpose.msra.mxu0 0
    %304 = vmatprep.subr.bf16.mxu0 0
    %305 = vmatpush1.bf16.xpose.msra.mxu0 0
    %306 = vmatprep.subr.bf16.mxu0 0
    %307 = vmatpush1.bf16.xpose.msra.mxu0 0
    %308 = vmatprep.subr.bf16.mxu0 0
    %309 = vmatpush1.bf16.xpose.msra.mxu0 0
    %310 = vmatprep.subr.bf16.mxu0 0
    %311 = vmatpush1.bf16.xpose.msra.mxu0 0
    %312 = vmatprep.subr.bf16.mxu0 0
    %313 = vmatpush1.bf16.xpose.msra.mxu0 0
    %314 = vmatprep.subr.bf16.mxu0 0
    %315 = vmatpush1.bf16.xpose.msra.mxu0 0
    %316 = vmatprep.subr.bf16.mxu0 0
    %317 = vmatpush1.bf16.xpose.msra.mxu0 0
    %318 = vmatprep.mubr.bf16.mxu0 0
    %319 = vmatmul.mubr.bf16.gmra.mrb[0].mxu0 %v281
    %v320 = vpop.f32.mrb[0].mxu0
    %v321 = vadd.f32 0.0, %v320
    %v322 = vpop.f32.mrb[0].mxu0
    %v323 = vpop.f32.mrb[0].mxu0
    %v324 = vpop.f32.mrb[0].mxu0
    %325 = vdwg.mxu0
    %v326 = vpack.c.b16 %v245, %v245
    %327 = vrot.lane.b32.xlu0 %v326, 64
    %v328 = vpop.permute.xlu0 %327
    %v330 = vsel %vm279, %v229, 0
    %v333 = vsel %vm279, %v328, 0
    %335 = vmatprep.subr.bf16.mxu0 0
    %336 = vmatpush1.bf16.xpose.msra.mxu0 %v333
    %337 = vmatprep.subr.bf16.mxu0 0
    %338 = vmatpush1.bf16.xpose.msra.mxu0 0
    %339 = vmatprep.subr.bf16.mxu0 0
    %340 = vmatpush1.bf16.xpose.msra.mxu0 0
    %341 = vmatprep.subr.bf16.mxu0 0
    %342 = vmatpush1.bf16.xpose.msra.mxu0 0
    %343 = vmatprep.subr.bf16.mxu0 0
    %344 = vmatpush1.bf16.xpose.msra.mxu0 0
    %345 = vmatprep.subr.bf16.mxu0 0
    %346 = vmatpush1.bf16.xpose.msra.mxu0 0
    %347 = vmatprep.subr.bf16.mxu0 0
    %348 = vmatpush1.bf16.xpose.msra.mxu0 0
    %349 = vmatprep.subr.bf16.mxu0 0
    %350 = vmatpush1.bf16.xpose.msra.mxu0 0
    %351 = vmatprep.subr.bf16.mxu0 0
    %352 = vmatpush1.bf16.xpose.msra.mxu0 0
    %353 = vmatprep.subr.bf16.mxu0 0
    %354 = vmatpush1.bf16.xpose.msra.mxu0 0
    %355 = vmatprep.subr.bf16.mxu0 0
    %356 = vmatpush1.bf16.xpose.msra.mxu0 0
    %357 = vmatprep.subr.bf16.mxu0 0
    %358 = vmatpush1.bf16.xpose.msra.mxu0 0
    %359 = vmatprep.subr.bf16.mxu0 0
    %360 = vmatpush1.bf16.xpose.msra.mxu0 0
    %361 = vmatprep.subr.bf16.mxu0 0
    %362 = vmatpush1.bf16.xpose.msra.mxu0 0
    %363 = vmatprep.subr.bf16.mxu0 0
    %364 = vmatpush1.bf16.xpose.msra.mxu0 0
    %365 = vmatprep.subr.bf16.mxu0 0
    %366 = vmatpush1.bf16.xpose.msra.mxu0 0
    %367 = vmatprep.mubr.bf16.mxu0 0
    %368 = vmatmul.mubr.bf16.gmra.mrb[0].mxu0 %v330
    %v369 = vpop.f32.mrb[0].mxu0
    %v370 = vadd.f32 0.0, %v369
    %v371 = vpop.f32.mrb[0].mxu0
    %v372 = vpop.f32.mrb[0].mxu0
    %v373 = vpop.f32.mrb[0].mxu0
    %374 = vdwg.mxu0
    %v375 = vpack.c.b16 %v246, %v246
    %376 = vrot.lane.b32.xlu0 %v375, 64
    %v377 = vpop.permute.xlu0 %376
    %v379 = vsel %vm279, %v230, 0
    %v382 = vsel %vm279, %v377, 0
    %384 = vmatprep.subr.bf16.mxu0 0
    %385 = vmatpush1.bf16.xpose.msra.mxu0 %v382
    %386 = vmatprep.subr.bf16.mxu0 0
    %387 = vmatpush1.bf16.xpose.msra.mxu0 0
    %388 = vmatprep.subr.bf16.mxu0 0
    %389 = vmatpush1.bf16.xpose.msra.mxu0 0
    %390 = vmatprep.subr.bf16.mxu0 0
    %391 = vmatpush1.bf16.xpose.msra.mxu0 0
    %392 = vmatprep.subr.bf16.mxu0 0
    %393 = vmatpush1.bf16.xpose.msra.mxu0 0
    %394 = vmatprep.subr.bf16.mxu0 0
    %395 = vmatpush1.bf16.xpose.msra.mxu0 0
    %396 = vmatprep.subr.bf16.mxu0 0
    %397 = vmatpush1.bf16.xpose.msra.mxu0 0
    %398 = vmatprep.subr.bf16.mxu0 0
    %399 = vmatpush1.bf16.xpose.msra.mxu0 0
    %400 = vmatprep.subr.bf16.mxu0 0
    %401 = vmatpush1.bf16.xpose.msra.mxu0 0
    %402 = vmatprep.subr.bf16.mxu0 0
    %403 = vmatpush1.bf16.xpose.msra.mxu0 0
    %404 = vmatprep.subr.bf16.mxu0 0
    %405 = vmatpush1.bf16.xpose.msra.mxu0 0
    %406 = vmatprep.subr.bf16.mxu0 0
    %407 = vmatpush1.bf16.xpose.msra.mxu0 0
    %408 = vmatprep.subr.bf16.mxu0 0
    %409 = vmatpush1.bf16.xpose.msra.mxu0 0
    %410 = vmatprep.subr.bf16.mxu0 0
    %411 = vmatpush1.bf16.xpose.msra.mxu0 0
    %412 = vmatprep.subr.bf16.mxu0 0
    %413 = vmatpush1.bf16.xpose.msra.mxu0 0
    %414 = vmatprep.subr.bf16.mxu0 0
    %415 = vmatpush1.bf16.xpose.msra.mxu0 0
    %416 = vmatprep.mubr.bf16.mxu0 0
    %417 = vmatmul.mubr.bf16.gmra.mrb[0].mxu0 %v379
    %v418 = vpop.f32.mrb[0].mxu0
    %v419 = vadd.f32 0.0, %v418
    %v420 = vpop.f32.mrb[0].mxu0
    %v421 = vpop.f32.mrb[0].mxu0
    %v422 = vpop.f32.mrb[0].mxu0
    %423 = vdwg.mxu0
    %v424 = vpack.c.b16 %v247, %v247
    %425 = vrot.lane.b32.xlu0 %v424, 64
    %v426 = vpop.permute.xlu0 %425
    %v428 = vsel %vm279, %v231, 0
    %v431 = vsel %vm279, %v426, 0
    %433 = vmatprep.subr.bf16.mxu0 0
    %434 = vmatpush1.bf16.xpose.msra.mxu0 %v431
    %435 = vmatprep.subr.bf16.mxu0 0
    %436 = vmatpush1.bf16.xpose.msra.mxu0 0
    %437 = vmatprep.subr.bf16.mxu0 0
    %438 = vmatpush1.bf16.xpose.msra.mxu0 0
    %439 = vmatprep.subr.bf16.mxu0 0
    %440 = vmatpush1.bf16.xpose.msra.mxu0 0
    %441 = vmatprep.subr.bf16.mxu0 0
    %442 = vmatpush1.bf16.xpose.msra.mxu0 0
    %443 = vmatprep.subr.bf16.mxu0 0
    %444 = vmatpush1.bf16.xpose.msra.mxu0 0
    %445 = vmatprep.subr.bf16.mxu0 0
    %446 = vmatpush1.bf16.xpose.msra.mxu0 0
    %447 = vmatprep.subr.bf16.mxu0 0
    %448 = vmatpush1.bf16.xpose.msra.mxu0 0
    %449 = vmatprep.subr.bf16.mxu0 0
    %450 = vmatpush1.bf16.xpose.msra.mxu0 0
    %451 = vmatprep.subr.bf16.mxu0 0
    %452 = vmatpush1.bf16.xpose.msra.mxu0 0
    %453 = vmatprep.subr.bf16.mxu0 0
    %454 = vmatpush1.bf16.xpose.msra.mxu0 0
    %455 = vmatprep.subr.bf16.mxu0 0
    %456 = vmatpush1.bf16.xpose.msra.mxu0 0
    %457 = vmatprep.subr.bf16.mxu0 0
    %458 = vmatpush1.bf16.xpose.msra.mxu0 0
    %459 = vmatprep.subr.bf16.mxu0 0
    %460 = vmatpush1.bf16.xpose.msra.mxu0 0
    %461 = vmatprep.subr.bf16.mxu0 0
    %462 = vmatpush1.bf16.xpose.msra.mxu0 0
    %463 = vmatprep.subr.bf16.mxu0 0
    %464 = vmatpush1.bf16.xpose.msra.mxu0 0
    %465 = vmatprep.mubr.bf16.mxu0 0
    %466 = vmatmul.mubr.bf16.gmra.mrb[0].mxu0 %v428
    %v467 = vpop.f32.mrb[0].mxu0
    %v468 = vadd.f32 0.0, %v467
    %v469 = vpop.f32.mrb[0].mxu0
    %v470 = vpop.f32.mrb[0].mxu0
    %v471 = vpop.f32.mrb[0].mxu0
    %472 = vdwg.mxu0
    %v473 = vpack.c.b16 %v248, %v248
    %474 = vrot.lane.b32.xlu0 %v473, 64
    %v475 = vpop.permute.xlu0 %474
    %v477 = vsel %vm279, %v232, 0
    %v480 = vsel %vm279, %v475, 0
    %482 = vmatprep.subr.bf16.mxu0 0
    %483 = vmatpush1.bf16.xpose.msra.mxu0 %v480
    %484 = vmatprep.subr.bf16.mxu0 0
    %485 = vmatpush1.bf16.xpose.msra.mxu0 0
    %486 = vmatprep.subr.bf16.mxu0 0
    %487 = vmatpush1.bf16.xpose.msra.mxu0 0
    %488 = vmatprep.subr.bf16.mxu0 0
    %489 = vmatpush1.bf16.xpose.msra.mxu0 0
    %490 = vmatprep.subr.bf16.mxu0 0
    %491 = vmatpush1.bf16.xpose.msra.mxu0 0
    %492 = vmatprep.subr.bf16.mxu0 0
    %493 = vmatpush1.bf16.xpose.msra.mxu0 0
    %494 = vmatprep.subr.bf16.mxu0 0
    %495 = vmatpush1.bf16.xpose.msra.mxu0 0
    %496 = vmatprep.subr.bf16.mxu0 0
    %497 = vmatpush1.bf16.xpose.msra.mxu0 0
    %498 = vmatprep.subr.bf16.mxu0 0
    %499 = vmatpush1.bf16.xpose.msra.mxu0 0
    %500 = vmatprep.subr.bf16.mxu0 0
    %501 = vmatpush1.bf16.xpose.msra.mxu0 0
    %502 = vmatprep.subr.bf16.mxu0 0
    %503 = vmatpush1.bf16.xpose.msra.mxu0 0
    %504 = vmatprep.subr.bf16.mxu0 0
    %505 = vmatpush1.bf16.xpose.msra.mxu0 0
    %506 = vmatprep.subr.bf16.mxu0 0
    %507 = vmatpush1.bf16.xpose.msra.mxu0 0
    %508 = vmatprep.subr.bf16.mxu0 0
    %509 = vmatpush1.bf16.xpose.msra.mxu0 0
    %510 = vmatprep.subr.bf16.mxu0 0
    %511 = vmatpush1.bf16.xpose.msra.mxu0 0
    %512 = vmatprep.subr.bf16.mxu0 0
    %513 = vmatpush1.bf16.xpose.msra.mxu0 0
    %514 = vmatprep.mubr.bf16.mxu0 0
    %515 = vmatmul.mubr.bf16.gmra.mrb[0].mxu0 %v477
    %v516 = vpop.f32.mrb[0].mxu0
    %v517 = vadd.f32 0.0, %v516
    %v518 = vpop.f32.mrb[0].mxu0
    %v519 = vpop.f32.mrb[0].mxu0
    %v520 = vpop.f32.mrb[0].mxu0
    %521 = vdwg.mxu0
    %v522 = vpack.c.b16 %v249, %v249
    %523 = vrot.lane.b32.xlu0 %v522, 64
    %v524 = vpop.permute.xlu0 %523
    %v526 = vsel %vm279, %v233, 0
    %v529 = vsel %vm279, %v524, 0
    %531 = vmatprep.subr.bf16.mxu0 0
    %532 = vmatpush1.bf16.xpose.msra.mxu0 %v529
    %533 = vmatprep.subr.bf16.mxu0 0
    %534 = vmatpush1.bf16.xpose.msra.mxu0 0
    %535 = vmatprep.subr.bf16.mxu0 0
    %536 = vmatpush1.bf16.xpose.msra.mxu0 0
    %537 = vmatprep.subr.bf16.mxu0 0
    %538 = vmatpush1.bf16.xpose.msra.mxu0 0
    %539 = vmatprep.subr.bf16.mxu0 0
    %540 = vmatpush1.bf16.xpose.msra.mxu0 0
    %541 = vmatprep.subr.bf16.mxu0 0
    %542 = vmatpush1.bf16.xpose.msra.mxu0 0
    %543 = vmatprep.subr.bf16.mxu0 0
    %544 = vmatpush1.bf16.xpose.msra.mxu0 0
    %545 = vmatprep.subr.bf16.mxu0 0
    %546 = vmatpush1.bf16.xpose.msra.mxu0 0
    %547 = vmatprep.subr.bf16.mxu0 0
    %548 = vmatpush1.bf16.xpose.msra.mxu0 0
    %549 = vmatprep.subr.bf16.mxu0 0
    %550 = vmatpush1.bf16.xpose.msra.mxu0 0
    %551 = vmatprep.subr.bf16.mxu0 0
    %552 = vmatpush1.bf16.xpose.msra.mxu0 0
    %553 = vmatprep.subr.bf16.mxu0 0
    %554 = vmatpush1.bf16.xpose.msra.mxu0 0
    %555 = vmatprep.subr.bf16.mxu0 0
    %556 = vmatpush1.bf16.xpose.msra.mxu0 0
    %557 = vmatprep.subr.bf16.mxu0 0
    %558 = vmatpush1.bf16.xpose.msra.mxu0 0
    %559 = vmatprep.subr.bf16.mxu0 0
    %560 = vmatpush1.bf16.xpose.msra.mxu0 0
    %561 = vmatprep.subr.bf16.mxu0 0
    %562 = vmatpush1.bf16.xpose.msra.mxu0 0
    %563 = vmatprep.mubr.bf16.mxu0 0
    %564 = vmatmul.mubr.bf16.gmra.mrb[0].mxu0 %v526
    %v565 = vpop.f32.mrb[0].mxu0
    %v566 = vadd.f32 0.0, %v565
    %v567 = vpop.f32.mrb[0].mxu0
    %v568 = vpop.f32.mrb[0].mxu0
    %v569 = vpop.f32.mrb[0].mxu0
    %570 = vdwg.mxu0
    %v571 = vpack.c.b16 %v250, %v250
    %572 = vrot.lane.b32.xlu0 %v571, 64
    %v573 = vpop.permute.xlu0 %572
    %v575 = vsel %vm279, %v234, 0
    %v578 = vsel %vm279, %v573, 0
    %580 = vmatprep.subr.bf16.mxu0 0
    %581 = vmatpush1.bf16.xpose.msra.mxu0 %v578
    %582 = vmatprep.subr.bf16.mxu0 0
    %583 = vmatpush1.bf16.xpose.msra.mxu0 0
    %584 = vmatprep.subr.bf16.mxu0 0
    %585 = vmatpush1.bf16.xpose.msra.mxu0 0
    %586 = vmatprep.subr.bf16.mxu0 0
    %587 = vmatpush1.bf16.xpose.msra.mxu0 0
    %588 = vmatprep.subr.bf16.mxu0 0
    %589 = vmatpush1.bf16.xpose.msra.mxu0 0
    %590 = vmatprep.subr.bf16.mxu0 0
    %591 = vmatpush1.bf16.xpose.msra.mxu0 0
    %592 = vmatprep.subr.bf16.mxu0 0
    %593 = vmatpush1.bf16.xpose.msra.mxu0 0
    %594 = vmatprep.subr.bf16.mxu0 0
    %595 = vmatpush1.bf16.xpose.msra.mxu0 0
    %596 = vmatprep.subr.bf16.mxu0 0
    %597 = vmatpush1.bf16.xpose.msra.mxu0 0
    %598 = vmatprep.subr.bf16.mxu0 0
    %599 = vmatpush1.bf16.xpose.msra.mxu0 0
    %600 = vmatprep.subr.bf16.mxu0 0
    %601 = vmatpush1.bf16.xpose.msra.mxu0 0
    %602 = vmatprep.subr.bf16.mxu0 0
    %603 = vmatpush1.bf16.xpose.msra.mxu0 0
    %604 = vmatprep.subr.bf16.mxu0 0
    %605 = vmatpush1.bf16.xpose.msra.mxu0 0
    %606 = vmatprep.subr.bf16.mxu0 0
    %607 = vmatpush1.bf16.xpose.msra.mxu0 0
    %608 = vmatprep.subr.bf16.mxu0 0
    %609 = vmatpush1.bf16.xpose.msra.mxu0 0
    %610 = vmatprep.subr.bf16.mxu0 0
    %611 = vmatpush1.bf16.xpose.msra.mxu0 0
    %612 = vmatprep.mubr.bf16.mxu0 0
    %613 = vmatmul.mubr.bf16.gmra.mrb[0].mxu0 %v575
    %v614 = vpop.f32.mrb[0].mxu0
    %v615 = vadd.f32 0.0, %v614
    %v616 = vpop.f32.mrb[0].mxu0
    %v617 = vpop.f32.mrb[0].mxu0
    %v618 = vpop.f32.mrb[0].mxu0
    %619 = vdwg.mxu0
    %v620 = vpack.c.b16 %v251, %v251
    %621 = vrot.lane.b32.xlu0 %v620, 64
    %v622 = vpop.permute.xlu0 %621
    %v624 = vsel %vm279, %v235, 0
    %v627 = vsel %vm279, %v622, 0
    %629 = vmatprep.subr.bf16.mxu0 0
    %630 = vmatpush1.bf16.xpose.msra.mxu0 %v627
    %631 = vmatprep.subr.bf16.mxu0 0
    %632 = vmatpush1.bf16.xpose.msra.mxu0 0
    %633 = vmatprep.subr.bf16.mxu0 0
    %634 = vmatpush1.bf16.xpose.msra.mxu0 0
    %635 = vmatprep.subr.bf16.mxu0 0
    %636 = vmatpush1.bf16.xpose.msra.mxu0 0
    %637 = vmatprep.subr.bf16.mxu0 0
    %638 = vmatpush1.bf16.xpose.msra.mxu0 0
    %639 = vmatprep.subr.bf16.mxu0 0
    %640 = vmatpush1.bf16.xpose.msra.mxu0 0
    %641 = vmatprep.subr.bf16.mxu0 0
    %642 = vmatpush1.bf16.xpose.msra.mxu0 0
    %643 = vmatprep.subr.bf16.mxu0 0
    %644 = vmatpush1.bf16.xpose.msra.mxu0 0
    %645 = vmatprep.subr.bf16.mxu0 0
    %646 = vmatpush1.bf16.xpose.msra.mxu0 0
    %647 = vmatprep.subr.bf16.mxu0 0
    %648 = vmatpush1.bf16.xpose.msra.mxu0 0
    %649 = vmatprep.subr.bf16.mxu0 0
    %650 = vmatpush1.bf16.xpose.msra.mxu0 0
    %651 = vmatprep.subr.bf16.mxu0 0
    %652 = vmatpush1.bf16.xpose.msra.mxu0 0
    %653 = vmatprep.subr.bf16.mxu0 0
    %654 = vmatpush1.bf16.xpose.msra.mxu0 0
    %655 = vmatprep.subr.bf16.mxu0 0
    %656 = vmatpush1.bf16.xpose.msra.mxu0 0
    %657 = vmatprep.subr.bf16.mxu0 0
    %658 = vmatpush1.bf16.xpose.msra.mxu0 0
    %659 = vmatprep.subr.bf16.mxu0 0
    %660 = vmatpush1.bf16.xpose.msra.mxu0 0
    %661 = vmatprep.mubr.bf16.mxu0 0
    %662 = vmatmul.mubr.bf16.gmra.mrb[0].mxu0 %v624
    %v663 = vpop.f32.mrb[0].mxu0
    %v664 = vadd.f32 0.0, %v663
    %v665 = vpop.f32.mrb[0].mxu0
    %v666 = vpop.f32.mrb[0].mxu0
    %v667 = vpop.f32.mrb[0].mxu0
    %668 = vdwg.mxu0
    %vm669 = vcmask 64512
    %v670 = vsel %vm669, %v321, -inf
    %671 = vmax.xlane.f32.xlu0 %v670
    %v672 = vpop.xlane.xlu0 %671
    %v673 = vsel %vm669, %v370, -inf
    %674 = vmax.xlane.f32.xlu0 %v673
    %v675 = vpop.xlane.xlu0 %674
    %v676 = vsel %vm669, %v419, -inf
    %677 = vmax.xlane.f32.xlu0 %v676
    %v678 = vpop.xlane.xlu0 %677
    %v679 = vsel %vm669, %v468, -inf
    %680 = vmax.xlane.f32.xlu0 %v679
    %v681 = vpop.xlane.xlu0 %680
    %v682 = vsel %vm669, %v517, -inf
    %683 = vmax.xlane.f32.xlu0 %v682
    %v684 = vpop.xlane.xlu0 %683
    %v685 = vsel %vm669, %v566, -inf
    %686 = vmax.xlane.f32.xlu0 %v685
    %v687 = vpop.xlane.xlu0 %686
    %v688 = vsel %vm669, %v615, -inf
    %689 = vmax.xlane.f32.xlu0 %v688
    %v690 = vpop.xlane.xlu0 %689
    %v691 = vsel %vm669, %v664, -inf
    %692 = vmax.xlane.f32.xlu0 %v691
    %v693 = vpop.xlane.xlu0 %692
    %v694 = vsub.f32 %v321, %v672
    %v695 = vsub.f32 %v370, %v675
    %v696 = vsub.f32 %v419, %v678
    %v697 = vsub.f32 %v468, %v681
    %v698 = vsub.f32 %v517, %v684
    %v699 = vsub.f32 %v566, %v687
    %v700 = vsub.f32 %v615, %v690
    %v701 = vsub.f32 %v664, %v693
    %v702 = vmul.f32 %v694, 1.442695
    %v703 = vpow.pop %v702
    %v704 = vmul.f32 %v695, 1.442695
    %v705 = vpow.pop %v704
    %v706 = vmul.f32 %v696, 1.442695
    %v707 = vpow.pop %v706
    %v708 = vmul.f32 %v697, 1.442695
    %v709 = vpow.pop %v708
    %v710 = vmul.f32 %v698, 1.442695
    %v711 = vpow.pop %v710
    %v712 = vmul.f32 %v699, 1.442695
    %v713 = vpow.pop %v712
    %v714 = vmul.f32 %v700, 1.442695
    %v715 = vpow.pop %v714
    %v716 = vmul.f32 %v701, 1.442695
    %v717 = vpow.pop %v716
    %v718 = vsel %vm669, %v703, 0.0
    %719 = vadd.xlane.f32.xlu0 %v718
    %v720 = vpop.xlane.xlu0 %719
    %v721 = vsel %vm669, %v705, 0.0
    %722 = vadd.xlane.f32.xlu0 %v721
    %v723 = vpop.xlane.xlu0 %722
    %v724 = vsel %vm669, %v707, 0.0
    %725 = vadd.xlane.f32.xlu0 %v724
    %v726 = vpop.xlane.xlu0 %725
    %v727 = vsel %vm669, %v709, 0.0
    %728 = vadd.xlane.f32.xlu0 %v727
    %v729 = vpop.xlane.xlu0 %728
    %v730 = vsel %vm669, %v711, 0.0
    %731 = vadd.xlane.f32.xlu0 %v730
    %v732 = vpop.xlane.xlu0 %731
    %v733 = vsel %vm669, %v713, 0.0
    %734 = vadd.xlane.f32.xlu0 %v733
    %v735 = vpop.xlane.xlu0 %734
    %v736 = vsel %vm669, %v715, 0.0
    %737 = vadd.xlane.f32.xlu0 %v736
    %v738 = vpop.xlane.xlu0 %737
    %v739 = vsel %vm669, %v717, 0.0
    %740 = vadd.xlane.f32.xlu0 %v739
    %v741 = vpop.xlane.xlu0 %740
    %v742 = vrcp.pop %v720
    %v743 = vrcp.pop %v723
    %v744 = vrcp.pop %v726
    %v745 = vrcp.pop %v729
    %v746 = vrcp.pop %v732
    %v747 = vrcp.pop %v735
    %v748 = vrcp.pop %v738
    %v749 = vrcp.pop %v741
    %v750 = vmul.f32 %v703, %v742
    %v751 = vmul.f32 %v705, %v743
    %v752 = vmul.f32 %v707, %v744
    %v753 = vmul.f32 %v709, %v745
    %v754 = vmul.f32 %v711, %v746
    %v755 = vmul.f32 %v713, %v747
    %v756 = vmul.f32 %v715, %v748
    %v757 = vmul.f32 %v717, %v749
    %v758 = vpack.c.bf16 %v750, %v750
    %v759 = vpack.c.bf16 %v751, %v751
    %v760 = vpack.c.bf16 %v752, %v752
    %v761 = vpack.c.bf16 %v753, %v753
    %v762 = vpack.c.bf16 %v754, %v754
    %v763 = vpack.c.bf16 %v755, %v755
    %v764 = vpack.c.bf16 %v756, %v756
    %v765 = vpack.c.bf16 %v757, %v757
    %v767 = vsel %vm669, %v758, 0
    %vm769 = vcmask 1043456
    %v771 = vsel %vm769, %v268, 0
    %773 = vmatprep.subr.bf16.mxu0 0
    %774 = vmatpush1.bf16.msra.mxu0 %v771
    %775 = vmatprep.subr.bf16.mxu0 0
    %776 = vmatpush1.bf16.msra.mxu0 0
    %777 = vmatprep.subr.bf16.mxu0 0
    %778 = vmatpush1.bf16.msra.mxu0 0
    %779 = vmatprep.subr.bf16.mxu0 0
    %780 = vmatpush1.bf16.msra.mxu0 0
    %781 = vmatprep.subr.bf16.mxu0 0
    %782 = vmatpush1.bf16.msra.mxu0 0
    %783 = vmatprep.subr.bf16.mxu0 0
    %784 = vmatpush1.bf16.msra.mxu0 0
    %785 = vmatprep.subr.bf16.mxu0 0
    %786 = vmatpush1.bf16.msra.mxu0 0
    %787 = vmatprep.subr.bf16.mxu0 0
    %788 = vmatpush1.bf16.msra.mxu0 0
    %789 = vmatprep.subr.bf16.mxu0 0
    %790 = vmatpush1.bf16.msra.mxu0 0
    %791 = vmatprep.subr.bf16.mxu0 0
    %792 = vmatpush1.bf16.msra.mxu0 0
    %793 = vmatprep.subr.bf16.mxu0 0
    %794 = vmatpush1.bf16.msra.mxu0 0
    %795 = vmatprep.subr.bf16.mxu0 0
    %796 = vmatpush1.bf16.msra.mxu0 0
    %797 = vmatprep.subr.bf16.mxu0 0
    %798 = vmatpush1.bf16.msra.mxu0 0
    %799 = vmatprep.subr.bf16.mxu0 0
    %800 = vmatpush1.bf16.msra.mxu0 0
    %801 = vmatprep.subr.bf16.mxu0 0
    %802 = vmatpush1.bf16.msra.mxu0 0
    %803 = vmatprep.subr.bf16.mxu0 0
    %804 = vmatpush1.bf16.msra.mxu0 0
    %805 = vmatprep.mubr.bf16.mxu0 0
    %806 = vmatmul.mubr.bf16.gmra.mrb[0].mxu0 %v767
    %v807 = vpop.f32.mrb[0].mxu0
    %v808 = vadd.f32 0.0, %v807
    %v809 = vpop.f32.mrb[0].mxu0
    %v810 = vpop.f32.mrb[0].mxu0
    %v811 = vpop.f32.mrb[0].mxu0
    %812 = vdwg.mxu0
    %v814 = vsel %vm669, %v759, 0
    %v817 = vsel %vm769, %v269, 0
    %819 = vmatprep.subr.bf16.mxu0 0
    %820 = vmatpush1.bf16.msra.mxu0 %v817
    %821 = vmatprep.subr.bf16.mxu0 0
    %822 = vmatpush1.bf16.msra.mxu0 0
    %823 = vmatprep.subr.bf16.mxu0 0
    %824 = vmatpush1.bf16.msra.mxu0 0
    %825 = vmatprep.subr.bf16.mxu0 0
    %826 = vmatpush1.bf16.msra.mxu0 0
    %827 = vmatprep.subr.bf16.mxu0 0
    %828 = vmatpush1.bf16.msra.mxu0 0
    %829 = vmatprep.subr.bf16.mxu0 0
    %830 = vmatpush1.bf16.msra.mxu0 0
    %831 = vmatprep.subr.bf16.mxu0 0
    %832 = vmatpush1.bf16.msra.mxu0 0
    %833 = vmatprep.subr.bf16.mxu0 0
    %834 = vmatpush1.bf16.msra.mxu0 0
    %835 = vmatprep.subr.bf16.mxu0 0
    %836 = vmatpush1.bf16.msra.mxu0 0
    %837 = vmatprep.subr.bf16.mxu0 0
    %838 = vmatpush1.bf16.msra.mxu0 0
    %839 = vmatprep.subr.bf16.mxu0 0
    %840 = vmatpush1.bf16.msra.mxu0 0
    %841 = vmatprep.subr.bf16.mxu0 0
    %842 = vmatpush1.bf16.msra.mxu0 0
    %843 = vmatprep.subr.bf16.mxu0 0
    %844 = vmatpush1.bf16.msra.mxu0 0
    %845 = vmatprep.subr.bf16.mxu0 0
    %846 = vmatpush1.bf16.msra.mxu0 0
    %847 = vmatprep.subr.bf16.mxu0 0
    %848 = vmatpush1.bf16.msra.mxu0 0
    %849 = vmatprep.subr.bf16.mxu0 0
    %850 = vmatpush1.bf16.msra.mxu0 0
    %851 = vmatprep.mubr.bf16.mxu0 0
    %852 = vmatmul.mubr.bf16.gmra.mrb[0].mxu0 %v814
    %v853 = vpop.f32.mrb[0].mxu0
    %v854 = vadd.f32 0.0, %v853
    %v855 = vpop.f32.mrb[0].mxu0
    %v856 = vpop.f32.mrb[0].mxu0
    %v857 = vpop.f32.mrb[0].mxu0
    %858 = vdwg.mxu0
    %v860 = vsel %vm669, %v760, 0
    %v863 = vsel %vm769, %v270, 0
    %865 = vmatprep.subr.bf16.mxu0 0
    %866 = vmatpush1.bf16.msra.mxu0 %v863
    %867 = vmatprep.subr.bf16.mxu0 0
    %868 = vmatpush1.bf16.msra.mxu0 0
    %869 = vmatprep.subr.bf16.mxu0 0
    %870 = vmatpush1.bf16.msra.mxu0 0
    %871 = vmatprep.subr.bf16.mxu0 0
    %872 = vmatpush1.bf16.msra.mxu0 0
    %873 = vmatprep.subr.bf16.mxu0 0
    %874 = vmatpush1.bf16.msra.mxu0 0
    %875 = vmatprep.subr.bf16.mxu0 0
    %876 = vmatpush1.bf16.msra.mxu0 0
    %877 = vmatprep.subr.bf16.mxu0 0
    %878 = vmatpush1.bf16.msra.mxu0 0
    %879 = vmatprep.subr.bf16.mxu0 0
    %880 = vmatpush1.bf16.msra.mxu0 0
    %881 = vmatprep.subr.bf16.mxu0 0
    %882 = vmatpush1.bf16.msra.mxu0 0
    %883 = vmatprep.subr.bf16.mxu0 0
    %884 = vmatpush1.bf16.msra.mxu0 0
    %885 = vmatprep.subr.bf16.mxu0 0
    %886 = vmatpush1.bf16.msra.mxu0 0
    %887 = vmatprep.subr.bf16.mxu0 0
    %888 = vmatpush1.bf16.msra.mxu0 0
    %889 = vmatprep.subr.bf16.mxu0 0
    %890 = vmatpush1.bf16.msra.mxu0 0
    %891 = vmatprep.subr.bf16.mxu0 0
    %892 = vmatpush1.bf16.msra.mxu0 0
    %893 = vmatprep.subr.bf16.mxu0 0
    %894 = vmatpush1.bf16.msra.mxu0 0
    %895 = vmatprep.subr.bf16.mxu0 0
    %896 = vmatpush1.bf16.msra.mxu0 0
    %897 = vmatprep.mubr.bf16.mxu0 0
    %898 = vmatmul.mubr.bf16.gmra.mrb[0].mxu0 %v860
    %v899 = vpop.f32.mrb[0].mxu0
    %v900 = vadd.f32 0.0, %v899
    %v901 = vpop.f32.mrb[0].mxu0
    %v902 = vpop.f32.mrb[0].mxu0
    %v903 = vpop.f32.mrb[0].mxu0
    %904 = vdwg.mxu0
    %v906 = vsel %vm669, %v761, 0
    %v909 = vsel %vm769, %v271, 0
    %911 = vmatprep.subr.bf16.mxu0 0
    %912 = vmatpush1.bf16.msra.mxu0 %v909
    %913 = vmatprep.subr.bf16.mxu0 0
    %914 = vmatpush1.bf16.msra.mxu0 0
    %915 = vmatprep.subr.bf16.mxu0 0
    %916 = vmatpush1.bf16.msra.mxu0 0
    %917 = vmatprep.subr.bf16.mxu0 0
    %918 = vmatpush1.bf16.msra.mxu0 0
    %919 = vmatprep.subr.bf16.mxu0 0
    %920 = vmatpush1.bf16.msra.mxu0 0
    %921 = vmatprep.subr.bf16.mxu0 0
    %922 = vmatpush1.bf16.msra.mxu0 0
    %923 = vmatprep.subr.bf16.mxu0 0
    %924 = vmatpush1.bf16.msra.mxu0 0
    %925 = vmatprep.subr.bf16.mxu0 0
    %926 = vmatpush1.bf16.msra.mxu0 0
    %927 = vmatprep.subr.bf16.mxu0 0
    %928 = vmatpush1.bf16.msra.mxu0 0
    %929 = vmatprep.subr.bf16.mxu0 0
    %930 = vmatpush1.bf16.msra.mxu0 0
    %931 = vmatprep.subr.bf16.mxu0 0
    %932 = vmatpush1.bf16.msra.mxu0 0
    %933 = vmatprep.subr.bf16.mxu0 0
    %934 = vmatpush1.bf16.msra.mxu0 0
    %935 = vmatprep.subr.bf16.mxu0 0
    %936 = vmatpush1.bf16.msra.mxu0 0
    %937 = vmatprep.subr.bf16.mxu0 0
    %938 = vmatpush1.bf16.msra.mxu0 0
    %939 = vmatprep.subr.bf16.mxu0 0
    %940 = vmatpush1.bf16.msra.mxu0 0
    %941 = vmatprep.subr.bf16.mxu0 0
    %942 = vmatpush1.bf16.msra.mxu0 0
    %943 = vmatprep.mubr.bf16.mxu0 0
    %944 = vmatmul.mubr.bf16.gmra.mrb[0].mxu0 %v906
    %v945 = vpop.f32.mrb[0].mxu0
    %v946 = vadd.f32 0.0, %v945
    %v947 = vpop.f32.mrb[0].mxu0
    %v948 = vpop.f32.mrb[0].mxu0
    %v949 = vpop.f32.mrb[0].mxu0
    %950 = vdwg.mxu0
    %v952 = vsel %vm669, %v762, 0
    %v955 = vsel %vm769, %v272, 0
    %957 = vmatprep.subr.bf16.mxu0 0
    %958 = vmatpush1.bf16.msra.mxu0 %v955
    %959 = vmatprep.subr.bf16.mxu0 0
    %960 = vmatpush1.bf16.msra.mxu0 0
    %961 = vmatprep.subr.bf16.mxu0 0
    %962 = vmatpush1.bf16.msra.mxu0 0
    %963 = vmatprep.subr.bf16.mxu0 0
    %964 = vmatpush1.bf16.msra.mxu0 0
    %965 = vmatprep.subr.bf16.mxu0 0
    %966 = vmatpush1.bf16.msra.mxu0 0
    %967 = vmatprep.subr.bf16.mxu0 0
    %968 = vmatpush1.bf16.msra.mxu0 0
    %969 = vmatprep.subr.bf16.mxu0 0
    %970 = vmatpush1.bf16.msra.mxu0 0
    %971 = vmatprep.subr.bf16.mxu0 0
    %972 = vmatpush1.bf16.msra.mxu0 0
    %973 = vmatprep.subr.bf16.mxu0 0
    %974 = vmatpush1.bf16.msra.mxu0 0
    %975 = vmatprep.subr.bf16.mxu0 0
    %976 = vmatpush1.bf16.msra.mxu0 0
    %977 = vmatprep.subr.bf16.mxu0 0
    %978 = vmatpush1.bf16.msra.mxu0 0
    %979 = vmatprep.subr.bf16.mxu0 0
    %980 = vmatpush1.bf16.msra.mxu0 0
    %981 = vmatprep.subr.bf16.mxu0 0
    %982 = vmatpush1.bf16.msra.mxu0 0
    %983 = vmatprep.subr.bf16.mxu0 0
    %984 = vmatpush1.bf16.msra.mxu0 0
    %985 = vmatprep.subr.bf16.mxu0 0
    %986 = vmatpush1.bf16.msra.mxu0 0
    %987 = vmatprep.subr.bf16.mxu0 0
    %988 = vmatpush1.bf16.msra.mxu0 0
    %989 = vmatprep.mubr.bf16.mxu0 0
    %990 = vmatmul.mubr.bf16.gmra.mrb[0].mxu0 %v952
    %v991 = vpop.f32.mrb[0].mxu0
    %v992 = vadd.f32 0.0, %v991
    %v993 = vpop.f32.mrb[0].mxu0
    %v994 = vpop.f32.mrb[0].mxu0
    %v995 = vpop.f32.mrb[0].mxu0
    %996 = vdwg.mxu0
    %v998 = vsel %vm669, %v763, 0
    %v1001 = vsel %vm769, %v273, 0
    %1003 = vmatprep.subr.bf16.mxu0 0
    %1004 = vmatpush1.bf16.msra.mxu0 %v1001
    %1005 = vmatprep.subr.bf16.mxu0 0
    %1006 = vmatpush1.bf16.msra.mxu0 0
    %1007 = vmatprep.subr.bf16.mxu0 0
    %1008 = vmatpush1.bf16.msra.mxu0 0
    %1009 = vmatprep.subr.bf16.mxu0 0
    %1010 = vmatpush1.bf16.msra.mxu0 0
    %1011 = vmatprep.subr.bf16.mxu0 0
    %1012 = vmatpush1.bf16.msra.mxu0 0
    %1013 = vmatprep.subr.bf16.mxu0 0
    %1014 = vmatpush1.bf16.msra.mxu0 0
    %1015 = vmatprep.subr.bf16.mxu0 0
    %1016 = vmatpush1.bf16.msra.mxu0 0
    %1017 = vmatprep.subr.bf16.mxu0 0
    %1018 = vmatpush1.bf16.msra.mxu0 0
    %1019 = vmatprep.subr.bf16.mxu0 0
    %1020 = vmatpush1.bf16.msra.mxu0 0
    %1021 = vmatprep.subr.bf16.mxu0 0
    %1022 = vmatpush1.bf16.msra.mxu0 0
    %1023 = vmatprep.subr.bf16.mxu0 0
    %1024 = vmatpush1.bf16.msra.mxu0 0
    %1025 = vmatprep.subr.bf16.mxu0 0
    %1026 = vmatpush1.bf16.msra.mxu0 0
    %1027 = vmatprep.subr.bf16.mxu0 0
    %1028 = vmatpush1.bf16.msra.mxu0 0
    %1029 = vmatprep.subr.bf16.mxu0 0
    %1030 = vmatpush1.bf16.msra.mxu0 0
    %1031 = vmatprep.subr.bf16.mxu0 0
    %1032 = vmatpush1.bf16.msra.mxu0 0
    %1033 = vmatprep.subr.bf16.mxu0 0
    %1034 = vmatpush1.bf16.msra.mxu0 0
    %1035 = vmatprep.mubr.bf16.mxu0 0
    %1036 = vmatmul.mubr.bf16.gmra.mrb[0].mxu0 %v998
    %v1037 = vpop.f32.mrb[0].mxu0
    %v1038 = vadd.f32 0.0, %v1037
    %v1039 = vpop.f32.mrb[0].mxu0
    %v1040 = vpop.f32.mrb[0].mxu0
    %v1041 = vpop.f32.mrb[0].mxu0
    %1042 = vdwg.mxu0
    %v1044 = vsel %vm669, %v764, 0
    %v1047 = vsel %vm769, %v274, 0
    %1049 = vmatprep.subr.bf16.mxu0 0
    %1050 = vmatpush1.bf16.msra.mxu0 %v1047
    %1051 = vmatprep.subr.bf16.mxu0 0
    %1052 = vmatpush1.bf16.msra.mxu0 0
    %1053 = vmatprep.subr.bf16.mxu0 0
    %1054 = vmatpush1.bf16.msra.mxu0 0
    %1055 = vmatprep.subr.bf16.mxu0 0
    %1056 = vmatpush1.bf16.msra.mxu0 0
    %1057 = vmatprep.subr.bf16.mxu0 0
    %1058 = vmatpush1.bf16.msra.mxu0 0
    %1059 = vmatprep.subr.bf16.mxu0 0
    %1060 = vmatpush1.bf16.msra.mxu0 0
    %1061 = vmatprep.subr.bf16.mxu0 0
    %1062 = vmatpush1.bf16.msra.mxu0 0
    %1063 = vmatprep.subr.bf16.mxu0 0
    %1064 = vmatpush1.bf16.msra.mxu0 0
    %1065 = vmatprep.subr.bf16.mxu0 0
    %1066 = vmatpush1.bf16.msra.mxu0 0
    %1067 = vmatprep.subr.bf16.mxu0 0
    %1068 = vmatpush1.bf16.msra.mxu0 0
    %1069 = vmatprep.subr.bf16.mxu0 0
    %1070 = vmatpush1.bf16.msra.mxu0 0
    %1071 = vmatprep.subr.bf16.mxu0 0
    %1072 = vmatpush1.bf16.msra.mxu0 0
    %1073 = vmatprep.subr.bf16.mxu0 0
    %1074 = vmatpush1.bf16.msra.mxu0 0
    %1075 = vmatprep.subr.bf16.mxu0 0
    %1076 = vmatpush1.bf16.msra.mxu0 0
    %1077 = vmatprep.subr.bf16.mxu0 0
    %1078 = vmatpush1.bf16.msra.mxu0 0
    %1079 = vmatprep.subr.bf16.mxu0 0
    %1080 = vmatpush1.bf16.msra.mxu0 0
    %1081 = vmatprep.mubr.bf16.mxu0 0
    %1082 = vmatmul.mubr.bf16.gmra.mrb[0].mxu0 %v1044
    %v1083 = vpop.f32.mrb[0].mxu0
    %v1084 = vadd.f32 0.0, %v1083
    %v1085 = vpop.f32.mrb[0].mxu0
    %v1086 = vpop.f32.mrb[0].mxu0
    %v1087 = vpop.f32.mrb[0].mxu0
    %1088 = vdwg.mxu0
    %v1090 = vsel %vm669, %v765, 0
    %v1093 = vsel %vm769, %v275, 0
    %1095 = vmatprep.subr.bf16.mxu0 0
    %1096 = vmatpush1.bf16.msra.mxu0 %v1093
    %1097 = vmatprep.subr.bf16.mxu0 0
    %1098 = vmatpush1.bf16.msra.mxu0 0
    %1099 = vmatprep.subr.bf16.mxu0 0
    %1100 = vmatpush1.bf16.msra.mxu0 0
    %1101 = vmatprep.subr.bf16.mxu0 0
    %1102 = vmatpush1.bf16.msra.mxu0 0
    %1103 = vmatprep.subr.bf16.mxu0 0
    %1104 = vmatpush1.bf16.msra.mxu0 0
    %1105 = vmatprep.subr.bf16.mxu0 0
    %1106 = vmatpush1.bf16.msra.mxu0 0
    %1107 = vmatprep.subr.bf16.mxu0 0
    %1108 = vmatpush1.bf16.msra.mxu0 0
    %1109 = vmatprep.subr.bf16.mxu0 0
    %1110 = vmatpush1.bf16.msra.mxu0 0
    %1111 = vmatprep.subr.bf16.mxu0 0
    %1112 = vmatpush1.bf16.msra.mxu0 0
    %1113 = vmatprep.subr.bf16.mxu0 0
    %1114 = vmatpush1.bf16.msra.mxu0 0
    %1115 = vmatprep.subr.bf16.mxu0 0
    %1116 = vmatpush1.bf16.msra.mxu0 0
    %1117 = vmatprep.subr.bf16.mxu0 0
    %1118 = vmatpush1.bf16.msra.mxu0 0
    %1119 = vmatprep.subr.bf16.mxu0 0
    %1120 = vmatpush1.bf16.msra.mxu0 0
    %1121 = vmatprep.subr.bf16.mxu0 0
    %1122 = vmatpush1.bf16.msra.mxu0 0
    %1123 = vmatprep.subr.bf16.mxu0 0
    %1124 = vmatpush1.bf16.msra.mxu0 0
    %1125 = vmatprep.subr.bf16.mxu0 0
    %1126 = vmatpush1.bf16.msra.mxu0 0
    %1127 = vmatprep.mubr.bf16.mxu0 0
    %1128 = vmatmul.mubr.bf16.gmra.mrb[0].mxu0 %v1090
    %v1129 = vpop.f32.mrb[0].mxu0
    %v1130 = vadd.f32 0.0, %v1129
    %v1131 = vpop.f32.mrb[0].mxu0
    %v1132 = vpop.f32.mrb[0].mxu0
    %v1133 = vpop.f32.mrb[0].mxu0
    %1134 = vdwg.mxu0
    %1135 = vrot.lane.b32.xlu0 %v228, 112
    %v1136 = vpop.permute.xlu0 %1135
    %1137 = vrot.lane.b32.xlu0 %v276, 48
    %v1138 = vpop.permute.xlu0 %1137
    %v1140 = vsel %vm279, %v1136, 0
    %v1143 = vsel %vm279, %v1138, 0
    %1145 = vmatprep.subr.bf16.mxu0 0
    %1146 = vmatpush1.bf16.xpose.msra.mxu0 %v1143
    %1147 = vmatprep.subr.bf16.mxu0 0
    %1148 = vmatpush1.bf16.xpose.msra.mxu0 0
    %1149 = vmatprep.subr.bf16.mxu0 0
    %1150 = vmatpush1.bf16.xpose.msra.mxu0 0
    %1151 = vmatprep.subr.bf16.mxu0 0
    %1152 = vmatpush1.bf16.xpose.msra.mxu0 0
    %1153 = vmatprep.subr.bf16.mxu0 0
    %1154 = vmatpush1.bf16.xpose.msra.mxu0 0
    %1155 = vmatprep.subr.bf16.mxu0 0
    %1156 = vmatpush1.bf16.xpose.msra.mxu0 0
    %1157 = vmatprep.subr.bf16.mxu0 0
    %1158 = vmatpush1.bf16.xpose.msra.mxu0 0
    %1159 = vmatprep.subr.bf16.mxu0 0
    %1160 = vmatpush1.bf16.xpose.msra.mxu0 0
    %1161 = vmatprep.subr.bf16.mxu0 0
    %1162 = vmatpush1.bf16.xpose.msra.mxu0 0
    %1163 = vmatprep.subr.bf16.mxu0 0
    %1164 = vmatpush1.bf16.xpose.msra.mxu0 0
    %1165 = vmatprep.subr.bf16.mxu0 0
    %1166 = vmatpush1.bf16.xpose.msra.mxu0 0
    %1167 = vmatprep.subr.bf16.mxu0 0
    %1168 = vmatpush1.bf16.xpose.msra.mxu0 0
    %1169 = vmatprep.subr.bf16.mxu0 0
    %1170 = vmatpush1.bf16.xpose.msra.mxu0 0
    %1171 = vmatprep.subr.bf16.mxu0 0
    %1172 = vmatpush1.bf16.xpose.msra.mxu0 0
    %1173 = vmatprep.subr.bf16.mxu0 0
    %1174 = vmatpush1.bf16.xpose.msra.mxu0 0
    %1175 = vmatprep.subr.bf16.mxu0 0
    %1176 = vmatpush1.bf16.xpose.msra.mxu0 0
    %1177 = vmatprep.mubr.bf16.mxu0 0
    %1178 = vmatmul.mubr.bf16.gmra.mrb[0].mxu0 %v1140
    %v1179 = vpop.f32.mrb[0].mxu0
    %v1180 = vadd.f32 0.0, %v1179
    %v1181 = vpop.f32.mrb[0].mxu0
    %v1182 = vpop.f32.mrb[0].mxu0
    %v1183 = vpop.f32.mrb[0].mxu0
    %1184 = vdwg.mxu0
    %1185 = vrot.lane.b32.xlu0 %v229, 112
    %v1186 = vpop.permute.xlu0 %1185
    %1187 = vrot.lane.b32.xlu0 %v326, 48
    %v1188 = vpop.permute.xlu0 %1187
    %v1190 = vsel %vm279, %v1186, 0
    %v1193 = vsel %vm279, %v1188, 0
    %1195 = vmatprep.subr.bf16.mxu0 0
    %1196 = vmatpush1.bf16.xpose.msra.mxu0 %v1193
    %1197 = vmatprep.subr.bf16.mxu0 0
    %1198 = vmatpush1.bf16.xpose.msra.mxu0 0
    %1199 = vmatprep.subr.bf16.mxu0 0
    %1200 = vmatpush1.bf16.xpose.msra.mxu0 0
    %1201 = vmatprep.subr.bf16.mxu0 0
    %1202 = vmatpush1.bf16.xpose.msra.mxu0 0
    %1203 = vmatprep.subr.bf16.mxu0 0
    %1204 = vmatpush1.bf16.xpose.msra.mxu0 0
    %1205 = vmatprep.subr.bf16.mxu0 0
    %1206 = vmatpush1.bf16.xpose.msra.mxu0 0
    %1207 = vmatprep.subr.bf16.mxu0 0
    %1208 = vmatpush1.bf16.xpose.msra.mxu0 0
    %1209 = vmatprep.subr.bf16.mxu0 0
    %1210 = vmatpush1.bf16.xpose.msra.mxu0 0
    %1211 = vmatprep.subr.bf16.mxu0 0
    %1212 = vmatpush1.bf16.xpose.msra.mxu0 0
    %1213 = vmatprep.subr.bf16.mxu0 0
    %1214 = vmatpush1.bf16.xpose.msra.mxu0 0
    %1215 = vmatprep.subr.bf16.mxu0 0
    %1216 = vmatpush1.bf16.xpose.msra.mxu0 0
    %1217 = vmatprep.subr.bf16.mxu0 0
    %1218 = vmatpush1.bf16.xpose.msra.mxu0 0
    %1219 = vmatprep.subr.bf16.mxu0 0
    %1220 = vmatpush1.bf16.xpose.msra.mxu0 0
    %1221 = vmatprep.subr.bf16.mxu0 0
    %1222 = vmatpush1.bf16.xpose.msra.mxu0 0
    %1223 = vmatprep.subr.bf16.mxu0 0
    %1224 = vmatpush1.bf16.xpose.msra.mxu0 0
    %1225 = vmatprep.subr.bf16.mxu0 0
    %1226 = vmatpush1.bf16.xpose.msra.mxu0 0
    %1227 = vmatprep.mubr.bf16.mxu0 0
    %1228 = vmatmul.mubr.bf16.gmra.mrb[0].mxu0 %v1190
    %v1229 = vpop.f32.mrb[0].mxu0
    %v1230 = vadd.f32 0.0, %v1229
    %v1231 = vpop.f32.mrb[0].mxu0
    %v1232 = vpop.f32.mrb[0].mxu0
    %v1233 = vpop.f32.mrb[0].mxu0
    %1234 = vdwg.mxu0
    %1235 = vrot.lane.b32.xlu0 %v230, 112
    %v1236 = vpop.permute.xlu0 %1235
    %1237 = vrot.lane.b32.xlu0 %v375, 48
    %v1238 = vpop.permute.xlu0 %1237
    %v1240 = vsel %vm279, %v1236, 0
    %v1243 = vsel %vm279, %v1238, 0
    %1245 = vmatprep.subr.bf16.mxu0 0
    %1246 = vmatpush1.bf16.xpose.msra.mxu0 %v1243
    %1247 = vmatprep.subr.bf16.mxu0 0
    %1248 = vmatpush1.bf16.xpose.msra.mxu0 0
    %1249 = vmatprep.subr.bf16.mxu0 0
    %1250 = vmatpush1.bf16.xpose.msra.mxu0 0
    %1251 = vmatprep.subr.bf16.mxu0 0
    %1252 = vmatpush1.bf16.xpose.msra.mxu0 0
    %1253 = vmatprep.subr.bf16.mxu0 0
    %1254 = vmatpush1.bf16.xpose.msra.mxu0 0
    %1255 = vmatprep.subr.bf16.mxu0 0
    %1256 = vmatpush1.bf16.xpose.msra.mxu0 0
    %1257 = vmatprep.subr.bf16.mxu0 0
    %1258 = vmatpush1.bf16.xpose.msra.mxu0 0
    %1259 = vmatprep.subr.bf16.mxu0 0
    %1260 = vmatpush1.bf16.xpose.msra.mxu0 0
    %1261 = vmatprep.subr.bf16.mxu0 0
    %1262 = vmatpush1.bf16.xpose.msra.mxu0 0
    %1263 = vmatprep.subr.bf16.mxu0 0
    %1264 = vmatpush1.bf16.xpose.msra.mxu0 0
    %1265 = vmatprep.subr.bf16.mxu0 0
    %1266 = vmatpush1.bf16.xpose.msra.mxu0 0
    %1267 = vmatprep.subr.bf16.mxu0 0
    %1268 = vmatpush1.bf16.xpose.msra.mxu0 0
    %1269 = vmatprep.subr.bf16.mxu0 0
    %1270 = vmatpush1.bf16.xpose.msra.mxu0 0
    %1271 = vmatprep.subr.bf16.mxu0 0
    %1272 = vmatpush1.bf16.xpose.msra.mxu0 0
    %1273 = vmatprep.subr.bf16.mxu0 0
    %1274 = vmatpush1.bf16.xpose.msra.mxu0 0
    %1275 = vmatprep.subr.bf16.mxu0 0
    %1276 = vmatpush1.bf16.xpose.msra.mxu0 0
    %1277 = vmatprep.mubr.bf16.mxu0 0
    %1278 = vmatmul.mubr.bf16.gmra.mrb[0].mxu0 %v1240
    %v1279 = vpop.f32.mrb[0].mxu0
    %v1280 = vadd.f32 0.0, %v1279
    %v1281 = vpop.f32.mrb[0].mxu0
    %v1282 = vpop.f32.mrb[0].mxu0
    %v1283 = vpop.f32.mrb[0].mxu0
    %1284 = vdwg.mxu0
    %1285 = vrot.lane.b32.xlu0 %v231, 112
    %v1286 = vpop.permute.xlu0 %1285
    %1287 = vrot.lane.b32.xlu0 %v424, 48
    %v1288 = vpop.permute.xlu0 %1287
    %v1290 = vsel %vm279, %v1286, 0
    %v1293 = vsel %vm279, %v1288, 0
    %1295 = vmatprep.subr.bf16.mxu0 0
    %1296 = vmatpush1.bf16.xpose.msra.mxu0 %v1293
    %1297 = vmatprep.subr.bf16.mxu0 0
    %1298 = vmatpush1.bf16.xpose.msra.mxu0 0
    %1299 = vmatprep.subr.bf16.mxu0 0
    %1300 = vmatpush1.bf16.xpose.msra.mxu0 0
    %1301 = vmatprep.subr.bf16.mxu0 0
    %1302 = vmatpush1.bf16.xpose.msra.mxu0 0
    %1303 = vmatprep.subr.bf16.mxu0 0
    %1304 = vmatpush1.bf16.xpose.msra.mxu0 0
    %1305 = vmatprep.subr.bf16.mxu0 0
    %1306 = vmatpush1.bf16.xpose.msra.mxu0 0
    %1307 = vmatprep.subr.bf16.mxu0 0
    %1308 = vmatpush1.bf16.xpose.msra.mxu0 0
    %1309 = vmatprep.subr.bf16.mxu0 0
    %1310 = vmatpush1.bf16.xpose.msra.mxu0 0
    %1311 = vmatprep.subr.bf16.mxu0 0
    %1312 = vmatpush1.bf16.xpose.msra.mxu0 0
    %1313 = vmatprep.subr.bf16.mxu0 0
    %1314 = vmatpush1.bf16.xpose.msra.mxu0 0
    %1315 = vmatprep.subr.bf16.mxu0 0
    %1316 = vmatpush1.bf16.xpose.msra.mxu0 0
    %1317 = vmatprep.subr.bf16.mxu0 0
    %1318 = vmatpush1.bf16.xpose.msra.mxu0 0
    %1319 = vmatprep.subr.bf16.mxu0 0
    %1320 = vmatpush1.bf16.xpose.msra.mxu0 0
    %1321 = vmatprep.subr.bf16.mxu0 0
    %1322 = vmatpush1.bf16.xpose.msra.mxu0 0
    %1323 = vmatprep.subr.bf16.mxu0 0
    %1324 = vmatpush1.bf16.xpose.msra.mxu0 0
    %1325 = vmatprep.subr.bf16.mxu0 0
    %1326 = vmatpush1.bf16.xpose.msra.mxu0 0
    %1327 = vmatprep.mubr.bf16.mxu0 0
    %1328 = vmatmul.mubr.bf16.gmra.mrb[0].mxu0 %v1290
    %v1329 = vpop.f32.mrb[0].mxu0
    %v1330 = vadd.f32 0.0, %v1329
    %v1331 = vpop.f32.mrb[0].mxu0
    %v1332 = vpop.f32.mrb[0].mxu0
    %v1333 = vpop.f32.mrb[0].mxu0
    %1334 = vdwg.mxu0
    %1335 = vrot.lane.b32.xlu0 %v232, 112
    %v1336 = vpop.permute.xlu0 %1335
    %1337 = vrot.lane.b32.xlu0 %v473, 48
    %v1338 = vpop.permute.xlu0 %1337
    %v1340 = vsel %vm279, %v1336, 0
    %v1343 = vsel %vm279, %v1338, 0
    %1345 = vmatprep.subr.bf16.mxu0 0
    %1346 = vmatpush1.bf16.xpose.msra.mxu0 %v1343
    %1347 = vmatprep.subr.bf16.mxu0 0
    %1348 = vmatpush1.bf16.xpose.msra.mxu0 0
    %1349 = vmatprep.subr.bf16.mxu0 0
    %1350 = vmatpush1.bf16.xpose.msra.mxu0 0
    %1351 = vmatprep.subr.bf16.mxu0 0
    %1352 = vmatpush1.bf16.xpose.msra.mxu0 0
    %1353 = vmatprep.subr.bf16.mxu0 0
    %1354 = vmatpush1.bf16.xpose.msra.mxu0 0
    %1355 = vmatprep.subr.bf16.mxu0 0
    %1356 = vmatpush1.bf16.xpose.msra.mxu0 0
    %1357 = vmatprep.subr.bf16.mxu0 0
    %1358 = vmatpush1.bf16.xpose.msra.mxu0 0
    %1359 = vmatprep.subr.bf16.mxu0 0
    %1360 = vmatpush1.bf16.xpose.msra.mxu0 0
    %1361 = vmatprep.subr.bf16.mxu0 0
    %1362 = vmatpush1.bf16.xpose.msra.mxu0 0
    %1363 = vmatprep.subr.bf16.mxu0 0
    %1364 = vmatpush1.bf16.xpose.msra.mxu0 0
    %1365 = vmatprep.subr.bf16.mxu0 0
    %1366 = vmatpush1.bf16.xpose.msra.mxu0 0
    %1367 = vmatprep.subr.bf16.mxu0 0
    %1368 = vmatpush1.bf16.xpose.msra.mxu0 0
    %1369 = vmatprep.subr.bf16.mxu0 0
    %1370 = vmatpush1.bf16.xpose.msra.mxu0 0
    %1371 = vmatprep.subr.bf16.mxu0 0
    %1372 = vmatpush1.bf16.xpose.msra.mxu0 0
    %1373 = vmatprep.subr.bf16.mxu0 0
    %1374 = vmatpush1.bf16.xpose.msra.mxu0 0
    %1375 = vmatprep.subr.bf16.mxu0 0
    %1376 = vmatpush1.bf16.xpose.msra.mxu0 0
    %1377 = vmatprep.mubr.bf16.mxu0 0
    %1378 = vmatmul.mubr.bf16.gmra.mrb[0].mxu0 %v1340
    %v1379 = vpop.f32.mrb[0].mxu0
    %v1380 = vadd.f32 0.0, %v1379
    %v1381 = vpop.f32.mrb[0].mxu0
    %v1382 = vpop.f32.mrb[0].mxu0
    %v1383 = vpop.f32.mrb[0].mxu0
    %1384 = vdwg.mxu0
    %1385 = vrot.lane.b32.xlu0 %v233, 112
    %v1386 = vpop.permute.xlu0 %1385
    %1387 = vrot.lane.b32.xlu0 %v522, 48
    %v1388 = vpop.permute.xlu0 %1387
    %v1390 = vsel %vm279, %v1386, 0
    %v1393 = vsel %vm279, %v1388, 0
    %1395 = vmatprep.subr.bf16.mxu0 0
    %1396 = vmatpush1.bf16.xpose.msra.mxu0 %v1393
    %1397 = vmatprep.subr.bf16.mxu0 0
    %1398 = vmatpush1.bf16.xpose.msra.mxu0 0
    %1399 = vmatprep.subr.bf16.mxu0 0
    %1400 = vmatpush1.bf16.xpose.msra.mxu0 0
    %1401 = vmatprep.subr.bf16.mxu0 0
    %1402 = vmatpush1.bf16.xpose.msra.mxu0 0
    %1403 = vmatprep.subr.bf16.mxu0 0
    %1404 = vmatpush1.bf16.xpose.msra.mxu0 0
    %1405 = vmatprep.subr.bf16.mxu0 0
    %1406 = vmatpush1.bf16.xpose.msra.mxu0 0
    %1407 = vmatprep.subr.bf16.mxu0 0
    %1408 = vmatpush1.bf16.xpose.msra.mxu0 0
    %1409 = vmatprep.subr.bf16.mxu0 0
    %1410 = vmatpush1.bf16.xpose.msra.mxu0 0
    %1411 = vmatprep.subr.bf16.mxu0 0
    %1412 = vmatpush1.bf16.xpose.msra.mxu0 0
    %1413 = vmatprep.subr.bf16.mxu0 0
    %1414 = vmatpush1.bf16.xpose.msra.mxu0 0
    %1415 = vmatprep.subr.bf16.mxu0 0
    %1416 = vmatpush1.bf16.xpose.msra.mxu0 0
    %1417 = vmatprep.subr.bf16.mxu0 0
    %1418 = vmatpush1.bf16.xpose.msra.mxu0 0
    %1419 = vmatprep.subr.bf16.mxu0 0
    %1420 = vmatpush1.bf16.xpose.msra.mxu0 0
    %1421 = vmatprep.subr.bf16.mxu0 0
    %1422 = vmatpush1.bf16.xpose.msra.mxu0 0
    %1423 = vmatprep.subr.bf16.mxu0 0
    %1424 = vmatpush1.bf16.xpose.msra.mxu0 0
    %1425 = vmatprep.subr.bf16.mxu0 0
    %1426 = vmatpush1.bf16.xpose.msra.mxu0 0
    %1427 = vmatprep.mubr.bf16.mxu0 0
    %1428 = vmatmul.mubr.bf16.gmra.mrb[0].mxu0 %v1390
    %v1429 = vpop.f32.mrb[0].mxu0
    %v1430 = vadd.f32 0.0, %v1429
    %v1431 = vpop.f32.mrb[0].mxu0
    %v1432 = vpop.f32.mrb[0].mxu0
    %v1433 = vpop.f32.mrb[0].mxu0
    %1434 = vdwg.mxu0
    %1435 = vrot.lane.b32.xlu0 %v234, 112
    %v1436 = vpop.permute.xlu0 %1435
    %1437 = vrot.lane.b32.xlu0 %v571, 48
    %v1438 = vpop.permute.xlu0 %1437
    %v1440 = vsel %vm279, %v1436, 0
    %v1443 = vsel %vm279, %v1438, 0
    %1445 = vmatprep.subr.bf16.mxu0 0
    %1446 = vmatpush1.bf16.xpose.msra.mxu0 %v1443
    %1447 = vmatprep.subr.bf16.mxu0 0
    %1448 = vmatpush1.bf16.xpose.msra.mxu0 0
    %1449 = vmatprep.subr.bf16.mxu0 0
    %1450 = vmatpush1.bf16.xpose.msra.mxu0 0
    %1451 = vmatprep.subr.bf16.mxu0 0
    %1452 = vmatpush1.bf16.xpose.msra.mxu0 0
    %1453 = vmatprep.subr.bf16.mxu0 0
    %1454 = vmatpush1.bf16.xpose.msra.mxu0 0
    %1455 = vmatprep.subr.bf16.mxu0 0
    %1456 = vmatpush1.bf16.xpose.msra.mxu0 0
    %1457 = vmatprep.subr.bf16.mxu0 0
    %1458 = vmatpush1.bf16.xpose.msra.mxu0 0
    %1459 = vmatprep.subr.bf16.mxu0 0
    %1460 = vmatpush1.bf16.xpose.msra.mxu0 0
    %1461 = vmatprep.subr.bf16.mxu0 0
    %1462 = vmatpush1.bf16.xpose.msra.mxu0 0
    %1463 = vmatprep.subr.bf16.mxu0 0
    %1464 = vmatpush1.bf16.xpose.msra.mxu0 0
    %1465 = vmatprep.subr.bf16.mxu0 0
    %1466 = vmatpush1.bf16.xpose.msra.mxu0 0
    %1467 = vmatprep.subr.bf16.mxu0 0
    %1468 = vmatpush1.bf16.xpose.msra.mxu0 0
    %1469 = vmatprep.subr.bf16.mxu0 0
    %1470 = vmatpush1.bf16.xpose.msra.mxu0 0
    %1471 = vmatprep.subr.bf16.mxu0 0
    %1472 = vmatpush1.bf16.xpose.msra.mxu0 0
    %1473 = vmatprep.subr.bf16.mxu0 0
    %1474 = vmatpush1.bf16.xpose.msra.mxu0 0
    %1475 = vmatprep.subr.bf16.mxu0 0
    %1476 = vmatpush1.bf16.xpose.msra.mxu0 0
    %1477 = vmatprep.mubr.bf16.mxu0 0
    %1478 = vmatmul.mubr.bf16.gmra.mrb[0].mxu0 %v1440
    %v1479 = vpop.f32.mrb[0].mxu0
    %v1480 = vadd.f32 0.0, %v1479
    %v1481 = vpop.f32.mrb[0].mxu0
    %v1482 = vpop.f32.mrb[0].mxu0
    %v1483 = vpop.f32.mrb[0].mxu0
    %1484 = vdwg.mxu0
    %1485 = vrot.lane.b32.xlu0 %v235, 112
    %v1486 = vpop.permute.xlu0 %1485
    %1487 = vrot.lane.b32.xlu0 %v620, 48
    %v1488 = vpop.permute.xlu0 %1487
    %v1490 = vsel %vm279, %v1486, 0
    %v1493 = vsel %vm279, %v1488, 0
    %1495 = vmatprep.subr.bf16.mxu0 0
    %1496 = vmatpush1.bf16.xpose.msra.mxu0 %v1493
    %1497 = vmatprep.subr.bf16.mxu0 0
    %1498 = vmatpush1.bf16.xpose.msra.mxu0 0
    %1499 = vmatprep.subr.bf16.mxu0 0
    %1500 = vmatpush1.bf16.xpose.msra.mxu0 0
    %1501 = vmatprep.subr.bf16.mxu0 0
    %1502 = vmatpush1.bf16.xpose.msra.mxu0 0
    %1503 = vmatprep.subr.bf16.mxu0 0
    %1504 = vmatpush1.bf16.xpose.msra.mxu0 0
    %1505 = vmatprep.subr.bf16.mxu0 0
    %1506 = vmatpush1.bf16.xpose.msra.mxu0 0
    %1507 = vmatprep.subr.bf16.mxu0 0
    %1508 = vmatpush1.bf16.xpose.msra.mxu0 0
    %1509 = vmatprep.subr.bf16.mxu0 0
    %1510 = vmatpush1.bf16.xpose.msra.mxu0 0
    %1511 = vmatprep.subr.bf16.mxu0 0
    %1512 = vmatpush1.bf16.xpose.msra.mxu0 0
    %1513 = vmatprep.subr.bf16.mxu0 0
    %1514 = vmatpush1.bf16.xpose.msra.mxu0 0
    %1515 = vmatprep.subr.bf16.mxu0 0
    %1516 = vmatpush1.bf16.xpose.msra.mxu0 0
    %1517 = vmatprep.subr.bf16.mxu0 0
    %1518 = vmatpush1.bf16.xpose.msra.mxu0 0
    %1519 = vmatprep.subr.bf16.mxu0 0
    %1520 = vmatpush1.bf16.xpose.msra.mxu0 0
    %1521 = vmatprep.subr.bf16.mxu0 0
    %1522 = vmatpush1.bf16.xpose.msra.mxu0 0
    %1523 = vmatprep.subr.bf16.mxu0 0
    %1524 = vmatpush1.bf16.xpose.msra.mxu0 0
    %1525 = vmatprep.subr.bf16.mxu0 0
    %1526 = vmatpush1.bf16.xpose.msra.mxu0 0
    %1527 = vmatprep.mubr.bf16.mxu0 0
    %1528 = vmatmul.mubr.bf16.gmra.mrb[0].mxu0 %v1490
    %v1529 = vpop.f32.mrb[0].mxu0
    %v1530 = vadd.f32 0.0, %v1529
    %v1531 = vpop.f32.mrb[0].mxu0
    %v1532 = vpop.f32.mrb[0].mxu0
    %v1533 = vpop.f32.mrb[0].mxu0
    %1534 = vdwg.mxu0
    %v1535 = vsel %vm669, %v1180, -inf
    %1536 = vmax.xlane.f32.xlu0 %v1535
    %v1537 = vpop.xlane.xlu0 %1536
    %v1538 = vsel %vm669, %v1230, -inf
    %1539 = vmax.xlane.f32.xlu0 %v1538
    %v1540 = vpop.xlane.xlu0 %1539
    %v1541 = vsel %vm669, %v1280, -inf
    %1542 = vmax.xlane.f32.xlu0 %v1541
    %v1543 = vpop.xlane.xlu0 %1542
    %v1544 = vsel %vm669, %v1330, -inf
    %1545 = vmax.xlane.f32.xlu0 %v1544
    %v1546 = vpop.xlane.xlu0 %1545
    %v1547 = vsel %vm669, %v1380, -inf
    %1548 = vmax.xlane.f32.xlu0 %v1547
    %v1549 = vpop.xlane.xlu0 %1548
    %v1550 = vsel %vm669, %v1430, -inf
    %1551 = vmax.xlane.f32.xlu0 %v1550
    %v1552 = vpop.xlane.xlu0 %1551
    %v1553 = vsel %vm669, %v1480, -inf
    %1554 = vmax.xlane.f32.xlu0 %v1553
    %v1555 = vpop.xlane.xlu0 %1554
    %v1556 = vsel %vm669, %v1530, -inf
    %1557 = vmax.xlane.f32.xlu0 %v1556
    %v1558 = vpop.xlane.xlu0 %1557
    %v1559 = vsub.f32 %v1180, %v1537
    %v1560 = vsub.f32 %v1230, %v1540
    %v1561 = vsub.f32 %v1280, %v1543
    %v1562 = vsub.f32 %v1330, %v1546
    %v1563 = vsub.f32 %v1380, %v1549
    %v1564 = vsub.f32 %v1430, %v1552
    %v1565 = vsub.f32 %v1480, %v1555
    %v1566 = vsub.f32 %v1530, %v1558
    %v1567 = vmul.f32 %v1559, 1.442695
    %v1568 = vpow.pop %v1567
    %v1569 = vmul.f32 %v1560, 1.442695
    %v1570 = vpow.pop %v1569
    %v1571 = vmul.f32 %v1561, 1.442695
    %v1572 = vpow.pop %v1571
    %v1573 = vmul.f32 %v1562, 1.442695
    %v1574 = vpow.pop %v1573
    %v1575 = vmul.f32 %v1563, 1.442695
    %v1576 = vpow.pop %v1575
    %v1577 = vmul.f32 %v1564, 1.442695
    %v1578 = vpow.pop %v1577
    %v1579 = vmul.f32 %v1565, 1.442695
    %v1580 = vpow.pop %v1579
    %v1581 = vmul.f32 %v1566, 1.442695
    %v1582 = vpow.pop %v1581
    %v1583 = vsel %vm669, %v1568, 0.0
    %1584 = vadd.xlane.f32.xlu0 %v1583
    %v1585 = vpop.xlane.xlu0 %1584
    %v1586 = vsel %vm669, %v1570, 0.0
    %1587 = vadd.xlane.f32.xlu0 %v1586
    %v1588 = vpop.xlane.xlu0 %1587
    %v1589 = vsel %vm669, %v1572, 0.0
    %1590 = vadd.xlane.f32.xlu0 %v1589
    %v1591 = vpop.xlane.xlu0 %1590
    %v1592 = vsel %vm669, %v1574, 0.0
    %1593 = vadd.xlane.f32.xlu0 %v1592
    %v1594 = vpop.xlane.xlu0 %1593
    %v1595 = vsel %vm669, %v1576, 0.0
    %1596 = vadd.xlane.f32.xlu0 %v1595
    %v1597 = vpop.xlane.xlu0 %1596
    %v1598 = vsel %vm669, %v1578, 0.0
    %1599 = vadd.xlane.f32.xlu0 %v1598
    %v1600 = vpop.xlane.xlu0 %1599
    %v1601 = vsel %vm669, %v1580, 0.0
    %1602 = vadd.xlane.f32.xlu0 %v1601
    %v1603 = vpop.xlane.xlu0 %1602
    %v1604 = vsel %vm669, %v1582, 0.0
    %1605 = vadd.xlane.f32.xlu0 %v1604
    %v1606 = vpop.xlane.xlu0 %1605
    %v1607 = vrcp.pop %v1585
    %v1608 = vrcp.pop %v1588
    %v1609 = vrcp.pop %v1591
    %v1610 = vrcp.pop %v1594
    %v1611 = vrcp.pop %v1597
    %v1612 = vrcp.pop %v1600
    %v1613 = vrcp.pop %v1603
    %v1614 = vrcp.pop %v1606
    %v1615 = vmul.f32 %v1568, %v1607
    %v1616 = vmul.f32 %v1570, %v1608
    %v1617 = vmul.f32 %v1572, %v1609
    %v1618 = vmul.f32 %v1574, %v1610
    %v1619 = vmul.f32 %v1576, %v1611
    %v1620 = vmul.f32 %v1578, %v1612
    %v1621 = vmul.f32 %v1580, %v1613
    %v1622 = vmul.f32 %v1582, %v1614
    %v1623 = vpack.c.bf16 %v1615, %v1615
    %v1624 = vpack.c.bf16 %v1616, %v1616
    %v1625 = vpack.c.bf16 %v1617, %v1617
    %v1626 = vpack.c.bf16 %v1618, %v1618
    %v1627 = vpack.c.bf16 %v1619, %v1619
    %v1628 = vpack.c.bf16 %v1620, %v1620
    %v1629 = vpack.c.bf16 %v1621, %v1621
    %v1630 = vpack.c.bf16 %v1622, %v1622
    %1631 = vrot.lane.b32.xlu0 %v268, 112
    %v1632 = vpop.permute.xlu0 %1631
    %v1634 = vsel %vm669, %v1623, 0
    %v1637 = vsel %vm769, %v1632, 0
    %1639 = vmatprep.subr.bf16.mxu0 0
    %1640 = vmatpush1.bf16.msra.mxu0 %v1637
    %1641 = vmatprep.subr.bf16.mxu0 0
    %1642 = vmatpush1.bf16.msra.mxu0 0
    %1643 = vmatprep.subr.bf16.mxu0 0
    %1644 = vmatpush1.bf16.msra.mxu0 0
    %1645 = vmatprep.subr.bf16.mxu0 0
    %1646 = vmatpush1.bf16.msra.mxu0 0
    %1647 = vmatprep.subr.bf16.mxu0 0
    %1648 = vmatpush1.bf16.msra.mxu0 0
    %1649 = vmatprep.subr.bf16.mxu0 0
    %1650 = vmatpush1.bf16.msra.mxu0 0
    %1651 = vmatprep.subr.bf16.mxu0 0
    %1652 = vmatpush1.bf16.msra.mxu0 0
    %1653 = vmatprep.subr.bf16.mxu0 0
    %1654 = vmatpush1.bf16.msra.mxu0 0
    %1655 = vmatprep.subr.bf16.mxu0 0
    %1656 = vmatpush1.bf16.msra.mxu0 0
    %1657 = vmatprep.subr.bf16.mxu0 0
    %1658 = vmatpush1.bf16.msra.mxu0 0
    %1659 = vmatprep.subr.bf16.mxu0 0
    %1660 = vmatpush1.bf16.msra.mxu0 0
    %1661 = vmatprep.subr.bf16.mxu0 0
    %1662 = vmatpush1.bf16.msra.mxu0 0
    %1663 = vmatprep.subr.bf16.mxu0 0
    %1664 = vmatpush1.bf16.msra.mxu0 0
    %1665 = vmatprep.subr.bf16.mxu0 0
    %1666 = vmatpush1.bf16.msra.mxu0 0
    %1667 = vmatprep.subr.bf16.mxu0 0
    %1668 = vmatpush1.bf16.msra.mxu0 0
    %1669 = vmatprep.subr.bf16.mxu0 0
    %1670 = vmatpush1.bf16.msra.mxu0 0
    %1671 = vmatprep.mubr.bf16.mxu0 0
    %1672 = vmatmul.mubr.bf16.gmra.mrb[0].mxu0 %v1634
    %v1673 = vpop.f32.mrb[0].mxu0
    %v1674 = vadd.f32 0.0, %v1673
    %v1675 = vpop.f32.mrb[0].mxu0
    %v1676 = vpop.f32.mrb[0].mxu0
    %v1677 = vpop.f32.mrb[0].mxu0
    %1678 = vdwg.mxu0
    %1679 = vrot.lane.b32.xlu0 %v269, 112
    %v1680 = vpop.permute.xlu0 %1679
    %v1682 = vsel %vm669, %v1624, 0
    %v1685 = vsel %vm769, %v1680, 0
    %1687 = vmatprep.subr.bf16.mxu0 0
    %1688 = vmatpush1.bf16.msra.mxu0 %v1685
    %1689 = vmatprep.subr.bf16.mxu0 0
    %1690 = vmatpush1.bf16.msra.mxu0 0
    %1691 = vmatprep.subr.bf16.mxu0 0
    %1692 = vmatpush1.bf16.msra.mxu0 0
    %1693 = vmatprep.subr.bf16.mxu0 0
    %1694 = vmatpush1.bf16.msra.mxu0 0
    %1695 = vmatprep.subr.bf16.mxu0 0
    %1696 = vmatpush1.bf16.msra.mxu0 0
    %1697 = vmatprep.subr.bf16.mxu0 0
    %1698 = vmatpush1.bf16.msra.mxu0 0
    %1699 = vmatprep.subr.bf16.mxu0 0
    %1700 = vmatpush1.bf16.msra.mxu0 0
    %1701 = vmatprep.subr.bf16.mxu0 0
    %1702 = vmatpush1.bf16.msra.mxu0 0
    %1703 = vmatprep.subr.bf16.mxu0 0
    %1704 = vmatpush1.bf16.msra.mxu0 0
    %1705 = vmatprep.subr.bf16.mxu0 0
    %1706 = vmatpush1.bf16.msra.mxu0 0
    %1707 = vmatprep.subr.bf16.mxu0 0
    %1708 = vmatpush1.bf16.msra.mxu0 0
    %1709 = vmatprep.subr.bf16.mxu0 0
    %1710 = vmatpush1.bf16.msra.mxu0 0
    %1711 = vmatprep.subr.bf16.mxu0 0
    %1712 = vmatpush1.bf16.msra.mxu0 0
    %1713 = vmatprep.subr.bf16.mxu0 0
    %1714 = vmatpush1.bf16.msra.mxu0 0
    %1715 = vmatprep.subr.bf16.mxu0 0
    %1716 = vmatpush1.bf16.msra.mxu0 0
    %1717 = vmatprep.subr.bf16.mxu0 0
    %1718 = vmatpush1.bf16.msra.mxu0 0
    %1719 = vmatprep.mubr.bf16.mxu0 0
    %1720 = vmatmul.mubr.bf16.gmra.mrb[0].mxu0 %v1682
    %v1721 = vpop.f32.mrb[0].mxu0
    %v1722 = vadd.f32 0.0, %v1721
    %v1723 = vpop.f32.mrb[0].mxu0
    %v1724 = vpop.f32.mrb[0].mxu0
    %v1725 = vpop.f32.mrb[0].mxu0
    %1726 = vdwg.mxu0
    %1727 = vrot.lane.b32.xlu0 %v270, 112
    %v1728 = vpop.permute.xlu0 %1727
    %v1730 = vsel %vm669, %v1625, 0
    %v1733 = vsel %vm769, %v1728, 0
    %1735 = vmatprep.subr.bf16.mxu0 0
    %1736 = vmatpush1.bf16.msra.mxu0 %v1733
    %1737 = vmatprep.subr.bf16.mxu0 0
    %1738 = vmatpush1.bf16.msra.mxu0 0
    %1739 = vmatprep.subr.bf16.mxu0 0
    %1740 = vmatpush1.bf16.msra.mxu0 0
    %1741 = vmatprep.subr.bf16.mxu0 0
    %1742 = vmatpush1.bf16.msra.mxu0 0
    %1743 = vmatprep.subr.bf16.mxu0 0
    %1744 = vmatpush1.bf16.msra.mxu0 0
    %1745 = vmatprep.subr.bf16.mxu0 0
    %1746 = vmatpush1.bf16.msra.mxu0 0
    %1747 = vmatprep.subr.bf16.mxu0 0
    %1748 = vmatpush1.bf16.msra.mxu0 0
    %1749 = vmatprep.subr.bf16.mxu0 0
    %1750 = vmatpush1.bf16.msra.mxu0 0
    %1751 = vmatprep.subr.bf16.mxu0 0
    %1752 = vmatpush1.bf16.msra.mxu0 0
    %1753 = vmatprep.subr.bf16.mxu0 0
    %1754 = vmatpush1.bf16.msra.mxu0 0
    %1755 = vmatprep.subr.bf16.mxu0 0
    %1756 = vmatpush1.bf16.msra.mxu0 0
    %1757 = vmatprep.subr.bf16.mxu0 0
    %1758 = vmatpush1.bf16.msra.mxu0 0
    %1759 = vmatprep.subr.bf16.mxu0 0
    %1760 = vmatpush1.bf16.msra.mxu0 0
    %1761 = vmatprep.subr.bf16.mxu0 0
    %1762 = vmatpush1.bf16.msra.mxu0 0
    %1763 = vmatprep.subr.bf16.mxu0 0
    %1764 = vmatpush1.bf16.msra.mxu0 0
    %1765 = vmatprep.subr.bf16.mxu0 0
    %1766 = vmatpush1.bf16.msra.mxu0 0
    %1767 = vmatprep.mubr.bf16.mxu0 0
    %1768 = vmatmul.mubr.bf16.gmra.mrb[0].mxu0 %v1730
    %v1769 = vpop.f32.mrb[0].mxu0
    %v1770 = vadd.f32 0.0, %v1769
    %v1771 = vpop.f32.mrb[0].mxu0
    %v1772 = vpop.f32.mrb[0].mxu0
    %v1773 = vpop.f32.mrb[0].mxu0
    %1774 = vdwg.mxu0
    %1775 = vrot.lane.b32.xlu0 %v271, 112
    %v1776 = vpop.permute.xlu0 %1775
    %v1778 = vsel %vm669, %v1626, 0
    %v1781 = vsel %vm769, %v1776, 0
    %1783 = vmatprep.subr.bf16.mxu0 0
    %1784 = vmatpush1.bf16.msra.mxu0 %v1781
    %1785 = vmatprep.subr.bf16.mxu0 0
    %1786 = vmatpush1.bf16.msra.mxu0 0
    %1787 = vmatprep.subr.bf16.mxu0 0
    %1788 = vmatpush1.bf16.msra.mxu0 0
    %1789 = vmatprep.subr.bf16.mxu0 0
    %1790 = vmatpush1.bf16.msra.mxu0 0
    %1791 = vmatprep.subr.bf16.mxu0 0
    %1792 = vmatpush1.bf16.msra.mxu0 0
    %1793 = vmatprep.subr.bf16.mxu0 0
    %1794 = vmatpush1.bf16.msra.mxu0 0
    %1795 = vmatprep.subr.bf16.mxu0 0
    %1796 = vmatpush1.bf16.msra.mxu0 0
    %1797 = vmatprep.subr.bf16.mxu0 0
    %1798 = vmatpush1.bf16.msra.mxu0 0
    %1799 = vmatprep.subr.bf16.mxu0 0
    %1800 = vmatpush1.bf16.msra.mxu0 0
    %1801 = vmatprep.subr.bf16.mxu0 0
    %1802 = vmatpush1.bf16.msra.mxu0 0
    %1803 = vmatprep.subr.bf16.mxu0 0
    %1804 = vmatpush1.bf16.msra.mxu0 0
    %1805 = vmatprep.subr.bf16.mxu0 0
    %1806 = vmatpush1.bf16.msra.mxu0 0
    %1807 = vmatprep.subr.bf16.mxu0 0
    %1808 = vmatpush1.bf16.msra.mxu0 0
    %1809 = vmatprep.subr.bf16.mxu0 0
    %1810 = vmatpush1.bf16.msra.mxu0 0
    %1811 = vmatprep.subr.bf16.mxu0 0
    %1812 = vmatpush1.bf16.msra.mxu0 0
    %1813 = vmatprep.subr.bf16.mxu0 0
    %1814 = vmatpush1.bf16.msra.mxu0 0
    %1815 = vmatprep.mubr.bf16.mxu0 0
    %1816 = vmatmul.mubr.bf16.gmra.mrb[0].mxu0 %v1778
    %v1817 = vpop.f32.mrb[0].mxu0
    %v1818 = vadd.f32 0.0, %v1817
    %v1819 = vpop.f32.mrb[0].mxu0
    %v1820 = vpop.f32.mrb[0].mxu0
    %v1821 = vpop.f32.mrb[0].mxu0
    %1822 = vdwg.mxu0
    %1823 = vrot.lane.b32.xlu0 %v272, 112
    %v1824 = vpop.permute.xlu0 %1823
    %v1826 = vsel %vm669, %v1627, 0
    %v1829 = vsel %vm769, %v1824, 0
    %1831 = vmatprep.subr.bf16.mxu0 0
    %1832 = vmatpush1.bf16.msra.mxu0 %v1829
    %1833 = vmatprep.subr.bf16.mxu0 0
    %1834 = vmatpush1.bf16.msra.mxu0 0
    %1835 = vmatprep.subr.bf16.mxu0 0
    %1836 = vmatpush1.bf16.msra.mxu0 0
    %1837 = vmatprep.subr.bf16.mxu0 0
    %1838 = vmatpush1.bf16.msra.mxu0 0
    %1839 = vmatprep.subr.bf16.mxu0 0
    %1840 = vmatpush1.bf16.msra.mxu0 0
    %1841 = vmatprep.subr.bf16.mxu0 0
    %1842 = vmatpush1.bf16.msra.mxu0 0
    %1843 = vmatprep.subr.bf16.mxu0 0
    %1844 = vmatpush1.bf16.msra.mxu0 0
    %1845 = vmatprep.subr.bf16.mxu0 0
    %1846 = vmatpush1.bf16.msra.mxu0 0
    %1847 = vmatprep.subr.bf16.mxu0 0
    %1848 = vmatpush1.bf16.msra.mxu0 0
    %1849 = vmatprep.subr.bf16.mxu0 0
    %1850 = vmatpush1.bf16.msra.mxu0 0
    %1851 = vmatprep.subr.bf16.mxu0 0
    %1852 = vmatpush1.bf16.msra.mxu0 0
    %1853 = vmatprep.subr.bf16.mxu0 0
    %1854 = vmatpush1.bf16.msra.mxu0 0
    %1855 = vmatprep.subr.bf16.mxu0 0
    %1856 = vmatpush1.bf16.msra.mxu0 0
    %1857 = vmatprep.subr.bf16.mxu0 0
    %1858 = vmatpush1.bf16.msra.mxu0 0
    %1859 = vmatprep.subr.bf16.mxu0 0
    %1860 = vmatpush1.bf16.msra.mxu0 0
    %1861 = vmatprep.subr.bf16.mxu0 0
    %1862 = vmatpush1.bf16.msra.mxu0 0
    %1863 = vmatprep.mubr.bf16.mxu0 0
    %1864 = vmatmul.mubr.bf16.gmra.mrb[0].mxu0 %v1826
    %v1865 = vpop.f32.mrb[0].mxu0
    %v1866 = vadd.f32 0.0, %v1865
    %v1867 = vpop.f32.mrb[0].mxu0
    %v1868 = vpop.f32.mrb[0].mxu0
    %v1869 = vpop.f32.mrb[0].mxu0
    %1870 = vdwg.mxu0
    %1871 = vrot.lane.b32.xlu0 %v273, 112
    %v1872 = vpop.permute.xlu0 %1871
    %v1874 = vsel %vm669, %v1628, 0
    %v1877 = vsel %vm769, %v1872, 0
    %1879 = vmatprep.subr.bf16.mxu0 0
    %1880 = vmatpush1.bf16.msra.mxu0 %v1877
    %1881 = vmatprep.subr.bf16.mxu0 0
    %1882 = vmatpush1.bf16.msra.mxu0 0
    %1883 = vmatprep.subr.bf16.mxu0 0
    %1884 = vmatpush1.bf16.msra.mxu0 0
    %1885 = vmatprep.subr.bf16.mxu0 0
    %1886 = vmatpush1.bf16.msra.mxu0 0
    %1887 = vmatprep.subr.bf16.mxu0 0
    %1888 = vmatpush1.bf16.msra.mxu0 0
    %1889 = vmatprep.subr.bf16.mxu0 0
    %1890 = vmatpush1.bf16.msra.mxu0 0
    %1891 = vmatprep.subr.bf16.mxu0 0
    %1892 = vmatpush1.bf16.msra.mxu0 0
    %1893 = vmatprep.subr.bf16.mxu0 0
    %1894 = vmatpush1.bf16.msra.mxu0 0
    %1895 = vmatprep.subr.bf16.mxu0 0
    %1896 = vmatpush1.bf16.msra.mxu0 0
    %1897 = vmatprep.subr.bf16.mxu0 0
    %1898 = vmatpush1.bf16.msra.mxu0 0
    %1899 = vmatprep.subr.bf16.mxu0 0
    %1900 = vmatpush1.bf16.msra.mxu0 0
    %1901 = vmatprep.subr.bf16.mxu0 0
    %1902 = vmatpush1.bf16.msra.mxu0 0
    %1903 = vmatprep.subr.bf16.mxu0 0
    %1904 = vmatpush1.bf16.msra.mxu0 0
    %1905 = vmatprep.subr.bf16.mxu0 0
    %1906 = vmatpush1.bf16.msra.mxu0 0
    %1907 = vmatprep.subr.bf16.mxu0 0
    %1908 = vmatpush1.bf16.msra.mxu0 0
    %1909 = vmatprep.subr.bf16.mxu0 0
    %1910 = vmatpush1.bf16.msra.mxu0 0
    %1911 = vmatprep.mubr.bf16.mxu0 0
    %1912 = vmatmul.mubr.bf16.gmra.mrb[0].mxu0 %v1874
    %v1913 = vpop.f32.mrb[0].mxu0
    %v1914 = vadd.f32 0.0, %v1913
    %v1915 = vpop.f32.mrb[0].mxu0
    %v1916 = vpop.f32.mrb[0].mxu0
    %v1917 = vpop.f32.mrb[0].mxu0
    %1918 = vdwg.mxu0
    %1919 = vrot.lane.b32.xlu0 %v274, 112
    %v1920 = vpop.permute.xlu0 %1919
    %v1922 = vsel %vm669, %v1629, 0
    %v1925 = vsel %vm769, %v1920, 0
    %1927 = vmatprep.subr.bf16.mxu0 0
    %1928 = vmatpush1.bf16.msra.mxu0 %v1925
    %1929 = vmatprep.subr.bf16.mxu0 0
    %1930 = vmatpush1.bf16.msra.mxu0 0
    %1931 = vmatprep.subr.bf16.mxu0 0
    %1932 = vmatpush1.bf16.msra.mxu0 0
    %1933 = vmatprep.subr.bf16.mxu0 0
    %1934 = vmatpush1.bf16.msra.mxu0 0
    %1935 = vmatprep.subr.bf16.mxu0 0
    %1936 = vmatpush1.bf16.msra.mxu0 0
    %1937 = vmatprep.subr.bf16.mxu0 0
    %1938 = vmatpush1.bf16.msra.mxu0 0
    %1939 = vmatprep.subr.bf16.mxu0 0
    %1940 = vmatpush1.bf16.msra.mxu0 0
    %1941 = vmatprep.subr.bf16.mxu0 0
    %1942 = vmatpush1.bf16.msra.mxu0 0
    %1943 = vmatprep.subr.bf16.mxu0 0
    %1944 = vmatpush1.bf16.msra.mxu0 0
    %1945 = vmatprep.subr.bf16.mxu0 0
    %1946 = vmatpush1.bf16.msra.mxu0 0
    %1947 = vmatprep.subr.bf16.mxu0 0
    %1948 = vmatpush1.bf16.msra.mxu0 0
    %1949 = vmatprep.subr.bf16.mxu0 0
    %1950 = vmatpush1.bf16.msra.mxu0 0
    %1951 = vmatprep.subr.bf16.mxu0 0
    %1952 = vmatpush1.bf16.msra.mxu0 0
    %1953 = vmatprep.subr.bf16.mxu0 0
    %1954 = vmatpush1.bf16.msra.mxu0 0
    %1955 = vmatprep.subr.bf16.mxu0 0
    %1956 = vmatpush1.bf16.msra.mxu0 0
    %1957 = vmatprep.subr.bf16.mxu0 0
    %1958 = vmatpush1.bf16.msra.mxu0 0
    %1959 = vmatprep.mubr.bf16.mxu0 0
    %1960 = vmatmul.mubr.bf16.gmra.mrb[0].mxu0 %v1922
    %v1961 = vpop.f32.mrb[0].mxu0
    %v1962 = vadd.f32 0.0, %v1961
    %v1963 = vpop.f32.mrb[0].mxu0
    %v1964 = vpop.f32.mrb[0].mxu0
    %v1965 = vpop.f32.mrb[0].mxu0
    %1966 = vdwg.mxu0
    %1967 = vrot.lane.b32.xlu0 %v275, 112
    %v1968 = vpop.permute.xlu0 %1967
    %v1970 = vsel %vm669, %v1630, 0
    %v1973 = vsel %vm769, %v1968, 0
    %1975 = vmatprep.subr.bf16.mxu0 0
    %1976 = vmatpush1.bf16.msra.mxu0 %v1973
    %1977 = vmatprep.subr.bf16.mxu0 0
    %1978 = vmatpush1.bf16.msra.mxu0 0
    %1979 = vmatprep.subr.bf16.mxu0 0
    %1980 = vmatpush1.bf16.msra.mxu0 0
    %1981 = vmatprep.subr.bf16.mxu0 0
    %1982 = vmatpush1.bf16.msra.mxu0 0
    %1983 = vmatprep.subr.bf16.mxu0 0
    %1984 = vmatpush1.bf16.msra.mxu0 0
    %1985 = vmatprep.subr.bf16.mxu0 0
    %1986 = vmatpush1.bf16.msra.mxu0 0
    %1987 = vmatprep.subr.bf16.mxu0 0
    %1988 = vmatpush1.bf16.msra.mxu0 0
    %1989 = vmatprep.subr.bf16.mxu0 0
    %1990 = vmatpush1.bf16.msra.mxu0 0
    %1991 = vmatprep.subr.bf16.mxu0 0
    %1992 = vmatpush1.bf16.msra.mxu0 0
    %1993 = vmatprep.subr.bf16.mxu0 0
    %1994 = vmatpush1.bf16.msra.mxu0 0
    %1995 = vmatprep.subr.bf16.mxu0 0
    %1996 = vmatpush1.bf16.msra.mxu0 0
    %1997 = vmatprep.subr.bf16.mxu0 0
    %1998 = vmatpush1.bf16.msra.mxu0 0
    %1999 = vmatprep.subr.bf16.mxu0 0
    %2000 = vmatpush1.bf16.msra.mxu0 0
    %2001 = vmatprep.subr.bf16.mxu0 0
    %2002 = vmatpush1.bf16.msra.mxu0 0
    %2003 = vmatprep.subr.bf16.mxu0 0
    %2004 = vmatpush1.bf16.msra.mxu0 0
    %2005 = vmatprep.subr.bf16.mxu0 0
    %2006 = vmatpush1.bf16.msra.mxu0 0
    %2007 = vmatprep.mubr.bf16.mxu0 0
    %2008 = vmatmul.mubr.bf16.gmra.mrb[0].mxu0 %v1970
    %v2009 = vpop.f32.mrb[0].mxu0
    %v2010 = vadd.f32 0.0, %v2009
    %v2011 = vpop.f32.mrb[0].mxu0
    %v2012 = vpop.f32.mrb[0].mxu0
    %v2013 = vpop.f32.mrb[0].mxu0
    %2014 = vdwg.mxu0
    %2015 = vrot.lane.b32.xlu0 %v228, 96
    %v2016 = vpop.permute.xlu0 %2015
    %2017 = vrot.lane.b32.xlu0 %v276, 32
    %v2018 = vpop.permute.xlu0 %2017
    %v2020 = vsel %vm279, %v2016, 0
    %v2023 = vsel %vm279, %v2018, 0
    %2025 = vmatprep.subr.bf16.mxu0 0
    %2026 = vmatpush1.bf16.xpose.msra.mxu0 %v2023
    %2027 = vmatprep.subr.bf16.mxu0 0
    %2028 = vmatpush1.bf16.xpose.msra.mxu0 0
    %2029 = vmatprep.subr.bf16.mxu0 0
    %2030 = vmatpush1.bf16.xpose.msra.mxu0 0
    %2031 = vmatprep.subr.bf16.mxu0 0
    %2032 = vmatpush1.bf16.xpose.msra.mxu0 0
    %2033 = vmatprep.subr.bf16.mxu0 0
    %2034 = vmatpush1.bf16.xpose.msra.mxu0 0
    %2035 = vmatprep.subr.bf16.mxu0 0
    %2036 = vmatpush1.bf16.xpose.msra.mxu0 0
    %2037 = vmatprep.subr.bf16.mxu0 0
    %2038 = vmatpush1.bf16.xpose.msra.mxu0 0
    %2039 = vmatprep.subr.bf16.mxu0 0
    %2040 = vmatpush1.bf16.xpose.msra.mxu0 0
    %2041 = vmatprep.subr.bf16.mxu0 0
    %2042 = vmatpush1.bf16.xpose.msra.mxu0 0
    %2043 = vmatprep.subr.bf16.mxu0 0
    %2044 = vmatpush1.bf16.xpose.msra.mxu0 0
    %2045 = vmatprep.subr.bf16.mxu0 0
    %2046 = vmatpush1.bf16.xpose.msra.mxu0 0
    %2047 = vmatprep.subr.bf16.mxu0 0
    %2048 = vmatpush1.bf16.xpose.msra.mxu0 0
    %2049 = vmatprep.subr.bf16.mxu0 0
    %2050 = vmatpush1.bf16.xpose.msra.mxu0 0
    %2051 = vmatprep.subr.bf16.mxu0 0
    %2052 = vmatpush1.bf16.xpose.msra.mxu0 0
    %2053 = vmatprep.subr.bf16.mxu0 0
    %2054 = vmatpush1.bf16.xpose.msra.mxu0 0
    %2055 = vmatprep.subr.bf16.mxu0 0
    %2056 = vmatpush1.bf16.xpose.msra.mxu0 0
    %2057 = vmatprep.mubr.bf16.mxu0 0
    %2058 = vmatmul.mubr.bf16.gmra.mrb[0].mxu0 %v2020
    %v2059 = vpop.f32.mrb[0].mxu0
    %v2060 = vadd.f32 0.0, %v2059
    %v2061 = vpop.f32.mrb[0].mxu0
    %v2062 = vpop.f32.mrb[0].mxu0
    %v2063 = vpop.f32.mrb[0].mxu0
    %2064 = vdwg.mxu0
    %2065 = vrot.lane.b32.xlu0 %v229, 96
    %v2066 = vpop.permute.xlu0 %2065
    %2067 = vrot.lane.b32.xlu0 %v326, 32
    %v2068 = vpop.permute.xlu0 %2067
    %v2070 = vsel %vm279, %v2066, 0
    %v2073 = vsel %vm279, %v2068, 0
    %2075 = vmatprep.subr.bf16.mxu0 0
    %2076 = vmatpush1.bf16.xpose.msra.mxu0 %v2073
    %2077 = vmatprep.subr.bf16.mxu0 0
    %2078 = vmatpush1.bf16.xpose.msra.mxu0 0
    %2079 = vmatprep.subr.bf16.mxu0 0
    %2080 = vmatpush1.bf16.xpose.msra.mxu0 0
    %2081 = vmatprep.subr.bf16.mxu0 0
    %2082 = vmatpush1.bf16.xpose.msra.mxu0 0
    %2083 = vmatprep.subr.bf16.mxu0 0
    %2084 = vmatpush1.bf16.xpose.msra.mxu0 0
    %2085 = vmatprep.subr.bf16.mxu0 0
    %2086 = vmatpush1.bf16.xpose.msra.mxu0 0
    %2087 = vmatprep.subr.bf16.mxu0 0
    %2088 = vmatpush1.bf16.xpose.msra.mxu0 0
    %2089 = vmatprep.subr.bf16.mxu0 0
    %2090 = vmatpush1.bf16.xpose.msra.mxu0 0
    %2091 = vmatprep.subr.bf16.mxu0 0
    %2092 = vmatpush1.bf16.xpose.msra.mxu0 0
    %2093 = vmatprep.subr.bf16.mxu0 0
    %2094 = vmatpush1.bf16.xpose.msra.mxu0 0
    %2095 = vmatprep.subr.bf16.mxu0 0
    %2096 = vmatpush1.bf16.xpose.msra.mxu0 0
    %2097 = vmatprep.subr.bf16.mxu0 0
    %2098 = vmatpush1.bf16.xpose.msra.mxu0 0
    %2099 = vmatprep.subr.bf16.mxu0 0
    %2100 = vmatpush1.bf16.xpose.msra.mxu0 0
    %2101 = vmatprep.subr.bf16.mxu0 0
    %2102 = vmatpush1.bf16.xpose.msra.mxu0 0
    %2103 = vmatprep.subr.bf16.mxu0 0
    %2104 = vmatpush1.bf16.xpose.msra.mxu0 0
    %2105 = vmatprep.subr.bf16.mxu0 0
    %2106 = vmatpush1.bf16.xpose.msra.mxu0 0
    %2107 = vmatprep.mubr.bf16.mxu0 0
    %2108 = vmatmul.mubr.bf16.gmra.mrb[0].mxu0 %v2070
    %v2109 = vpop.f32.mrb[0].mxu0
    %v2110 = vadd.f32 0.0, %v2109
    %v2111 = vpop.f32.mrb[0].mxu0
    %v2112 = vpop.f32.mrb[0].mxu0
    %v2113 = vpop.f32.mrb[0].mxu0
    %2114 = vdwg.mxu0
    %2115 = vrot.lane.b32.xlu0 %v230, 96
    %v2116 = vpop.permute.xlu0 %2115
    %2117 = vrot.lane.b32.xlu0 %v375, 32
    %v2118 = vpop.permute.xlu0 %2117
    %v2120 = vsel %vm279, %v2116, 0
    %v2123 = vsel %vm279, %v2118, 0
    %2125 = vmatprep.subr.bf16.mxu0 0
    %2126 = vmatpush1.bf16.xpose.msra.mxu0 %v2123
    %2127 = vmatprep.subr.bf16.mxu0 0
    %2128 = vmatpush1.bf16.xpose.msra.mxu0 0
    %2129 = vmatprep.subr.bf16.mxu0 0
    %2130 = vmatpush1.bf16.xpose.msra.mxu0 0
    %2131 = vmatprep.subr.bf16.mxu0 0
    %2132 = vmatpush1.bf16.xpose.msra.mxu0 0
    %2133 = vmatprep.subr.bf16.mxu0 0
    %2134 = vmatpush1.bf16.xpose.msra.mxu0 0
    %2135 = vmatprep.subr.bf16.mxu0 0
    %2136 = vmatpush1.bf16.xpose.msra.mxu0 0
    %2137 = vmatprep.subr.bf16.mxu0 0
    %2138 = vmatpush1.bf16.xpose.msra.mxu0 0
    %2139 = vmatprep.subr.bf16.mxu0 0
    %2140 = vmatpush1.bf16.xpose.msra.mxu0 0
    %2141 = vmatprep.subr.bf16.mxu0 0
    %2142 = vmatpush1.bf16.xpose.msra.mxu0 0
    %2143 = vmatprep.subr.bf16.mxu0 0
    %2144 = vmatpush1.bf16.xpose.msra.mxu0 0
    %2145 = vmatprep.subr.bf16.mxu0 0
    %2146 = vmatpush1.bf16.xpose.msra.mxu0 0
    %2147 = vmatprep.subr.bf16.mxu0 0
    %2148 = vmatpush1.bf16.xpose.msra.mxu0 0
    %2149 = vmatprep.subr.bf16.mxu0 0
    %2150 = vmatpush1.bf16.xpose.msra.mxu0 0
    %2151 = vmatprep.subr.bf16.mxu0 0
    %2152 = vmatpush1.bf16.xpose.msra.mxu0 0
    %2153 = vmatprep.subr.bf16.mxu0 0
    %2154 = vmatpush1.bf16.xpose.msra.mxu0 0
    %2155 = vmatprep.subr.bf16.mxu0 0
    %2156 = vmatpush1.bf16.xpose.msra.mxu0 0
    %2157 = vmatprep.mubr.bf16.mxu0 0
    %2158 = vmatmul.mubr.bf16.gmra.mrb[0].mxu0 %v2120
    %v2159 = vpop.f32.mrb[0].mxu0
    %v2160 = vadd.f32 0.0, %v2159
    %v2161 = vpop.f32.mrb[0].mxu0
    %v2162 = vpop.f32.mrb[0].mxu0
    %v2163 = vpop.f32.mrb[0].mxu0
    %2164 = vdwg.mxu0
    %2165 = vrot.lane.b32.xlu0 %v231, 96
    %v2166 = vpop.permute.xlu0 %2165
    %2167 = vrot.lane.b32.xlu0 %v424, 32
    %v2168 = vpop.permute.xlu0 %2167
    %v2170 = vsel %vm279, %v2166, 0
    %v2173 = vsel %vm279, %v2168, 0
    %2175 = vmatprep.subr.bf16.mxu0 0
    %2176 = vmatpush1.bf16.xpose.msra.mxu0 %v2173
    %2177 = vmatprep.subr.bf16.mxu0 0
    %2178 = vmatpush1.bf16.xpose.msra.mxu0 0
    %2179 = vmatprep.subr.bf16.mxu0 0
    %2180 = vmatpush1.bf16.xpose.msra.mxu0 0
    %2181 = vmatprep.subr.bf16.mxu0 0
    %2182 = vmatpush1.bf16.xpose.msra.mxu0 0
    %2183 = vmatprep.subr.bf16.mxu0 0
    %2184 = vmatpush1.bf16.xpose.msra.mxu0 0
    %2185 = vmatprep.subr.bf16.mxu0 0
    %2186 = vmatpush1.bf16.xpose.msra.mxu0 0
    %2187 = vmatprep.subr.bf16.mxu0 0
    %2188 = vmatpush1.bf16.xpose.msra.mxu0 0
    %2189 = vmatprep.subr.bf16.mxu0 0
    %2190 = vmatpush1.bf16.xpose.msra.mxu0 0
    %2191 = vmatprep.subr.bf16.mxu0 0
    %2192 = vmatpush1.bf16.xpose.msra.mxu0 0
    %2193 = vmatprep.subr.bf16.mxu0 0
    %2194 = vmatpush1.bf16.xpose.msra.mxu0 0
    %2195 = vmatprep.subr.bf16.mxu0 0
    %2196 = vmatpush1.bf16.xpose.msra.mxu0 0
    %2197 = vmatprep.subr.bf16.mxu0 0
    %2198 = vmatpush1.bf16.xpose.msra.mxu0 0
    %2199 = vmatprep.subr.bf16.mxu0 0
    %2200 = vmatpush1.bf16.xpose.msra.mxu0 0
    %2201 = vmatprep.subr.bf16.mxu0 0
    %2202 = vmatpush1.bf16.xpose.msra.mxu0 0
    %2203 = vmatprep.subr.bf16.mxu0 0
    %2204 = vmatpush1.bf16.xpose.msra.mxu0 0
    %2205 = vmatprep.subr.bf16.mxu0 0
    %2206 = vmatpush1.bf16.xpose.msra.mxu0 0
    %2207 = vmatprep.mubr.bf16.mxu0 0
    %2208 = vmatmul.mubr.bf16.gmra.mrb[0].mxu0 %v2170
    %v2209 = vpop.f32.mrb[0].mxu0
    %v2210 = vadd.f32 0.0, %v2209
    %v2211 = vpop.f32.mrb[0].mxu0
    %v2212 = vpop.f32.mrb[0].mxu0
    %v2213 = vpop.f32.mrb[0].mxu0
    %2214 = vdwg.mxu0
    %2215 = vrot.lane.b32.xlu0 %v232, 96
    %v2216 = vpop.permute.xlu0 %2215
    %2217 = vrot.lane.b32.xlu0 %v473, 32
    %v2218 = vpop.permute.xlu0 %2217
    %v2220 = vsel %vm279, %v2216, 0
    %v2223 = vsel %vm279, %v2218, 0
    %2225 = vmatprep.subr.bf16.mxu0 0
    %2226 = vmatpush1.bf16.xpose.msra.mxu0 %v2223
    %2227 = vmatprep.subr.bf16.mxu0 0
    %2228 = vmatpush1.bf16.xpose.msra.mxu0 0
    %2229 = vmatprep.subr.bf16.mxu0 0
    %2230 = vmatpush1.bf16.xpose.msra.mxu0 0
    %2231 = vmatprep.subr.bf16.mxu0 0
    %2232 = vmatpush1.bf16.xpose.msra.mxu0 0
    %2233 = vmatprep.subr.bf16.mxu0 0
    %2234 = vmatpush1.bf16.xpose.msra.mxu0 0
    %2235 = vmatprep.subr.bf16.mxu0 0
    %2236 = vmatpush1.bf16.xpose.msra.mxu0 0
    %2237 = vmatprep.subr.bf16.mxu0 0
    %2238 = vmatpush1.bf16.xpose.msra.mxu0 0
    %2239 = vmatprep.subr.bf16.mxu0 0
    %2240 = vmatpush1.bf16.xpose.msra.mxu0 0
    %2241 = vmatprep.subr.bf16.mxu0 0
    %2242 = vmatpush1.bf16.xpose.msra.mxu0 0
    %2243 = vmatprep.subr.bf16.mxu0 0
    %2244 = vmatpush1.bf16.xpose.msra.mxu0 0
    %2245 = vmatprep.subr.bf16.mxu0 0
    %2246 = vmatpush1.bf16.xpose.msra.mxu0 0
    %2247 = vmatprep.subr.bf16.mxu0 0
    %2248 = vmatpush1.bf16.xpose.msra.mxu0 0
    %2249 = vmatprep.subr.bf16.mxu0 0
    %2250 = vmatpush1.bf16.xpose.msra.mxu0 0
    %2251 = vmatprep.subr.bf16.mxu0 0
    %2252 = vmatpush1.bf16.xpose.msra.mxu0 0
    %2253 = vmatprep.subr.bf16.mxu0 0
    %2254 = vmatpush1.bf16.xpose.msra.mxu0 0
    %2255 = vmatprep.subr.bf16.mxu0 0
    %2256 = vmatpush1.bf16.xpose.msra.mxu0 0
    %2257 = vmatprep.mubr.bf16.mxu0 0
    %2258 = vmatmul.mubr.bf16.gmra.mrb[0].mxu0 %v2220
    %v2259 = vpop.f32.mrb[0].mxu0
    %v2260 = vadd.f32 0.0, %v2259
    %v2261 = vpop.f32.mrb[0].mxu0
    %v2262 = vpop.f32.mrb[0].mxu0
    %v2263 = vpop.f32.mrb[0].mxu0
    %2264 = vdwg.mxu0
    %2265 = vrot.lane.b32.xlu0 %v233, 96
    %v2266 = vpop.permute.xlu0 %2265
    %2267 = vrot.lane.b32.xlu0 %v522, 32
    %v2268 = vpop.permute.xlu0 %2267
    %v2270 = vsel %vm279, %v2266, 0
    %v2273 = vsel %vm279, %v2268, 0
    %2275 = vmatprep.subr.bf16.mxu0 0
    %2276 = vmatpush1.bf16.xpose.msra.mxu0 %v2273
    %2277 = vmatprep.subr.bf16.mxu0 0
    %2278 = vmatpush1.bf16.xpose.msra.mxu0 0
    %2279 = vmatprep.subr.bf16.mxu0 0
    %2280 = vmatpush1.bf16.xpose.msra.mxu0 0
    %2281 = vmatprep.subr.bf16.mxu0 0
    %2282 = vmatpush1.bf16.xpose.msra.mxu0 0
    %2283 = vmatprep.subr.bf16.mxu0 0
    %2284 = vmatpush1.bf16.xpose.msra.mxu0 0
    %2285 = vmatprep.subr.bf16.mxu0 0
    %2286 = vmatpush1.bf16.xpose.msra.mxu0 0
    %2287 = vmatprep.subr.bf16.mxu0 0
    %2288 = vmatpush1.bf16.xpose.msra.mxu0 0
    %2289 = vmatprep.subr.bf16.mxu0 0
    %2290 = vmatpush1.bf16.xpose.msra.mxu0 0
    %2291 = vmatprep.subr.bf16.mxu0 0
    %2292 = vmatpush1.bf16.xpose.msra.mxu0 0
    %2293 = vmatprep.subr.bf16.mxu0 0
    %2294 = vmatpush1.bf16.xpose.msra.mxu0 0
    %2295 = vmatprep.subr.bf16.mxu0 0
    %2296 = vmatpush1.bf16.xpose.msra.mxu0 0
    %2297 = vmatprep.subr.bf16.mxu0 0
    %2298 = vmatpush1.bf16.xpose.msra.mxu0 0
    %2299 = vmatprep.subr.bf16.mxu0 0
    %2300 = vmatpush1.bf16.xpose.msra.mxu0 0
    %2301 = vmatprep.subr.bf16.mxu0 0
    %2302 = vmatpush1.bf16.xpose.msra.mxu0 0
    %2303 = vmatprep.subr.bf16.mxu0 0
    %2304 = vmatpush1.bf16.xpose.msra.mxu0 0
    %2305 = vmatprep.subr.bf16.mxu0 0
    %2306 = vmatpush1.bf16.xpose.msra.mxu0 0
    %2307 = vmatprep.mubr.bf16.mxu0 0
    %2308 = vmatmul.mubr.bf16.gmra.mrb[0].mxu0 %v2270
    %v2309 = vpop.f32.mrb[0].mxu0
    %v2310 = vadd.f32 0.0, %v2309
    %v2311 = vpop.f32.mrb[0].mxu0
    %v2312 = vpop.f32.mrb[0].mxu0
    %v2313 = vpop.f32.mrb[0].mxu0
    %2314 = vdwg.mxu0
    %2315 = vrot.lane.b32.xlu0 %v234, 96
    %v2316 = vpop.permute.xlu0 %2315
    %2317 = vrot.lane.b32.xlu0 %v571, 32
    %v2318 = vpop.permute.xlu0 %2317
    %v2320 = vsel %vm279, %v2316, 0
    %v2323 = vsel %vm279, %v2318, 0
    %2325 = vmatprep.subr.bf16.mxu0 0
    %2326 = vmatpush1.bf16.xpose.msra.mxu0 %v2323
    %2327 = vmatprep.subr.bf16.mxu0 0
    %2328 = vmatpush1.bf16.xpose.msra.mxu0 0
    %2329 = vmatprep.subr.bf16.mxu0 0
    %2330 = vmatpush1.bf16.xpose.msra.mxu0 0
    %2331 = vmatprep.subr.bf16.mxu0 0
    %2332 = vmatpush1.bf16.xpose.msra.mxu0 0
    %2333 = vmatprep.subr.bf16.mxu0 0
    %2334 = vmatpush1.bf16.xpose.msra.mxu0 0
    %2335 = vmatprep.subr.bf16.mxu0 0
    %2336 = vmatpush1.bf16.xpose.msra.mxu0 0
    %2337 = vmatprep.subr.bf16.mxu0 0
    %2338 = vmatpush1.bf16.xpose.msra.mxu0 0
    %2339 = vmatprep.subr.bf16.mxu0 0
    %2340 = vmatpush1.bf16.xpose.msra.mxu0 0
    %2341 = vmatprep.subr.bf16.mxu0 0
    %2342 = vmatpush1.bf16.xpose.msra.mxu0 0
    %2343 = vmatprep.subr.bf16.mxu0 0
    %2344 = vmatpush1.bf16.xpose.msra.mxu0 0
    %2345 = vmatprep.subr.bf16.mxu0 0
    %2346 = vmatpush1.bf16.xpose.msra.mxu0 0
    %2347 = vmatprep.subr.bf16.mxu0 0
    %2348 = vmatpush1.bf16.xpose.msra.mxu0 0
    %2349 = vmatprep.subr.bf16.mxu0 0
    %2350 = vmatpush1.bf16.xpose.msra.mxu0 0
    %2351 = vmatprep.subr.bf16.mxu0 0
    %2352 = vmatpush1.bf16.xpose.msra.mxu0 0
    %2353 = vmatprep.subr.bf16.mxu0 0
    %2354 = vmatpush1.bf16.xpose.msra.mxu0 0
    %2355 = vmatprep.subr.bf16.mxu0 0
    %2356 = vmatpush1.bf16.xpose.msra.mxu0 0
    %2357 = vmatprep.mubr.bf16.mxu0 0
    %2358 = vmatmul.mubr.bf16.gmra.mrb[0].mxu0 %v2320
    %v2359 = vpop.f32.mrb[0].mxu0
    %v2360 = vadd.f32 0.0, %v2359
    %v2361 = vpop.f32.mrb[0].mxu0
    %v2362 = vpop.f32.mrb[0].mxu0
    %v2363 = vpop.f32.mrb[0].mxu0
    %2364 = vdwg.mxu0
    %2365 = vrot.lane.b32.xlu0 %v235, 96
    %v2366 = vpop.permute.xlu0 %2365
    %2367 = vrot.lane.b32.xlu0 %v620, 32
    %v2368 = vpop.permute.xlu0 %2367
    %v2370 = vsel %vm279, %v2366, 0
    %v2373 = vsel %vm279, %v2368, 0
    %2375 = vmatprep.subr.bf16.mxu0 0
    %2376 = vmatpush1.bf16.xpose.msra.mxu0 %v2373
    %2377 = vmatprep.subr.bf16.mxu0 0
    %2378 = vmatpush1.bf16.xpose.msra.mxu0 0
    %2379 = vmatprep.subr.bf16.mxu0 0
    %2380 = vmatpush1.bf16.xpose.msra.mxu0 0
    %2381 = vmatprep.subr.bf16.mxu0 0
    %2382 = vmatpush1.bf16.xpose.msra.mxu0 0
    %2383 = vmatprep.subr.bf16.mxu0 0
    %2384 = vmatpush1.bf16.xpose.msra.mxu0 0
    %2385 = vmatprep.subr.bf16.mxu0 0
    %2386 = vmatpush1.bf16.xpose.msra.mxu0 0
    %2387 = vmatprep.subr.bf16.mxu0 0
    %2388 = vmatpush1.bf16.xpose.msra.mxu0 0
    %2389 = vmatprep.subr.bf16.mxu0 0
    %2390 = vmatpush1.bf16.xpose.msra.mxu0 0
    %2391 = vmatprep.subr.bf16.mxu0 0
    %2392 = vmatpush1.bf16.xpose.msra.mxu0 0
    %2393 = vmatprep.subr.bf16.mxu0 0
    %2394 = vmatpush1.bf16.xpose.msra.mxu0 0
    %2395 = vmatprep.subr.bf16.mxu0 0
    %2396 = vmatpush1.bf16.xpose.msra.mxu0 0
    %2397 = vmatprep.subr.bf16.mxu0 0
    %2398 = vmatpush1.bf16.xpose.msra.mxu0 0
    %2399 = vmatprep.subr.bf16.mxu0 0
    %2400 = vmatpush1.bf16.xpose.msra.mxu0 0
    %2401 = vmatprep.subr.bf16.mxu0 0
    %2402 = vmatpush1.bf16.xpose.msra.mxu0 0
    %2403 = vmatprep.subr.bf16.mxu0 0
    %2404 = vmatpush1.bf16.xpose.msra.mxu0 0
    %2405 = vmatprep.subr.bf16.mxu0 0
    %2406 = vmatpush1.bf16.xpose.msra.mxu0 0
    %2407 = vmatprep.mubr.bf16.mxu0 0
    %2408 = vmatmul.mubr.bf16.gmra.mrb[0].mxu0 %v2370
    %v2409 = vpop.f32.mrb[0].mxu0
    %v2410 = vadd.f32 0.0, %v2409
    %v2411 = vpop.f32.mrb[0].mxu0
    %v2412 = vpop.f32.mrb[0].mxu0
    %v2413 = vpop.f32.mrb[0].mxu0
    %2414 = vdwg.mxu0
    %v2415 = vsel %vm669, %v2060, -inf
    %2416 = vmax.xlane.f32.xlu0 %v2415
    %v2417 = vpop.xlane.xlu0 %2416
    %v2418 = vsel %vm669, %v2110, -inf
    %2419 = vmax.xlane.f32.xlu0 %v2418
    %v2420 = vpop.xlane.xlu0 %2419
    %v2421 = vsel %vm669, %v2160, -inf
    %2422 = vmax.xlane.f32.xlu0 %v2421
    %v2423 = vpop.xlane.xlu0 %2422
    %v2424 = vsel %vm669, %v2210, -inf
    %2425 = vmax.xlane.f32.xlu0 %v2424
    %v2426 = vpop.xlane.xlu0 %2425
    %v2427 = vsel %vm669, %v2260, -inf
    %2428 = vmax.xlane.f32.xlu0 %v2427
    %v2429 = vpop.xlane.xlu0 %2428
    %v2430 = vsel %vm669, %v2310, -inf
    %2431 = vmax.xlane.f32.xlu0 %v2430
    %v2432 = vpop.xlane.xlu0 %2431
    %v2433 = vsel %vm669, %v2360, -inf
    %2434 = vmax.xlane.f32.xlu0 %v2433
    %v2435 = vpop.xlane.xlu0 %2434
    %v2436 = vsel %vm669, %v2410, -inf
    %2437 = vmax.xlane.f32.xlu0 %v2436
    %v2438 = vpop.xlane.xlu0 %2437
    %v2439 = vsub.f32 %v2060, %v2417
    %v2440 = vsub.f32 %v2110, %v2420
    %v2441 = vsub.f32 %v2160, %v2423
    %v2442 = vsub.f32 %v2210, %v2426
    %v2443 = vsub.f32 %v2260, %v2429
    %v2444 = vsub.f32 %v2310, %v2432
    %v2445 = vsub.f32 %v2360, %v2435
    %v2446 = vsub.f32 %v2410, %v2438
    %v2447 = vmul.f32 %v2439, 1.442695
    %v2448 = vpow.pop %v2447
    %v2449 = vmul.f32 %v2440, 1.442695
    %v2450 = vpow.pop %v2449
    %v2451 = vmul.f32 %v2441, 1.442695
    %v2452 = vpow.pop %v2451
    %v2453 = vmul.f32 %v2442, 1.442695
    %v2454 = vpow.pop %v2453
    %v2455 = vmul.f32 %v2443, 1.442695
    %v2456 = vpow.pop %v2455
    %v2457 = vmul.f32 %v2444, 1.442695
    %v2458 = vpow.pop %v2457
    %v2459 = vmul.f32 %v2445, 1.442695
    %v2460 = vpow.pop %v2459
    %v2461 = vmul.f32 %v2446, 1.442695
    %v2462 = vpow.pop %v2461
    %v2463 = vsel %vm669, %v2448, 0.0
    %2464 = vadd.xlane.f32.xlu0 %v2463
    %v2465 = vpop.xlane.xlu0 %2464
    %v2466 = vsel %vm669, %v2450, 0.0
    %2467 = vadd.xlane.f32.xlu0 %v2466
    %v2468 = vpop.xlane.xlu0 %2467
    %v2469 = vsel %vm669, %v2452, 0.0
    %2470 = vadd.xlane.f32.xlu0 %v2469
    %v2471 = vpop.xlane.xlu0 %2470
    %v2472 = vsel %vm669, %v2454, 0.0
    %2473 = vadd.xlane.f32.xlu0 %v2472
    %v2474 = vpop.xlane.xlu0 %2473
    %v2475 = vsel %vm669, %v2456, 0.0
    %2476 = vadd.xlane.f32.xlu0 %v2475
    %v2477 = vpop.xlane.xlu0 %2476
    %v2478 = vsel %vm669, %v2458, 0.0
    %2479 = vadd.xlane.f32.xlu0 %v2478
    %v2480 = vpop.xlane.xlu0 %2479
    %v2481 = vsel %vm669, %v2460, 0.0
    %2482 = vadd.xlane.f32.xlu0 %v2481
    %v2483 = vpop.xlane.xlu0 %2482
    %v2484 = vsel %vm669, %v2462, 0.0
    %2485 = vadd.xlane.f32.xlu0 %v2484
    %v2486 = vpop.xlane.xlu0 %2485
    %v2487 = vrcp.pop %v2465
    %v2488 = vrcp.pop %v2468
    %v2489 = vrcp.pop %v2471
    %v2490 = vrcp.pop %v2474
    %v2491 = vrcp.pop %v2477
    %v2492 = vrcp.pop %v2480
    %v2493 = vrcp.pop %v2483
    %v2494 = vrcp.pop %v2486
    %v2495 = vmul.f32 %v2448, %v2487
    %v2496 = vmul.f32 %v2450, %v2488
    %v2497 = vmul.f32 %v2452, %v2489
    %v2498 = vmul.f32 %v2454, %v2490
    %v2499 = vmul.f32 %v2456, %v2491
    %v2500 = vmul.f32 %v2458, %v2492
    %v2501 = vmul.f32 %v2460, %v2493
    %v2502 = vmul.f32 %v2462, %v2494
    %v2503 = vpack.c.bf16 %v2495, %v2495
    %v2504 = vpack.c.bf16 %v2496, %v2496
    %v2505 = vpack.c.bf16 %v2497, %v2497
    %v2506 = vpack.c.bf16 %v2498, %v2498
    %v2507 = vpack.c.bf16 %v2499, %v2499
    %v2508 = vpack.c.bf16 %v2500, %v2500
    %v2509 = vpack.c.bf16 %v2501, %v2501
    %v2510 = vpack.c.bf16 %v2502, %v2502
    %2511 = vrot.lane.b32.xlu0 %v268, 96
    %v2512 = vpop.permute.xlu0 %2511
    %v2514 = vsel %vm669, %v2503, 0
    %v2517 = vsel %vm769, %v2512, 0
    %2519 = vmatprep.subr.bf16.mxu0 0
    %2520 = vmatpush1.bf16.msra.mxu0 %v2517
    %2521 = vmatprep.subr.bf16.mxu0 0
    %2522 = vmatpush1.bf16.msra.mxu0 0
    %2523 = vmatprep.subr.bf16.mxu0 0
    %2524 = vmatpush1.bf16.msra.mxu0 0
    %2525 = vmatprep.subr.bf16.mxu0 0
    %2526 = vmatpush1.bf16.msra.mxu0 0
    %2527 = vmatprep.subr.bf16.mxu0 0
    %2528 = vmatpush1.bf16.msra.mxu0 0
    %2529 = vmatprep.subr.bf16.mxu0 0
    %2530 = vmatpush1.bf16.msra.mxu0 0
    %2531 = vmatprep.subr.bf16.mxu0 0
    %2532 = vmatpush1.bf16.msra.mxu0 0
    %2533 = vmatprep.subr.bf16.mxu0 0
    %2534 = vmatpush1.bf16.msra.mxu0 0
    %2535 = vmatprep.subr.bf16.mxu0 0
    %2536 = vmatpush1.bf16.msra.mxu0 0
    %2537 = vmatprep.subr.bf16.mxu0 0
    %2538 = vmatpush1.bf16.msra.mxu0 0
    %2539 = vmatprep.subr.bf16.mxu0 0
    %2540 = vmatpush1.bf16.msra.mxu0 0
    %2541 = vmatprep.subr.bf16.mxu0 0
    %2542 = vmatpush1.bf16.msra.mxu0 0
    %2543 = vmatprep.subr.bf16.mxu0 0
    %2544 = vmatpush1.bf16.msra.mxu0 0
    %2545 = vmatprep.subr.bf16.mxu0 0
    %2546 = vmatpush1.bf16.msra.mxu0 0
    %2547 = vmatprep.subr.bf16.mxu0 0
    %2548 = vmatpush1.bf16.msra.mxu0 0
    %2549 = vmatprep.subr.bf16.mxu0 0
    %2550 = vmatpush1.bf16.msra.mxu0 0
    %2551 = vmatprep.mubr.bf16.mxu0 0
    %2552 = vmatmul.mubr.bf16.gmra.mrb[0].mxu0 %v2514
    %v2553 = vpop.f32.mrb[0].mxu0
    %v2554 = vadd.f32 0.0, %v2553
    %v2555 = vpop.f32.mrb[0].mxu0
    %v2556 = vpop.f32.mrb[0].mxu0
    %v2557 = vpop.f32.mrb[0].mxu0
    %2558 = vdwg.mxu0
    %2559 = vrot.lane.b32.xlu0 %v269, 96
    %v2560 = vpop.permute.xlu0 %2559
    %v2562 = vsel %vm669, %v2504, 0
    %v2565 = vsel %vm769, %v2560, 0
    %2567 = vmatprep.subr.bf16.mxu0 0
    %2568 = vmatpush1.bf16.msra.mxu0 %v2565
    %2569 = vmatprep.subr.bf16.mxu0 0
    %2570 = vmatpush1.bf16.msra.mxu0 0
    %2571 = vmatprep.subr.bf16.mxu0 0
    %2572 = vmatpush1.bf16.msra.mxu0 0
    %2573 = vmatprep.subr.bf16.mxu0 0
    %2574 = vmatpush1.bf16.msra.mxu0 0
    %2575 = vmatprep.subr.bf16.mxu0 0
    %2576 = vmatpush1.bf16.msra.mxu0 0
    %2577 = vmatprep.subr.bf16.mxu0 0
    %2578 = vmatpush1.bf16.msra.mxu0 0
    %2579 = vmatprep.subr.bf16.mxu0 0
    %2580 = vmatpush1.bf16.msra.mxu0 0
    %2581 = vmatprep.subr.bf16.mxu0 0
    %2582 = vmatpush1.bf16.msra.mxu0 0
    %2583 = vmatprep.subr.bf16.mxu0 0
    %2584 = vmatpush1.bf16.msra.mxu0 0
    %2585 = vmatprep.subr.bf16.mxu0 0
    %2586 = vmatpush1.bf16.msra.mxu0 0
    %2587 = vmatprep.subr.bf16.mxu0 0
    %2588 = vmatpush1.bf16.msra.mxu0 0
    %2589 = vmatprep.subr.bf16.mxu0 0
    %2590 = vmatpush1.bf16.msra.mxu0 0
    %2591 = vmatprep.subr.bf16.mxu0 0
    %2592 = vmatpush1.bf16.msra.mxu0 0
    %2593 = vmatprep.subr.bf16.mxu0 0
    %2594 = vmatpush1.bf16.msra.mxu0 0
    %2595 = vmatprep.subr.bf16.mxu0 0
    %2596 = vmatpush1.bf16.msra.mxu0 0
    %2597 = vmatprep.subr.bf16.mxu0 0
    %2598 = vmatpush1.bf16.msra.mxu0 0
    %2599 = vmatprep.mubr.bf16.mxu0 0
    %2600 = vmatmul.mubr.bf16.gmra.mrb[0].mxu0 %v2562
    %v2601 = vpop.f32.mrb[0].mxu0
    %v2602 = vadd.f32 0.0, %v2601
    %v2603 = vpop.f32.mrb[0].mxu0
    %v2604 = vpop.f32.mrb[0].mxu0
    %v2605 = vpop.f32.mrb[0].mxu0
    %2606 = vdwg.mxu0
    %2607 = vrot.lane.b32.xlu0 %v270, 96
    %v2608 = vpop.permute.xlu0 %2607
    %v2610 = vsel %vm669, %v2505, 0
    %v2613 = vsel %vm769, %v2608, 0
    %2615 = vmatprep.subr.bf16.mxu0 0
    %2616 = vmatpush1.bf16.msra.mxu0 %v2613
    %2617 = vmatprep.subr.bf16.mxu0 0
    %2618 = vmatpush1.bf16.msra.mxu0 0
    %2619 = vmatprep.subr.bf16.mxu0 0
    %2620 = vmatpush1.bf16.msra.mxu0 0
    %2621 = vmatprep.subr.bf16.mxu0 0
    %2622 = vmatpush1.bf16.msra.mxu0 0
    %2623 = vmatprep.subr.bf16.mxu0 0
    %2624 = vmatpush1.bf16.msra.mxu0 0
    %2625 = vmatprep.subr.bf16.mxu0 0
    %2626 = vmatpush1.bf16.msra.mxu0 0
    %2627 = vmatprep.subr.bf16.mxu0 0
    %2628 = vmatpush1.bf16.msra.mxu0 0
    %2629 = vmatprep.subr.bf16.mxu0 0
    %2630 = vmatpush1.bf16.msra.mxu0 0
    %2631 = vmatprep.subr.bf16.mxu0 0
    %2632 = vmatpush1.bf16.msra.mxu0 0
    %2633 = vmatprep.subr.bf16.mxu0 0
    %2634 = vmatpush1.bf16.msra.mxu0 0
    %2635 = vmatprep.subr.bf16.mxu0 0
    %2636 = vmatpush1.bf16.msra.mxu0 0
    %2637 = vmatprep.subr.bf16.mxu0 0
    %2638 = vmatpush1.bf16.msra.mxu0 0
    %2639 = vmatprep.subr.bf16.mxu0 0
    %2640 = vmatpush1.bf16.msra.mxu0 0
    %2641 = vmatprep.subr.bf16.mxu0 0
    %2642 = vmatpush1.bf16.msra.mxu0 0
    %2643 = vmatprep.subr.bf16.mxu0 0
    %2644 = vmatpush1.bf16.msra.mxu0 0
    %2645 = vmatprep.subr.bf16.mxu0 0
    %2646 = vmatpush1.bf16.msra.mxu0 0
    %2647 = vmatprep.mubr.bf16.mxu0 0
    %2648 = vmatmul.mubr.bf16.gmra.mrb[0].mxu0 %v2610
    %v2649 = vpop.f32.mrb[0].mxu0
    %v2650 = vadd.f32 0.0, %v2649
    %v2651 = vpop.f32.mrb[0].mxu0
    %v2652 = vpop.f32.mrb[0].mxu0
    %v2653 = vpop.f32.mrb[0].mxu0
    %2654 = vdwg.mxu0
    %2655 = vrot.lane.b32.xlu0 %v271, 96
    %v2656 = vpop.permute.xlu0 %2655
    %v2658 = vsel %vm669, %v2506, 0
    %v2661 = vsel %vm769, %v2656, 0
    %2663 = vmatprep.subr.bf16.mxu0 0
    %2664 = vmatpush1.bf16.msra.mxu0 %v2661
    %2665 = vmatprep.subr.bf16.mxu0 0
    %2666 = vmatpush1.bf16.msra.mxu0 0
    %2667 = vmatprep.subr.bf16.mxu0 0
    %2668 = vmatpush1.bf16.msra.mxu0 0
    %2669 = vmatprep.subr.bf16.mxu0 0
    %2670 = vmatpush1.bf16.msra.mxu0 0
    %2671 = vmatprep.subr.bf16.mxu0 0
    %2672 = vmatpush1.bf16.msra.mxu0 0
    %2673 = vmatprep.subr.bf16.mxu0 0
    %2674 = vmatpush1.bf16.msra.mxu0 0
    %2675 = vmatprep.subr.bf16.mxu0 0
    %2676 = vmatpush1.bf16.msra.mxu0 0
    %2677 = vmatprep.subr.bf16.mxu0 0
    %2678 = vmatpush1.bf16.msra.mxu0 0
    %2679 = vmatprep.subr.bf16.mxu0 0
    %2680 = vmatpush1.bf16.msra.mxu0 0
    %2681 = vmatprep.subr.bf16.mxu0 0
    %2682 = vmatpush1.bf16.msra.mxu0 0
    %2683 = vmatprep.subr.bf16.mxu0 0
    %2684 = vmatpush1.bf16.msra.mxu0 0
    %2685 = vmatprep.subr.bf16.mxu0 0
    %2686 = vmatpush1.bf16.msra.mxu0 0
    %2687 = vmatprep.subr.bf16.mxu0 0
    %2688 = vmatpush1.bf16.msra.mxu0 0
    %2689 = vmatprep.subr.bf16.mxu0 0
    %2690 = vmatpush1.bf16.msra.mxu0 0
    %2691 = vmatprep.subr.bf16.mxu0 0
    %2692 = vmatpush1.bf16.msra.mxu0 0
    %2693 = vmatprep.subr.bf16.mxu0 0
    %2694 = vmatpush1.bf16.msra.mxu0 0
    %2695 = vmatprep.mubr.bf16.mxu0 0
    %2696 = vmatmul.mubr.bf16.gmra.mrb[0].mxu0 %v2658
    %v2697 = vpop.f32.mrb[0].mxu0
    %v2698 = vadd.f32 0.0, %v2697
    %v2699 = vpop.f32.mrb[0].mxu0
    %v2700 = vpop.f32.mrb[0].mxu0
    %v2701 = vpop.f32.mrb[0].mxu0
    %2702 = vdwg.mxu0
    %2703 = vrot.lane.b32.xlu0 %v272, 96
    %v2704 = vpop.permute.xlu0 %2703
    %v2706 = vsel %vm669, %v2507, 0
    %v2709 = vsel %vm769, %v2704, 0
    %2711 = vmatprep.subr.bf16.mxu0 0
    %2712 = vmatpush1.bf16.msra.mxu0 %v2709
    %2713 = vmatprep.subr.bf16.mxu0 0
    %2714 = vmatpush1.bf16.msra.mxu0 0
    %2715 = vmatprep.subr.bf16.mxu0 0
    %2716 = vmatpush1.bf16.msra.mxu0 0
    %2717 = vmatprep.subr.bf16.mxu0 0
    %2718 = vmatpush1.bf16.msra.mxu0 0
    %2719 = vmatprep.subr.bf16.mxu0 0
    %2720 = vmatpush1.bf16.msra.mxu0 0
    %2721 = vmatprep.subr.bf16.mxu0 0
    %2722 = vmatpush1.bf16.msra.mxu0 0
    %2723 = vmatprep.subr.bf16.mxu0 0
    %2724 = vmatpush1.bf16.msra.mxu0 0
    %2725 = vmatprep.subr.bf16.mxu0 0
    %2726 = vmatpush1.bf16.msra.mxu0 0
    %2727 = vmatprep.subr.bf16.mxu0 0
    %2728 = vmatpush1.bf16.msra.mxu0 0
    %2729 = vmatprep.subr.bf16.mxu0 0
    %2730 = vmatpush1.bf16.msra.mxu0 0
    %2731 = vmatprep.subr.bf16.mxu0 0
    %2732 = vmatpush1.bf16.msra.mxu0 0
    %2733 = vmatprep.subr.bf16.mxu0 0
    %2734 = vmatpush1.bf16.msra.mxu0 0
    %2735 = vmatprep.subr.bf16.mxu0 0
    %2736 = vmatpush1.bf16.msra.mxu0 0
    %2737 = vmatprep.subr.bf16.mxu0 0
    %2738 = vmatpush1.bf16.msra.mxu0 0
    %2739 = vmatprep.subr.bf16.mxu0 0
    %2740 = vmatpush1.bf16.msra.mxu0 0
    %2741 = vmatprep.subr.bf16.mxu0 0
    %2742 = vmatpush1.bf16.msra.mxu0 0
    %2743 = vmatprep.mubr.bf16.mxu0 0
    %2744 = vmatmul.mubr.bf16.gmra.mrb[0].mxu0 %v2706
    %v2745 = vpop.f32.mrb[0].mxu0
    %v2746 = vadd.f32 0.0, %v2745
    %v2747 = vpop.f32.mrb[0].mxu0
    %v2748 = vpop.f32.mrb[0].mxu0
    %v2749 = vpop.f32.mrb[0].mxu0
    %2750 = vdwg.mxu0
    %2751 = vrot.lane.b32.xlu0 %v273, 96
    %v2752 = vpop.permute.xlu0 %2751
    %v2754 = vsel %vm669, %v2508, 0
    %v2757 = vsel %vm769, %v2752, 0
    %2759 = vmatprep.subr.bf16.mxu0 0
    %2760 = vmatpush1.bf16.msra.mxu0 %v2757
    %2761 = vmatprep.subr.bf16.mxu0 0
    %2762 = vmatpush1.bf16.msra.mxu0 0
    %2763 = vmatprep.subr.bf16.mxu0 0
    %2764 = vmatpush1.bf16.msra.mxu0 0
    %2765 = vmatprep.subr.bf16.mxu0 0
    %2766 = vmatpush1.bf16.msra.mxu0 0
    %2767 = vmatprep.subr.bf16.mxu0 0
    %2768 = vmatpush1.bf16.msra.mxu0 0
    %2769 = vmatprep.subr.bf16.mxu0 0
    %2770 = vmatpush1.bf16.msra.mxu0 0
    %2771 = vmatprep.subr.bf16.mxu0 0
    %2772 = vmatpush1.bf16.msra.mxu0 0
    %2773 = vmatprep.subr.bf16.mxu0 0
    %2774 = vmatpush1.bf16.msra.mxu0 0
    %2775 = vmatprep.subr.bf16.mxu0 0
    %2776 = vmatpush1.bf16.msra.mxu0 0
    %2777 = vmatprep.subr.bf16.mxu0 0
    %2778 = vmatpush1.bf16.msra.mxu0 0
    %2779 = vmatprep.subr.bf16.mxu0 0
    %2780 = vmatpush1.bf16.msra.mxu0 0
    %2781 = vmatprep.subr.bf16.mxu0 0
    %2782 = vmatpush1.bf16.msra.mxu0 0
    %2783 = vmatprep.subr.bf16.mxu0 0
    %2784 = vmatpush1.bf16.msra.mxu0 0
    %2785 = vmatprep.subr.bf16.mxu0 0
    %2786 = vmatpush1.bf16.msra.mxu0 0
    %2787 = vmatprep.subr.bf16.mxu0 0
    %2788 = vmatpush1.bf16.msra.mxu0 0
    %2789 = vmatprep.subr.bf16.mxu0 0
    %2790 = vmatpush1.bf16.msra.mxu0 0
    %2791 = vmatprep.mubr.bf16.mxu0 0
    %2792 = vmatmul.mubr.bf16.gmra.mrb[0].mxu0 %v2754
    %v2793 = vpop.f32.mrb[0].mxu0
    %v2794 = vadd.f32 0.0, %v2793
    %v2795 = vpop.f32.mrb[0].mxu0
    %v2796 = vpop.f32.mrb[0].mxu0
    %v2797 = vpop.f32.mrb[0].mxu0
    %2798 = vdwg.mxu0
    %2799 = vrot.lane.b32.xlu0 %v274, 96
    %v2800 = vpop.permute.xlu0 %2799
    %v2802 = vsel %vm669, %v2509, 0
    %v2805 = vsel %vm769, %v2800, 0
    %2807 = vmatprep.subr.bf16.mxu0 0
    %2808 = vmatpush1.bf16.msra.mxu0 %v2805
    %2809 = vmatprep.subr.bf16.mxu0 0
    %2810 = vmatpush1.bf16.msra.mxu0 0
    %2811 = vmatprep.subr.bf16.mxu0 0
    %2812 = vmatpush1.bf16.msra.mxu0 0
    %2813 = vmatprep.subr.bf16.mxu0 0
    %2814 = vmatpush1.bf16.msra.mxu0 0
    %2815 = vmatprep.subr.bf16.mxu0 0
    %2816 = vmatpush1.bf16.msra.mxu0 0
    %2817 = vmatprep.subr.bf16.mxu0 0
    %2818 = vmatpush1.bf16.msra.mxu0 0
    %2819 = vmatprep.subr.bf16.mxu0 0
    %2820 = vmatpush1.bf16.msra.mxu0 0
    %2821 = vmatprep.subr.bf16.mxu0 0
    %2822 = vmatpush1.bf16.msra.mxu0 0
    %2823 = vmatprep.subr.bf16.mxu0 0
    %2824 = vmatpush1.bf16.msra.mxu0 0
    %2825 = vmatprep.subr.bf16.mxu0 0
    %2826 = vmatpush1.bf16.msra.mxu0 0
    %2827 = vmatprep.subr.bf16.mxu0 0
    %2828 = vmatpush1.bf16.msra.mxu0 0
    %2829 = vmatprep.subr.bf16.mxu0 0
    %2830 = vmatpush1.bf16.msra.mxu0 0
    %2831 = vmatprep.subr.bf16.mxu0 0
    %2832 = vmatpush1.bf16.msra.mxu0 0
    %2833 = vmatprep.subr.bf16.mxu0 0
    %2834 = vmatpush1.bf16.msra.mxu0 0
    %2835 = vmatprep.subr.bf16.mxu0 0
    %2836 = vmatpush1.bf16.msra.mxu0 0
    %2837 = vmatprep.subr.bf16.mxu0 0
    %2838 = vmatpush1.bf16.msra.mxu0 0
    %2839 = vmatprep.mubr.bf16.mxu0 0
    %2840 = vmatmul.mubr.bf16.gmra.mrb[0].mxu0 %v2802
    %v2841 = vpop.f32.mrb[0].mxu0
    %v2842 = vadd.f32 0.0, %v2841
    %v2843 = vpop.f32.mrb[0].mxu0
    %v2844 = vpop.f32.mrb[0].mxu0
    %v2845 = vpop.f32.mrb[0].mxu0
    %2846 = vdwg.mxu0
    %2847 = vrot.lane.b32.xlu0 %v275, 96
    %v2848 = vpop.permute.xlu0 %2847
    %v2850 = vsel %vm669, %v2510, 0
    %v2853 = vsel %vm769, %v2848, 0
    %2855 = vmatprep.subr.bf16.mxu0 0
    %2856 = vmatpush1.bf16.msra.mxu0 %v2853
    %2857 = vmatprep.subr.bf16.mxu0 0
    %2858 = vmatpush1.bf16.msra.mxu0 0
    %2859 = vmatprep.subr.bf16.mxu0 0
    %2860 = vmatpush1.bf16.msra.mxu0 0
    %2861 = vmatprep.subr.bf16.mxu0 0
    %2862 = vmatpush1.bf16.msra.mxu0 0
    %2863 = vmatprep.subr.bf16.mxu0 0
    %2864 = vmatpush1.bf16.msra.mxu0 0
    %2865 = vmatprep.subr.bf16.mxu0 0
    %2866 = vmatpush1.bf16.msra.mxu0 0
    %2867 = vmatprep.subr.bf16.mxu0 0
    %2868 = vmatpush1.bf16.msra.mxu0 0
    %2869 = vmatprep.subr.bf16.mxu0 0
    %2870 = vmatpush1.bf16.msra.mxu0 0
    %2871 = vmatprep.subr.bf16.mxu0 0
    %2872 = vmatpush1.bf16.msra.mxu0 0
    %2873 = vmatprep.subr.bf16.mxu0 0
    %2874 = vmatpush1.bf16.msra.mxu0 0
    %2875 = vmatprep.subr.bf16.mxu0 0
    %2876 = vmatpush1.bf16.msra.mxu0 0
    %2877 = vmatprep.subr.bf16.mxu0 0
    %2878 = vmatpush1.bf16.msra.mxu0 0
    %2879 = vmatprep.subr.bf16.mxu0 0
    %2880 = vmatpush1.bf16.msra.mxu0 0
    %2881 = vmatprep.subr.bf16.mxu0 0
    %2882 = vmatpush1.bf16.msra.mxu0 0
    %2883 = vmatprep.subr.bf16.mxu0 0
    %2884 = vmatpush1.bf16.msra.mxu0 0
    %2885 = vmatprep.subr.bf16.mxu0 0
    %2886 = vmatpush1.bf16.msra.mxu0 0
    %2887 = vmatprep.mubr.bf16.mxu0 0
    %2888 = vmatmul.mubr.bf16.gmra.mrb[0].mxu0 %v2850
    %v2889 = vpop.f32.mrb[0].mxu0
    %v2890 = vadd.f32 0.0, %v2889
    %v2891 = vpop.f32.mrb[0].mxu0
    %v2892 = vpop.f32.mrb[0].mxu0
    %v2893 = vpop.f32.mrb[0].mxu0
    %2894 = vdwg.mxu0
    %2895 = vrot.lane.b32.xlu0 %v228, 80
    %v2896 = vpop.permute.xlu0 %2895
    %2897 = vrot.lane.b32.xlu0 %v276, 16
    %v2898 = vpop.permute.xlu0 %2897
    %v2900 = vsel %vm279, %v2896, 0
    %v2903 = vsel %vm279, %v2898, 0
    %2905 = vmatprep.subr.bf16.mxu0 0
    %2906 = vmatpush1.bf16.xpose.msra.mxu0 %v2903
    %2907 = vmatprep.subr.bf16.mxu0 0
    %2908 = vmatpush1.bf16.xpose.msra.mxu0 0
    %2909 = vmatprep.subr.bf16.mxu0 0
    %2910 = vmatpush1.bf16.xpose.msra.mxu0 0
    %2911 = vmatprep.subr.bf16.mxu0 0
    %2912 = vmatpush1.bf16.xpose.msra.mxu0 0
    %2913 = vmatprep.subr.bf16.mxu0 0
    %2914 = vmatpush1.bf16.xpose.msra.mxu0 0
    %2915 = vmatprep.subr.bf16.mxu0 0
    %2916 = vmatpush1.bf16.xpose.msra.mxu0 0
    %2917 = vmatprep.subr.bf16.mxu0 0
    %2918 = vmatpush1.bf16.xpose.msra.mxu0 0
    %2919 = vmatprep.subr.bf16.mxu0 0
    %2920 = vmatpush1.bf16.xpose.msra.mxu0 0
    %2921 = vmatprep.subr.bf16.mxu0 0
    %2922 = vmatpush1.bf16.xpose.msra.mxu0 0
    %2923 = vmatprep.subr.bf16.mxu0 0
    %2924 = vmatpush1.bf16.xpose.msra.mxu0 0
    %2925 = vmatprep.subr.bf16.mxu0 0
    %2926 = vmatpush1.bf16.xpose.msra.mxu0 0
    %2927 = vmatprep.subr.bf16.mxu0 0
    %2928 = vmatpush1.bf16.xpose.msra.mxu0 0
    %2929 = vmatprep.subr.bf16.mxu0 0
    %2930 = vmatpush1.bf16.xpose.msra.mxu0 0
    %2931 = vmatprep.subr.bf16.mxu0 0
    %2932 = vmatpush1.bf16.xpose.msra.mxu0 0
    %2933 = vmatprep.subr.bf16.mxu0 0
    %2934 = vmatpush1.bf16.xpose.msra.mxu0 0
    %2935 = vmatprep.subr.bf16.mxu0 0
    %2936 = vmatpush1.bf16.xpose.msra.mxu0 0
    %2937 = vmatprep.mubr.bf16.mxu0 0
    %2938 = vmatmul.mubr.bf16.gmra.mrb[0].mxu0 %v2900
    %v2939 = vpop.f32.mrb[0].mxu0
    %v2940 = vadd.f32 0.0, %v2939
    %v2941 = vpop.f32.mrb[0].mxu0
    %v2942 = vpop.f32.mrb[0].mxu0
    %v2943 = vpop.f32.mrb[0].mxu0
    %2944 = vdwg.mxu0
    %2945 = vrot.lane.b32.xlu0 %v229, 80
    %v2946 = vpop.permute.xlu0 %2945
    %2947 = vrot.lane.b32.xlu0 %v326, 16
    %v2948 = vpop.permute.xlu0 %2947
    %v2950 = vsel %vm279, %v2946, 0
    %v2953 = vsel %vm279, %v2948, 0
    %2955 = vmatprep.subr.bf16.mxu0 0
    %2956 = vmatpush1.bf16.xpose.msra.mxu0 %v2953
    %2957 = vmatprep.subr.bf16.mxu0 0
    %2958 = vmatpush1.bf16.xpose.msra.mxu0 0
    %2959 = vmatprep.subr.bf16.mxu0 0
    %2960 = vmatpush1.bf16.xpose.msra.mxu0 0
    %2961 = vmatprep.subr.bf16.mxu0 0
    %2962 = vmatpush1.bf16.xpose.msra.mxu0 0
    %2963 = vmatprep.subr.bf16.mxu0 0
    %2964 = vmatpush1.bf16.xpose.msra.mxu0 0
    %2965 = vmatprep.subr.bf16.mxu0 0
    %2966 = vmatpush1.bf16.xpose.msra.mxu0 0
    %2967 = vmatprep.subr.bf16.mxu0 0
    %2968 = vmatpush1.bf16.xpose.msra.mxu0 0
    %2969 = vmatprep.subr.bf16.mxu0 0
    %2970 = vmatpush1.bf16.xpose.msra.mxu0 0
    %2971 = vmatprep.subr.bf16.mxu0 0
    %2972 = vmatpush1.bf16.xpose.msra.mxu0 0
    %2973 = vmatprep.subr.bf16.mxu0 0
    %2974 = vmatpush1.bf16.xpose.msra.mxu0 0
    %2975 = vmatprep.subr.bf16.mxu0 0
    %2976 = vmatpush1.bf16.xpose.msra.mxu0 0
    %2977 = vmatprep.subr.bf16.mxu0 0
    %2978 = vmatpush1.bf16.xpose.msra.mxu0 0
    %2979 = vmatprep.subr.bf16.mxu0 0
    %2980 = vmatpush1.bf16.xpose.msra.mxu0 0
    %2981 = vmatprep.subr.bf16.mxu0 0
    %2982 = vmatpush1.bf16.xpose.msra.mxu0 0
    %2983 = vmatprep.subr.bf16.mxu0 0
    %2984 = vmatpush1.bf16.xpose.msra.mxu0 0
    %2985 = vmatprep.subr.bf16.mxu0 0
    %2986 = vmatpush1.bf16.xpose.msra.mxu0 0
    %2987 = vmatprep.mubr.bf16.mxu0 0
    %2988 = vmatmul.mubr.bf16.gmra.mrb[0].mxu0 %v2950
    %v2989 = vpop.f32.mrb[0].mxu0
    %v2990 = vadd.f32 0.0, %v2989
    %v2991 = vpop.f32.mrb[0].mxu0
    %v2992 = vpop.f32.mrb[0].mxu0
    %v2993 = vpop.f32.mrb[0].mxu0
    %2994 = vdwg.mxu0
    %2995 = vrot.lane.b32.xlu0 %v230, 80
    %v2996 = vpop.permute.xlu0 %2995
    %2997 = vrot.lane.b32.xlu0 %v375, 16
    %v2998 = vpop.permute.xlu0 %2997
    %v3000 = vsel %vm279, %v2996, 0
    %v3003 = vsel %vm279, %v2998, 0
    %3005 = vmatprep.subr.bf16.mxu0 0
    %3006 = vmatpush1.bf16.xpose.msra.mxu0 %v3003
    %3007 = vmatprep.subr.bf16.mxu0 0
    %3008 = vmatpush1.bf16.xpose.msra.mxu0 0
    %3009 = vmatprep.subr.bf16.mxu0 0
    %3010 = vmatpush1.bf16.xpose.msra.mxu0 0
    %3011 = vmatprep.subr.bf16.mxu0 0
    %3012 = vmatpush1.bf16.xpose.msra.mxu0 0
    %3013 = vmatprep.subr.bf16.mxu0 0
    %3014 = vmatpush1.bf16.xpose.msra.mxu0 0
    %3015 = vmatprep.subr.bf16.mxu0 0
    %3016 = vmatpush1.bf16.xpose.msra.mxu0 0
    %3017 = vmatprep.subr.bf16.mxu0 0
    %3018 = vmatpush1.bf16.xpose.msra.mxu0 0
    %3019 = vmatprep.subr.bf16.mxu0 0
    %3020 = vmatpush1.bf16.xpose.msra.mxu0 0
    %3021 = vmatprep.subr.bf16.mxu0 0
    %3022 = vmatpush1.bf16.xpose.msra.mxu0 0
    %3023 = vmatprep.subr.bf16.mxu0 0
    %3024 = vmatpush1.bf16.xpose.msra.mxu0 0
    %3025 = vmatprep.subr.bf16.mxu0 0
    %3026 = vmatpush1.bf16.xpose.msra.mxu0 0
    %3027 = vmatprep.subr.bf16.mxu0 0
    %3028 = vmatpush1.bf16.xpose.msra.mxu0 0
    %3029 = vmatprep.subr.bf16.mxu0 0
    %3030 = vmatpush1.bf16.xpose.msra.mxu0 0
    %3031 = vmatprep.subr.bf16.mxu0 0
    %3032 = vmatpush1.bf16.xpose.msra.mxu0 0
    %3033 = vmatprep.subr.bf16.mxu0 0
    %3034 = vmatpush1.bf16.xpose.msra.mxu0 0
    %3035 = vmatprep.subr.bf16.mxu0 0
    %3036 = vmatpush1.bf16.xpose.msra.mxu0 0
    %3037 = vmatprep.mubr.bf16.mxu0 0
    %3038 = vmatmul.mubr.bf16.gmra.mrb[0].mxu0 %v3000
    %v3039 = vpop.f32.mrb[0].mxu0
    %v3040 = vadd.f32 0.0, %v3039
    %v3041 = vpop.f32.mrb[0].mxu0
    %v3042 = vpop.f32.mrb[0].mxu0
    %v3043 = vpop.f32.mrb[0].mxu0
    %3044 = vdwg.mxu0
    %3045 = vrot.lane.b32.xlu0 %v231, 80
    %v3046 = vpop.permute.xlu0 %3045
    %3047 = vrot.lane.b32.xlu0 %v424, 16
    %v3048 = vpop.permute.xlu0 %3047
    %v3050 = vsel %vm279, %v3046, 0
    %v3053 = vsel %vm279, %v3048, 0
    %3055 = vmatprep.subr.bf16.mxu0 0
    %3056 = vmatpush1.bf16.xpose.msra.mxu0 %v3053
    %3057 = vmatprep.subr.bf16.mxu0 0
    %3058 = vmatpush1.bf16.xpose.msra.mxu0 0
    %3059 = vmatprep.subr.bf16.mxu0 0
    %3060 = vmatpush1.bf16.xpose.msra.mxu0 0
    %3061 = vmatprep.subr.bf16.mxu0 0
    %3062 = vmatpush1.bf16.xpose.msra.mxu0 0
    %3063 = vmatprep.subr.bf16.mxu0 0
    %3064 = vmatpush1.bf16.xpose.msra.mxu0 0
    %3065 = vmatprep.subr.bf16.mxu0 0
    %3066 = vmatpush1.bf16.xpose.msra.mxu0 0
    %3067 = vmatprep.subr.bf16.mxu0 0
    %3068 = vmatpush1.bf16.xpose.msra.mxu0 0
    %3069 = vmatprep.subr.bf16.mxu0 0
    %3070 = vmatpush1.bf16.xpose.msra.mxu0 0
    %3071 = vmatprep.subr.bf16.mxu0 0
    %3072 = vmatpush1.bf16.xpose.msra.mxu0 0
    %3073 = vmatprep.subr.bf16.mxu0 0
    %3074 = vmatpush1.bf16.xpose.msra.mxu0 0
    %3075 = vmatprep.subr.bf16.mxu0 0
    %3076 = vmatpush1.bf16.xpose.msra.mxu0 0
    %3077 = vmatprep.subr.bf16.mxu0 0
    %3078 = vmatpush1.bf16.xpose.msra.mxu0 0
    %3079 = vmatprep.subr.bf16.mxu0 0
    %3080 = vmatpush1.bf16.xpose.msra.mxu0 0
    %3081 = vmatprep.subr.bf16.mxu0 0
    %3082 = vmatpush1.bf16.xpose.msra.mxu0 0
    %3083 = vmatprep.subr.bf16.mxu0 0
    %3084 = vmatpush1.bf16.xpose.msra.mxu0 0
    %3085 = vmatprep.subr.bf16.mxu0 0
    %3086 = vmatpush1.bf16.xpose.msra.mxu0 0
    %3087 = vmatprep.mubr.bf16.mxu0 0
    %3088 = vmatmul.mubr.bf16.gmra.mrb[0].mxu0 %v3050
    %v3089 = vpop.f32.mrb[0].mxu0
    %v3090 = vadd.f32 0.0, %v3089
    %v3091 = vpop.f32.mrb[0].mxu0
    %v3092 = vpop.f32.mrb[0].mxu0
    %v3093 = vpop.f32.mrb[0].mxu0
    %3094 = vdwg.mxu0
    %3095 = vrot.lane.b32.xlu0 %v232, 80
    %v3096 = vpop.permute.xlu0 %3095
    %3097 = vrot.lane.b32.xlu0 %v473, 16
    %v3098 = vpop.permute.xlu0 %3097
    %v3100 = vsel %vm279, %v3096, 0
    %v3103 = vsel %vm279, %v3098, 0
    %3105 = vmatprep.subr.bf16.mxu0 0
    %3106 = vmatpush1.bf16.xpose.msra.mxu0 %v3103
    %3107 = vmatprep.subr.bf16.mxu0 0
    %3108 = vmatpush1.bf16.xpose.msra.mxu0 0
    %3109 = vmatprep.subr.bf16.mxu0 0
    %3110 = vmatpush1.bf16.xpose.msra.mxu0 0
    %3111 = vmatprep.subr.bf16.mxu0 0
    %3112 = vmatpush1.bf16.xpose.msra.mxu0 0
    %3113 = vmatprep.subr.bf16.mxu0 0
    %3114 = vmatpush1.bf16.xpose.msra.mxu0 0
    %3115 = vmatprep.subr.bf16.mxu0 0
    %3116 = vmatpush1.bf16.xpose.msra.mxu0 0
    %3117 = vmatprep.subr.bf16.mxu0 0
    %3118 = vmatpush1.bf16.xpose.msra.mxu0 0
    %3119 = vmatprep.subr.bf16.mxu0 0
    %3120 = vmatpush1.bf16.xpose.msra.mxu0 0
    %3121 = vmatprep.subr.bf16.mxu0 0
    %3122 = vmatpush1.bf16.xpose.msra.mxu0 0
    %3123 = vmatprep.subr.bf16.mxu0 0
    %3124 = vmatpush1.bf16.xpose.msra.mxu0 0
    %3125 = vmatprep.subr.bf16.mxu0 0
    %3126 = vmatpush1.bf16.xpose.msra.mxu0 0
    %3127 = vmatprep.subr.bf16.mxu0 0
    %3128 = vmatpush1.bf16.xpose.msra.mxu0 0
    %3129 = vmatprep.subr.bf16.mxu0 0
    %3130 = vmatpush1.bf16.xpose.msra.mxu0 0
    %3131 = vmatprep.subr.bf16.mxu0 0
    %3132 = vmatpush1.bf16.xpose.msra.mxu0 0
    %3133 = vmatprep.subr.bf16.mxu0 0
    %3134 = vmatpush1.bf16.xpose.msra.mxu0 0
    %3135 = vmatprep.subr.bf16.mxu0 0
    %3136 = vmatpush1.bf16.xpose.msra.mxu0 0
    %3137 = vmatprep.mubr.bf16.mxu0 0
    %3138 = vmatmul.mubr.bf16.gmra.mrb[0].mxu0 %v3100
    %v3139 = vpop.f32.mrb[0].mxu0
    %v3140 = vadd.f32 0.0, %v3139
    %v3141 = vpop.f32.mrb[0].mxu0
    %v3142 = vpop.f32.mrb[0].mxu0
    %v3143 = vpop.f32.mrb[0].mxu0
    %3144 = vdwg.mxu0
    %3145 = vrot.lane.b32.xlu0 %v233, 80
    %v3146 = vpop.permute.xlu0 %3145
    %3147 = vrot.lane.b32.xlu0 %v522, 16
    %v3148 = vpop.permute.xlu0 %3147
    %v3150 = vsel %vm279, %v3146, 0
    %v3153 = vsel %vm279, %v3148, 0
    %3155 = vmatprep.subr.bf16.mxu0 0
    %3156 = vmatpush1.bf16.xpose.msra.mxu0 %v3153
    %3157 = vmatprep.subr.bf16.mxu0 0
    %3158 = vmatpush1.bf16.xpose.msra.mxu0 0
    %3159 = vmatprep.subr.bf16.mxu0 0
    %3160 = vmatpush1.bf16.xpose.msra.mxu0 0
    %3161 = vmatprep.subr.bf16.mxu0 0
    %3162 = vmatpush1.bf16.xpose.msra.mxu0 0
    %3163 = vmatprep.subr.bf16.mxu0 0
    %3164 = vmatpush1.bf16.xpose.msra.mxu0 0
    %3165 = vmatprep.subr.bf16.mxu0 0
    %3166 = vmatpush1.bf16.xpose.msra.mxu0 0
    %3167 = vmatprep.subr.bf16.mxu0 0
    %3168 = vmatpush1.bf16.xpose.msra.mxu0 0
    %3169 = vmatprep.subr.bf16.mxu0 0
    %3170 = vmatpush1.bf16.xpose.msra.mxu0 0
    %3171 = vmatprep.subr.bf16.mxu0 0
    %3172 = vmatpush1.bf16.xpose.msra.mxu0 0
    %3173 = vmatprep.subr.bf16.mxu0 0
    %3174 = vmatpush1.bf16.xpose.msra.mxu0 0
    %3175 = vmatprep.subr.bf16.mxu0 0
    %3176 = vmatpush1.bf16.xpose.msra.mxu0 0
    %3177 = vmatprep.subr.bf16.mxu0 0
    %3178 = vmatpush1.bf16.xpose.msra.mxu0 0
    %3179 = vmatprep.subr.bf16.mxu0 0
    %3180 = vmatpush1.bf16.xpose.msra.mxu0 0
    %3181 = vmatprep.subr.bf16.mxu0 0
    %3182 = vmatpush1.bf16.xpose.msra.mxu0 0
    %3183 = vmatprep.subr.bf16.mxu0 0
    %3184 = vmatpush1.bf16.xpose.msra.mxu0 0
    %3185 = vmatprep.subr.bf16.mxu0 0
    %3186 = vmatpush1.bf16.xpose.msra.mxu0 0
    %3187 = vmatprep.mubr.bf16.mxu0 0
    %3188 = vmatmul.mubr.bf16.gmra.mrb[0].mxu0 %v3150
    %v3189 = vpop.f32.mrb[0].mxu0
    %v3190 = vadd.f32 0.0, %v3189
    %v3191 = vpop.f32.mrb[0].mxu0
    %v3192 = vpop.f32.mrb[0].mxu0
    %v3193 = vpop.f32.mrb[0].mxu0
    %3194 = vdwg.mxu0
    %3195 = vrot.lane.b32.xlu0 %v234, 80
    %v3196 = vpop.permute.xlu0 %3195
    %3197 = vrot.lane.b32.xlu0 %v571, 16
    %v3198 = vpop.permute.xlu0 %3197
    %v3200 = vsel %vm279, %v3196, 0
    %v3203 = vsel %vm279, %v3198, 0
    %3205 = vmatprep.subr.bf16.mxu0 0
    %3206 = vmatpush1.bf16.xpose.msra.mxu0 %v3203
    %3207 = vmatprep.subr.bf16.mxu0 0
    %3208 = vmatpush1.bf16.xpose.msra.mxu0 0
    %3209 = vmatprep.subr.bf16.mxu0 0
    %3210 = vmatpush1.bf16.xpose.msra.mxu0 0
    %3211 = vmatprep.subr.bf16.mxu0 0
    %3212 = vmatpush1.bf16.xpose.msra.mxu0 0
    %3213 = vmatprep.subr.bf16.mxu0 0
    %3214 = vmatpush1.bf16.xpose.msra.mxu0 0
    %3215 = vmatprep.subr.bf16.mxu0 0
    %3216 = vmatpush1.bf16.xpose.msra.mxu0 0
    %3217 = vmatprep.subr.bf16.mxu0 0
    %3218 = vmatpush1.bf16.xpose.msra.mxu0 0
    %3219 = vmatprep.subr.bf16.mxu0 0
    %3220 = vmatpush1.bf16.xpose.msra.mxu0 0
    %3221 = vmatprep.subr.bf16.mxu0 0
    %3222 = vmatpush1.bf16.xpose.msra.mxu0 0
    %3223 = vmatprep.subr.bf16.mxu0 0
    %3224 = vmatpush1.bf16.xpose.msra.mxu0 0
    %3225 = vmatprep.subr.bf16.mxu0 0
    %3226 = vmatpush1.bf16.xpose.msra.mxu0 0
    %3227 = vmatprep.subr.bf16.mxu0 0
    %3228 = vmatpush1.bf16.xpose.msra.mxu0 0
    %3229 = vmatprep.subr.bf16.mxu0 0
    %3230 = vmatpush1.bf16.xpose.msra.mxu0 0
    %3231 = vmatprep.subr.bf16.mxu0 0
    %3232 = vmatpush1.bf16.xpose.msra.mxu0 0
    %3233 = vmatprep.subr.bf16.mxu0 0
    %3234 = vmatpush1.bf16.xpose.msra.mxu0 0
    %3235 = vmatprep.subr.bf16.mxu0 0
    %3236 = vmatpush1.bf16.xpose.msra.mxu0 0
    %3237 = vmatprep.mubr.bf16.mxu0 0
    %3238 = vmatmul.mubr.bf16.gmra.mrb[0].mxu0 %v3200
    %v3239 = vpop.f32.mrb[0].mxu0
    %v3240 = vadd.f32 0.0, %v3239
    %v3241 = vpop.f32.mrb[0].mxu0
    %v3242 = vpop.f32.mrb[0].mxu0
    %v3243 = vpop.f32.mrb[0].mxu0
    %3244 = vdwg.mxu0
    %3245 = vrot.lane.b32.xlu0 %v235, 80
    %v3246 = vpop.permute.xlu0 %3245
    %3247 = vrot.lane.b32.xlu0 %v620, 16
    %v3248 = vpop.permute.xlu0 %3247
    %v3250 = vsel %vm279, %v3246, 0
    %v3253 = vsel %vm279, %v3248, 0
    %3255 = vmatprep.subr.bf16.mxu0 0
    %3256 = vmatpush1.bf16.xpose.msra.mxu0 %v3253
    %3257 = vmatprep.subr.bf16.mxu0 0
    %3258 = vmatpush1.bf16.xpose.msra.mxu0 0
    %3259 = vmatprep.subr.bf16.mxu0 0
    %3260 = vmatpush1.bf16.xpose.msra.mxu0 0
    %3261 = vmatprep.subr.bf16.mxu0 0
    %3262 = vmatpush1.bf16.xpose.msra.mxu0 0
    %3263 = vmatprep.subr.bf16.mxu0 0
    %3264 = vmatpush1.bf16.xpose.msra.mxu0 0
    %3265 = vmatprep.subr.bf16.mxu0 0
    %3266 = vmatpush1.bf16.xpose.msra.mxu0 0
    %3267 = vmatprep.subr.bf16.mxu0 0
    %3268 = vmatpush1.bf16.xpose.msra.mxu0 0
    %3269 = vmatprep.subr.bf16.mxu0 0
    %3270 = vmatpush1.bf16.xpose.msra.mxu0 0
    %3271 = vmatprep.subr.bf16.mxu0 0
    %3272 = vmatpush1.bf16.xpose.msra.mxu0 0
    %3273 = vmatprep.subr.bf16.mxu0 0
    %3274 = vmatpush1.bf16.xpose.msra.mxu0 0
    %3275 = vmatprep.subr.bf16.mxu0 0
    %3276 = vmatpush1.bf16.xpose.msra.mxu0 0
    %3277 = vmatprep.subr.bf16.mxu0 0
    %3278 = vmatpush1.bf16.xpose.msra.mxu0 0
    %3279 = vmatprep.subr.bf16.mxu0 0
    %3280 = vmatpush1.bf16.xpose.msra.mxu0 0
    %3281 = vmatprep.subr.bf16.mxu0 0
    %3282 = vmatpush1.bf16.xpose.msra.mxu0 0
    %3283 = vmatprep.subr.bf16.mxu0 0
    %3284 = vmatpush1.bf16.xpose.msra.mxu0 0
    %3285 = vmatprep.subr.bf16.mxu0 0
    %3286 = vmatpush1.bf16.xpose.msra.mxu0 0
    %3287 = vmatprep.mubr.bf16.mxu0 0
    %3288 = vmatmul.mubr.bf16.gmra.mrb[0].mxu0 %v3250
    %v3289 = vpop.f32.mrb[0].mxu0
    %v3290 = vadd.f32 0.0, %v3289
    %v3291 = vpop.f32.mrb[0].mxu0
    %v3292 = vpop.f32.mrb[0].mxu0
    %v3293 = vpop.f32.mrb[0].mxu0
    %3294 = vdwg.mxu0
    %v3295 = vsel %vm669, %v2940, -inf
    %3296 = vmax.xlane.f32.xlu0 %v3295
    %v3297 = vpop.xlane.xlu0 %3296
    %v3298 = vsel %vm669, %v2990, -inf
    %3299 = vmax.xlane.f32.xlu0 %v3298
    %v3300 = vpop.xlane.xlu0 %3299
    %v3301 = vsel %vm669, %v3040, -inf
    %3302 = vmax.xlane.f32.xlu0 %v3301
    %v3303 = vpop.xlane.xlu0 %3302
    %v3304 = vsel %vm669, %v3090, -inf
    %3305 = vmax.xlane.f32.xlu0 %v3304
    %v3306 = vpop.xlane.xlu0 %3305
    %v3307 = vsel %vm669, %v3140, -inf
    %3308 = vmax.xlane.f32.xlu0 %v3307
    %v3309 = vpop.xlane.xlu0 %3308
    %v3310 = vsel %vm669, %v3190, -inf
    %3311 = vmax.xlane.f32.xlu0 %v3310
    %v3312 = vpop.xlane.xlu0 %3311
    %v3313 = vsel %vm669, %v3240, -inf
    %3314 = vmax.xlane.f32.xlu0 %v3313
    %v3315 = vpop.xlane.xlu0 %3314
    %v3316 = vsel %vm669, %v3290, -inf
    %3317 = vmax.xlane.f32.xlu0 %v3316
    %v3318 = vpop.xlane.xlu0 %3317
    %v3319 = vsub.f32 %v2940, %v3297
    %v3320 = vsub.f32 %v2990, %v3300
    %v3321 = vsub.f32 %v3040, %v3303
    %v3322 = vsub.f32 %v3090, %v3306
    %v3323 = vsub.f32 %v3140, %v3309
    %v3324 = vsub.f32 %v3190, %v3312
    %v3325 = vsub.f32 %v3240, %v3315
    %v3326 = vsub.f32 %v3290, %v3318
    %v3327 = vmul.f32 %v3319, 1.442695
    %v3328 = vpow.pop %v3327
    %v3329 = vmul.f32 %v3320, 1.442695
    %v3330 = vpow.pop %v3329
    %v3331 = vmul.f32 %v3321, 1.442695
    %v3332 = vpow.pop %v3331
    %v3333 = vmul.f32 %v3322, 1.442695
    %v3334 = vpow.pop %v3333
    %v3335 = vmul.f32 %v3323, 1.442695
    %v3336 = vpow.pop %v3335
    %v3337 = vmul.f32 %v3324, 1.442695
    %v3338 = vpow.pop %v3337
    %v3339 = vmul.f32 %v3325, 1.442695
    %v3340 = vpow.pop %v3339
    %v3341 = vmul.f32 %v3326, 1.442695
    %v3342 = vpow.pop %v3341
    %v3343 = vsel %vm669, %v3328, 0.0
    %3344 = vadd.xlane.f32.xlu0 %v3343
    %v3345 = vpop.xlane.xlu0 %3344
    %v3346 = vsel %vm669, %v3330, 0.0
    %3347 = vadd.xlane.f32.xlu0 %v3346
    %v3348 = vpop.xlane.xlu0 %3347
    %v3349 = vsel %vm669, %v3332, 0.0
    %3350 = vadd.xlane.f32.xlu0 %v3349
    %v3351 = vpop.xlane.xlu0 %3350
    %v3352 = vsel %vm669, %v3334, 0.0
    %3353 = vadd.xlane.f32.xlu0 %v3352
    %v3354 = vpop.xlane.xlu0 %3353
    %v3355 = vsel %vm669, %v3336, 0.0
    %3356 = vadd.xlane.f32.xlu0 %v3355
    %v3357 = vpop.xlane.xlu0 %3356
    %v3358 = vsel %vm669, %v3338, 0.0
    %3359 = vadd.xlane.f32.xlu0 %v3358
    %v3360 = vpop.xlane.xlu0 %3359
    %v3361 = vsel %vm669, %v3340, 0.0
    %3362 = vadd.xlane.f32.xlu0 %v3361
    %v3363 = vpop.xlane.xlu0 %3362
    %v3364 = vsel %vm669, %v3342, 0.0
    %3365 = vadd.xlane.f32.xlu0 %v3364
    %v3366 = vpop.xlane.xlu0 %3365
    %v3367 = vrcp.pop %v3345
    %v3368 = vrcp.pop %v3348
    %v3369 = vrcp.pop %v3351
    %v3370 = vrcp.pop %v3354
    %v3371 = vrcp.pop %v3357
    %v3372 = vrcp.pop %v3360
    %v3373 = vrcp.pop %v3363
    %v3374 = vrcp.pop %v3366
    %v3375 = vmul.f32 %v3328, %v3367
    %v3376 = vmul.f32 %v3330, %v3368
    %v3377 = vmul.f32 %v3332, %v3369
    %v3378 = vmul.f32 %v3334, %v3370
    %v3379 = vmul.f32 %v3336, %v3371
    %v3380 = vmul.f32 %v3338, %v3372
    %v3381 = vmul.f32 %v3340, %v3373
    %v3382 = vmul.f32 %v3342, %v3374
    %v3383 = vpack.c.bf16 %v3375, %v3375
    %v3384 = vpack.c.bf16 %v3376, %v3376
    %v3385 = vpack.c.bf16 %v3377, %v3377
    %v3386 = vpack.c.bf16 %v3378, %v3378
    %v3387 = vpack.c.bf16 %v3379, %v3379
    %v3388 = vpack.c.bf16 %v3380, %v3380
    %v3389 = vpack.c.bf16 %v3381, %v3381
    %v3390 = vpack.c.bf16 %v3382, %v3382
    %3391 = vrot.lane.b32.xlu0 %v268, 80
    %v3392 = vpop.permute.xlu0 %3391
    %v3394 = vsel %vm669, %v3383, 0
    %v3397 = vsel %vm769, %v3392, 0
    %3399 = vmatprep.subr.bf16.mxu0 0
    %3400 = vmatpush1.bf16.msra.mxu0 %v3397
    %3401 = vmatprep.subr.bf16.mxu0 0
    %3402 = vmatpush1.bf16.msra.mxu0 0
    %3403 = vmatprep.subr.bf16.mxu0 0
    %3404 = vmatpush1.bf16.msra.mxu0 0
    %3405 = vmatprep.subr.bf16.mxu0 0
    %3406 = vmatpush1.bf16.msra.mxu0 0
    %3407 = vmatprep.subr.bf16.mxu0 0
    %3408 = vmatpush1.bf16.msra.mxu0 0
    %3409 = vmatprep.subr.bf16.mxu0 0
    %3410 = vmatpush1.bf16.msra.mxu0 0
    %3411 = vmatprep.subr.bf16.mxu0 0
    %3412 = vmatpush1.bf16.msra.mxu0 0
    %3413 = vmatprep.subr.bf16.mxu0 0
    %3414 = vmatpush1.bf16.msra.mxu0 0
    %3415 = vmatprep.subr.bf16.mxu0 0
    %3416 = vmatpush1.bf16.msra.mxu0 0
    %3417 = vmatprep.subr.bf16.mxu0 0
    %3418 = vmatpush1.bf16.msra.mxu0 0
    %3419 = vmatprep.subr.bf16.mxu0 0
    %3420 = vmatpush1.bf16.msra.mxu0 0
    %3421 = vmatprep.subr.bf16.mxu0 0
    %3422 = vmatpush1.bf16.msra.mxu0 0
    %3423 = vmatprep.subr.bf16.mxu0 0
    %3424 = vmatpush1.bf16.msra.mxu0 0
    %3425 = vmatprep.subr.bf16.mxu0 0
    %3426 = vmatpush1.bf16.msra.mxu0 0
    %3427 = vmatprep.subr.bf16.mxu0 0
    %3428 = vmatpush1.bf16.msra.mxu0 0
    %3429 = vmatprep.subr.bf16.mxu0 0
    %3430 = vmatpush1.bf16.msra.mxu0 0
    %3431 = vmatprep.mubr.bf16.mxu0 0
    %3432 = vmatmul.mubr.bf16.gmra.mrb[0].mxu0 %v3394
    %v3433 = vpop.f32.mrb[0].mxu0
    %v3434 = vadd.f32 0.0, %v3433
    %v3435 = vpop.f32.mrb[0].mxu0
    %v3436 = vpop.f32.mrb[0].mxu0
    %v3437 = vpop.f32.mrb[0].mxu0
    %3438 = vdwg.mxu0
    %3439 = vrot.lane.b32.xlu0 %v269, 80
    %v3440 = vpop.permute.xlu0 %3439
    %v3442 = vsel %vm669, %v3384, 0
    %v3445 = vsel %vm769, %v3440, 0
    %3447 = vmatprep.subr.bf16.mxu0 0
    %3448 = vmatpush1.bf16.msra.mxu0 %v3445
    %3449 = vmatprep.subr.bf16.mxu0 0
    %3450 = vmatpush1.bf16.msra.mxu0 0
    %3451 = vmatprep.subr.bf16.mxu0 0
    %3452 = vmatpush1.bf16.msra.mxu0 0
    %3453 = vmatprep.subr.bf16.mxu0 0
    %3454 = vmatpush1.bf16.msra.mxu0 0
    %3455 = vmatprep.subr.bf16.mxu0 0
    %3456 = vmatpush1.bf16.msra.mxu0 0
    %3457 = vmatprep.subr.bf16.mxu0 0
    %3458 = vmatpush1.bf16.msra.mxu0 0
    %3459 = vmatprep.subr.bf16.mxu0 0
    %3460 = vmatpush1.bf16.msra.mxu0 0
    %3461 = vmatprep.subr.bf16.mxu0 0
    %3462 = vmatpush1.bf16.msra.mxu0 0
    %3463 = vmatprep.subr.bf16.mxu0 0
    %3464 = vmatpush1.bf16.msra.mxu0 0
    %3465 = vmatprep.subr.bf16.mxu0 0
    %3466 = vmatpush1.bf16.msra.mxu0 0
    %3467 = vmatprep.subr.bf16.mxu0 0
    %3468 = vmatpush1.bf16.msra.mxu0 0
    %3469 = vmatprep.subr.bf16.mxu0 0
    %3470 = vmatpush1.bf16.msra.mxu0 0
    %3471 = vmatprep.subr.bf16.mxu0 0
    %3472 = vmatpush1.bf16.msra.mxu0 0
    %3473 = vmatprep.subr.bf16.mxu0 0
    %3474 = vmatpush1.bf16.msra.mxu0 0
    %3475 = vmatprep.subr.bf16.mxu0 0
    %3476 = vmatpush1.bf16.msra.mxu0 0
    %3477 = vmatprep.subr.bf16.mxu0 0
    %3478 = vmatpush1.bf16.msra.mxu0 0
    %3479 = vmatprep.mubr.bf16.mxu0 0
    %3480 = vmatmul.mubr.bf16.gmra.mrb[0].mxu0 %v3442
    %v3481 = vpop.f32.mrb[0].mxu0
    %v3482 = vadd.f32 0.0, %v3481
    %v3483 = vpop.f32.mrb[0].mxu0
    %v3484 = vpop.f32.mrb[0].mxu0
    %v3485 = vpop.f32.mrb[0].mxu0
    %3486 = vdwg.mxu0
    %3487 = vrot.lane.b32.xlu0 %v270, 80
    %v3488 = vpop.permute.xlu0 %3487
    %v3490 = vsel %vm669, %v3385, 0
    %v3493 = vsel %vm769, %v3488, 0
    %3495 = vmatprep.subr.bf16.mxu0 0
    %3496 = vmatpush1.bf16.msra.mxu0 %v3493
    %3497 = vmatprep.subr.bf16.mxu0 0
    %3498 = vmatpush1.bf16.msra.mxu0 0
    %3499 = vmatprep.subr.bf16.mxu0 0
    %3500 = vmatpush1.bf16.msra.mxu0 0
    %3501 = vmatprep.subr.bf16.mxu0 0
    %3502 = vmatpush1.bf16.msra.mxu0 0
    %3503 = vmatprep.subr.bf16.mxu0 0
    %3504 = vmatpush1.bf16.msra.mxu0 0
    %3505 = vmatprep.subr.bf16.mxu0 0
    %3506 = vmatpush1.bf16.msra.mxu0 0
    %3507 = vmatprep.subr.bf16.mxu0 0
    %3508 = vmatpush1.bf16.msra.mxu0 0
    %3509 = vmatprep.subr.bf16.mxu0 0
    %3510 = vmatpush1.bf16.msra.mxu0 0
    %3511 = vmatprep.subr.bf16.mxu0 0
    %3512 = vmatpush1.bf16.msra.mxu0 0
    %3513 = vmatprep.subr.bf16.mxu0 0
    %3514 = vmatpush1.bf16.msra.mxu0 0
    %3515 = vmatprep.subr.bf16.mxu0 0
    %3516 = vmatpush1.bf16.msra.mxu0 0
    %3517 = vmatprep.subr.bf16.mxu0 0
    %3518 = vmatpush1.bf16.msra.mxu0 0
    %3519 = vmatprep.subr.bf16.mxu0 0
    %3520 = vmatpush1.bf16.msra.mxu0 0
    %3521 = vmatprep.subr.bf16.mxu0 0
    %3522 = vmatpush1.bf16.msra.mxu0 0
    %3523 = vmatprep.subr.bf16.mxu0 0
    %3524 = vmatpush1.bf16.msra.mxu0 0
    %3525 = vmatprep.subr.bf16.mxu0 0
    %3526 = vmatpush1.bf16.msra.mxu0 0
    %3527 = vmatprep.mubr.bf16.mxu0 0
    %3528 = vmatmul.mubr.bf16.gmra.mrb[0].mxu0 %v3490
    %v3529 = vpop.f32.mrb[0].mxu0
    %v3530 = vadd.f32 0.0, %v3529
    %v3531 = vpop.f32.mrb[0].mxu0
    %v3532 = vpop.f32.mrb[0].mxu0
    %v3533 = vpop.f32.mrb[0].mxu0
    %3534 = vdwg.mxu0
    %3535 = vrot.lane.b32.xlu0 %v271, 80
    %v3536 = vpop.permute.xlu0 %3535
    %v3538 = vsel %vm669, %v3386, 0
    %v3541 = vsel %vm769, %v3536, 0
    %3543 = vmatprep.subr.bf16.mxu0 0
    %3544 = vmatpush1.bf16.msra.mxu0 %v3541
    %3545 = vmatprep.subr.bf16.mxu0 0
    %3546 = vmatpush1.bf16.msra.mxu0 0
    %3547 = vmatprep.subr.bf16.mxu0 0
    %3548 = vmatpush1.bf16.msra.mxu0 0
    %3549 = vmatprep.subr.bf16.mxu0 0
    %3550 = vmatpush1.bf16.msra.mxu0 0
    %3551 = vmatprep.subr.bf16.mxu0 0
    %3552 = vmatpush1.bf16.msra.mxu0 0
    %3553 = vmatprep.subr.bf16.mxu0 0
    %3554 = vmatpush1.bf16.msra.mxu0 0
    %3555 = vmatprep.subr.bf16.mxu0 0
    %3556 = vmatpush1.bf16.msra.mxu0 0
    %3557 = vmatprep.subr.bf16.mxu0 0
    %3558 = vmatpush1.bf16.msra.mxu0 0
    %3559 = vmatprep.subr.bf16.mxu0 0
    %3560 = vmatpush1.bf16.msra.mxu0 0
    %3561 = vmatprep.subr.bf16.mxu0 0
    %3562 = vmatpush1.bf16.msra.mxu0 0
    %3563 = vmatprep.subr.bf16.mxu0 0
    %3564 = vmatpush1.bf16.msra.mxu0 0
    %3565 = vmatprep.subr.bf16.mxu0 0
    %3566 = vmatpush1.bf16.msra.mxu0 0
    %3567 = vmatprep.subr.bf16.mxu0 0
    %3568 = vmatpush1.bf16.msra.mxu0 0
    %3569 = vmatprep.subr.bf16.mxu0 0
    %3570 = vmatpush1.bf16.msra.mxu0 0
    %3571 = vmatprep.subr.bf16.mxu0 0
    %3572 = vmatpush1.bf16.msra.mxu0 0
    %3573 = vmatprep.subr.bf16.mxu0 0
    %3574 = vmatpush1.bf16.msra.mxu0 0
    %3575 = vmatprep.mubr.bf16.mxu0 0
    %3576 = vmatmul.mubr.bf16.gmra.mrb[0].mxu0 %v3538
    %v3577 = vpop.f32.mrb[0].mxu0
    %v3578 = vadd.f32 0.0, %v3577
    %v3579 = vpop.f32.mrb[0].mxu0
    %v3580 = vpop.f32.mrb[0].mxu0
    %v3581 = vpop.f32.mrb[0].mxu0
    %3582 = vdwg.mxu0
    %3583 = vrot.lane.b32.xlu0 %v272, 80
    %v3584 = vpop.permute.xlu0 %3583
    %v3586 = vsel %vm669, %v3387, 0
    %v3589 = vsel %vm769, %v3584, 0
    %3591 = vmatprep.subr.bf16.mxu0 0
    %3592 = vmatpush1.bf16.msra.mxu0 %v3589
    %3593 = vmatprep.subr.bf16.mxu0 0
    %3594 = vmatpush1.bf16.msra.mxu0 0
    %3595 = vmatprep.subr.bf16.mxu0 0
    %3596 = vmatpush1.bf16.msra.mxu0 0
    %3597 = vmatprep.subr.bf16.mxu0 0
    %3598 = vmatpush1.bf16.msra.mxu0 0
    %3599 = vmatprep.subr.bf16.mxu0 0
    %3600 = vmatpush1.bf16.msra.mxu0 0
    %3601 = vmatprep.subr.bf16.mxu0 0
    %3602 = vmatpush1.bf16.msra.mxu0 0
    %3603 = vmatprep.subr.bf16.mxu0 0
    %3604 = vmatpush1.bf16.msra.mxu0 0
    %3605 = vmatprep.subr.bf16.mxu0 0
    %3606 = vmatpush1.bf16.msra.mxu0 0
    %3607 = vmatprep.subr.bf16.mxu0 0
    %3608 = vmatpush1.bf16.msra.mxu0 0
    %3609 = vmatprep.subr.bf16.mxu0 0
    %3610 = vmatpush1.bf16.msra.mxu0 0
    %3611 = vmatprep.subr.bf16.mxu0 0
    %3612 = vmatpush1.bf16.msra.mxu0 0
    %3613 = vmatprep.subr.bf16.mxu0 0
    %3614 = vmatpush1.bf16.msra.mxu0 0
    %3615 = vmatprep.subr.bf16.mxu0 0
    %3616 = vmatpush1.bf16.msra.mxu0 0
    %3617 = vmatprep.subr.bf16.mxu0 0
    %3618 = vmatpush1.bf16.msra.mxu0 0
    %3619 = vmatprep.subr.bf16.mxu0 0
    %3620 = vmatpush1.bf16.msra.mxu0 0
    %3621 = vmatprep.subr.bf16.mxu0 0
    %3622 = vmatpush1.bf16.msra.mxu0 0
    %3623 = vmatprep.mubr.bf16.mxu0 0
    %3624 = vmatmul.mubr.bf16.gmra.mrb[0].mxu0 %v3586
    %v3625 = vpop.f32.mrb[0].mxu0
    %v3626 = vadd.f32 0.0, %v3625
    %v3627 = vpop.f32.mrb[0].mxu0
    %v3628 = vpop.f32.mrb[0].mxu0
    %v3629 = vpop.f32.mrb[0].mxu0
    %3630 = vdwg.mxu0
    %3631 = vrot.lane.b32.xlu0 %v273, 80
    %v3632 = vpop.permute.xlu0 %3631
    %v3634 = vsel %vm669, %v3388, 0
    %v3637 = vsel %vm769, %v3632, 0
    %3639 = vmatprep.subr.bf16.mxu0 0
    %3640 = vmatpush1.bf16.msra.mxu0 %v3637
    %3641 = vmatprep.subr.bf16.mxu0 0
    %3642 = vmatpush1.bf16.msra.mxu0 0
    %3643 = vmatprep.subr.bf16.mxu0 0
    %3644 = vmatpush1.bf16.msra.mxu0 0
    %3645 = vmatprep.subr.bf16.mxu0 0
    %3646 = vmatpush1.bf16.msra.mxu0 0
    %3647 = vmatprep.subr.bf16.mxu0 0
    %3648 = vmatpush1.bf16.msra.mxu0 0
    %3649 = vmatprep.subr.bf16.mxu0 0
    %3650 = vmatpush1.bf16.msra.mxu0 0
    %3651 = vmatprep.subr.bf16.mxu0 0
    %3652 = vmatpush1.bf16.msra.mxu0 0
    %3653 = vmatprep.subr.bf16.mxu0 0
    %3654 = vmatpush1.bf16.msra.mxu0 0
    %3655 = vmatprep.subr.bf16.mxu0 0
    %3656 = vmatpush1.bf16.msra.mxu0 0
    %3657 = vmatprep.subr.bf16.mxu0 0
    %3658 = vmatpush1.bf16.msra.mxu0 0
    %3659 = vmatprep.subr.bf16.mxu0 0
    %3660 = vmatpush1.bf16.msra.mxu0 0
    %3661 = vmatprep.subr.bf16.mxu0 0
    %3662 = vmatpush1.bf16.msra.mxu0 0
    %3663 = vmatprep.subr.bf16.mxu0 0
    %3664 = vmatpush1.bf16.msra.mxu0 0
    %3665 = vmatprep.subr.bf16.mxu0 0
    %3666 = vmatpush1.bf16.msra.mxu0 0
    %3667 = vmatprep.subr.bf16.mxu0 0
    %3668 = vmatpush1.bf16.msra.mxu0 0
    %3669 = vmatprep.subr.bf16.mxu0 0
    %3670 = vmatpush1.bf16.msra.mxu0 0
    %3671 = vmatprep.mubr.bf16.mxu0 0
    %3672 = vmatmul.mubr.bf16.gmra.mrb[0].mxu0 %v3634
    %v3673 = vpop.f32.mrb[0].mxu0
    %v3674 = vadd.f32 0.0, %v3673
    %v3675 = vpop.f32.mrb[0].mxu0
    %v3676 = vpop.f32.mrb[0].mxu0
    %v3677 = vpop.f32.mrb[0].mxu0
    %3678 = vdwg.mxu0
    %3679 = vrot.lane.b32.xlu0 %v274, 80
    %v3680 = vpop.permute.xlu0 %3679
    %v3682 = vsel %vm669, %v3389, 0
    %v3685 = vsel %vm769, %v3680, 0
    %3687 = vmatprep.subr.bf16.mxu0 0
    %3688 = vmatpush1.bf16.msra.mxu0 %v3685
    %3689 = vmatprep.subr.bf16.mxu0 0
    %3690 = vmatpush1.bf16.msra.mxu0 0
    %3691 = vmatprep.subr.bf16.mxu0 0
    %3692 = vmatpush1.bf16.msra.mxu0 0
    %3693 = vmatprep.subr.bf16.mxu0 0
    %3694 = vmatpush1.bf16.msra.mxu0 0
    %3695 = vmatprep.subr.bf16.mxu0 0
    %3696 = vmatpush1.bf16.msra.mxu0 0
    %3697 = vmatprep.subr.bf16.mxu0 0
    %3698 = vmatpush1.bf16.msra.mxu0 0
    %3699 = vmatprep.subr.bf16.mxu0 0
    %3700 = vmatpush1.bf16.msra.mxu0 0
    %3701 = vmatprep.subr.bf16.mxu0 0
    %3702 = vmatpush1.bf16.msra.mxu0 0
    %3703 = vmatprep.subr.bf16.mxu0 0
    %3704 = vmatpush1.bf16.msra.mxu0 0
    %3705 = vmatprep.subr.bf16.mxu0 0
    %3706 = vmatpush1.bf16.msra.mxu0 0
    %3707 = vmatprep.subr.bf16.mxu0 0
    %3708 = vmatpush1.bf16.msra.mxu0 0
    %3709 = vmatprep.subr.bf16.mxu0 0
    %3710 = vmatpush1.bf16.msra.mxu0 0
    %3711 = vmatprep.subr.bf16.mxu0 0
    %3712 = vmatpush1.bf16.msra.mxu0 0
    %3713 = vmatprep.subr.bf16.mxu0 0
    %3714 = vmatpush1.bf16.msra.mxu0 0
    %3715 = vmatprep.subr.bf16.mxu0 0
    %3716 = vmatpush1.bf16.msra.mxu0 0
    %3717 = vmatprep.subr.bf16.mxu0 0
    %3718 = vmatpush1.bf16.msra.mxu0 0
    %3719 = vmatprep.mubr.bf16.mxu0 0
    %3720 = vmatmul.mubr.bf16.gmra.mrb[0].mxu0 %v3682
    %v3721 = vpop.f32.mrb[0].mxu0
    %v3722 = vadd.f32 0.0, %v3721
    %v3723 = vpop.f32.mrb[0].mxu0
    %v3724 = vpop.f32.mrb[0].mxu0
    %v3725 = vpop.f32.mrb[0].mxu0
    %3726 = vdwg.mxu0
    %3727 = vrot.lane.b32.xlu0 %v275, 80
    %v3728 = vpop.permute.xlu0 %3727
    %v3730 = vsel %vm669, %v3390, 0
    %v3733 = vsel %vm769, %v3728, 0
    %3735 = vmatprep.subr.bf16.mxu0 0
    %3736 = vmatpush1.bf16.msra.mxu0 %v3733
    %3737 = vmatprep.subr.bf16.mxu0 0
    %3738 = vmatpush1.bf16.msra.mxu0 0
    %3739 = vmatprep.subr.bf16.mxu0 0
    %3740 = vmatpush1.bf16.msra.mxu0 0
    %3741 = vmatprep.subr.bf16.mxu0 0
    %3742 = vmatpush1.bf16.msra.mxu0 0
    %3743 = vmatprep.subr.bf16.mxu0 0
    %3744 = vmatpush1.bf16.msra.mxu0 0
    %3745 = vmatprep.subr.bf16.mxu0 0
    %3746 = vmatpush1.bf16.msra.mxu0 0
    %3747 = vmatprep.subr.bf16.mxu0 0
    %3748 = vmatpush1.bf16.msra.mxu0 0
    %3749 = vmatprep.subr.bf16.mxu0 0
    %3750 = vmatpush1.bf16.msra.mxu0 0
    %3751 = vmatprep.subr.bf16.mxu0 0
    %3752 = vmatpush1.bf16.msra.mxu0 0
    %3753 = vmatprep.subr.bf16.mxu0 0
    %3754 = vmatpush1.bf16.msra.mxu0 0
    %3755 = vmatprep.subr.bf16.mxu0 0
    %3756 = vmatpush1.bf16.msra.mxu0 0
    %3757 = vmatprep.subr.bf16.mxu0 0
    %3758 = vmatpush1.bf16.msra.mxu0 0
    %3759 = vmatprep.subr.bf16.mxu0 0
    %3760 = vmatpush1.bf16.msra.mxu0 0
    %3761 = vmatprep.subr.bf16.mxu0 0
    %3762 = vmatpush1.bf16.msra.mxu0 0
    %3763 = vmatprep.subr.bf16.mxu0 0
    %3764 = vmatpush1.bf16.msra.mxu0 0
    %3765 = vmatprep.subr.bf16.mxu0 0
    %3766 = vmatpush1.bf16.msra.mxu0 0
    %3767 = vmatprep.mubr.bf16.mxu0 0
    %3768 = vmatmul.mubr.bf16.gmra.mrb[0].mxu0 %v3730
    %v3769 = vpop.f32.mrb[0].mxu0
    %v3770 = vadd.f32 0.0, %v3769
    %v3771 = vpop.f32.mrb[0].mxu0
    %v3772 = vpop.f32.mrb[0].mxu0
    %v3773 = vpop.f32.mrb[0].mxu0
    %3774 = vdwg.mxu0
    %3783 = vrot.lane.b32.xlu0 %v1674, 16
    %v3784 = vpop.permute.xlu0 %3783
    %3785 = vrot.lane.b32.xlu0 %v1722, 16
    %v3786 = vpop.permute.xlu0 %3785
    %3787 = vrot.lane.b32.xlu0 %v1770, 16
    %v3788 = vpop.permute.xlu0 %3787
    %3789 = vrot.lane.b32.xlu0 %v1818, 16
    %v3790 = vpop.permute.xlu0 %3789
    %3791 = vrot.lane.b32.xlu0 %v1866, 16
    %v3792 = vpop.permute.xlu0 %3791
    %3793 = vrot.lane.b32.xlu0 %v1914, 16
    %v3794 = vpop.permute.xlu0 %3793
    %3795 = vrot.lane.b32.xlu0 %v1962, 16
    %v3796 = vpop.permute.xlu0 %3795
    %3797 = vrot.lane.b32.xlu0 %v2010, 16
    %v3798 = vpop.permute.xlu0 %3797
    %3815 = vrot.lane.b32.xlu0 %v2554, 32
    %v3816 = vpop.permute.xlu0 %3815
    %3817 = vrot.lane.b32.xlu0 %v2602, 32
    %v3818 = vpop.permute.xlu0 %3817
    %3819 = vrot.lane.b32.xlu0 %v2650, 32
    %v3820 = vpop.permute.xlu0 %3819
    %3821 = vrot.lane.b32.xlu0 %v2698, 32
    %v3822 = vpop.permute.xlu0 %3821
    %3823 = vrot.lane.b32.xlu0 %v2746, 32
    %v3824 = vpop.permute.xlu0 %3823
    %3825 = vrot.lane.b32.xlu0 %v2794, 32
    %v3826 = vpop.permute.xlu0 %3825
    %3827 = vrot.lane.b32.xlu0 %v2842, 32
    %v3828 = vpop.permute.xlu0 %3827
    %3829 = vrot.lane.b32.xlu0 %v2890, 32
    %v3830 = vpop.permute.xlu0 %3829
    %3847 = vrot.lane.b32.xlu0 %v3434, 48
    %v3848 = vpop.permute.xlu0 %3847
    %3849 = vrot.lane.b32.xlu0 %v3482, 48
    %v3850 = vpop.permute.xlu0 %3849
    %3851 = vrot.lane.b32.xlu0 %v3530, 48
    %v3852 = vpop.permute.xlu0 %3851
    %3853 = vrot.lane.b32.xlu0 %v3578, 48
    %v3854 = vpop.permute.xlu0 %3853
    %3855 = vrot.lane.b32.xlu0 %v3626, 48
    %v3856 = vpop.permute.xlu0 %3855
    %3857 = vrot.lane.b32.xlu0 %v3674, 48
    %v3858 = vpop.permute.xlu0 %3857
    %3859 = vrot.lane.b32.xlu0 %v3722, 48
    %v3860 = vpop.permute.xlu0 %3859
    %3861 = vrot.lane.b32.xlu0 %v3770, 48
    %v3862 = vpop.permute.xlu0 %3861
    %v3871 = vsel %vm279, %v808, %v3784
    %v3872 = vsel %vm279, %v854, %v3786
    %v3873 = vsel %vm279, %v900, %v3788
    %v3874 = vsel %vm279, %v946, %v3790
    %v3875 = vsel %vm279, %v992, %v3792
    %v3876 = vsel %vm279, %v1038, %v3794
    %v3877 = vsel %vm279, %v1084, %v3796
    %v3878 = vsel %vm279, %v1130, %v3798
    %vm3879 = vcmask 261120
    %v3880 = vsel %vm3879, %v3871, %v3816
    %v3881 = vsel %vm3879, %v3872, %v3818
    %v3882 = vsel %vm3879, %v3873, %v3820
    %v3883 = vsel %vm3879, %v3874, %v3822
    %v3884 = vsel %vm3879, %v3875, %v3824
    %v3885 = vsel %vm3879, %v3876, %v3826
    %v3886 = vsel %vm3879, %v3877, %v3828
    %v3887 = vsel %vm3879, %v3878, %v3830
    %vm3888 = vcmask 392192
    %v3889 = vsel %vm3888, %v3880, %v3848
    %v3890 = vsel %vm3888, %v3881, %v3850
    %v3891 = vsel %vm3888, %v3882, %v3852
    %v3892 = vsel %vm3888, %v3883, %v3854
    %v3893 = vsel %vm3888, %v3884, %v3856
    %v3894 = vsel %vm3888, %v3885, %v3858
    %v3895 = vsel %vm3888, %v3886, %v3860
    %v3896 = vsel %vm3888, %v3887, %v3862
    %v3897 = vpack.c.bf16 %v3890, %v3889
    %v3898 = vpack.c.bf16 %v3892, %v3891
    %v3899 = vpack.c.bf16 %v3894, %v3893
    %v3900 = vpack.c.bf16 %v3896, %v3895
    %v3901 = vld [vmem:[%s3] sm:$0xf]
    %v3902 = vld [vmem:[%s3 + $0x4] sm:$0xf]
    %v3903 = vld [vmem:[%s3 + $0x8] sm:$0xf]
    %v3904 = vld [vmem:[%s3 + $0xc] sm:$0xf]
    %v3905 = vld [vmem:[%s3 + $0x10] sm:$0xf]
    %v3906 = vld [vmem:[%s3 + $0x14] sm:$0xf]
    %v3907 = vld [vmem:[%s3 + $0x18] sm:$0xf]
    %v3908 = vld [vmem:[%s3 + $0x1c] sm:$0xf]
    %v3909 = vld [vmem:[%s4] sm:$0x1]
    %v3911 = vlaneseq
    %v3912 = vshrl.u32 %v3911, 7
    %v3913 = vsub.s32 0, %v3912
    %v3914 = vrot.slane %v3909, %v3913
    %v3924 = vunpack.c.l.b16 %v3901
    %v3925 = vunpack.c.l.b16 %v3902
    %v3926 = vunpack.c.l.b16 %v3903
    %v3927 = vunpack.c.l.b16 %v3904
    %v3928 = vunpack.c.l.b16 %v3905
    %v3929 = vunpack.c.l.b16 %v3906
    %v3930 = vunpack.c.l.b16 %v3907
    %v3931 = vunpack.c.l.b16 %v3908
    %v3932 = vpack.c.b16 %v3925, %v3924
    %v3933 = vpack.c.b16 %v3927, %v3926
    %v3934 = vpack.c.b16 %v3929, %v3928
    %v3935 = vpack.c.b16 %v3931, %v3930
    %v3941 = vsel %vm118, %v3897, 0
    %v3944 = vsel %vm118, %v3898, 0
    %v3947 = vsel %vm118, %v3899, 0
    %v3950 = vsel %vm118, %v3900, 0
    %3952 = vmatprep.subr.bf16.mxu0 0
    %3953 = vmatpush1.bf16.msra.mxu0 %v3932
    %3954 = vmatprep.subr.bf16.mxu0 0
    %3955 = vmatpush1.bf16.msra.mxu0 %v3933
    %3956 = vmatprep.subr.bf16.mxu0 0
    %3957 = vmatpush1.bf16.msra.mxu0 %v3934
    %3958 = vmatprep.subr.bf16.mxu0 0
    %3959 = vmatpush1.bf16.msra.mxu0 %v3935
    %3960 = vmatprep.subr.bf16.mxu0 0
    %3961 = vmatpush1.bf16.msra.mxu0 0
    %3962 = vmatprep.subr.bf16.mxu0 0
    %3963 = vmatpush1.bf16.msra.mxu0 0
    %3964 = vmatprep.subr.bf16.mxu0 0
    %3965 = vmatpush1.bf16.msra.mxu0 0
    %3966 = vmatprep.subr.bf16.mxu0 0
    %3967 = vmatpush1.bf16.msra.mxu0 0
    %3968 = vmatprep.subr.bf16.mxu0 0
    %3969 = vmatpush1.bf16.msra.mxu0 0
    %3970 = vmatprep.subr.bf16.mxu0 0
    %3971 = vmatpush1.bf16.msra.mxu0 0
    %3972 = vmatprep.subr.bf16.mxu0 0
    %3973 = vmatpush1.bf16.msra.mxu0 0
    %3974 = vmatprep.subr.bf16.mxu0 0
    %3975 = vmatpush1.bf16.msra.mxu0 0
    %3976 = vmatprep.subr.bf16.mxu0 0
    %3977 = vmatpush1.bf16.msra.mxu0 0
    %3978 = vmatprep.subr.bf16.mxu0 0
    %3979 = vmatpush1.bf16.msra.mxu0 0
    %3980 = vmatprep.subr.bf16.mxu0 0
    %3981 = vmatpush1.bf16.msra.mxu0 0
    %3982 = vmatprep.subr.bf16.mxu0 0
    %3983 = vmatpush1.bf16.msra.mxu0 0
    %3984 = vmatprep.mubr.bf16.mxu0 0
    %3985 = vmatmul.mubr.bf16.gmra.mrb[0].mxu0 %v3941
    %v3986 = vpop.f32.mrb[0].mxu0
    %v3987 = vadd.f32 %v3914, %v3986
    %v3988 = vpop.f32.mrb[0].mxu0
    %v3989 = vpop.f32.mrb[0].mxu0
    %v3990 = vadd.f32 %v3914, %v3989
    %v3991 = vpop.f32.mrb[0].mxu0
    %3992 = vmatprep.mubr.bf16.mxu0 0
    %3993 = vmatmul.mubr.bf16.gmra.mrb[0].mxu0 %v3944
    %v3994 = vpop.f32.mrb[0].mxu0
    %v3995 = vadd.f32 %v3914, %v3994
    %v3996 = vpop.f32.mrb[0].mxu0
    %v3997 = vpop.f32.mrb[0].mxu0
    %v3998 = vadd.f32 %v3914, %v3997
    %v3999 = vpop.f32.mrb[0].mxu0
    %4000 = vmatprep.mubr.bf16.mxu0 0
    %4001 = vmatmul.mubr.bf16.gmra.mrb[0].mxu0 %v3947
    %v4002 = vpop.f32.mrb[0].mxu0
    %v4003 = vadd.f32 %v3914, %v4002
    %v4004 = vpop.f32.mrb[0].mxu0
    %v4005 = vpop.f32.mrb[0].mxu0
    %v4006 = vadd.f32 %v3914, %v4005
    %v4007 = vpop.f32.mrb[0].mxu0
    %4008 = vmatprep.mubr.bf16.mxu0 0
    %4009 = vmatmul.mubr.bf16.gmra.mrb[0].mxu0 %v3950
    %v4010 = vpop.f32.mrb[0].mxu0
    %v4011 = vadd.f32 %v3914, %v4010
    %v4012 = vpop.f32.mrb[0].mxu0
    %v4013 = vpop.f32.mrb[0].mxu0
    %v4014 = vadd.f32 %v3914, %v4013
    %v4015 = vpop.f32.mrb[0].mxu0
    %4016 = vdwg.mxu0
    %v4017 = vadd.f32 %v46, %v3987
    %v4018 = vadd.f32 %v47, %v3990
    %v4019 = vadd.f32 %v48, %v3995
    %v4020 = vadd.f32 %v49, %v3998
    %v4021 = vadd.f32 %v50, %v4003
    %v4022 = vadd.f32 %v51, %v4006
    %v4023 = vadd.f32 %v52, %v4011
    %v4024 = vadd.f32 %v53, %v4014
    %v4025 = vld [vmem:[%s5] sm:$0x1]
    %v4026 = vld [vmem:[%s6] sm:$0x1]
    %v4027 = vsel %vm118, %v4017, 0.0
    %4028 = vadd.xlane.f32.xlu0 %v4027
    %v4029 = vpop.xlane.xlu0 %4028
    %v4030 = vsel %vm118, %v4018, 0.0
    %4031 = vadd.xlane.f32.xlu0 %v4030
    %v4032 = vpop.xlane.xlu0 %4031
    %v4033 = vsel %vm118, %v4019, 0.0
    %4034 = vadd.xlane.f32.xlu0 %v4033
    %v4035 = vpop.xlane.xlu0 %4034
    %v4036 = vsel %vm118, %v4020, 0.0
    %4037 = vadd.xlane.f32.xlu0 %v4036
    %v4038 = vpop.xlane.xlu0 %4037
    %v4039 = vsel %vm118, %v4021, 0.0
    %4040 = vadd.xlane.f32.xlu0 %v4039
    %v4041 = vpop.xlane.xlu0 %4040
    %v4042 = vsel %vm118, %v4022, 0.0
    %4043 = vadd.xlane.f32.xlu0 %v4042
    %v4044 = vpop.xlane.xlu0 %4043
    %v4045 = vsel %vm118, %v4023, 0.0
    %4046 = vadd.xlane.f32.xlu0 %v4045
    %v4047 = vpop.xlane.xlu0 %4046
    %v4048 = vsel %vm118, %v4024, 0.0
    %4049 = vadd.xlane.f32.xlu0 %v4048
    %v4050 = vpop.xlane.xlu0 %4049
    %v4051 = vrcp.pop 64.0
    %v4052 = vmul.f32 %v4029, %v4051
    %v4053 = vmul.f32 %v4032, %v4051
    %v4054 = vmul.f32 %v4035, %v4051
    %v4055 = vmul.f32 %v4038, %v4051
    %v4056 = vmul.f32 %v4041, %v4051
    %v4057 = vmul.f32 %v4044, %v4051
    %v4058 = vmul.f32 %v4047, %v4051
    %v4059 = vmul.f32 %v4050, %v4051
    %v4060 = vsub.f32 %v4017, %v4052
    %v4061 = vsub.f32 %v4018, %v4053
    %v4062 = vsub.f32 %v4019, %v4054
    %v4063 = vsub.f32 %v4020, %v4055
    %v4064 = vsub.f32 %v4021, %v4056
    %v4065 = vsub.f32 %v4022, %v4057
    %v4066 = vsub.f32 %v4023, %v4058
    %v4067 = vsub.f32 %v4024, %v4059
    %v4068 = vmul.f32 %v4060, %v4060
    %v4069 = vmul.f32 %v4061, %v4061
    %v4070 = vmul.f32 %v4062, %v4062
    %v4071 = vmul.f32 %v4063, %v4063
    %v4072 = vmul.f32 %v4064, %v4064
    %v4073 = vmul.f32 %v4065, %v4065
    %v4074 = vmul.f32 %v4066, %v4066
    %v4075 = vmul.f32 %v4067, %v4067
    %v4076 = vsel %vm118, %v4068, 0.0
    %4077 = vadd.xlane.f32.xlu0 %v4076
    %v4078 = vpop.xlane.xlu0 %4077
    %v4079 = vsel %vm118, %v4069, 0.0
    %4080 = vadd.xlane.f32.xlu0 %v4079
    %v4081 = vpop.xlane.xlu0 %4080
    %v4082 = vsel %vm118, %v4070, 0.0
    %4083 = vadd.xlane.f32.xlu0 %v4082
    %v4084 = vpop.xlane.xlu0 %4083
    %v4085 = vsel %vm118, %v4071, 0.0
    %4086 = vadd.xlane.f32.xlu0 %v4085
    %v4087 = vpop.xlane.xlu0 %4086
    %v4088 = vsel %vm118, %v4072, 0.0
    %4089 = vadd.xlane.f32.xlu0 %v4088
    %v4090 = vpop.xlane.xlu0 %4089
    %v4091 = vsel %vm118, %v4073, 0.0
    %4092 = vadd.xlane.f32.xlu0 %v4091
    %v4093 = vpop.xlane.xlu0 %4092
    %v4094 = vsel %vm118, %v4074, 0.0
    %4095 = vadd.xlane.f32.xlu0 %v4094
    %v4096 = vpop.xlane.xlu0 %4095
    %v4097 = vsel %vm118, %v4075, 0.0
    %4098 = vadd.xlane.f32.xlu0 %v4097
    %v4099 = vpop.xlane.xlu0 %4098
    %v4100 = vmul.f32 %v4078, %v4051
    %v4101 = vmul.f32 %v4081, %v4051
    %v4102 = vmul.f32 %v4084, %v4051
    %v4103 = vmul.f32 %v4087, %v4051
    %v4104 = vmul.f32 %v4090, %v4051
    %v4105 = vmul.f32 %v4093, %v4051
    %v4106 = vmul.f32 %v4096, %v4051
    %v4107 = vmul.f32 %v4099, %v4051
    %v4108 = vadd.f32 %v4100, 1e-05
    %v4109 = vadd.f32 %v4101, 1e-05
    %v4110 = vadd.f32 %v4102, 1e-05
    %v4111 = vadd.f32 %v4103, 1e-05
    %v4112 = vadd.f32 %v4104, 1e-05
    %v4113 = vadd.f32 %v4105, 1e-05
    %v4114 = vadd.f32 %v4106, 1e-05
    %v4115 = vadd.f32 %v4107, 1e-05
    %v4116 = vrsqrt.pop %v4108
    %v4117 = vrsqrt.pop %v4109
    %v4118 = vrsqrt.pop %v4110
    %v4119 = vrsqrt.pop %v4111
    %v4120 = vrsqrt.pop %v4112
    %v4121 = vrsqrt.pop %v4113
    %v4122 = vrsqrt.pop %v4114
    %v4123 = vrsqrt.pop %v4115
    %v4124 = vmul.f32 %v4060, %v4116
    %v4125 = vmul.f32 %v4061, %v4117
    %v4126 = vmul.f32 %v4062, %v4118
    %v4127 = vmul.f32 %v4063, %v4119
    %v4128 = vmul.f32 %v4064, %v4120
    %v4129 = vmul.f32 %v4065, %v4121
    %v4130 = vmul.f32 %v4066, %v4122
    %v4131 = vmul.f32 %v4067, %v4123
    %v4133 = vlaneseq
    %v4134 = vshrl.u32 %v4133, 7
    %v4135 = vsub.s32 0, %v4134
    %v4136 = vrot.slane %v4025, %v4135
    %v4138 = vmul.f32 %v4124, %v4136
    %v4139 = vmul.f32 %v4125, %v4136
    %v4140 = vmul.f32 %v4126, %v4136
    %v4141 = vmul.f32 %v4127, %v4136
    %v4142 = vmul.f32 %v4128, %v4136
    %v4143 = vmul.f32 %v4129, %v4136
    %v4144 = vmul.f32 %v4130, %v4136
    %v4145 = vmul.f32 %v4131, %v4136
    %v4147 = vlaneseq
    %v4148 = vshrl.u32 %v4147, 7
    %v4149 = vsub.s32 0, %v4148
    %v4150 = vrot.slane %v4026, %v4149
    %v4152 = vadd.f32 %v4138, %v4150
    %v4153 = vadd.f32 %v4139, %v4150
    %v4154 = vadd.f32 %v4140, %v4150
    %v4155 = vadd.f32 %v4141, %v4150
    %v4156 = vadd.f32 %v4142, %v4150
    %v4157 = vadd.f32 %v4143, %v4150
    %v4158 = vadd.f32 %v4144, %v4150
    %v4159 = vadd.f32 %v4145, %v4150
    %v4160 = vpack.c.bf16 %v4153, %v4152
    %v4161 = vpack.c.bf16 %v4155, %v4154
    %v4162 = vpack.c.bf16 %v4157, %v4156
    %v4163 = vpack.c.bf16 %v4159, %v4158
    %v4164 = vld [vmem:[%s7] sm:$0xff]
    %v4165 = vld [vmem:[%s7 + $0x8] sm:$0xff]
    %v4166 = vld [vmem:[%s7 + $0x10] sm:$0xff]
    %v4167 = vld [vmem:[%s7 + $0x18] sm:$0xff]
    %v4168 = vld [vmem:[%s7 + $0x20] sm:$0xff]
    %v4169 = vld [vmem:[%s7 + $0x28] sm:$0xff]
    %v4170 = vld [vmem:[%s7 + $0x30] sm:$0xff]
    %v4171 = vld [vmem:[%s7 + $0x38] sm:$0xff]
    %v4172 = vld [vmem:[%s7 + $0x40] sm:$0xff]
    %v4173 = vld [vmem:[%s7 + $0x48] sm:$0xff]
    %v4174 = vld [vmem:[%s7 + $0x50] sm:$0xff]
    %v4175 = vld [vmem:[%s7 + $0x58] sm:$0xff]
    %v4176 = vld [vmem:[%s7 + $0x60] sm:$0xff]
    %v4177 = vld [vmem:[%s7 + $0x68] sm:$0xff]
    %v4178 = vld [vmem:[%s7 + $0x70] sm:$0xff]
    %v4179 = vld [vmem:[%s7 + $0x78] sm:$0xff]
    %v4180 = vld [vmem:[%s7 + $0x80] sm:$0xff]
    %v4181 = vld [vmem:[%s7 + $0x88] sm:$0xff]
    %v4182 = vld [vmem:[%s7 + $0x90] sm:$0xff]
    %v4183 = vld [vmem:[%s7 + $0x98] sm:$0xff]
    %v4184 = vld [vmem:[%s7 + $0xa0] sm:$0xff]
    %v4185 = vld [vmem:[%s7 + $0xa8] sm:$0xff]
    %v4186 = vld [vmem:[%s7 + $0xb0] sm:$0xff]
    %v4187 = vld [vmem:[%s7 + $0xb8] sm:$0xff]
    %v4188 = vld [vmem:[%s7 + $0xc0] sm:$0xff]
    %v4189 = vld [vmem:[%s7 + $0xc8] sm:$0xff]
    %v4190 = vld [vmem:[%s7 + $0xd0] sm:$0xff]
    %v4191 = vld [vmem:[%s7 + $0xd8] sm:$0xff]
    %v4192 = vld [vmem:[%s7 + $0xe0] sm:$0xff]
    %v4193 = vld [vmem:[%s7 + $0xe8] sm:$0xff]
    %v4194 = vld [vmem:[%s7 + $0xf0] sm:$0xff]
    %v4195 = vld [vmem:[%s7 + $0xf8] sm:$0xff]
    %v4196 = vld [vmem:[%s7 + $0x100] sm:$0xff]
    %v4197 = vld [vmem:[%s7 + $0x108] sm:$0xff]
    %v4198 = vld [vmem:[%s7 + $0x110] sm:$0xff]
    %v4199 = vld [vmem:[%s7 + $0x118] sm:$0xff]
    %v4200 = vld [vmem:[%s7 + $0x120] sm:$0xff]
    %v4201 = vld [vmem:[%s7 + $0x128] sm:$0xff]
    %v4202 = vld [vmem:[%s7 + $0x130] sm:$0xff]
    %v4203 = vld [vmem:[%s7 + $0x138] sm:$0xff]
    %v4204 = vld [vmem:[%s7 + $0x140] sm:$0xff]
    %v4205 = vld [vmem:[%s7 + $0x148] sm:$0xff]
    %v4206 = vld [vmem:[%s7 + $0x150] sm:$0xff]
    %v4207 = vld [vmem:[%s7 + $0x158] sm:$0xff]
    %v4208 = vld [vmem:[%s7 + $0x160] sm:$0xff]
    %v4209 = vld [vmem:[%s7 + $0x168] sm:$0xff]
    %v4210 = vld [vmem:[%s7 + $0x170] sm:$0xff]
    %v4211 = vld [vmem:[%s7 + $0x178] sm:$0xff]
    %v4212 = vld [vmem:[%s7 + $0x180] sm:$0xff]
    %v4213 = vld [vmem:[%s7 + $0x188] sm:$0xff]
    %v4214 = vld [vmem:[%s7 + $0x190] sm:$0xff]
    %v4215 = vld [vmem:[%s7 + $0x198] sm:$0xff]
    %v4216 = vld [vmem:[%s7 + $0x1a0] sm:$0xff]
    %v4217 = vld [vmem:[%s7 + $0x1a8] sm:$0xff]
    %v4218 = vld [vmem:[%s7 + $0x1b0] sm:$0xff]
    %v4219 = vld [vmem:[%s7 + $0x1b8] sm:$0xff]
    %v4220 = vld [vmem:[%s7 + $0x1c0] sm:$0xff]
    %v4221 = vld [vmem:[%s7 + $0x1c8] sm:$0xff]
    %v4222 = vld [vmem:[%s7 + $0x1d0] sm:$0xff]
    %v4223 = vld [vmem:[%s7 + $0x1d8] sm:$0xff]
    %v4224 = vld [vmem:[%s7 + $0x1e0] sm:$0xff]
    %v4225 = vld [vmem:[%s7 + $0x1e8] sm:$0xff]
    %v4226 = vld [vmem:[%s7 + $0x1f0] sm:$0xff]
    %v4227 = vld [vmem:[%s7 + $0x1f8] sm:$0xff]
    %v4228 = vld [vmem:[%s8] sm:$0xff]
    %v4229 = vld [vmem:[%s8 + $0x8] sm:$0xff]
    %v4232 = vlaneseq
    %v4233 = vshrl.u32 %v4232, 7
    %v4234 = vsub.s32 0, %v4233
    %v4235 = vrot.slane %v4228, %v4234
    %v4236 = vlaneseq
    %v4237 = vshrl.u32 %v4236, 7
    %v4238 = vsub.s32 1, %v4237
    %v4239 = vrot.slane %v4228, %v4238
    %v4240 = vlaneseq
    %v4241 = vshrl.u32 %v4240, 7
    %v4242 = vsub.s32 2, %v4241
    %v4243 = vrot.slane %v4228, %v4242
    %v4244 = vlaneseq
    %v4245 = vshrl.u32 %v4244, 7
    %v4246 = vsub.s32 3, %v4245
    %v4247 = vrot.slane %v4228, %v4246
    %v4248 = vlaneseq
    %v4249 = vshrl.u32 %v4248, 7
    %v4250 = vsub.s32 4, %v4249
    %v4251 = vrot.slane %v4228, %v4250
    %v4252 = vlaneseq
    %v4253 = vshrl.u32 %v4252, 7
    %v4254 = vsub.s32 5, %v4253
    %v4255 = vrot.slane %v4228, %v4254
    %v4256 = vlaneseq
    %v4257 = vshrl.u32 %v4256, 7
    %v4258 = vsub.s32 6, %v4257
    %v4259 = vrot.slane %v4228, %v4258
    %v4260 = vlaneseq
    %v4261 = vshrl.u32 %v4260, 7
    %v4262 = vsub.s32 7, %v4261
    %v4263 = vrot.slane %v4228, %v4262
    %v4264 = vlaneseq
    %v4265 = vshrl.u32 %v4264, 7
    %v4266 = vsub.s32 0, %v4265
    %v4267 = vrot.slane %v4229, %v4266
    %v4268 = vlaneseq
    %v4269 = vshrl.u32 %v4268, 7
    %v4270 = vsub.s32 1, %v4269
    %v4271 = vrot.slane %v4229, %v4270
    %v4272 = vlaneseq
    %v4273 = vshrl.u32 %v4272, 7
    %v4274 = vsub.s32 2, %v4273
    %v4275 = vrot.slane %v4229, %v4274
    %v4276 = vlaneseq
    %v4277 = vshrl.u32 %v4276, 7
    %v4278 = vsub.s32 3, %v4277
    %v4279 = vrot.slane %v4229, %v4278
    %v4280 = vlaneseq
    %v4281 = vshrl.u32 %v4280, 7
    %v4282 = vsub.s32 4, %v4281
    %v4283 = vrot.slane %v4229, %v4282
    %v4284 = vlaneseq
    %v4285 = vshrl.u32 %v4284, 7
    %v4286 = vsub.s32 5, %v4285
    %v4287 = vrot.slane %v4229, %v4286
    %v4288 = vlaneseq
    %v4289 = vshrl.u32 %v4288, 7
    %v4290 = vsub.s32 6, %v4289
    %v4291 = vrot.slane %v4229, %v4290
    %v4292 = vlaneseq
    %v4293 = vshrl.u32 %v4292, 7
    %v4294 = vsub.s32 7, %v4293
    %v4295 = vrot.slane %v4229, %v4294
    %v4376 = vunpack.c.l.b16 %v4164
    %v4377 = vunpack.c.h.b16 %v4164
    %v4378 = vunpack.c.l.b16 %v4165
    %v4379 = vunpack.c.h.b16 %v4165
    %v4380 = vunpack.c.l.b16 %v4166
    %v4381 = vunpack.c.h.b16 %v4166
    %v4382 = vunpack.c.l.b16 %v4167
    %v4383 = vunpack.c.h.b16 %v4167
    %v4384 = vunpack.c.l.b16 %v4168
    %v4385 = vunpack.c.h.b16 %v4168
    %v4386 = vunpack.c.l.b16 %v4169
    %v4387 = vunpack.c.h.b16 %v4169
    %v4388 = vunpack.c.l.b16 %v4170
    %v4389 = vunpack.c.h.b16 %v4170
    %v4390 = vunpack.c.l.b16 %v4171
    %v4391 = vunpack.c.h.b16 %v4171
    %v4392 = vunpack.c.l.b16 %v4172
    %v4393 = vunpack.c.h.b16 %v4172
    %v4394 = vunpack.c.l.b16 %v4173
    %v4395 = vunpack.c.h.b16 %v4173
    %v4396 = vunpack.c.l.b16 %v4174
    %v4397 = vunpack.c.h.b16 %v4174
    %v4398 = vunpack.c.l.b16 %v4175
    %v4399 = vunpack.c.h.b16 %v4175
    %v4400 = vunpack.c.l.b16 %v4176
    %v4401 = vunpack.c.h.b16 %v4176
    %v4402 = vunpack.c.l.b16 %v4177
    %v4403 = vunpack.c.h.b16 %v4177
    %v4404 = vunpack.c.l.b16 %v4178
    %v4405 = vunpack.c.h.b16 %v4178
    %v4406 = vunpack.c.l.b16 %v4179
    %v4407 = vunpack.c.h.b16 %v4179
    %v4408 = vunpack.c.l.b16 %v4180
    %v4409 = vunpack.c.h.b16 %v4180
    %v4410 = vunpack.c.l.b16 %v4181
    %v4411 = vunpack.c.h.b16 %v4181
    %v4412 = vunpack.c.l.b16 %v4182
    %v4413 = vunpack.c.h.b16 %v4182
    %v4414 = vunpack.c.l.b16 %v4183
    %v4415 = vunpack.c.h.b16 %v4183
    %v4416 = vunpack.c.l.b16 %v4184
    %v4417 = vunpack.c.h.b16 %v4184
    %v4418 = vunpack.c.l.b16 %v4185
    %v4419 = vunpack.c.h.b16 %v4185
    %v4420 = vunpack.c.l.b16 %v4186
    %v4421 = vunpack.c.h.b16 %v4186
    %v4422 = vunpack.c.l.b16 %v4187
    %v4423 = vunpack.c.h.b16 %v4187
    %v4424 = vunpack.c.l.b16 %v4188
    %v4425 = vunpack.c.h.b16 %v4188
    %v4426 = vunpack.c.l.b16 %v4189
    %v4427 = vunpack.c.h.b16 %v4189
    %v4428 = vunpack.c.l.b16 %v4190
    %v4429 = vunpack.c.h.b16 %v4190
    %v4430 = vunpack.c.l.b16 %v4191
    %v4431 = vunpack.c.h.b16 %v4191
    %v4432 = vunpack.c.l.b16 %v4192
    %v4433 = vunpack.c.h.b16 %v4192
    %v4434 = vunpack.c.l.b16 %v4193
    %v4435 = vunpack.c.h.b16 %v4193
    %v4436 = vunpack.c.l.b16 %v4194
    %v4437 = vunpack.c.h.b16 %v4194
    %v4438 = vunpack.c.l.b16 %v4195
    %v4439 = vunpack.c.h.b16 %v4195
    %v4440 = vunpack.c.l.b16 %v4196
    %v4441 = vunpack.c.h.b16 %v4196
    %v4442 = vunpack.c.l.b16 %v4197
    %v4443 = vunpack.c.h.b16 %v4197
    %v4444 = vunpack.c.l.b16 %v4198
    %v4445 = vunpack.c.h.b16 %v4198
    %v4446 = vunpack.c.l.b16 %v4199
    %v4447 = vunpack.c.h.b16 %v4199
    %v4448 = vunpack.c.l.b16 %v4200
    %v4449 = vunpack.c.h.b16 %v4200
    %v4450 = vunpack.c.l.b16 %v4201
    %v4451 = vunpack.c.h.b16 %v4201
    %v4452 = vunpack.c.l.b16 %v4202
    %v4453 = vunpack.c.h.b16 %v4202
    %v4454 = vunpack.c.l.b16 %v4203
    %v4455 = vunpack.c.h.b16 %v4203
    %v4456 = vunpack.c.l.b16 %v4204
    %v4457 = vunpack.c.h.b16 %v4204
    %v4458 = vunpack.c.l.b16 %v4205
    %v4459 = vunpack.c.h.b16 %v4205
    %v4460 = vunpack.c.l.b16 %v4206
    %v4461 = vunpack.c.h.b16 %v4206
    %v4462 = vunpack.c.l.b16 %v4207
    %v4463 = vunpack.c.h.b16 %v4207
    %v4464 = vunpack.c.l.b16 %v4208
    %v4465 = vunpack.c.h.b16 %v4208
    %v4466 = vunpack.c.l.b16 %v4209
    %v4467 = vunpack.c.h.b16 %v4209
    %v4468 = vunpack.c.l.b16 %v4210
    %v4469 = vunpack.c.h.b16 %v4210
    %v4470 = vunpack.c.l.b16 %v4211
    %v4471 = vunpack.c.h.b16 %v4211
    %v4472 = vunpack.c.l.b16 %v4212
    %v4473 = vunpack.c.h.b16 %v4212
    %v4474 = vunpack.c.l.b16 %v4213
    %v4475 = vunpack.c.h.b16 %v4213
    %v4476 = vunpack.c.l.b16 %v4214
    %v4477 = vunpack.c.h.b16 %v4214
    %v4478 = vunpack.c.l.b16 %v4215
    %v4479 = vunpack.c.h.b16 %v4215
    %v4480 = vunpack.c.l.b16 %v4216
    %v4481 = vunpack.c.h.b16 %v4216
    %v4482 = vunpack.c.l.b16 %v4217
    %v4483 = vunpack.c.h.b16 %v4217
    %v4484 = vunpack.c.l.b16 %v4218
    %v4485 = vunpack.c.h.b16 %v4218
    %v4486 = vunpack.c.l.b16 %v4219
    %v4487 = vunpack.c.h.b16 %v4219
    %v4488 = vunpack.c.l.b16 %v4220
    %v4489 = vunpack.c.h.b16 %v4220
    %v4490 = vunpack.c.l.b16 %v4221
    %v4491 = vunpack.c.h.b16 %v4221
    %v4492 = vunpack.c.l.b16 %v4222
    %v4493 = vunpack.c.h.b16 %v4222
    %v4494 = vunpack.c.l.b16 %v4223
    %v4495 = vunpack.c.h.b16 %v4223
    %v4496 = vunpack.c.l.b16 %v4224
    %v4497 = vunpack.c.h.b16 %v4224
    %v4498 = vunpack.c.l.b16 %v4225
    %v4499 = vunpack.c.h.b16 %v4225
    %v4500 = vunpack.c.l.b16 %v4226
    %v4501 = vunpack.c.h.b16 %v4226
    %v4502 = vunpack.c.l.b16 %v4227
    %v4503 = vunpack.c.h.b16 %v4227
    %v4504 = vpack.c.b16 %v4392, %v4376
    %v4505 = vpack.c.b16 %v4393, %v4377
    %v4506 = vpack.c.b16 %v4394, %v4378
    %v4507 = vpack.c.b16 %v4395, %v4379
    %v4508 = vpack.c.b16 %v4396, %v4380
    %v4509 = vpack.c.b16 %v4397, %v4381
    %v4510 = vpack.c.b16 %v4398, %v4382
    %v4511 = vpack.c.b16 %v4399, %v4383
    %v4512 = vpack.c.b16 %v4400, %v4384
    %v4513 = vpack.c.b16 %v4401, %v4385
    %v4514 = vpack.c.b16 %v4402, %v4386
    %v4515 = vpack.c.b16 %v4403, %v4387
    %v4516 = vpack.c.b16 %v4404, %v4388
    %v4517 = vpack.c.b16 %v4405, %v4389
    %v4518 = vpack.c.b16 %v4406, %v4390
    %v4519 = vpack.c.b16 %v4407, %v4391
    %v4520 = vpack.c.b16 %v4424, %v4408
    %v4521 = vpack.c.b16 %v4425, %v4409
    %v4522 = vpack.c.b16 %v4426, %v4410
    %v4523 = vpack.c.b16 %v4427, %v4411
    %v4524 = vpack.c.b16 %v4428, %v4412
    %v4525 = vpack.c.b16 %v4429, %v4413
    %v4526 = vpack.c.b16 %v4430, %v4414
    %v4527 = vpack.c.b16 %v4431, %v4415
    %v4528 = vpack.c.b16 %v4432, %v4416
    %v4529 = vpack.c.b16 %v4433, %v4417
    %v4530 = vpack.c.b16 %v4434, %v4418
    %v4531 = vpack.c.b16 %v4435, %v4419
    %v4532 = vpack.c.b16 %v4436, %v4420
    %v4533 = vpack.c.b16 %v4437, %v4421
    %v4534 = vpack.c.b16 %v4438, %v4422
    %v4535 = vpack.c.b16 %v4439, %v4423
    %v4536 = vpack.c.b16 %v4456, %v4440
    %v4537 = vpack.c.b16 %v4457, %v4441
    %v4538 = vpack.c.b16 %v4458, %v4442
    %v4539 = vpack.c.b16 %v4459, %v4443
    %v4540 = vpack.c.b16 %v4460, %v4444
    %v4541 = vpack.c.b16 %v4461, %v4445
    %v4542 = vpack.c.b16 %v4462, %v4446
    %v4543 = vpack.c.b16 %v4463, %v4447
    %v4544 = vpack.c.b16 %v4464, %v4448
    %v4545 = vpack.c.b16 %v4465, %v4449
    %v4546 = vpack.c.b16 %v4466, %v4450
    %v4547 = vpack.c.b16 %v4467, %v4451
    %v4548 = vpack.c.b16 %v4468, %v4452
    %v4549 = vpack.c.b16 %v4469, %v4453
    %v4550 = vpack.c.b16 %v4470, %v4454
    %v4551 = vpack.c.b16 %v4471, %v4455
    %v4552 = vpack.c.b16 %v4488, %v4472
    %v4553 = vpack.c.b16 %v4489, %v4473
    %v4554 = vpack.c.b16 %v4490, %v4474
    %v4555 = vpack.c.b16 %v4491, %v4475
    %v4556 = vpack.c.b16 %v4492, %v4476
    %v4557 = vpack.c.b16 %v4493, %v4477
    %v4558 = vpack.c.b16 %v4494, %v4478
    %v4559 = vpack.c.b16 %v4495, %v4479
    %v4560 = vpack.c.b16 %v4496, %v4480
    %v4561 = vpack.c.b16 %v4497, %v4481
    %v4562 = vpack.c.b16 %v4498, %v4482
    %v4563 = vpack.c.b16 %v4499, %v4483
    %v4564 = vpack.c.b16 %v4500, %v4484
    %v4565 = vpack.c.b16 %v4501, %v4485
    %v4566 = vpack.c.b16 %v4502, %v4486
    %v4567 = vpack.c.b16 %v4503, %v4487
    %v4633 = vsel %vm118, %v4160, 0
    %v4636 = vsel %vm118, %v4161, 0
    %v4639 = vsel %vm118, %v4162, 0
    %v4642 = vsel %vm118, %v4163, 0
    %4644 = vmatprep.subr.bf16.mxu0 %v4505
    %4645 = vmatpush1.bf16.msra.mxu0 %v4504
    %4646 = vmatprep.subr.bf16.mxu0 %v4521
    %4647 = vmatpush1.bf16.msra.mxu0 %v4520
    %4648 = vmatprep.subr.bf16.mxu0 %v4537
    %4649 = vmatpush1.bf16.msra.mxu0 %v4536
    %4650 = vmatprep.subr.bf16.mxu0 %v4553
    %4651 = vmatpush1.bf16.msra.mxu0 %v4552
    %4652 = vmatprep.subr.bf16.mxu0 0
    %4653 = vmatpush1.bf16.msra.mxu0 0
    %4654 = vmatprep.subr.bf16.mxu0 0
    %4655 = vmatpush1.bf16.msra.mxu0 0
    %4656 = vmatprep.subr.bf16.mxu0 0
    %4657 = vmatpush1.bf16.msra.mxu0 0
    %4658 = vmatprep.subr.bf16.mxu0 0
    %4659 = vmatpush1.bf16.msra.mxu0 0
    %4660 = vmatprep.subr.bf16.mxu0 0
    %4661 = vmatpush1.bf16.msra.mxu0 0
    %4662 = vmatprep.subr.bf16.mxu0 0
    %4663 = vmatpush1.bf16.msra.mxu0 0
    %4664 = vmatprep.subr.bf16.mxu0 0
    %4665 = vmatpush1.bf16.msra.mxu0 0
    %4666 = vmatprep.subr.bf16.mxu0 0
    %4667 = vmatpush1.bf16.msra.mxu0 0
    %4668 = vmatprep.subr.bf16.mxu0 0
    %4669 = vmatpush1.bf16.msra.mxu0 0
    %4670 = vmatprep.subr.bf16.mxu0 0
    %4671 = vmatpush1.bf16.msra.mxu0 0
    %4672 = vmatprep.subr.bf16.mxu0 0
    %4673 = vmatpush1.bf16.msra.mxu0 0
    %4674 = vmatprep.subr.bf16.mxu0 0
    %4675 = vmatpush1.bf16.msra.mxu0 0
    %4676 = vmatprep.mubr.bf16.mxu0 0
    %4677 = vmatmul.mubr.bf16.gmra.mrb[0].mxu0 %v4633
    %v4678 = vpop.f32.mrb[0].mxu0
    %v4679 = vadd.f32 %v4235, %v4678
    %v4680 = vpop.f32.mrb[0].mxu0
    %v4681 = vadd.f32 %v4239, %v4680
    %v4682 = vpop.f32.mrb[0].mxu0
    %v4683 = vadd.f32 %v4235, %v4682
    %v4684 = vpop.f32.mrb[0].mxu0
    %v4685 = vadd.f32 %v4239, %v4684
    %4686 = vmatprep.mubr.bf16.mxu0 0
    %4687 = vmatmul.mubr.bf16.gmra.mrb[0].mxu0 %v4636
    %v4688 = vpop.f32.mrb[0].mxu0
    %v4689 = vadd.f32 %v4235, %v4688
    %v4690 = vpop.f32.mrb[0].mxu0
    %v4691 = vadd.f32 %v4239, %v4690
    %v4692 = vpop.f32.mrb[0].mxu0
    %v4693 = vadd.f32 %v4235, %v4692
    %v4694 = vpop.f32.mrb[0].mxu0
    %v4695 = vadd.f32 %v4239, %v4694
    %4696 = vmatprep.mubr.bf16.mxu0 0
    %4697 = vmatmul.mubr.bf16.gmra.mrb[0].mxu0 %v4639
    %v4698 = vpop.f32.mrb[0].mxu0
    %v4699 = vadd.f32 %v4235, %v4698
    %v4700 = vpop.f32.mrb[0].mxu0
    %v4701 = vadd.f32 %v4239, %v4700
    %v4702 = vpop.f32.mrb[0].mxu0
    %v4703 = vadd.f32 %v4235, %v4702
    %v4704 = vpop.f32.mrb[0].mxu0
    %v4705 = vadd.f32 %v4239, %v4704
    %4706 = vmatprep.mubr.bf16.mxu0 0
    %4707 = vmatmul.mubr.bf16.gmra.mrb[0].mxu0 %v4642
    %v4708 = vpop.f32.mrb[0].mxu0
    %v4709 = vadd.f32 %v4235, %v4708
    %v4710 = vpop.f32.mrb[0].mxu0
    %v4711 = vadd.f32 %v4239, %v4710
    %v4712 = vpop.f32.mrb[0].mxu0
    %v4713 = vadd.f32 %v4235, %v4712
    %v4714 = vpop.f32.mrb[0].mxu0
    %v4715 = vadd.f32 %v4239, %v4714
    %4716 = vdwg.mxu0
    %4717 = vmatprep.subr.bf16.mxu0 %v4507
    %4718 = vmatpush1.bf16.msra.mxu0 %v4506
    %4719 = vmatprep.subr.bf16.mxu0 %v4523
    %4720 = vmatpush1.bf16.msra.mxu0 %v4522
    %4721 = vmatprep.subr.bf16.mxu0 %v4539
    %4722 = vmatpush1.bf16.msra.mxu0 %v4538
    %4723 = vmatprep.subr.bf16.mxu0 %v4555
    %4724 = vmatpush1.bf16.msra.mxu0 %v4554
    %4725 = vmatprep.subr.bf16.mxu0 0
    %4726 = vmatpush1.bf16.msra.mxu0 0
    %4727 = vmatprep.subr.bf16.mxu0 0
    %4728 = vmatpush1.bf16.msra.mxu0 0
    %4729 = vmatprep.subr.bf16.mxu0 0
    %4730 = vmatpush1.bf16.msra.mxu0 0
    %4731 = vmatprep.subr.bf16.mxu0 0
    %4732 = vmatpush1.bf16.msra.mxu0 0
    %4733 = vmatprep.subr.bf16.mxu0 0
    %4734 = vmatpush1.bf16.msra.mxu0 0
    %4735 = vmatprep.subr.bf16.mxu0 0
    %4736 = vmatpush1.bf16.msra.mxu0 0
    %4737 = vmatprep.subr.bf16.mxu0 0
    %4738 = vmatpush1.bf16.msra.mxu0 0
    %4739 = vmatprep.subr.bf16.mxu0 0
    %4740 = vmatpush1.bf16.msra.mxu0 0
    %4741 = vmatprep.subr.bf16.mxu0 0
    %4742 = vmatpush1.bf16.msra.mxu0 0
    %4743 = vmatprep.subr.bf16.mxu0 0
    %4744 = vmatpush1.bf16.msra.mxu0 0
    %4745 = vmatprep.subr.bf16.mxu0 0
    %4746 = vmatpush1.bf16.msra.mxu0 0
    %4747 = vmatprep.subr.bf16.mxu0 0
    %4748 = vmatpush1.bf16.msra.mxu0 0
    %4749 = vmatprep.mubr.bf16.mxu0 0
    %4750 = vmatmul.mubr.bf16.gmra.mrb[0].mxu0 %v4633
    %v4751 = vpop.f32.mrb[0].mxu0
    %v4752 = vadd.f32 %v4243, %v4751
    %v4753 = vpop.f32.mrb[0].mxu0
    %v4754 = vadd.f32 %v4247, %v4753
    %v4755 = vpop.f32.mrb[0].mxu0
    %v4756 = vadd.f32 %v4243, %v4755
    %v4757 = vpop.f32.mrb[0].mxu0
    %v4758 = vadd.f32 %v4247, %v4757
    %4759 = vmatprep.mubr.bf16.mxu0 0
    %4760 = vmatmul.mubr.bf16.gmra.mrb[0].mxu0 %v4636
    %v4761 = vpop.f32.mrb[0].mxu0
    %v4762 = vadd.f32 %v4243, %v4761
    %v4763 = vpop.f32.mrb[0].mxu0
    %v4764 = vadd.f32 %v4247, %v4763
    %v4765 = vpop.f32.mrb[0].mxu0
    %v4766 = vadd.f32 %v4243, %v4765
    %v4767 = vpop.f32.mrb[0].mxu0
    %v4768 = vadd.f32 %v4247, %v4767
    %4769 = vmatprep.mubr.bf16.mxu0 0
    %4770 = vmatmul.mubr.bf16.gmra.mrb[0].mxu0 %v4639
    %v4771 = vpop.f32.mrb[0].mxu0
    %v4772 = vadd.f32 %v4243, %v4771
    %v4773 = vpop.f32.mrb[0].mxu0
    %v4774 = vadd.f32 %v4247, %v4773
    %v4775 = vpop.f32.mrb[0].mxu0
    %v4776 = vadd.f32 %v4243, %v4775
    %v4777 = vpop.f32.mrb[0].mxu0
    %v4778 = vadd.f32 %v4247, %v4777
    %4779 = vmatprep.mubr.bf16.mxu0 0
    %4780 = vmatmul.mubr.bf16.gmra.mrb[0].mxu0 %v4642
    %v4781 = vpop.f32.mrb[0].mxu0
    %v4782 = vadd.f32 %v4243, %v4781
    %v4783 = vpop.f32.mrb[0].mxu0
    %v4784 = vadd.f32 %v4247, %v4783
    %v4785 = vpop.f32.mrb[0].mxu0
    %v4786 = vadd.f32 %v4243, %v4785
    %v4787 = vpop.f32.mrb[0].mxu0
    %v4788 = vadd.f32 %v4247, %v4787
    %4789 = vdwg.mxu0
    %4790 = vmatprep.subr.bf16.mxu0 %v4509
    %4791 = vmatpush1.bf16.msra.mxu0 %v4508
    %4792 = vmatprep.subr.bf16.mxu0 %v4525
    %4793 = vmatpush1.bf16.msra.mxu0 %v4524
    %4794 = vmatprep.subr.bf16.mxu0 %v4541
    %4795 = vmatpush1.bf16.msra.mxu0 %v4540
    %4796 = vmatprep.subr.bf16.mxu0 %v4557
    %4797 = vmatpush1.bf16.msra.mxu0 %v4556
    %4798 = vmatprep.subr.bf16.mxu0 0
    %4799 = vmatpush1.bf16.msra.mxu0 0
    %4800 = vmatprep.subr.bf16.mxu0 0
    %4801 = vmatpush1.bf16.msra.mxu0 0
    %4802 = vmatprep.subr.bf16.mxu0 0
    %4803 = vmatpush1.bf16.msra.mxu0 0
    %4804 = vmatprep.subr.bf16.mxu0 0
    %4805 = vmatpush1.bf16.msra.mxu0 0
    %4806 = vmatprep.subr.bf16.mxu0 0
    %4807 = vmatpush1.bf16.msra.mxu0 0
    %4808 = vmatprep.subr.bf16.mxu0 0
    %4809 = vmatpush1.bf16.msra.mxu0 0
    %4810 = vmatprep.subr.bf16.mxu0 0
    %4811 = vmatpush1.bf16.msra.mxu0 0
    %4812 = vmatprep.subr.bf16.mxu0 0
    %4813 = vmatpush1.bf16.msra.mxu0 0
    %4814 = vmatprep.subr.bf16.mxu0 0
    %4815 = vmatpush1.bf16.msra.mxu0 0
    %4816 = vmatprep.subr.bf16.mxu0 0
    %4817 = vmatpush1.bf16.msra.mxu0 0
    %4818 = vmatprep.subr.bf16.mxu0 0
    %4819 = vmatpush1.bf16.msra.mxu0 0
    %4820 = vmatprep.subr.bf16.mxu0 0
    %4821 = vmatpush1.bf16.msra.mxu0 0
    %4822 = vmatprep.mubr.bf16.mxu0 0
    %4823 = vmatmul.mubr.bf16.gmra.mrb[0].mxu0 %v4633
    %v4824 = vpop.f32.mrb[0].mxu0
    %v4825 = vadd.f32 %v4251, %v4824
    %v4826 = vpop.f32.mrb[0].mxu0
    %v4827 = vadd.f32 %v4255, %v4826
    %v4828 = vpop.f32.mrb[0].mxu0
    %v4829 = vadd.f32 %v4251, %v4828
    %v4830 = vpop.f32.mrb[0].mxu0
    %v4831 = vadd.f32 %v4255, %v4830
    %4832 = vmatprep.mubr.bf16.mxu0 0
    %4833 = vmatmul.mubr.bf16.gmra.mrb[0].mxu0 %v4636
    %v4834 = vpop.f32.mrb[0].mxu0
    %v4835 = vadd.f32 %v4251, %v4834
    %v4836 = vpop.f32.mrb[0].mxu0
    %v4837 = vadd.f32 %v4255, %v4836
    %v4838 = vpop.f32.mrb[0].mxu0
    %v4839 = vadd.f32 %v4251, %v4838
    %v4840 = vpop.f32.mrb[0].mxu0
    %v4841 = vadd.f32 %v4255, %v4840
    %4842 = vmatprep.mubr.bf16.mxu0 0
    %4843 = vmatmul.mubr.bf16.gmra.mrb[0].mxu0 %v4639
    %v4844 = vpop.f32.mrb[0].mxu0
    %v4845 = vadd.f32 %v4251, %v4844
    %v4846 = vpop.f32.mrb[0].mxu0
    %v4847 = vadd.f32 %v4255, %v4846
    %v4848 = vpop.f32.mrb[0].mxu0
    %v4849 = vadd.f32 %v4251, %v4848
    %v4850 = vpop.f32.mrb[0].mxu0
    %v4851 = vadd.f32 %v4255, %v4850
    %4852 = vmatprep.mubr.bf16.mxu0 0
    %4853 = vmatmul.mubr.bf16.gmra.mrb[0].mxu0 %v4642
    %v4854 = vpop.f32.mrb[0].mxu0
    %v4855 = vadd.f32 %v4251, %v4854
    %v4856 = vpop.f32.mrb[0].mxu0
    %v4857 = vadd.f32 %v4255, %v4856
    %v4858 = vpop.f32.mrb[0].mxu0
    %v4859 = vadd.f32 %v4251, %v4858
    %v4860 = vpop.f32.mrb[0].mxu0
    %v4861 = vadd.f32 %v4255, %v4860
    %4862 = vdwg.mxu0
    %4863 = vmatprep.subr.bf16.mxu0 %v4511
    %4864 = vmatpush1.bf16.msra.mxu0 %v4510
    %4865 = vmatprep.subr.bf16.mxu0 %v4527
    %4866 = vmatpush1.bf16.msra.mxu0 %v4526
    %4867 = vmatprep.subr.bf16.mxu0 %v4543
    %4868 = vmatpush1.bf16.msra.mxu0 %v4542
    %4869 = vmatprep.subr.bf16.mxu0 %v4559
    %4870 = vmatpush1.bf16.msra.mxu0 %v4558
    %4871 = vmatprep.subr.bf16.mxu0 0
    %4872 = vmatpush1.bf16.msra.mxu0 0
    %4873 = vmatprep.subr.bf16.mxu0 0
    %4874 = vmatpush1.bf16.msra.mxu0 0
    %4875 = vmatprep.subr.bf16.mxu0 0
    %4876 = vmatpush1.bf16.msra.mxu0 0
    %4877 = vmatprep.subr.bf16.mxu0 0
    %4878 = vmatpush1.bf16.msra.mxu0 0
    %4879 = vmatprep.subr.bf16.mxu0 0
    %4880 = vmatpush1.bf16.msra.mxu0 0
    %4881 = vmatprep.subr.bf16.mxu0 0
    %4882 = vmatpush1.bf16.msra.mxu0 0
    %4883 = vmatprep.subr.bf16.mxu0 0
    %4884 = vmatpush1.bf16.msra.mxu0 0
    %4885 = vmatprep.subr.bf16.mxu0 0
    %4886 = vmatpush1.bf16.msra.mxu0 0
    %4887 = vmatprep.subr.bf16.mxu0 0
    %4888 = vmatpush1.bf16.msra.mxu0 0
    %4889 = vmatprep.subr.bf16.mxu0 0
    %4890 = vmatpush1.bf16.msra.mxu0 0
    %4891 = vmatprep.subr.bf16.mxu0 0
    %4892 = vmatpush1.bf16.msra.mxu0 0
    %4893 = vmatprep.subr.bf16.mxu0 0
    %4894 = vmatpush1.bf16.msra.mxu0 0
    %4895 = vmatprep.mubr.bf16.mxu0 0
    %4896 = vmatmul.mubr.bf16.gmra.mrb[0].mxu0 %v4633
    %v4897 = vpop.f32.mrb[0].mxu0
    %v4898 = vadd.f32 %v4259, %v4897
    %v4899 = vpop.f32.mrb[0].mxu0
    %v4900 = vadd.f32 %v4263, %v4899
    %v4901 = vpop.f32.mrb[0].mxu0
    %v4902 = vadd.f32 %v4259, %v4901
    %v4903 = vpop.f32.mrb[0].mxu0
    %v4904 = vadd.f32 %v4263, %v4903
    %4905 = vmatprep.mubr.bf16.mxu0 0
    %4906 = vmatmul.mubr.bf16.gmra.mrb[0].mxu0 %v4636
    %v4907 = vpop.f32.mrb[0].mxu0
    %v4908 = vadd.f32 %v4259, %v4907
    %v4909 = vpop.f32.mrb[0].mxu0
    %v4910 = vadd.f32 %v4263, %v4909
    %v4911 = vpop.f32.mrb[0].mxu0
    %v4912 = vadd.f32 %v4259, %v4911
    %v4913 = vpop.f32.mrb[0].mxu0
    %v4914 = vadd.f32 %v4263, %v4913
    %4915 = vmatprep.mubr.bf16.mxu0 0
    %4916 = vmatmul.mubr.bf16.gmra.mrb[0].mxu0 %v4639
    %v4917 = vpop.f32.mrb[0].mxu0
    %v4918 = vadd.f32 %v4259, %v4917
    %v4919 = vpop.f32.mrb[0].mxu0
    %v4920 = vadd.f32 %v4263, %v4919
    %v4921 = vpop.f32.mrb[0].mxu0
    %v4922 = vadd.f32 %v4259, %v4921
    %v4923 = vpop.f32.mrb[0].mxu0
    %v4924 = vadd.f32 %v4263, %v4923
    %4925 = vmatprep.mubr.bf16.mxu0 0
    %4926 = vmatmul.mubr.bf16.gmra.mrb[0].mxu0 %v4642
    %v4927 = vpop.f32.mrb[0].mxu0
    %v4928 = vadd.f32 %v4259, %v4927
    %v4929 = vpop.f32.mrb[0].mxu0
    %v4930 = vadd.f32 %v4263, %v4929
    %v4931 = vpop.f32.mrb[0].mxu0
    %v4932 = vadd.f32 %v4259, %v4931
    %v4933 = vpop.f32.mrb[0].mxu0
    %v4934 = vadd.f32 %v4263, %v4933
    %4935 = vdwg.mxu0
    %4936 = vmatprep.subr.bf16.mxu0 %v4513
    %4937 = vmatpush1.bf16.msra.mxu0 %v4512
    %4938 = vmatprep.subr.bf16.mxu0 %v4529
    %4939 = vmatpush1.bf16.msra.mxu0 %v4528
    %4940 = vmatprep.subr.bf16.mxu0 %v4545
    %4941 = vmatpush1.bf16.msra.mxu0 %v4544
    %4942 = vmatprep.subr.bf16.mxu0 %v4561
    %4943 = vmatpush1.bf16.msra.mxu0 %v4560
    %4944 = vmatprep.subr.bf16.mxu0 0
    %4945 = vmatpush1.bf16.msra.mxu0 0
    %4946 = vmatprep.subr.bf16.mxu0 0
    %4947 = vmatpush1.bf16.msra.mxu0 0
    %4948 = vmatprep.subr.bf16.mxu0 0
    %4949 = vmatpush1.bf16.msra.mxu0 0
    %4950 = vmatprep.subr.bf16.mxu0 0
    %4951 = vmatpush1.bf16.msra.mxu0 0
    %4952 = vmatprep.subr.bf16.mxu0 0
    %4953 = vmatpush1.bf16.msra.mxu0 0
    %4954 = vmatprep.subr.bf16.mxu0 0
    %4955 = vmatpush1.bf16.msra.mxu0 0
    %4956 = vmatprep.subr.bf16.mxu0 0
    %4957 = vmatpush1.bf16.msra.mxu0 0
    %4958 = vmatprep.subr.bf16.mxu0 0
    %4959 = vmatpush1.bf16.msra.mxu0 0
    %4960 = vmatprep.subr.bf16.mxu0 0
    %4961 = vmatpush1.bf16.msra.mxu0 0
    %4962 = vmatprep.subr.bf16.mxu0 0
    %4963 = vmatpush1.bf16.msra.mxu0 0
    %4964 = vmatprep.subr.bf16.mxu0 0
    %4965 = vmatpush1.bf16.msra.mxu0 0
    %4966 = vmatprep.subr.bf16.mxu0 0
    %4967 = vmatpush1.bf16.msra.mxu0 0
    %4968 = vmatprep.mubr.bf16.mxu0 0
    %4969 = vmatmul.mubr.bf16.gmra.mrb[0].mxu0 %v4633
    %v4970 = vpop.f32.mrb[0].mxu0
    %v4971 = vadd.f32 %v4267, %v4970
    %v4972 = vpop.f32.mrb[0].mxu0
    %v4973 = vadd.f32 %v4271, %v4972
    %v4974 = vpop.f32.mrb[0].mxu0
    %v4975 = vadd.f32 %v4267, %v4974
    %v4976 = vpop.f32.mrb[0].mxu0
    %v4977 = vadd.f32 %v4271, %v4976
    %4978 = vmatprep.mubr.bf16.mxu0 0
    %4979 = vmatmul.mubr.bf16.gmra.mrb[0].mxu0 %v4636
    %v4980 = vpop.f32.mrb[0].mxu0
    %v4981 = vadd.f32 %v4267, %v4980
    %v4982 = vpop.f32.mrb[0].mxu0
    %v4983 = vadd.f32 %v4271, %v4982
    %v4984 = vpop.f32.mrb[0].mxu0
    %v4985 = vadd.f32 %v4267, %v4984
    %v4986 = vpop.f32.mrb[0].mxu0
    %v4987 = vadd.f32 %v4271, %v4986
    %4988 = vmatprep.mubr.bf16.mxu0 0
    %4989 = vmatmul.mubr.bf16.gmra.mrb[0].mxu0 %v4639
    %v4990 = vpop.f32.mrb[0].mxu0
    %v4991 = vadd.f32 %v4267, %v4990
    %v4992 = vpop.f32.mrb[0].mxu0
    %v4993 = vadd.f32 %v4271, %v4992
    %v4994 = vpop.f32.mrb[0].mxu0
    %v4995 = vadd.f32 %v4267, %v4994
    %v4996 = vpop.f32.mrb[0].mxu0
    %v4997 = vadd.f32 %v4271, %v4996
    %4998 = vmatprep.mubr.bf16.mxu0 0
    %4999 = vmatmul.mubr.bf16.gmra.mrb[0].mxu0 %v4642
    %v5000 = vpop.f32.mrb[0].mxu0
    %v5001 = vadd.f32 %v4267, %v5000
    %v5002 = vpop.f32.mrb[0].mxu0
    %v5003 = vadd.f32 %v4271, %v5002
    %v5004 = vpop.f32.mrb[0].mxu0
    %v5005 = vadd.f32 %v4267, %v5004
    %v5006 = vpop.f32.mrb[0].mxu0
    %v5007 = vadd.f32 %v4271, %v5006
    %5008 = vdwg.mxu0
    %5009 = vmatprep.subr.bf16.mxu0 %v4515
    %5010 = vmatpush1.bf16.msra.mxu0 %v4514
    %5011 = vmatprep.subr.bf16.mxu0 %v4531
    %5012 = vmatpush1.bf16.msra.mxu0 %v4530
    %5013 = vmatprep.subr.bf16.mxu0 %v4547
    %5014 = vmatpush1.bf16.msra.mxu0 %v4546
    %5015 = vmatprep.subr.bf16.mxu0 %v4563
    %5016 = vmatpush1.bf16.msra.mxu0 %v4562
    %5017 = vmatprep.subr.bf16.mxu0 0
    %5018 = vmatpush1.bf16.msra.mxu0 0
    %5019 = vmatprep.subr.bf16.mxu0 0
    %5020 = vmatpush1.bf16.msra.mxu0 0
    %5021 = vmatprep.subr.bf16.mxu0 0
    %5022 = vmatpush1.bf16.msra.mxu0 0
    %5023 = vmatprep.subr.bf16.mxu0 0
    %5024 = vmatpush1.bf16.msra.mxu0 0
    %5025 = vmatprep.subr.bf16.mxu0 0
    %5026 = vmatpush1.bf16.msra.mxu0 0
    %5027 = vmatprep.subr.bf16.mxu0 0
    %5028 = vmatpush1.bf16.msra.mxu0 0
    %5029 = vmatprep.subr.bf16.mxu0 0
    %5030 = vmatpush1.bf16.msra.mxu0 0
    %5031 = vmatprep.subr.bf16.mxu0 0
    %5032 = vmatpush1.bf16.msra.mxu0 0
    %5033 = vmatprep.subr.bf16.mxu0 0
    %5034 = vmatpush1.bf16.msra.mxu0 0
    %5035 = vmatprep.subr.bf16.mxu0 0
    %5036 = vmatpush1.bf16.msra.mxu0 0
    %5037 = vmatprep.subr.bf16.mxu0 0
    %5038 = vmatpush1.bf16.msra.mxu0 0
    %5039 = vmatprep.subr.bf16.mxu0 0
    %5040 = vmatpush1.bf16.msra.mxu0 0
    %5041 = vmatprep.mubr.bf16.mxu0 0
    %5042 = vmatmul.mubr.bf16.gmra.mrb[0].mxu0 %v4633
    %v5043 = vpop.f32.mrb[0].mxu0
    %v5044 = vadd.f32 %v4275, %v5043
    %v5045 = vpop.f32.mrb[0].mxu0
    %v5046 = vadd.f32 %v4279, %v5045
    %v5047 = vpop.f32.mrb[0].mxu0
    %v5048 = vadd.f32 %v4275, %v5047
    %v5049 = vpop.f32.mrb[0].mxu0
    %v5050 = vadd.f32 %v4279, %v5049
    %5051 = vmatprep.mubr.bf16.mxu0 0
    %5052 = vmatmul.mubr.bf16.gmra.mrb[0].mxu0 %v4636
    %v5053 = vpop.f32.mrb[0].mxu0
    %v5054 = vadd.f32 %v4275, %v5053
    %v5055 = vpop.f32.mrb[0].mxu0
    %v5056 = vadd.f32 %v4279, %v5055
    %v5057 = vpop.f32.mrb[0].mxu0
    %v5058 = vadd.f32 %v4275, %v5057
    %v5059 = vpop.f32.mrb[0].mxu0
    %v5060 = vadd.f32 %v4279, %v5059
    %5061 = vmatprep.mubr.bf16.mxu0 0
    %5062 = vmatmul.mubr.bf16.gmra.mrb[0].mxu0 %v4639
    %v5063 = vpop.f32.mrb[0].mxu0
    %v5064 = vadd.f32 %v4275, %v5063
    %v5065 = vpop.f32.mrb[0].mxu0
    %v5066 = vadd.f32 %v4279, %v5065
    %v5067 = vpop.f32.mrb[0].mxu0
    %v5068 = vadd.f32 %v4275, %v5067
    %v5069 = vpop.f32.mrb[0].mxu0
    %v5070 = vadd.f32 %v4279, %v5069
    %5071 = vmatprep.mubr.bf16.mxu0 0
    %5072 = vmatmul.mubr.bf16.gmra.mrb[0].mxu0 %v4642
    %v5073 = vpop.f32.mrb[0].mxu0
    %v5074 = vadd.f32 %v4275, %v5073
    %v5075 = vpop.f32.mrb[0].mxu0
    %v5076 = vadd.f32 %v4279, %v5075
    %v5077 = vpop.f32.mrb[0].mxu0
    %v5078 = vadd.f32 %v4275, %v5077
    %v5079 = vpop.f32.mrb[0].mxu0
    %v5080 = vadd.f32 %v4279, %v5079
    %5081 = vdwg.mxu0
    %5082 = vmatprep.subr.bf16.mxu0 %v4517
    %5083 = vmatpush1.bf16.msra.mxu0 %v4516
    %5084 = vmatprep.subr.bf16.mxu0 %v4533
    %5085 = vmatpush1.bf16.msra.mxu0 %v4532
    %5086 = vmatprep.subr.bf16.mxu0 %v4549
    %5087 = vmatpush1.bf16.msra.mxu0 %v4548
    %5088 = vmatprep.subr.bf16.mxu0 %v4565
    %5089 = vmatpush1.bf16.msra.mxu0 %v4564
    %5090 = vmatprep.subr.bf16.mxu0 0
    %5091 = vmatpush1.bf16.msra.mxu0 0
    %5092 = vmatprep.subr.bf16.mxu0 0
    %5093 = vmatpush1.bf16.msra.mxu0 0
    %5094 = vmatprep.subr.bf16.mxu0 0
    %5095 = vmatpush1.bf16.msra.mxu0 0
    %5096 = vmatprep.subr.bf16.mxu0 0
    %5097 = vmatpush1.bf16.msra.mxu0 0
    %5098 = vmatprep.subr.bf16.mxu0 0
    %5099 = vmatpush1.bf16.msra.mxu0 0
    %5100 = vmatprep.subr.bf16.mxu0 0
    %5101 = vmatpush1.bf16.msra.mxu0 0
    %5102 = vmatprep.subr.bf16.mxu0 0
    %5103 = vmatpush1.bf16.msra.mxu0 0
    %5104 = vmatprep.subr.bf16.mxu0 0
    %5105 = vmatpush1.bf16.msra.mxu0 0
    %5106 = vmatprep.subr.bf16.mxu0 0
    %5107 = vmatpush1.bf16.msra.mxu0 0
    %5108 = vmatprep.subr.bf16.mxu0 0
    %5109 = vmatpush1.bf16.msra.mxu0 0
    %5110 = vmatprep.subr.bf16.mxu0 0
    %5111 = vmatpush1.bf16.msra.mxu0 0
    %5112 = vmatprep.subr.bf16.mxu0 0
    %5113 = vmatpush1.bf16.msra.mxu0 0
    %5114 = vmatprep.mubr.bf16.mxu0 0
    %5115 = vmatmul.mubr.bf16.gmra.mrb[0].mxu0 %v4633
    %v5116 = vpop.f32.mrb[0].mxu0
    %v5117 = vadd.f32 %v4283, %v5116
    %v5118 = vpop.f32.mrb[0].mxu0
    %v5119 = vadd.f32 %v4287, %v5118
    %v5120 = vpop.f32.mrb[0].mxu0
    %v5121 = vadd.f32 %v4283, %v5120
    %v5122 = vpop.f32.mrb[0].mxu0
    %v5123 = vadd.f32 %v4287, %v5122
    %5124 = vmatprep.mubr.bf16.mxu0 0
    %5125 = vmatmul.mubr.bf16.gmra.mrb[0].mxu0 %v4636
    %v5126 = vpop.f32.mrb[0].mxu0
    %v5127 = vadd.f32 %v4283, %v5126
    %v5128 = vpop.f32.mrb[0].mxu0
    %v5129 = vadd.f32 %v4287, %v5128
    %v5130 = vpop.f32.mrb[0].mxu0
    %v5131 = vadd.f32 %v4283, %v5130
    %v5132 = vpop.f32.mrb[0].mxu0
    %v5133 = vadd.f32 %v4287, %v5132
    %5134 = vmatprep.mubr.bf16.mxu0 0
    %5135 = vmatmul.mubr.bf16.gmra.mrb[0].mxu0 %v4639
    %v5136 = vpop.f32.mrb[0].mxu0
    %v5137 = vadd.f32 %v4283, %v5136
    %v5138 = vpop.f32.mrb[0].mxu0
    %v5139 = vadd.f32 %v4287, %v5138
    %v5140 = vpop.f32.mrb[0].mxu0
    %v5141 = vadd.f32 %v4283, %v5140
    %v5142 = vpop.f32.mrb[0].mxu0
    %v5143 = vadd.f32 %v4287, %v5142
    %5144 = vmatprep.mubr.bf16.mxu0 0
    %5145 = vmatmul.mubr.bf16.gmra.mrb[0].mxu0 %v4642
    %v5146 = vpop.f32.mrb[0].mxu0
    %v5147 = vadd.f32 %v4283, %v5146
    %v5148 = vpop.f32.mrb[0].mxu0
    %v5149 = vadd.f32 %v4287, %v5148
    %v5150 = vpop.f32.mrb[0].mxu0
    %v5151 = vadd.f32 %v4283, %v5150
    %v5152 = vpop.f32.mrb[0].mxu0
    %v5153 = vadd.f32 %v4287, %v5152
    %5154 = vdwg.mxu0
    %5155 = vmatprep.subr.bf16.mxu0 %v4519
    %5156 = vmatpush1.bf16.msra.mxu0 %v4518
    %5157 = vmatprep.subr.bf16.mxu0 %v4535
    %5158 = vmatpush1.bf16.msra.mxu0 %v4534
    %5159 = vmatprep.subr.bf16.mxu0 %v4551
    %5160 = vmatpush1.bf16.msra.mxu0 %v4550
    %5161 = vmatprep.subr.bf16.mxu0 %v4567
    %5162 = vmatpush1.bf16.msra.mxu0 %v4566
    %5163 = vmatprep.subr.bf16.mxu0 0
    %5164 = vmatpush1.bf16.msra.mxu0 0
    %5165 = vmatprep.subr.bf16.mxu0 0
    %5166 = vmatpush1.bf16.msra.mxu0 0
    %5167 = vmatprep.subr.bf16.mxu0 0
    %5168 = vmatpush1.bf16.msra.mxu0 0
    %5169 = vmatprep.subr.bf16.mxu0 0
    %5170 = vmatpush1.bf16.msra.mxu0 0
    %5171 = vmatprep.subr.bf16.mxu0 0
    %5172 = vmatpush1.bf16.msra.mxu0 0
    %5173 = vmatprep.subr.bf16.mxu0 0
    %5174 = vmatpush1.bf16.msra.mxu0 0
    %5175 = vmatprep.subr.bf16.mxu0 0
    %5176 = vmatpush1.bf16.msra.mxu0 0
    %5177 = vmatprep.subr.bf16.mxu0 0
    %5178 = vmatpush1.bf16.msra.mxu0 0
    %5179 = vmatprep.subr.bf16.mxu0 0
    %5180 = vmatpush1.bf16.msra.mxu0 0
    %5181 = vmatprep.subr.bf16.mxu0 0
    %5182 = vmatpush1.bf16.msra.mxu0 0
    %5183 = vmatprep.subr.bf16.mxu0 0
    %5184 = vmatpush1.bf16.msra.mxu0 0
    %5185 = vmatprep.subr.bf16.mxu0 0
    %5186 = vmatpush1.bf16.msra.mxu0 0
    %5187 = vmatprep.mubr.bf16.mxu0 0
    %5188 = vmatmul.mubr.bf16.gmra.mrb[0].mxu0 %v4633
    %v5189 = vpop.f32.mrb[0].mxu0
    %v5190 = vadd.f32 %v4291, %v5189
    %v5191 = vpop.f32.mrb[0].mxu0
    %v5192 = vadd.f32 %v4295, %v5191
    %v5193 = vpop.f32.mrb[0].mxu0
    %v5194 = vadd.f32 %v4291, %v5193
    %v5195 = vpop.f32.mrb[0].mxu0
    %v5196 = vadd.f32 %v4295, %v5195
    %5197 = vmatprep.mubr.bf16.mxu0 0
    %5198 = vmatmul.mubr.bf16.gmra.mrb[0].mxu0 %v4636
    %v5199 = vpop.f32.mrb[0].mxu0
    %v5200 = vadd.f32 %v4291, %v5199
    %v5201 = vpop.f32.mrb[0].mxu0
    %v5202 = vadd.f32 %v4295, %v5201
    %v5203 = vpop.f32.mrb[0].mxu0
    %v5204 = vadd.f32 %v4291, %v5203
    %v5205 = vpop.f32.mrb[0].mxu0
    %v5206 = vadd.f32 %v4295, %v5205
    %5207 = vmatprep.mubr.bf16.mxu0 0
    %5208 = vmatmul.mubr.bf16.gmra.mrb[0].mxu0 %v4639
    %v5209 = vpop.f32.mrb[0].mxu0
    %v5210 = vadd.f32 %v4291, %v5209
    %v5211 = vpop.f32.mrb[0].mxu0
    %v5212 = vadd.f32 %v4295, %v5211
    %v5213 = vpop.f32.mrb[0].mxu0
    %v5214 = vadd.f32 %v4291, %v5213
    %v5215 = vpop.f32.mrb[0].mxu0
    %v5216 = vadd.f32 %v4295, %v5215
    %5217 = vmatprep.mubr.bf16.mxu0 0
    %5218 = vmatmul.mubr.bf16.gmra.mrb[0].mxu0 %v4642
    %v5219 = vpop.f32.mrb[0].mxu0
    %v5220 = vadd.f32 %v4291, %v5219
    %v5221 = vpop.f32.mrb[0].mxu0
    %v5222 = vadd.f32 %v4295, %v5221
    %v5223 = vpop.f32.mrb[0].mxu0
    %v5224 = vadd.f32 %v4291, %v5223
    %v5225 = vpop.f32.mrb[0].mxu0
    %v5226 = vadd.f32 %v4295, %v5225
    %5227 = vdwg.mxu0
    %v5228 = vmax.f32 %v4679, 0.0
    %v5229 = vmax.f32 %v4681, 0.0
    %v5230 = vmax.f32 %v4752, 0.0
    %v5231 = vmax.f32 %v4754, 0.0
    %v5232 = vmax.f32 %v4825, 0.0
    %v5233 = vmax.f32 %v4827, 0.0
    %v5234 = vmax.f32 %v4898, 0.0
    %v5235 = vmax.f32 %v4900, 0.0
    %v5236 = vmax.f32 %v4971, 0.0
    %v5237 = vmax.f32 %v4973, 0.0
    %v5238 = vmax.f32 %v5044, 0.0
    %v5239 = vmax.f32 %v5046, 0.0
    %v5240 = vmax.f32 %v5117, 0.0
    %v5241 = vmax.f32 %v5119, 0.0
    %v5242 = vmax.f32 %v5190, 0.0
    %v5243 = vmax.f32 %v5192, 0.0
    %v5244 = vmax.f32 %v4683, 0.0
    %v5245 = vmax.f32 %v4685, 0.0
    %v5246 = vmax.f32 %v4756, 0.0
    %v5247 = vmax.f32 %v4758, 0.0
    %v5248 = vmax.f32 %v4829, 0.0
    %v5249 = vmax.f32 %v4831, 0.0
    %v5250 = vmax.f32 %v4902, 0.0
    %v5251 = vmax.f32 %v4904, 0.0
    %v5252 = vmax.f32 %v4975, 0.0
    %v5253 = vmax.f32 %v4977, 0.0
    %v5254 = vmax.f32 %v5048, 0.0
    %v5255 = vmax.f32 %v5050, 0.0
    %v5256 = vmax.f32 %v5121, 0.0
    %v5257 = vmax.f32 %v5123, 0.0
    %v5258 = vmax.f32 %v5194, 0.0
    %v5259 = vmax.f32 %v5196, 0.0
    %v5260 = vmax.f32 %v4689, 0.0
    %v5261 = vmax.f32 %v4691, 0.0
    %v5262 = vmax.f32 %v4762, 0.0
    %v5263 = vmax.f32 %v4764, 0.0
    %v5264 = vmax.f32 %v4835, 0.0
    %v5265 = vmax.f32 %v4837, 0.0
    %v5266 = vmax.f32 %v4908, 0.0
    %v5267 = vmax.f32 %v4910, 0.0
    %v5268 = vmax.f32 %v4981, 0.0
    %v5269 = vmax.f32 %v4983, 0.0
    %v5270 = vmax.f32 %v5054, 0.0
    %v5271 = vmax.f32 %v5056, 0.0
    %v5272 = vmax.f32 %v5127, 0.0
    %v5273 = vmax.f32 %v5129, 0.0
    %v5274 = vmax.f32 %v5200, 0.0
    %v5275 = vmax.f32 %v5202, 0.0
    %v5276 = vmax.f32 %v4693, 0.0
    %v5277 = vmax.f32 %v4695, 0.0
    %v5278 = vmax.f32 %v4766, 0.0
    %v5279 = vmax.f32 %v4768, 0.0
    %v5280 = vmax.f32 %v4839, 0.0
    %v5281 = vmax.f32 %v4841, 0.0
    %v5282 = vmax.f32 %v4912, 0.0
    %v5283 = vmax.f32 %v4914, 0.0
    %v5284 = vmax.f32 %v4985, 0.0
    %v5285 = vmax.f32 %v4987, 0.0
    %v5286 = vmax.f32 %v5058, 0.0
    %v5287 = vmax.f32 %v5060, 0.0
    %v5288 = vmax.f32 %v5131, 0.0
    %v5289 = vmax.f32 %v5133, 0.0
    %v5290 = vmax.f32 %v5204, 0.0
    %v5291 = vmax.f32 %v5206, 0.0
    %v5292 = vmax.f32 %v4699, 0.0
    %v5293 = vmax.f32 %v4701, 0.0
    %v5294 = vmax.f32 %v4772, 0.0
    %v5295 = vmax.f32 %v4774, 0.0
    %v5296 = vmax.f32 %v4845, 0.0
    %v5297 = vmax.f32 %v4847, 0.0
    %v5298 = vmax.f32 %v4918, 0.0
    %v5299 = vmax.f32 %v4920, 0.0
    %v5300 = vmax.f32 %v4991, 0.0
    %v5301 = vmax.f32 %v4993, 0.0
    %v5302 = vmax.f32 %v5064, 0.0
    %v5303 = vmax.f32 %v5066, 0.0
    %v5304 = vmax.f32 %v5137, 0.0
    %v5305 = vmax.f32 %v5139, 0.0
    %v5306 = vmax.f32 %v5210, 0.0
    %v5307 = vmax.f32 %v5212, 0.0
    %v5308 = vmax.f32 %v4703, 0.0
    %v5309 = vmax.f32 %v4705, 0.0
    %v5310 = vmax.f32 %v4776, 0.0
    %v5311 = vmax.f32 %v4778, 0.0
    %v5312 = vmax.f32 %v4849, 0.0
    %v5313 = vmax.f32 %v4851, 0.0
    %v5314 = vmax.f32 %v4922, 0.0
    %v5315 = vmax.f32 %v4924, 0.0
    %v5316 = vmax.f32 %v4995, 0.0
    %v5317 = vmax.f32 %v4997, 0.0
    %v5318 = vmax.f32 %v5068, 0.0
    %v5319 = vmax.f32 %v5070, 0.0
    %v5320 = vmax.f32 %v5141, 0.0
    %v5321 = vmax.f32 %v5143, 0.0
    %v5322 = vmax.f32 %v5214, 0.0
    %v5323 = vmax.f32 %v5216, 0.0
    %v5324 = vmax.f32 %v4709, 0.0
    %v5325 = vmax.f32 %v4711, 0.0
    %v5326 = vmax.f32 %v4782, 0.0
    %v5327 = vmax.f32 %v4784, 0.0
    %v5328 = vmax.f32 %v4855, 0.0
    %v5329 = vmax.f32 %v4857, 0.0
    %v5330 = vmax.f32 %v4928, 0.0
    %v5331 = vmax.f32 %v4930, 0.0
    %v5332 = vmax.f32 %v5001, 0.0
    %v5333 = vmax.f32 %v5003, 0.0
    %v5334 = vmax.f32 %v5074, 0.0
    %v5335 = vmax.f32 %v5076, 0.0
    %v5336 = vmax.f32 %v5147, 0.0
    %v5337 = vmax.f32 %v5149, 0.0
    %v5338 = vmax.f32 %v5220, 0.0
    %v5339 = vmax.f32 %v5222, 0.0
    %v5340 = vmax.f32 %v4713, 0.0
    %v5341 = vmax.f32 %v4715, 0.0
    %v5342 = vmax.f32 %v4786, 0.0
    %v5343 = vmax.f32 %v4788, 0.0
    %v5344 = vmax.f32 %v4859, 0.0
    %v5345 = vmax.f32 %v4861, 0.0
    %v5346 = vmax.f32 %v4932, 0.0
    %v5347 = vmax.f32 %v4934, 0.0
    %v5348 = vmax.f32 %v5005, 0.0
    %v5349 = vmax.f32 %v5007, 0.0
    %v5350 = vmax.f32 %v5078, 0.0
    %v5351 = vmax.f32 %v5080, 0.0
    %v5352 = vmax.f32 %v5151, 0.0
    %v5353 = vmax.f32 %v5153, 0.0
    %v5354 = vmax.f32 %v5224, 0.0
    %v5355 = vmax.f32 %v5226, 0.0
    %v5356 = vpack.c.bf16 %v5244, %v5228
    %v5357 = vpack.c.bf16 %v5245, %v5229
    %v5358 = vpack.c.bf16 %v5246, %v5230
    %v5359 = vpack.c.bf16 %v5247, %v5231
    %v5360 = vpack.c.bf16 %v5248, %v5232
    %v5361 = vpack.c.bf16 %v5249, %v5233
    %v5362 = vpack.c.bf16 %v5250, %v5234
    %v5363 = vpack.c.bf16 %v5251, %v5235
    %v5364 = vpack.c.bf16 %v5252, %v5236
    %v5365 = vpack.c.bf16 %v5253, %v5237
    %v5366 = vpack.c.bf16 %v5254, %v5238
    %v5367 = vpack.c.bf16 %v5255, %v5239
    %v5368 = vpack.c.bf16 %v5256, %v5240
    %v5369 = vpack.c.bf16 %v5257, %v5241
    %v5370 = vpack.c.bf16 %v5258, %v5242
    %v5371 = vpack.c.bf16 %v5259, %v5243
    %v5372 = vpack.c.bf16 %v5276, %v5260
    %v5373 = vpack.c.bf16 %v5277, %v5261
    %v5374 = vpack.c.bf16 %v5278, %v5262
    %v5375 = vpack.c.bf16 %v5279, %v5263
    %v5376 = vpack.c.bf16 %v5280, %v5264
    %v5377 = vpack.c.bf16 %v5281, %v5265
    %v5378 = vpack.c.bf16 %v5282, %v5266
    %v5379 = vpack.c.bf16 %v5283, %v5267
    %v5380 = vpack.c.bf16 %v5284, %v5268
    %v5381 = vpack.c.bf16 %v5285, %v5269
    %v5382 = vpack.c.bf16 %v5286, %v5270
    %v5383 = vpack.c.bf16 %v5287, %v5271
    %v5384 = vpack.c.bf16 %v5288, %v5272
    %v5385 = vpack.c.bf16 %v5289, %v5273
    %v5386 = vpack.c.bf16 %v5290, %v5274
    %v5387 = vpack.c.bf16 %v5291, %v5275
    %v5388 = vpack.c.bf16 %v5308, %v5292
    %v5389 = vpack.c.bf16 %v5309, %v5293
    %v5390 = vpack.c.bf16 %v5310, %v5294
    %v5391 = vpack.c.bf16 %v5311, %v5295
    %v5392 = vpack.c.bf16 %v5312, %v5296
    %v5393 = vpack.c.bf16 %v5313, %v5297
    %v5394 = vpack.c.bf16 %v5314, %v5298
    %v5395 = vpack.c.bf16 %v5315, %v5299
    %v5396 = vpack.c.bf16 %v5316, %v5300
    %v5397 = vpack.c.bf16 %v5317, %v5301
    %v5398 = vpack.c.bf16 %v5318, %v5302
    %v5399 = vpack.c.bf16 %v5319, %v5303
    %v5400 = vpack.c.bf16 %v5320, %v5304
    %v5401 = vpack.c.bf16 %v5321, %v5305
    %v5402 = vpack.c.bf16 %v5322, %v5306
    %v5403 = vpack.c.bf16 %v5323, %v5307
    %v5404 = vpack.c.bf16 %v5340, %v5324
    %v5405 = vpack.c.bf16 %v5341, %v5325
    %v5406 = vpack.c.bf16 %v5342, %v5326
    %v5407 = vpack.c.bf16 %v5343, %v5327
    %v5408 = vpack.c.bf16 %v5344, %v5328
    %v5409 = vpack.c.bf16 %v5345, %v5329
    %v5410 = vpack.c.bf16 %v5346, %v5330
    %v5411 = vpack.c.bf16 %v5347, %v5331
    %v5412 = vpack.c.bf16 %v5348, %v5332
    %v5413 = vpack.c.bf16 %v5349, %v5333
    %v5414 = vpack.c.bf16 %v5350, %v5334
    %v5415 = vpack.c.bf16 %v5351, %v5335
    %v5416 = vpack.c.bf16 %v5352, %v5336
    %v5417 = vpack.c.bf16 %v5353, %v5337
    %v5418 = vpack.c.bf16 %v5354, %v5338
    %v5419 = vpack.c.bf16 %v5355, %v5339
    %v5420 = vld [vmem:[%s9] sm:$0xf]
    %v5421 = vld [vmem:[%s9 + $0x4] sm:$0xf]
    %v5422 = vld [vmem:[%s9 + $0x8] sm:$0xf]
    %v5423 = vld [vmem:[%s9 + $0xc] sm:$0xf]
    %v5424 = vld [vmem:[%s9 + $0x10] sm:$0xf]
    %v5425 = vld [vmem:[%s9 + $0x14] sm:$0xf]
    %v5426 = vld [vmem:[%s9 + $0x18] sm:$0xf]
    %v5427 = vld [vmem:[%s9 + $0x1c] sm:$0xf]
    %v5428 = vld [vmem:[%s9 + $0x20] sm:$0xf]
    %v5429 = vld [vmem:[%s9 + $0x24] sm:$0xf]
    %v5430 = vld [vmem:[%s9 + $0x28] sm:$0xf]
    %v5431 = vld [vmem:[%s9 + $0x2c] sm:$0xf]
    %v5432 = vld [vmem:[%s9 + $0x30] sm:$0xf]
    %v5433 = vld [vmem:[%s9 + $0x34] sm:$0xf]
    %v5434 = vld [vmem:[%s9 + $0x38] sm:$0xf]
    %v5435 = vld [vmem:[%s9 + $0x3c] sm:$0xf]
    %v5436 = vld [vmem:[%s9 + $0x40] sm:$0xf]
    %v5437 = vld [vmem:[%s9 + $0x44] sm:$0xf]
    %v5438 = vld [vmem:[%s9 + $0x48] sm:$0xf]
    %v5439 = vld [vmem:[%s9 + $0x4c] sm:$0xf]
    %v5440 = vld [vmem:[%s9 + $0x50] sm:$0xf]
    %v5441 = vld [vmem:[%s9 + $0x54] sm:$0xf]
    %v5442 = vld [vmem:[%s9 + $0x58] sm:$0xf]
    %v5443 = vld [vmem:[%s9 + $0x5c] sm:$0xf]
    %v5444 = vld [vmem:[%s9 + $0x60] sm:$0xf]
    %v5445 = vld [vmem:[%s9 + $0x64] sm:$0xf]
    %v5446 = vld [vmem:[%s9 + $0x68] sm:$0xf]
    %v5447 = vld [vmem:[%s9 + $0x6c] sm:$0xf]
    %v5448 = vld [vmem:[%s9 + $0x70] sm:$0xf]
    %v5449 = vld [vmem:[%s9 + $0x74] sm:$0xf]
    %v5450 = vld [vmem:[%s9 + $0x78] sm:$0xf]
    %v5451 = vld [vmem:[%s9 + $0x7c] sm:$0xf]
    %v5452 = vld [vmem:[%s9 + $0x80] sm:$0xf]
    %v5453 = vld [vmem:[%s9 + $0x84] sm:$0xf]
    %v5454 = vld [vmem:[%s9 + $0x88] sm:$0xf]
    %v5455 = vld [vmem:[%s9 + $0x8c] sm:$0xf]
    %v5456 = vld [vmem:[%s9 + $0x90] sm:$0xf]
    %v5457 = vld [vmem:[%s9 + $0x94] sm:$0xf]
    %v5458 = vld [vmem:[%s9 + $0x98] sm:$0xf]
    %v5459 = vld [vmem:[%s9 + $0x9c] sm:$0xf]
    %v5460 = vld [vmem:[%s9 + $0xa0] sm:$0xf]
    %v5461 = vld [vmem:[%s9 + $0xa4] sm:$0xf]
    %v5462 = vld [vmem:[%s9 + $0xa8] sm:$0xf]
    %v5463 = vld [vmem:[%s9 + $0xac] sm:$0xf]
    %v5464 = vld [vmem:[%s9 + $0xb0] sm:$0xf]
    %v5465 = vld [vmem:[%s9 + $0xb4] sm:$0xf]
    %v5466 = vld [vmem:[%s9 + $0xb8] sm:$0xf]
    %v5467 = vld [vmem:[%s9 + $0xbc] sm:$0xf]
    %v5468 = vld [vmem:[%s9 + $0xc0] sm:$0xf]
    %v5469 = vld [vmem:[%s9 + $0xc4] sm:$0xf]
    %v5470 = vld [vmem:[%s9 + $0xc8] sm:$0xf]
    %v5471 = vld [vmem:[%s9 + $0xcc] sm:$0xf]
    %v5472 = vld [vmem:[%s9 + $0xd0] sm:$0xf]
    %v5473 = vld [vmem:[%s9 + $0xd4] sm:$0xf]
    %v5474 = vld [vmem:[%s9 + $0xd8] sm:$0xf]
    %v5475 = vld [vmem:[%s9 + $0xdc] sm:$0xf]
    %v5476 = vld [vmem:[%s9 + $0xe0] sm:$0xf]
    %v5477 = vld [vmem:[%s9 + $0xe4] sm:$0xf]
    %v5478 = vld [vmem:[%s9 + $0xe8] sm:$0xf]
    %v5479 = vld [vmem:[%s9 + $0xec] sm:$0xf]
    %v5480 = vld [vmem:[%s9 + $0xf0] sm:$0xf]
    %v5481 = vld [vmem:[%s9 + $0xf4] sm:$0xf]
    %v5482 = vld [vmem:[%s9 + $0xf8] sm:$0xf]
    %v5483 = vld [vmem:[%s9 + $0xfc] sm:$0xf]
    %v5484 = vld [vmem:[%s9 + $0x100] sm:$0xf]
    %v5485 = vld [vmem:[%s9 + $0x104] sm:$0xf]
    %v5486 = vld [vmem:[%s9 + $0x108] sm:$0xf]
    %v5487 = vld [vmem:[%s9 + $0x10c] sm:$0xf]
    %v5488 = vld [vmem:[%s9 + $0x110] sm:$0xf]
    %v5489 = vld [vmem:[%s9 + $0x114] sm:$0xf]
    %v5490 = vld [vmem:[%s9 + $0x118] sm:$0xf]
    %v5491 = vld [vmem:[%s9 + $0x11c] sm:$0xf]
    %v5492 = vld [vmem:[%s9 + $0x120] sm:$0xf]
    %v5493 = vld [vmem:[%s9 + $0x124] sm:$0xf]
    %v5494 = vld [vmem:[%s9 + $0x128] sm:$0xf]
    %v5495 = vld [vmem:[%s9 + $0x12c] sm:$0xf]
    %v5496 = vld [vmem:[%s9 + $0x130] sm:$0xf]
    %v5497 = vld [vmem:[%s9 + $0x134] sm:$0xf]
    %v5498 = vld [vmem:[%s9 + $0x138] sm:$0xf]
    %v5499 = vld [vmem:[%s9 + $0x13c] sm:$0xf]
    %v5500 = vld [vmem:[%s9 + $0x140] sm:$0xf]
    %v5501 = vld [vmem:[%s9 + $0x144] sm:$0xf]
    %v5502 = vld [vmem:[%s9 + $0x148] sm:$0xf]
    %v5503 = vld [vmem:[%s9 + $0x14c] sm:$0xf]
    %v5504 = vld [vmem:[%s9 + $0x150] sm:$0xf]
    %v5505 = vld [vmem:[%s9 + $0x154] sm:$0xf]
    %v5506 = vld [vmem:[%s9 + $0x158] sm:$0xf]
    %v5507 = vld [vmem:[%s9 + $0x15c] sm:$0xf]
    %v5508 = vld [vmem:[%s9 + $0x160] sm:$0xf]
    %v5509 = vld [vmem:[%s9 + $0x164] sm:$0xf]
    %v5510 = vld [vmem:[%s9 + $0x168] sm:$0xf]
    %v5511 = vld [vmem:[%s9 + $0x16c] sm:$0xf]
    %v5512 = vld [vmem:[%s9 + $0x170] sm:$0xf]
    %v5513 = vld [vmem:[%s9 + $0x174] sm:$0xf]
    %v5514 = vld [vmem:[%s9 + $0x178] sm:$0xf]
    %v5515 = vld [vmem:[%s9 + $0x17c] sm:$0xf]
    %v5516 = vld [vmem:[%s9 + $0x180] sm:$0xf]
    %v5517 = vld [vmem:[%s9 + $0x184] sm:$0xf]
    %v5518 = vld [vmem:[%s9 + $0x188] sm:$0xf]
    %v5519 = vld [vmem:[%s9 + $0x18c] sm:$0xf]
    %v5520 = vld [vmem:[%s9 + $0x190] sm:$0xf]
    %v5521 = vld [vmem:[%s9 + $0x194] sm:$0xf]
    %v5522 = vld [vmem:[%s9 + $0x198] sm:$0xf]
    %v5523 = vld [vmem:[%s9 + $0x19c] sm:$0xf]
    %v5524 = vld [vmem:[%s9 + $0x1a0] sm:$0xf]
    %v5525 = vld [vmem:[%s9 + $0x1a4] sm:$0xf]
    %v5526 = vld [vmem:[%s9 + $0x1a8] sm:$0xf]
    %v5527 = vld [vmem:[%s9 + $0x1ac] sm:$0xf]
    %v5528 = vld [vmem:[%s9 + $0x1b0] sm:$0xf]
    %v5529 = vld [vmem:[%s9 + $0x1b4] sm:$0xf]
    %v5530 = vld [vmem:[%s9 + $0x1b8] sm:$0xf]
    %v5531 = vld [vmem:[%s9 + $0x1bc] sm:$0xf]
    %v5532 = vld [vmem:[%s9 + $0x1c0] sm:$0xf]
    %v5533 = vld [vmem:[%s9 + $0x1c4] sm:$0xf]
    %v5534 = vld [vmem:[%s9 + $0x1c8] sm:$0xf]
    %v5535 = vld [vmem:[%s9 + $0x1cc] sm:$0xf]
    %v5536 = vld [vmem:[%s9 + $0x1d0] sm:$0xf]
    %v5537 = vld [vmem:[%s9 + $0x1d4] sm:$0xf]
    %v5538 = vld [vmem:[%s9 + $0x1d8] sm:$0xf]
    %v5539 = vld [vmem:[%s9 + $0x1dc] sm:$0xf]
    %v5540 = vld [vmem:[%s9 + $0x1e0] sm:$0xf]
    %v5541 = vld [vmem:[%s9 + $0x1e4] sm:$0xf]
    %v5542 = vld [vmem:[%s9 + $0x1e8] sm:$0xf]
    %v5543 = vld [vmem:[%s9 + $0x1ec] sm:$0xf]
    %v5544 = vld [vmem:[%s9 + $0x1f0] sm:$0xf]
    %v5545 = vld [vmem:[%s9 + $0x1f4] sm:$0xf]
    %v5546 = vld [vmem:[%s9 + $0x1f8] sm:$0xf]
    %v5547 = vld [vmem:[%s9 + $0x1fc] sm:$0xf]
    %v5548 = vld [vmem:[%s9 + $0x200] sm:$0xf]
    %v5549 = vld [vmem:[%s9 + $0x204] sm:$0xf]
    %v5550 = vld [vmem:[%s9 + $0x208] sm:$0xf]
    %v5551 = vld [vmem:[%s9 + $0x20c] sm:$0xf]
    %v5552 = vld [vmem:[%s9 + $0x210] sm:$0xf]
    %v5553 = vld [vmem:[%s9 + $0x214] sm:$0xf]
    %v5554 = vld [vmem:[%s9 + $0x218] sm:$0xf]
    %v5555 = vld [vmem:[%s9 + $0x21c] sm:$0xf]
    %v5556 = vld [vmem:[%s9 + $0x220] sm:$0xf]
    %v5557 = vld [vmem:[%s9 + $0x224] sm:$0xf]
    %v5558 = vld [vmem:[%s9 + $0x228] sm:$0xf]
    %v5559 = vld [vmem:[%s9 + $0x22c] sm:$0xf]
    %v5560 = vld [vmem:[%s9 + $0x230] sm:$0xf]
    %v5561 = vld [vmem:[%s9 + $0x234] sm:$0xf]
    %v5562 = vld [vmem:[%s9 + $0x238] sm:$0xf]
    %v5563 = vld [vmem:[%s9 + $0x23c] sm:$0xf]
    %v5564 = vld [vmem:[%s9 + $0x240] sm:$0xf]
    %v5565 = vld [vmem:[%s9 + $0x244] sm:$0xf]
    %v5566 = vld [vmem:[%s9 + $0x248] sm:$0xf]
    %v5567 = vld [vmem:[%s9 + $0x24c] sm:$0xf]
    %v5568 = vld [vmem:[%s9 + $0x250] sm:$0xf]
    %v5569 = vld [vmem:[%s9 + $0x254] sm:$0xf]
    %v5570 = vld [vmem:[%s9 + $0x258] sm:$0xf]
    %v5571 = vld [vmem:[%s9 + $0x25c] sm:$0xf]
    %v5572 = vld [vmem:[%s9 + $0x260] sm:$0xf]
    %v5573 = vld [vmem:[%s9 + $0x264] sm:$0xf]
    %v5574 = vld [vmem:[%s9 + $0x268] sm:$0xf]
    %v5575 = vld [vmem:[%s9 + $0x26c] sm:$0xf]
    %v5576 = vld [vmem:[%s9 + $0x270] sm:$0xf]
    %v5577 = vld [vmem:[%s9 + $0x274] sm:$0xf]
    %v5578 = vld [vmem:[%s9 + $0x278] sm:$0xf]
    %v5579 = vld [vmem:[%s9 + $0x27c] sm:$0xf]
    %v5580 = vld [vmem:[%s9 + $0x280] sm:$0xf]
    %v5581 = vld [vmem:[%s9 + $0x284] sm:$0xf]
    %v5582 = vld [vmem:[%s9 + $0x288] sm:$0xf]
    %v5583 = vld [vmem:[%s9 + $0x28c] sm:$0xf]
    %v5584 = vld [vmem:[%s9 + $0x290] sm:$0xf]
    %v5585 = vld [vmem:[%s9 + $0x294] sm:$0xf]
    %v5586 = vld [vmem:[%s9 + $0x298] sm:$0xf]
    %v5587 = vld [vmem:[%s9 + $0x29c] sm:$0xf]
    %v5588 = vld [vmem:[%s9 + $0x2a0] sm:$0xf]
    %v5589 = vld [vmem:[%s9 + $0x2a4] sm:$0xf]
    %v5590 = vld [vmem:[%s9 + $0x2a8] sm:$0xf]
    %v5591 = vld [vmem:[%s9 + $0x2ac] sm:$0xf]
    %v5592 = vld [vmem:[%s9 + $0x2b0] sm:$0xf]
    %v5593 = vld [vmem:[%s9 + $0x2b4] sm:$0xf]
    %v5594 = vld [vmem:[%s9 + $0x2b8] sm:$0xf]
    %v5595 = vld [vmem:[%s9 + $0x2bc] sm:$0xf]
    %v5596 = vld [vmem:[%s9 + $0x2c0] sm:$0xf]
    %v5597 = vld [vmem:[%s9 + $0x2c4] sm:$0xf]
    %v5598 = vld [vmem:[%s9 + $0x2c8] sm:$0xf]
    %v5599 = vld [vmem:[%s9 + $0x2cc] sm:$0xf]
    %v5600 = vld [vmem:[%s9 + $0x2d0] sm:$0xf]
    %v5601 = vld [vmem:[%s9 + $0x2d4] sm:$0xf]
    %v5602 = vld [vmem:[%s9 + $0x2d8] sm:$0xf]
    %v5603 = vld [vmem:[%s9 + $0x2dc] sm:$0xf]
    %v5604 = vld [vmem:[%s9 + $0x2e0] sm:$0xf]
    %v5605 = vld [vmem:[%s9 + $0x2e4] sm:$0xf]
    %v5606 = vld [vmem:[%s9 + $0x2e8] sm:$0xf]
    %v5607 = vld [vmem:[%s9 + $0x2ec] sm:$0xf]
    %v5608 = vld [vmem:[%s9 + $0x2f0] sm:$0xf]
    %v5609 = vld [vmem:[%s9 + $0x2f4] sm:$0xf]
    %v5610 = vld [vmem:[%s9 + $0x2f8] sm:$0xf]
    %v5611 = vld [vmem:[%s9 + $0x2fc] sm:$0xf]
    %v5612 = vld [vmem:[%s9 + $0x300] sm:$0xf]
    %v5613 = vld [vmem:[%s9 + $0x304] sm:$0xf]
    %v5614 = vld [vmem:[%s9 + $0x308] sm:$0xf]
    %v5615 = vld [vmem:[%s9 + $0x30c] sm:$0xf]
    %v5616 = vld [vmem:[%s9 + $0x310] sm:$0xf]
    %v5617 = vld [vmem:[%s9 + $0x314] sm:$0xf]
    %v5618 = vld [vmem:[%s9 + $0x318] sm:$0xf]
    %v5619 = vld [vmem:[%s9 + $0x31c] sm:$0xf]
    %v5620 = vld [vmem:[%s9 + $0x320] sm:$0xf]
    %v5621 = vld [vmem:[%s9 + $0x324] sm:$0xf]
    %v5622 = vld [vmem:[%s9 + $0x328] sm:$0xf]
    %v5623 = vld [vmem:[%s9 + $0x32c] sm:$0xf]
    %v5624 = vld [vmem:[%s9 + $0x330] sm:$0xf]
    %v5625 = vld [vmem:[%s9 + $0x334] sm:$0xf]
    %v5626 = vld [vmem:[%s9 + $0x338] sm:$0xf]
    %v5627 = vld [vmem:[%s9 + $0x33c] sm:$0xf]
    %v5628 = vld [vmem:[%s9 + $0x340] sm:$0xf]
    %v5629 = vld [vmem:[%s9 + $0x344] sm:$0xf]
    %v5630 = vld [vmem:[%s9 + $0x348] sm:$0xf]
    %v5631 = vld [vmem:[%s9 + $0x34c] sm:$0xf]
    %v5632 = vld [vmem:[%s9 + $0x350] sm:$0xf]
    %v5633 = vld [vmem:[%s9 + $0x354] sm:$0xf]
    %v5634 = vld [vmem:[%s9 + $0x358] sm:$0xf]
    %v5635 = vld [vmem:[%s9 + $0x35c] sm:$0xf]
    %v5636 = vld [vmem:[%s9 + $0x360] sm:$0xf]
    %v5637 = vld [vmem:[%s9 + $0x364] sm:$0xf]
    %v5638 = vld [vmem:[%s9 + $0x368] sm:$0xf]
    %v5639 = vld [vmem:[%s9 + $0x36c] sm:$0xf]
    %v5640 = vld [vmem:[%s9 + $0x370] sm:$0xf]
    %v5641 = vld [vmem:[%s9 + $0x374] sm:$0xf]
    %v5642 = vld [vmem:[%s9 + $0x378] sm:$0xf]
    %v5643 = vld [vmem:[%s9 + $0x37c] sm:$0xf]
    %v5644 = vld [vmem:[%s9 + $0x380] sm:$0xf]
    %v5645 = vld [vmem:[%s9 + $0x384] sm:$0xf]
    %v5646 = vld [vmem:[%s9 + $0x388] sm:$0xf]
    %v5647 = vld [vmem:[%s9 + $0x38c] sm:$0xf]
    %v5648 = vld [vmem:[%s9 + $0x390] sm:$0xf]
    %v5649 = vld [vmem:[%s9 + $0x394] sm:$0xf]
    %v5650 = vld [vmem:[%s9 + $0x398] sm:$0xf]
    %v5651 = vld [vmem:[%s9 + $0x39c] sm:$0xf]
    %v5652 = vld [vmem:[%s9 + $0x3a0] sm:$0xf]
    %v5653 = vld [vmem:[%s9 + $0x3a4] sm:$0xf]
    %v5654 = vld [vmem:[%s9 + $0x3a8] sm:$0xf]
    %v5655 = vld [vmem:[%s9 + $0x3ac] sm:$0xf]
    %v5656 = vld [vmem:[%s9 + $0x3b0] sm:$0xf]
    %v5657 = vld [vmem:[%s9 + $0x3b4] sm:$0xf]
    %v5658 = vld [vmem:[%s9 + $0x3b8] sm:$0xf]
    %v5659 = vld [vmem:[%s9 + $0x3bc] sm:$0xf]
    %v5660 = vld [vmem:[%s9 + $0x3c0] sm:$0xf]
    %v5661 = vld [vmem:[%s9 + $0x3c4] sm:$0xf]
    %v5662 = vld [vmem:[%s9 + $0x3c8] sm:$0xf]
    %v5663 = vld [vmem:[%s9 + $0x3cc] sm:$0xf]
    %v5664 = vld [vmem:[%s9 + $0x3d0] sm:$0xf]
    %v5665 = vld [vmem:[%s9 + $0x3d4] sm:$0xf]
    %v5666 = vld [vmem:[%s9 + $0x3d8] sm:$0xf]
    %v5667 = vld [vmem:[%s9 + $0x3dc] sm:$0xf]
    %v5668 = vld [vmem:[%s9 + $0x3e0] sm:$0xf]
    %v5669 = vld [vmem:[%s9 + $0x3e4] sm:$0xf]
    %v5670 = vld [vmem:[%s9 + $0x3e8] sm:$0xf]
    %v5671 = vld [vmem:[%s9 + $0x3ec] sm:$0xf]
    %v5672 = vld [vmem:[%s9 + $0x3f0] sm:$0xf]
    %v5673 = vld [vmem:[%s9 + $0x3f4] sm:$0xf]
    %v5674 = vld [vmem:[%s9 + $0x3f8] sm:$0xf]
    %v5675 = vld [vmem:[%s9 + $0x3fc] sm:$0xf]
    %v5676 = vld [vmem:[%s10] sm:$0x1]
    %v5678 = vlaneseq
    %v5679 = vshrl.u32 %v5678, 7
    %v5680 = vsub.s32 0, %v5679
    %v5681 = vrot.slane %v5676, %v5680
    %v5939 = vunpack.c.l.b16 %v5420
    %v5940 = vunpack.c.l.b16 %v5421
    %v5941 = vunpack.c.l.b16 %v5422
    %v5942 = vunpack.c.l.b16 %v5423
    %v5943 = vunpack.c.l.b16 %v5424
    %v5944 = vunpack.c.l.b16 %v5425
    %v5945 = vunpack.c.l.b16 %v5426
    %v5946 = vunpack.c.l.b16 %v5427
    %v5947 = vunpack.c.l.b16 %v5428
    %v5948 = vunpack.c.l.b16 %v5429
    %v5949 = vunpack.c.l.b16 %v5430
    %v5950 = vunpack.c.l.b16 %v5431
    %v5951 = vunpack.c.l.b16 %v5432
    %v5952 = vunpack.c.l.b16 %v5433
    %v5953 = vunpack.c.l.b16 %v5434
    %v5954 = vunpack.c.l.b16 %v5435
    %v5955 = vunpack.c.l.b16 %v5436
    %v5956 = vunpack.c.l.b16 %v5437
    %v5957 = vunpack.c.l.b16 %v5438
    %v5958 = vunpack.c.l.b16 %v5439
    %v5959 = vunpack.c.l.b16 %v5440
    %v5960 = vunpack.c.l.b16 %v5441
    %v5961 = vunpack.c.l.b16 %v5442
    %v5962 = vunpack.c.l.b16 %v5443
    %v5963 = vunpack.c.l.b16 %v5444
    %v5964 = vunpack.c.l.b16 %v5445
    %v5965 = vunpack.c.l.b16 %v5446
    %v5966 = vunpack.c.l.b16 %v5447
    %v5967 = vunpack.c.l.b16 %v5448
    %v5968 = vunpack.c.l.b16 %v5449
    %v5969 = vunpack.c.l.b16 %v5450
    %v5970 = vunpack.c.l.b16 %v5451
    %v5971 = vunpack.c.l.b16 %v5452
    %v5972 = vunpack.c.l.b16 %v5453
    %v5973 = vunpack.c.l.b16 %v5454
    %v5974 = vunpack.c.l.b16 %v5455
    %v5975 = vunpack.c.l.b16 %v5456
    %v5976 = vunpack.c.l.b16 %v5457
    %v5977 = vunpack.c.l.b16 %v5458
    %v5978 = vunpack.c.l.b16 %v5459
    %v5979 = vunpack.c.l.b16 %v5460
    %v5980 = vunpack.c.l.b16 %v5461
    %v5981 = vunpack.c.l.b16 %v5462
    %v5982 = vunpack.c.l.b16 %v5463
    %v5983 = vunpack.c.l.b16 %v5464
    %v5984 = vunpack.c.l.b16 %v5465
    %v5985 = vunpack.c.l.b16 %v5466
    %v5986 = vunpack.c.l.b16 %v5467
    %v5987 = vunpack.c.l.b16 %v5468
    %v5988 = vunpack.c.l.b16 %v5469
    %v5989 = vunpack.c.l.b16 %v5470
    %v5990 = vunpack.c.l.b16 %v5471
    %v5991 = vunpack.c.l.b16 %v5472
    %v5992 = vunpack.c.l.b16 %v5473
    %v5993 = vunpack.c.l.b16 %v5474
    %v5994 = vunpack.c.l.b16 %v5475
    %v5995 = vunpack.c.l.b16 %v5476
    %v5996 = vunpack.c.l.b16 %v5477
    %v5997 = vunpack.c.l.b16 %v5478
    %v5998 = vunpack.c.l.b16 %v5479
    %v5999 = vunpack.c.l.b16 %v5480
    %v6000 = vunpack.c.l.b16 %v5481
    %v6001 = vunpack.c.l.b16 %v5482
    %v6002 = vunpack.c.l.b16 %v5483
    %v6003 = vunpack.c.l.b16 %v5484
    %v6004 = vunpack.c.l.b16 %v5485
    %v6005 = vunpack.c.l.b16 %v5486
    %v6006 = vunpack.c.l.b16 %v5487
    %v6007 = vunpack.c.l.b16 %v5488
    %v6008 = vunpack.c.l.b16 %v5489
    %v6009 = vunpack.c.l.b16 %v5490
    %v6010 = vunpack.c.l.b16 %v5491
    %v6011 = vunpack.c.l.b16 %v5492
    %v6012 = vunpack.c.l.b16 %v5493
    %v6013 = vunpack.c.l.b16 %v5494
    %v6014 = vunpack.c.l.b16 %v5495
    %v6015 = vunpack.c.l.b16 %v5496
    %v6016 = vunpack.c.l.b16 %v5497
    %v6017 = vunpack.c.l.b16 %v5498
    %v6018 = vunpack.c.l.b16 %v5499
    %v6019 = vunpack.c.l.b16 %v5500
    %v6020 = vunpack.c.l.b16 %v5501
    %v6021 = vunpack.c.l.b16 %v5502
    %v6022 = vunpack.c.l.b16 %v5503
    %v6023 = vunpack.c.l.b16 %v5504
    %v6024 = vunpack.c.l.b16 %v5505
    %v6025 = vunpack.c.l.b16 %v5506
    %v6026 = vunpack.c.l.b16 %v5507
    %v6027 = vunpack.c.l.b16 %v5508
    %v6028 = vunpack.c.l.b16 %v5509
    %v6029 = vunpack.c.l.b16 %v5510
    %v6030 = vunpack.c.l.b16 %v5511
    %v6031 = vunpack.c.l.b16 %v5512
    %v6032 = vunpack.c.l.b16 %v5513
    %v6033 = vunpack.c.l.b16 %v5514
    %v6034 = vunpack.c.l.b16 %v5515
    %v6035 = vunpack.c.l.b16 %v5516
    %v6036 = vunpack.c.l.b16 %v5517
    %v6037 = vunpack.c.l.b16 %v5518
    %v6038 = vunpack.c.l.b16 %v5519
    %v6039 = vunpack.c.l.b16 %v5520
    %v6040 = vunpack.c.l.b16 %v5521
    %v6041 = vunpack.c.l.b16 %v5522
    %v6042 = vunpack.c.l.b16 %v5523
    %v6043 = vunpack.c.l.b16 %v5524
    %v6044 = vunpack.c.l.b16 %v5525
    %v6045 = vunpack.c.l.b16 %v5526
    %v6046 = vunpack.c.l.b16 %v5527
    %v6047 = vunpack.c.l.b16 %v5528
    %v6048 = vunpack.c.l.b16 %v5529
    %v6049 = vunpack.c.l.b16 %v5530
    %v6050 = vunpack.c.l.b16 %v5531
    %v6051 = vunpack.c.l.b16 %v5532
    %v6052 = vunpack.c.l.b16 %v5533
    %v6053 = vunpack.c.l.b16 %v5534
    %v6054 = vunpack.c.l.b16 %v5535
    %v6055 = vunpack.c.l.b16 %v5536
    %v6056 = vunpack.c.l.b16 %v5537
    %v6057 = vunpack.c.l.b16 %v5538
    %v6058 = vunpack.c.l.b16 %v5539
    %v6059 = vunpack.c.l.b16 %v5540
    %v6060 = vunpack.c.l.b16 %v5541
    %v6061 = vunpack.c.l.b16 %v5542
    %v6062 = vunpack.c.l.b16 %v5543
    %v6063 = vunpack.c.l.b16 %v5544
    %v6064 = vunpack.c.l.b16 %v5545
    %v6065 = vunpack.c.l.b16 %v5546
    %v6066 = vunpack.c.l.b16 %v5547
    %v6067 = vunpack.c.l.b16 %v5548
    %v6068 = vunpack.c.l.b16 %v5549
    %v6069 = vunpack.c.l.b16 %v5550
    %v6070 = vunpack.c.l.b16 %v5551
    %v6071 = vunpack.c.l.b16 %v5552
    %v6072 = vunpack.c.l.b16 %v5553
    %v6073 = vunpack.c.l.b16 %v5554
    %v6074 = vunpack.c.l.b16 %v5555
    %v6075 = vunpack.c.l.b16 %v5556
    %v6076 = vunpack.c.l.b16 %v5557
    %v6077 = vunpack.c.l.b16 %v5558
    %v6078 = vunpack.c.l.b16 %v5559
    %v6079 = vunpack.c.l.b16 %v5560
    %v6080 = vunpack.c.l.b16 %v5561
    %v6081 = vunpack.c.l.b16 %v5562
    %v6082 = vunpack.c.l.b16 %v5563
    %v6083 = vunpack.c.l.b16 %v5564
    %v6084 = vunpack.c.l.b16 %v5565
    %v6085 = vunpack.c.l.b16 %v5566
    %v6086 = vunpack.c.l.b16 %v5567
    %v6087 = vunpack.c.l.b16 %v5568
    %v6088 = vunpack.c.l.b16 %v5569
    %v6089 = vunpack.c.l.b16 %v5570
    %v6090 = vunpack.c.l.b16 %v5571
    %v6091 = vunpack.c.l.b16 %v5572
    %v6092 = vunpack.c.l.b16 %v5573
    %v6093 = vunpack.c.l.b16 %v5574
    %v6094 = vunpack.c.l.b16 %v5575
    %v6095 = vunpack.c.l.b16 %v5576
    %v6096 = vunpack.c.l.b16 %v5577
    %v6097 = vunpack.c.l.b16 %v5578
    %v6098 = vunpack.c.l.b16 %v5579
    %v6099 = vunpack.c.l.b16 %v5580
    %v6100 = vunpack.c.l.b16 %v5581
    %v6101 = vunpack.c.l.b16 %v5582
    %v6102 = vunpack.c.l.b16 %v5583
    %v6103 = vunpack.c.l.b16 %v5584
    %v6104 = vunpack.c.l.b16 %v5585
    %v6105 = vunpack.c.l.b16 %v5586
    %v6106 = vunpack.c.l.b16 %v5587
    %v6107 = vunpack.c.l.b16 %v5588
    %v6108 = vunpack.c.l.b16 %v5589
    %v6109 = vunpack.c.l.b16 %v5590
    %v6110 = vunpack.c.l.b16 %v5591
    %v6111 = vunpack.c.l.b16 %v5592
    %v6112 = vunpack.c.l.b16 %v5593
    %v6113 = vunpack.c.l.b16 %v5594
    %v6114 = vunpack.c.l.b16 %v5595
    %v6115 = vunpack.c.l.b16 %v5596
    %v6116 = vunpack.c.l.b16 %v5597
    %v6117 = vunpack.c.l.b16 %v5598
    %v6118 = vunpack.c.l.b16 %v5599
    %v6119 = vunpack.c.l.b16 %v5600
    %v6120 = vunpack.c.l.b16 %v5601
    %v6121 = vunpack.c.l.b16 %v5602
    %v6122 = vunpack.c.l.b16 %v5603
    %v6123 = vunpack.c.l.b16 %v5604
    %v6124 = vunpack.c.l.b16 %v5605
    %v6125 = vunpack.c.l.b16 %v5606
    %v6126 = vunpack.c.l.b16 %v5607
    %v6127 = vunpack.c.l.b16 %v5608
    %v6128 = vunpack.c.l.b16 %v5609
    %v6129 = vunpack.c.l.b16 %v5610
    %v6130 = vunpack.c.l.b16 %v5611
    %v6131 = vunpack.c.l.b16 %v5612
    %v6132 = vunpack.c.l.b16 %v5613
    %v6133 = vunpack.c.l.b16 %v5614
    %v6134 = vunpack.c.l.b16 %v5615
    %v6135 = vunpack.c.l.b16 %v5616
    %v6136 = vunpack.c.l.b16 %v5617
    %v6137 = vunpack.c.l.b16 %v5618
    %v6138 = vunpack.c.l.b16 %v5619
    %v6139 = vunpack.c.l.b16 %v5620
    %v6140 = vunpack.c.l.b16 %v5621
    %v6141 = vunpack.c.l.b16 %v5622
    %v6142 = vunpack.c.l.b16 %v5623
    %v6143 = vunpack.c.l.b16 %v5624
    %v6144 = vunpack.c.l.b16 %v5625
    %v6145 = vunpack.c.l.b16 %v5626
    %v6146 = vunpack.c.l.b16 %v5627
    %v6147 = vunpack.c.l.b16 %v5628
    %v6148 = vunpack.c.l.b16 %v5629
    %v6149 = vunpack.c.l.b16 %v5630
    %v6150 = vunpack.c.l.b16 %v5631
    %v6151 = vunpack.c.l.b16 %v5632
    %v6152 = vunpack.c.l.b16 %v5633
    %v6153 = vunpack.c.l.b16 %v5634
    %v6154 = vunpack.c.l.b16 %v5635
    %v6155 = vunpack.c.l.b16 %v5636
    %v6156 = vunpack.c.l.b16 %v5637
    %v6157 = vunpack.c.l.b16 %v5638
    %v6158 = vunpack.c.l.b16 %v5639
    %v6159 = vunpack.c.l.b16 %v5640
    %v6160 = vunpack.c.l.b16 %v5641
    %v6161 = vunpack.c.l.b16 %v5642
    %v6162 = vunpack.c.l.b16 %v5643
    %v6163 = vunpack.c.l.b16 %v5644
    %v6164 = vunpack.c.l.b16 %v5645
    %v6165 = vunpack.c.l.b16 %v5646
    %v6166 = vunpack.c.l.b16 %v5647
    %v6167 = vunpack.c.l.b16 %v5648
    %v6168 = vunpack.c.l.b16 %v5649
    %v6169 = vunpack.c.l.b16 %v5650
    %v6170 = vunpack.c.l.b16 %v5651
    %v6171 = vunpack.c.l.b16 %v5652
    %v6172 = vunpack.c.l.b16 %v5653
    %v6173 = vunpack.c.l.b16 %v5654
    %v6174 = vunpack.c.l.b16 %v5655
    %v6175 = vunpack.c.l.b16 %v5656
    %v6176 = vunpack.c.l.b16 %v5657
    %v6177 = vunpack.c.l.b16 %v5658
    %v6178 = vunpack.c.l.b16 %v5659
    %v6179 = vunpack.c.l.b16 %v5660
    %v6180 = vunpack.c.l.b16 %v5661
    %v6181 = vunpack.c.l.b16 %v5662
    %v6182 = vunpack.c.l.b16 %v5663
    %v6183 = vunpack.c.l.b16 %v5664
    %v6184 = vunpack.c.l.b16 %v5665
    %v6185 = vunpack.c.l.b16 %v5666
    %v6186 = vunpack.c.l.b16 %v5667
    %v6187 = vunpack.c.l.b16 %v5668
    %v6188 = vunpack.c.l.b16 %v5669
    %v6189 = vunpack.c.l.b16 %v5670
    %v6190 = vunpack.c.l.b16 %v5671
    %v6191 = vunpack.c.l.b16 %v5672
    %v6192 = vunpack.c.l.b16 %v5673
    %v6193 = vunpack.c.l.b16 %v5674
    %v6194 = vunpack.c.l.b16 %v5675
    %v6195 = vpack.c.b16 %v5940, %v5939
    %v6196 = vpack.c.b16 %v5942, %v5941
    %v6197 = vpack.c.b16 %v5944, %v5943
    %v6198 = vpack.c.b16 %v5946, %v5945
    %v6199 = vpack.c.b16 %v5948, %v5947
    %v6200 = vpack.c.b16 %v5950, %v5949
    %v6201 = vpack.c.b16 %v5952, %v5951
    %v6202 = vpack.c.b16 %v5954, %v5953
    %v6203 = vpack.c.b16 %v5956, %v5955
    %v6204 = vpack.c.b16 %v5958, %v5957
    %v6205 = vpack.c.b16 %v5960, %v5959
    %v6206 = vpack.c.b16 %v5962, %v5961
    %v6207 = vpack.c.b16 %v5964, %v5963
    %v6208 = vpack.c.b16 %v5966, %v5965
    %v6209 = vpack.c.b16 %v5968, %v5967
    %v6210 = vpack.c.b16 %v5970, %v5969
    %v6211 = vpack.c.b16 %v5972, %v5971
    %v6212 = vpack.c.b16 %v5974, %v5973
    %v6213 = vpack.c.b16 %v5976, %v5975
    %v6214 = vpack.c.b16 %v5978, %v5977
    %v6215 = vpack.c.b16 %v5980, %v5979
    %v6216 = vpack.c.b16 %v5982, %v5981
    %v6217 = vpack.c.b16 %v5984, %v5983
    %v6218 = vpack.c.b16 %v5986, %v5985
    %v6219 = vpack.c.b16 %v5988, %v5987
    %v6220 = vpack.c.b16 %v5990, %v5989
    %v6221 = vpack.c.b16 %v5992, %v5991
    %v6222 = vpack.c.b16 %v5994, %v5993
    %v6223 = vpack.c.b16 %v5996, %v5995
    %v6224 = vpack.c.b16 %v5998, %v5997
    %v6225 = vpack.c.b16 %v6000, %v5999
    %v6226 = vpack.c.b16 %v6002, %v6001
    %v6227 = vpack.c.b16 %v6004, %v6003
    %v6228 = vpack.c.b16 %v6006, %v6005
    %v6229 = vpack.c.b16 %v6008, %v6007
    %v6230 = vpack.c.b16 %v6010, %v6009
    %v6231 = vpack.c.b16 %v6012, %v6011
    %v6232 = vpack.c.b16 %v6014, %v6013
    %v6233 = vpack.c.b16 %v6016, %v6015
    %v6234 = vpack.c.b16 %v6018, %v6017
    %v6235 = vpack.c.b16 %v6020, %v6019
    %v6236 = vpack.c.b16 %v6022, %v6021
    %v6237 = vpack.c.b16 %v6024, %v6023
    %v6238 = vpack.c.b16 %v6026, %v6025
    %v6239 = vpack.c.b16 %v6028, %v6027
    %v6240 = vpack.c.b16 %v6030, %v6029
    %v6241 = vpack.c.b16 %v6032, %v6031
    %v6242 = vpack.c.b16 %v6034, %v6033
    %v6243 = vpack.c.b16 %v6036, %v6035
    %v6244 = vpack.c.b16 %v6038, %v6037
    %v6245 = vpack.c.b16 %v6040, %v6039
    %v6246 = vpack.c.b16 %v6042, %v6041
    %v6247 = vpack.c.b16 %v6044, %v6043
    %v6248 = vpack.c.b16 %v6046, %v6045
    %v6249 = vpack.c.b16 %v6048, %v6047
    %v6250 = vpack.c.b16 %v6050, %v6049
    %v6251 = vpack.c.b16 %v6052, %v6051
    %v6252 = vpack.c.b16 %v6054, %v6053
    %v6253 = vpack.c.b16 %v6056, %v6055
    %v6254 = vpack.c.b16 %v6058, %v6057
    %v6255 = vpack.c.b16 %v6060, %v6059
    %v6256 = vpack.c.b16 %v6062, %v6061
    %v6257 = vpack.c.b16 %v6064, %v6063
    %v6258 = vpack.c.b16 %v6066, %v6065
    %v6259 = vpack.c.b16 %v6068, %v6067
    %v6260 = vpack.c.b16 %v6070, %v6069
    %v6261 = vpack.c.b16 %v6072, %v6071
    %v6262 = vpack.c.b16 %v6074, %v6073
    %v6263 = vpack.c.b16 %v6076, %v6075
    %v6264 = vpack.c.b16 %v6078, %v6077
    %v6265 = vpack.c.b16 %v6080, %v6079
    %v6266 = vpack.c.b16 %v6082, %v6081
    %v6267 = vpack.c.b16 %v6084, %v6083
    %v6268 = vpack.c.b16 %v6086, %v6085
    %v6269 = vpack.c.b16 %v6088, %v6087
    %v6270 = vpack.c.b16 %v6090, %v6089
    %v6271 = vpack.c.b16 %v6092, %v6091
    %v6272 = vpack.c.b16 %v6094, %v6093
    %v6273 = vpack.c.b16 %v6096, %v6095
    %v6274 = vpack.c.b16 %v6098, %v6097
    %v6275 = vpack.c.b16 %v6100, %v6099
    %v6276 = vpack.c.b16 %v6102, %v6101
    %v6277 = vpack.c.b16 %v6104, %v6103
    %v6278 = vpack.c.b16 %v6106, %v6105
    %v6279 = vpack.c.b16 %v6108, %v6107
    %v6280 = vpack.c.b16 %v6110, %v6109
    %v6281 = vpack.c.b16 %v6112, %v6111
    %v6282 = vpack.c.b16 %v6114, %v6113
    %v6283 = vpack.c.b16 %v6116, %v6115
    %v6284 = vpack.c.b16 %v6118, %v6117
    %v6285 = vpack.c.b16 %v6120, %v6119
    %v6286 = vpack.c.b16 %v6122, %v6121
    %v6287 = vpack.c.b16 %v6124, %v6123
    %v6288 = vpack.c.b16 %v6126, %v6125
    %v6289 = vpack.c.b16 %v6128, %v6127
    %v6290 = vpack.c.b16 %v6130, %v6129
    %v6291 = vpack.c.b16 %v6132, %v6131
    %v6292 = vpack.c.b16 %v6134, %v6133
    %v6293 = vpack.c.b16 %v6136, %v6135
    %v6294 = vpack.c.b16 %v6138, %v6137
    %v6295 = vpack.c.b16 %v6140, %v6139
    %v6296 = vpack.c.b16 %v6142, %v6141
    %v6297 = vpack.c.b16 %v6144, %v6143
    %v6298 = vpack.c.b16 %v6146, %v6145
    %v6299 = vpack.c.b16 %v6148, %v6147
    %v6300 = vpack.c.b16 %v6150, %v6149
    %v6301 = vpack.c.b16 %v6152, %v6151
    %v6302 = vpack.c.b16 %v6154, %v6153
    %v6303 = vpack.c.b16 %v6156, %v6155
    %v6304 = vpack.c.b16 %v6158, %v6157
    %v6305 = vpack.c.b16 %v6160, %v6159
    %v6306 = vpack.c.b16 %v6162, %v6161
    %v6307 = vpack.c.b16 %v6164, %v6163
    %v6308 = vpack.c.b16 %v6166, %v6165
    %v6309 = vpack.c.b16 %v6168, %v6167
    %v6310 = vpack.c.b16 %v6170, %v6169
    %v6311 = vpack.c.b16 %v6172, %v6171
    %v6312 = vpack.c.b16 %v6174, %v6173
    %v6313 = vpack.c.b16 %v6176, %v6175
    %v6314 = vpack.c.b16 %v6178, %v6177
    %v6315 = vpack.c.b16 %v6180, %v6179
    %v6316 = vpack.c.b16 %v6182, %v6181
    %v6317 = vpack.c.b16 %v6184, %v6183
    %v6318 = vpack.c.b16 %v6186, %v6185
    %v6319 = vpack.c.b16 %v6188, %v6187
    %v6320 = vpack.c.b16 %v6190, %v6189
    %v6321 = vpack.c.b16 %v6192, %v6191
    %v6322 = vpack.c.b16 %v6194, %v6193
    %6451 = vmatprep.subr.bf16.mxu0 0
    %6452 = vmatpush1.bf16.msra.mxu0 %v6195
    %6453 = vmatprep.subr.bf16.mxu0 0
    %6454 = vmatpush1.bf16.msra.mxu0 %v6196
    %6455 = vmatprep.subr.bf16.mxu0 0
    %6456 = vmatpush1.bf16.msra.mxu0 %v6197
    %6457 = vmatprep.subr.bf16.mxu0 0
    %6458 = vmatpush1.bf16.msra.mxu0 %v6198
    %6459 = vmatprep.subr.bf16.mxu0 0
    %6460 = vmatpush1.bf16.msra.mxu0 %v6199
    %6461 = vmatprep.subr.bf16.mxu0 0
    %6462 = vmatpush1.bf16.msra.mxu0 %v6200
    %6463 = vmatprep.subr.bf16.mxu0 0
    %6464 = vmatpush1.bf16.msra.mxu0 %v6201
    %6465 = vmatprep.subr.bf16.mxu0 0
    %6466 = vmatpush1.bf16.msra.mxu0 %v6202
    %6467 = vmatprep.subr.bf16.mxu0 0
    %6468 = vmatpush1.bf16.msra.mxu0 %v6203
    %6469 = vmatprep.subr.bf16.mxu0 0
    %6470 = vmatpush1.bf16.msra.mxu0 %v6204
    %6471 = vmatprep.subr.bf16.mxu0 0
    %6472 = vmatpush1.bf16.msra.mxu0 %v6205
    %6473 = vmatprep.subr.bf16.mxu0 0
    %6474 = vmatpush1.bf16.msra.mxu0 %v6206
    %6475 = vmatprep.subr.bf16.mxu0 0
    %6476 = vmatpush1.bf16.msra.mxu0 %v6207
    %6477 = vmatprep.subr.bf16.mxu0 0
    %6478 = vmatpush1.bf16.msra.mxu0 %v6208
    %6479 = vmatprep.subr.bf16.mxu0 0
    %6480 = vmatpush1.bf16.msra.mxu0 %v6209
    %6481 = vmatprep.subr.bf16.mxu0 0
    %6482 = vmatpush1.bf16.msra.mxu0 %v6210
    %6483 = vmatprep.mubr.bf16.mxu0 %v5357
    %6484 = vmatmul.mubr.bf16.gmra.mrb[0].mxu0 %v5356
    %v6485 = vpop.f32.mrb[0].mxu0
    %v6486 = vadd.f32 %v5681, %v6485
    %v6487 = vpop.f32.mrb[0].mxu0
    %v6488 = vpop.f32.mrb[0].mxu0
    %v6489 = vadd.f32 %v5681, %v6488
    %v6490 = vpop.f32.mrb[0].mxu0
    %6491 = vmatprep.mubr.bf16.mxu0 %v5373
    %6492 = vmatmul.mubr.bf16.gmra.mrb[0].mxu0 %v5372
    %v6493 = vpop.f32.mrb[0].mxu0
    %v6494 = vadd.f32 %v5681, %v6493
    %v6495 = vpop.f32.mrb[0].mxu0
    %v6496 = vpop.f32.mrb[0].mxu0
    %v6497 = vadd.f32 %v5681, %v6496
    %v6498 = vpop.f32.mrb[0].mxu0
    %6499 = vmatprep.mubr.bf16.mxu0 %v5389
    %6500 = vmatmul.mubr.bf16.gmra.mrb[0].mxu0 %v5388
    %v6501 = vpop.f32.mrb[0].mxu0
    %v6502 = vadd.f32 %v5681, %v6501
    %v6503 = vpop.f32.mrb[0].mxu0
    %v6504 = vpop.f32.mrb[0].mxu0
    %v6505 = vadd.f32 %v5681, %v6504
    %v6506 = vpop.f32.mrb[0].mxu0
    %6507 = vmatprep.mubr.bf16.mxu0 %v5405
    %6508 = vmatmul.mubr.bf16.gmra.mrb[0].mxu0 %v5404
    %v6509 = vpop.f32.mrb[0].mxu0
    %v6510 = vadd.f32 %v5681, %v6509
    %v6511 = vpop.f32.mrb[0].mxu0
    %v6512 = vpop.f32.mrb[0].mxu0
    %v6513 = vadd.f32 %v5681, %v6512
    %v6514 = vpop.f32.mrb[0].mxu0
    %6515 = vdwg.mxu0
    %6516 = vmatprep.subr.bf16.mxu0 0
    %6517 = vmatpush1.bf16.msra.mxu0 %v6211
    %6518 = vmatprep.subr.bf16.mxu0 0
    %6519 = vmatpush1.bf16.msra.mxu0 %v6212
    %6520 = vmatprep.subr.bf16.mxu0 0
    %6521 = vmatpush1.bf16.msra.mxu0 %v6213
    %6522 = vmatprep.subr.bf16.mxu0 0
    %6523 = vmatpush1.bf16.msra.mxu0 %v6214
    %6524 = vmatprep.subr.bf16.mxu0 0
    %6525 = vmatpush1.bf16.msra.mxu0 %v6215
    %6526 = vmatprep.subr.bf16.mxu0 0
    %6527 = vmatpush1.bf16.msra.mxu0 %v6216
    %6528 = vmatprep.subr.bf16.mxu0 0
    %6529 = vmatpush1.bf16.msra.mxu0 %v6217
    %6530 = vmatprep.subr.bf16.mxu0 0
    %6531 = vmatpush1.bf16.msra.mxu0 %v6218
    %6532 = vmatprep.subr.bf16.mxu0 0
    %6533 = vmatpush1.bf16.msra.mxu0 %v6219
    %6534 = vmatprep.subr.bf16.mxu0 0
    %6535 = vmatpush1.bf16.msra.mxu0 %v6220
    %6536 = vmatprep.subr.bf16.mxu0 0
    %6537 = vmatpush1.bf16.msra.mxu0 %v6221
    %6538 = vmatprep.subr.bf16.mxu0 0
    %6539 = vmatpush1.bf16.msra.mxu0 %v6222
    %6540 = vmatprep.subr.bf16.mxu0 0
    %6541 = vmatpush1.bf16.msra.mxu0 %v6223
    %6542 = vmatprep.subr.bf16.mxu0 0
    %6543 = vmatpush1.bf16.msra.mxu0 %v6224
    %6544 = vmatprep.subr.bf16.mxu0 0
    %6545 = vmatpush1.bf16.msra.mxu0 %v6225
    %6546 = vmatprep.subr.bf16.mxu0 0
    %6547 = vmatpush1.bf16.msra.mxu0 %v6226
    %6548 = vmatprep.mubr.bf16.mxu0 %v5359
    %6549 = vmatmul.mubr.bf16.gmra.mrb[0].mxu0 %v5358
    %v6550 = vpop.f32.mrb[0].mxu0
    %v6551 = vadd.f32 %v6486, %v6550
    %v6552 = vpop.f32.mrb[0].mxu0
    %v6553 = vpop.f32.mrb[0].mxu0
    %v6554 = vadd.f32 %v6489, %v6553
    %v6555 = vpop.f32.mrb[0].mxu0
    %6556 = vmatprep.mubr.bf16.mxu0 %v5375
    %6557 = vmatmul.mubr.bf16.gmra.mrb[0].mxu0 %v5374
    %v6558 = vpop.f32.mrb[0].mxu0
    %v6559 = vadd.f32 %v6494, %v6558
    %v6560 = vpop.f32.mrb[0].mxu0
    %v6561 = vpop.f32.mrb[0].mxu0
    %v6562 = vadd.f32 %v6497, %v6561
    %v6563 = vpop.f32.mrb[0].mxu0
    %6564 = vmatprep.mubr.bf16.mxu0 %v5391
    %6565 = vmatmul.mubr.bf16.gmra.mrb[0].mxu0 %v5390
    %v6566 = vpop.f32.mrb[0].mxu0
    %v6567 = vadd.f32 %v6502, %v6566
    %v6568 = vpop.f32.mrb[0].mxu0
    %v6569 = vpop.f32.mrb[0].mxu0
    %v6570 = vadd.f32 %v6505, %v6569
    %v6571 = vpop.f32.mrb[0].mxu0
    %6572 = vmatprep.mubr.bf16.mxu0 %v5407
    %6573 = vmatmul.mubr.bf16.gmra.mrb[0].mxu0 %v5406
    %v6574 = vpop.f32.mrb[0].mxu0
    %v6575 = vadd.f32 %v6510, %v6574
    %v6576 = vpop.f32.mrb[0].mxu0
    %v6577 = vpop.f32.mrb[0].mxu0
    %v6578 = vadd.f32 %v6513, %v6577
    %v6579 = vpop.f32.mrb[0].mxu0
    %6580 = vdwg.mxu0
    %6581 = vmatprep.subr.bf16.mxu0 0
    %6582 = vmatpush1.bf16.msra.mxu0 %v6227
    %6583 = vmatprep.subr.bf16.mxu0 0
    %6584 = vmatpush1.bf16.msra.mxu0 %v6228
    %6585 = vmatprep.subr.bf16.mxu0 0
    %6586 = vmatpush1.bf16.msra.mxu0 %v6229
    %6587 = vmatprep.subr.bf16.mxu0 0
    %6588 = vmatpush1.bf16.msra.mxu0 %v6230
    %6589 = vmatprep.subr.bf16.mxu0 0
    %6590 = vmatpush1.bf16.msra.mxu0 %v6231
    %6591 = vmatprep.subr.bf16.mxu0 0
    %6592 = vmatpush1.bf16.msra.mxu0 %v6232
    %6593 = vmatprep.subr.bf16.mxu0 0
    %6594 = vmatpush1.bf16.msra.mxu0 %v6233
    %6595 = vmatprep.subr.bf16.mxu0 0
    %6596 = vmatpush1.bf16.msra.mxu0 %v6234
    %6597 = vmatprep.subr.bf16.mxu0 0
    %6598 = vmatpush1.bf16.msra.mxu0 %v6235
    %6599 = vmatprep.subr.bf16.mxu0 0
    %6600 = vmatpush1.bf16.msra.mxu0 %v6236
    %6601 = vmatprep.subr.bf16.mxu0 0
    %6602 = vmatpush1.bf16.msra.mxu0 %v6237
    %6603 = vmatprep.subr.bf16.mxu0 0
    %6604 = vmatpush1.bf16.msra.mxu0 %v6238
    %6605 = vmatprep.subr.bf16.mxu0 0
    %6606 = vmatpush1.bf16.msra.mxu0 %v6239
    %6607 = vmatprep.subr.bf16.mxu0 0
    %6608 = vmatpush1.bf16.msra.mxu0 %v6240
    %6609 = vmatprep.subr.bf16.mxu0 0
    %6610 = vmatpush1.bf16.msra.mxu0 %v6241
    %6611 = vmatprep.subr.bf16.mxu0 0
    %6612 = vmatpush1.bf16.msra.mxu0 %v6242
    %6613 = vmatprep.mubr.bf16.mxu0 %v5361
    %6614 = vmatmul.mubr.bf16.gmra.mrb[0].mxu0 %v5360
    %v6615 = vpop.f32.mrb[0].mxu0
    %v6616 = vadd.f32 %v6551, %v6615
    %v6617 = vpop.f32.mrb[0].mxu0
    %v6618 = vpop.f32.mrb[0].mxu0
    %v6619 = vadd.f32 %v6554, %v6618
    %v6620 = vpop.f32.mrb[0].mxu0
    %6621 = vmatprep.mubr.bf16.mxu0 %v5377
    %6622 = vmatmul.mubr.bf16.gmra.mrb[0].mxu0 %v5376
    %v6623 = vpop.f32.mrb[0].mxu0
    %v6624 = vadd.f32 %v6559, %v6623
    %v6625 = vpop.f32.mrb[0].mxu0
    %v6626 = vpop.f32.mrb[0].mxu0
    %v6627 = vadd.f32 %v6562, %v6626
    %v6628 = vpop.f32.mrb[0].mxu0
    %6629 = vmatprep.mubr.bf16.mxu0 %v5393
    %6630 = vmatmul.mubr.bf16.gmra.mrb[0].mxu0 %v5392
    %v6631 = vpop.f32.mrb[0].mxu0
    %v6632 = vadd.f32 %v6567, %v6631
    %v6633 = vpop.f32.mrb[0].mxu0
    %v6634 = vpop.f32.mrb[0].mxu0
    %v6635 = vadd.f32 %v6570, %v6634
    %v6636 = vpop.f32.mrb[0].mxu0
    %6637 = vmatprep.mubr.bf16.mxu0 %v5409
    %6638 = vmatmul.mubr.bf16.gmra.mrb[0].mxu0 %v5408
    %v6639 = vpop.f32.mrb[0].mxu0
    %v6640 = vadd.f32 %v6575, %v6639
    %v6641 = vpop.f32.mrb[0].mxu0
    %v6642 = vpop.f32.mrb[0].mxu0
    %v6643 = vadd.f32 %v6578, %v6642
    %v6644 = vpop.f32.mrb[0].mxu0
    %6645 = vdwg.mxu0
    %6646 = vmatprep.subr.bf16.mxu0 0
    %6647 = vmatpush1.bf16.msra.mxu0 %v6243
    %6648 = vmatprep.subr.bf16.mxu0 0
    %6649 = vmatpush1.bf16.msra.mxu0 %v6244
    %6650 = vmatprep.subr.bf16.mxu0 0
    %6651 = vmatpush1.bf16.msra.mxu0 %v6245
    %6652 = vmatprep.subr.bf16.mxu0 0
    %6653 = vmatpush1.bf16.msra.mxu0 %v6246
    %6654 = vmatprep.subr.bf16.mxu0 0
    %6655 = vmatpush1.bf16.msra.mxu0 %v6247
    %6656 = vmatprep.subr.bf16.mxu0 0
    %6657 = vmatpush1.bf16.msra.mxu0 %v6248
    %6658 = vmatprep.subr.bf16.mxu0 0
    %6659 = vmatpush1.bf16.msra.mxu0 %v6249
    %6660 = vmatprep.subr.bf16.mxu0 0
    %6661 = vmatpush1.bf16.msra.mxu0 %v6250
    %6662 = vmatprep.subr.bf16.mxu0 0
    %6663 = vmatpush1.bf16.msra.mxu0 %v6251
    %6664 = vmatprep.subr.bf16.mxu0 0
    %6665 = vmatpush1.bf16.msra.mxu0 %v6252
    %6666 = vmatprep.subr.bf16.mxu0 0
    %6667 = vmatpush1.bf16.msra.mxu0 %v6253
    %6668 = vmatprep.subr.bf16.mxu0 0
    %6669 = vmatpush1.bf16.msra.mxu0 %v6254
    %6670 = vmatprep.subr.bf16.mxu0 0
    %6671 = vmatpush1.bf16.msra.mxu0 %v6255
    %6672 = vmatprep.subr.bf16.mxu0 0
    %6673 = vmatpush1.bf16.msra.mxu0 %v6256
    %6674 = vmatprep.subr.bf16.mxu0 0
    %6675 = vmatpush1.bf16.msra.mxu0 %v6257
    %6676 = vmatprep.subr.bf16.mxu0 0
    %6677 = vmatpush1.bf16.msra.mxu0 %v6258
    %6678 = vmatprep.mubr.bf16.mxu0 %v5363
    %6679 = vmatmul.mubr.bf16.gmra.mrb[0].mxu0 %v5362
    %v6680 = vpop.f32.mrb[0].mxu0
    %v6681 = vadd.f32 %v6616, %v6680
    %v6682 = vpop.f32.mrb[0].mxu0
    %v6683 = vpop.f32.mrb[0].mxu0
    %v6684 = vadd.f32 %v6619, %v6683
    %v6685 = vpop.f32.mrb[0].mxu0
    %6686 = vmatprep.mubr.bf16.mxu0 %v5379
    %6687 = vmatmul.mubr.bf16.gmra.mrb[0].mxu0 %v5378
    %v6688 = vpop.f32.mrb[0].mxu0
    %v6689 = vadd.f32 %v6624, %v6688
    %v6690 = vpop.f32.mrb[0].mxu0
    %v6691 = vpop.f32.mrb[0].mxu0
    %v6692 = vadd.f32 %v6627, %v6691
    %v6693 = vpop.f32.mrb[0].mxu0
    %6694 = vmatprep.mubr.bf16.mxu0 %v5395
    %6695 = vmatmul.mubr.bf16.gmra.mrb[0].mxu0 %v5394
    %v6696 = vpop.f32.mrb[0].mxu0
    %v6697 = vadd.f32 %v6632, %v6696
    %v6698 = vpop.f32.mrb[0].mxu0
    %v6699 = vpop.f32.mrb[0].mxu0
    %v6700 = vadd.f32 %v6635, %v6699
    %v6701 = vpop.f32.mrb[0].mxu0
    %6702 = vmatprep.mubr.bf16.mxu0 %v5411
    %6703 = vmatmul.mubr.bf16.gmra.mrb[0].mxu0 %v5410
    %v6704 = vpop.f32.mrb[0].mxu0
    %v6705 = vadd.f32 %v6640, %v6704
    %v6706 = vpop.f32.mrb[0].mxu0
    %v6707 = vpop.f32.mrb[0].mxu0
    %v6708 = vadd.f32 %v6643, %v6707
    %v6709 = vpop.f32.mrb[0].mxu0
    %6710 = vdwg.mxu0
    %6711 = vmatprep.subr.bf16.mxu0 0
    %6712 = vmatpush1.bf16.msra.mxu0 %v6259
    %6713 = vmatprep.subr.bf16.mxu0 0
    %6714 = vmatpush1.bf16.msra.mxu0 %v6260
    %6715 = vmatprep.subr.bf16.mxu0 0
    %6716 = vmatpush1.bf16.msra.mxu0 %v6261
    %6717 = vmatprep.subr.bf16.mxu0 0
    %6718 = vmatpush1.bf16.msra.mxu0 %v6262
    %6719 = vmatprep.subr.bf16.mxu0 0
    %6720 = vmatpush1.bf16.msra.mxu0 %v6263
    %6721 = vmatprep.subr.bf16.mxu0 0
    %6722 = vmatpush1.bf16.msra.mxu0 %v6264
    %6723 = vmatprep.subr.bf16.mxu0 0
    %6724 = vmatpush1.bf16.msra.mxu0 %v6265
    %6725 = vmatprep.subr.bf16.mxu0 0
    %6726 = vmatpush1.bf16.msra.mxu0 %v6266
    %6727 = vmatprep.subr.bf16.mxu0 0
    %6728 = vmatpush1.bf16.msra.mxu0 %v6267
    %6729 = vmatprep.subr.bf16.mxu0 0
    %6730 = vmatpush1.bf16.msra.mxu0 %v6268
    %6731 = vmatprep.subr.bf16.mxu0 0
    %6732 = vmatpush1.bf16.msra.mxu0 %v6269
    %6733 = vmatprep.subr.bf16.mxu0 0
    %6734 = vmatpush1.bf16.msra.mxu0 %v6270
    %6735 = vmatprep.subr.bf16.mxu0 0
    %6736 = vmatpush1.bf16.msra.mxu0 %v6271
    %6737 = vmatprep.subr.bf16.mxu0 0
    %6738 = vmatpush1.bf16.msra.mxu0 %v6272
    %6739 = vmatprep.subr.bf16.mxu0 0
    %6740 = vmatpush1.bf16.msra.mxu0 %v6273
    %6741 = vmatprep.subr.bf16.mxu0 0
    %6742 = vmatpush1.bf16.msra.mxu0 %v6274
    %6743 = vmatprep.mubr.bf16.mxu0 %v5365
    %6744 = vmatmul.mubr.bf16.gmra.mrb[0].mxu0 %v5364
    %v6745 = vpop.f32.mrb[0].mxu0
    %v6746 = vadd.f32 %v6681, %v6745
    %v6747 = vpop.f32.mrb[0].mxu0
    %v6748 = vpop.f32.mrb[0].mxu0
    %v6749 = vadd.f32 %v6684, %v6748
    %v6750 = vpop.f32.mrb[0].mxu0
    %6751 = vmatprep.mubr.bf16.mxu0 %v5381
    %6752 = vmatmul.mubr.bf16.gmra.mrb[0].mxu0 %v5380
    %v6753 = vpop.f32.mrb[0].mxu0
    %v6754 = vadd.f32 %v6689, %v6753
    %v6755 = vpop.f32.mrb[0].mxu0
    %v6756 = vpop.f32.mrb[0].mxu0
    %v6757 = vadd.f32 %v6692, %v6756
    %v6758 = vpop.f32.mrb[0].mxu0
    %6759 = vmatprep.mubr.bf16.mxu0 %v5397
    %6760 = vmatmul.mubr.bf16.gmra.mrb[0].mxu0 %v5396
    %v6761 = vpop.f32.mrb[0].mxu0
    %v6762 = vadd.f32 %v6697, %v6761
    %v6763 = vpop.f32.mrb[0].mxu0
    %v6764 = vpop.f32.mrb[0].mxu0
    %v6765 = vadd.f32 %v6700, %v6764
    %v6766 = vpop.f32.mrb[0].mxu0
    %6767 = vmatprep.mubr.bf16.mxu0 %v5413
    %6768 = vmatmul.mubr.bf16.gmra.mrb[0].mxu0 %v5412
    %v6769 = vpop.f32.mrb[0].mxu0
    %v6770 = vadd.f32 %v6705, %v6769
    %v6771 = vpop.f32.mrb[0].mxu0
    %v6772 = vpop.f32.mrb[0].mxu0
    %v6773 = vadd.f32 %v6708, %v6772
    %v6774 = vpop.f32.mrb[0].mxu0
    %6775 = vdwg.mxu0
    %6776 = vmatprep.subr.bf16.mxu0 0
    %6777 = vmatpush1.bf16.msra.mxu0 %v6275
    %6778 = vmatprep.subr.bf16.mxu0 0
    %6779 = vmatpush1.bf16.msra.mxu0 %v6276
    %6780 = vmatprep.subr.bf16.mxu0 0
    %6781 = vmatpush1.bf16.msra.mxu0 %v6277
    %6782 = vmatprep.subr.bf16.mxu0 0
    %6783 = vmatpush1.bf16.msra.mxu0 %v6278
    %6784 = vmatprep.subr.bf16.mxu0 0
    %6785 = vmatpush1.bf16.msra.mxu0 %v6279
    %6786 = vmatprep.subr.bf16.mxu0 0
    %6787 = vmatpush1.bf16.msra.mxu0 %v6280
    %6788 = vmatprep.subr.bf16.mxu0 0
    %6789 = vmatpush1.bf16.msra.mxu0 %v6281
    %6790 = vmatprep.subr.bf16.mxu0 0
    %6791 = vmatpush1.bf16.msra.mxu0 %v6282
    %6792 = vmatprep.subr.bf16.mxu0 0
    %6793 = vmatpush1.bf16.msra.mxu0 %v6283
    %6794 = vmatprep.subr.bf16.mxu0 0
    %6795 = vmatpush1.bf16.msra.mxu0 %v6284
    %6796 = vmatprep.subr.bf16.mxu0 0
    %6797 = vmatpush1.bf16.msra.mxu0 %v6285
    %6798 = vmatprep.subr.bf16.mxu0 0
    %6799 = vmatpush1.bf16.msra.mxu0 %v6286
    %6800 = vmatprep.subr.bf16.mxu0 0
    %6801 = vmatpush1.bf16.msra.mxu0 %v6287
    %6802 = vmatprep.subr.bf16.mxu0 0
    %6803 = vmatpush1.bf16.msra.mxu0 %v6288
    %6804 = vmatprep.subr.bf16.mxu0 0
    %6805 = vmatpush1.bf16.msra.mxu0 %v6289
    %6806 = vmatprep.subr.bf16.mxu0 0
    %6807 = vmatpush1.bf16.msra.mxu0 %v6290
    %6808 = vmatprep.mubr.bf16.mxu0 %v5367
    %6809 = vmatmul.mubr.bf16.gmra.mrb[0].mxu0 %v5366
    %v6810 = vpop.f32.mrb[0].mxu0
    %v6811 = vadd.f32 %v6746, %v6810
    %v6812 = vpop.f32.mrb[0].mxu0
    %v6813 = vpop.f32.mrb[0].mxu0
    %v6814 = vadd.f32 %v6749, %v6813
    %v6815 = vpop.f32.mrb[0].mxu0
    %6816 = vmatprep.mubr.bf16.mxu0 %v5383
    %6817 = vmatmul.mubr.bf16.gmra.mrb[0].mxu0 %v5382
    %v6818 = vpop.f32.mrb[0].mxu0
    %v6819 = vadd.f32 %v6754, %v6818
    %v6820 = vpop.f32.mrb[0].mxu0
    %v6821 = vpop.f32.mrb[0].mxu0
    %v6822 = vadd.f32 %v6757, %v6821
    %v6823 = vpop.f32.mrb[0].mxu0
    %6824 = vmatprep.mubr.bf16.mxu0 %v5399
    %6825 = vmatmul.mubr.bf16.gmra.mrb[0].mxu0 %v5398
    %v6826 = vpop.f32.mrb[0].mxu0
    %v6827 = vadd.f32 %v6762, %v6826
    %v6828 = vpop.f32.mrb[0].mxu0
    %v6829 = vpop.f32.mrb[0].mxu0
    %v6830 = vadd.f32 %v6765, %v6829
    %v6831 = vpop.f32.mrb[0].mxu0
    %6832 = vmatprep.mubr.bf16.mxu0 %v5415
    %6833 = vmatmul.mubr.bf16.gmra.mrb[0].mxu0 %v5414
    %v6834 = vpop.f32.mrb[0].mxu0
    %v6835 = vadd.f32 %v6770, %v6834
    %v6836 = vpop.f32.mrb[0].mxu0
    %v6837 = vpop.f32.mrb[0].mxu0
    %v6838 = vadd.f32 %v6773, %v6837
    %v6839 = vpop.f32.mrb[0].mxu0
    %6840 = vdwg.mxu0
    %6841 = vmatprep.subr.bf16.mxu0 0
    %6842 = vmatpush1.bf16.msra.mxu0 %v6291
    %6843 = vmatprep.subr.bf16.mxu0 0
    %6844 = vmatpush1.bf16.msra.mxu0 %v6292
    %6845 = vmatprep.subr.bf16.mxu0 0
    %6846 = vmatpush1.bf16.msra.mxu0 %v6293
    %6847 = vmatprep.subr.bf16.mxu0 0
    %6848 = vmatpush1.bf16.msra.mxu0 %v6294
    %6849 = vmatprep.subr.bf16.mxu0 0
    %6850 = vmatpush1.bf16.msra.mxu0 %v6295
    %6851 = vmatprep.subr.bf16.mxu0 0
    %6852 = vmatpush1.bf16.msra.mxu0 %v6296
    %6853 = vmatprep.subr.bf16.mxu0 0
    %6854 = vmatpush1.bf16.msra.mxu0 %v6297
    %6855 = vmatprep.subr.bf16.mxu0 0
    %6856 = vmatpush1.bf16.msra.mxu0 %v6298
    %6857 = vmatprep.subr.bf16.mxu0 0
    %6858 = vmatpush1.bf16.msra.mxu0 %v6299
    %6859 = vmatprep.subr.bf16.mxu0 0
    %6860 = vmatpush1.bf16.msra.mxu0 %v6300
    %6861 = vmatprep.subr.bf16.mxu0 0
    %6862 = vmatpush1.bf16.msra.mxu0 %v6301
    %6863 = vmatprep.subr.bf16.mxu0 0
    %6864 = vmatpush1.bf16.msra.mxu0 %v6302
    %6865 = vmatprep.subr.bf16.mxu0 0
    %6866 = vmatpush1.bf16.msra.mxu0 %v6303
    %6867 = vmatprep.subr.bf16.mxu0 0
    %6868 = vmatpush1.bf16.msra.mxu0 %v6304
    %6869 = vmatprep.subr.bf16.mxu0 0
    %6870 = vmatpush1.bf16.msra.mxu0 %v6305
    %6871 = vmatprep.subr.bf16.mxu0 0
    %6872 = vmatpush1.bf16.msra.mxu0 %v6306
    %6873 = vmatprep.mubr.bf16.mxu0 %v5369
    %6874 = vmatmul.mubr.bf16.gmra.mrb[0].mxu0 %v5368
    %v6875 = vpop.f32.mrb[0].mxu0
    %v6876 = vadd.f32 %v6811, %v6875
    %v6877 = vpop.f32.mrb[0].mxu0
    %v6878 = vpop.f32.mrb[0].mxu0
    %v6879 = vadd.f32 %v6814, %v6878
    %v6880 = vpop.f32.mrb[0].mxu0
    %6881 = vmatprep.mubr.bf16.mxu0 %v5385
    %6882 = vmatmul.mubr.bf16.gmra.mrb[0].mxu0 %v5384
    %v6883 = vpop.f32.mrb[0].mxu0
    %v6884 = vadd.f32 %v6819, %v6883
    %v6885 = vpop.f32.mrb[0].mxu0
    %v6886 = vpop.f32.mrb[0].mxu0
    %v6887 = vadd.f32 %v6822, %v6886
    %v6888 = vpop.f32.mrb[0].mxu0
    %6889 = vmatprep.mubr.bf16.mxu0 %v5401
    %6890 = vmatmul.mubr.bf16.gmra.mrb[0].mxu0 %v5400
    %v6891 = vpop.f32.mrb[0].mxu0
    %v6892 = vadd.f32 %v6827, %v6891
    %v6893 = vpop.f32.mrb[0].mxu0
    %v6894 = vpop.f32.mrb[0].mxu0
    %v6895 = vadd.f32 %v6830, %v6894
    %v6896 = vpop.f32.mrb[0].mxu0
    %6897 = vmatprep.mubr.bf16.mxu0 %v5417
    %6898 = vmatmul.mubr.bf16.gmra.mrb[0].mxu0 %v5416
    %v6899 = vpop.f32.mrb[0].mxu0
    %v6900 = vadd.f32 %v6835, %v6899
    %v6901 = vpop.f32.mrb[0].mxu0
    %v6902 = vpop.f32.mrb[0].mxu0
    %v6903 = vadd.f32 %v6838, %v6902
    %v6904 = vpop.f32.mrb[0].mxu0
    %6905 = vdwg.mxu0
    %6906 = vmatprep.subr.bf16.mxu0 0
    %6907 = vmatpush1.bf16.msra.mxu0 %v6307
    %6908 = vmatprep.subr.bf16.mxu0 0
    %6909 = vmatpush1.bf16.msra.mxu0 %v6308
    %6910 = vmatprep.subr.bf16.mxu0 0
    %6911 = vmatpush1.bf16.msra.mxu0 %v6309
    %6912 = vmatprep.subr.bf16.mxu0 0
    %6913 = vmatpush1.bf16.msra.mxu0 %v6310
    %6914 = vmatprep.subr.bf16.mxu0 0
    %6915 = vmatpush1.bf16.msra.mxu0 %v6311
    %6916 = vmatprep.subr.bf16.mxu0 0
    %6917 = vmatpush1.bf16.msra.mxu0 %v6312
    %6918 = vmatprep.subr.bf16.mxu0 0
    %6919 = vmatpush1.bf16.msra.mxu0 %v6313
    %6920 = vmatprep.subr.bf16.mxu0 0
    %6921 = vmatpush1.bf16.msra.mxu0 %v6314
    %6922 = vmatprep.subr.bf16.mxu0 0
    %6923 = vmatpush1.bf16.msra.mxu0 %v6315
    %6924 = vmatprep.subr.bf16.mxu0 0
    %6925 = vmatpush1.bf16.msra.mxu0 %v6316
    %6926 = vmatprep.subr.bf16.mxu0 0
    %6927 = vmatpush1.bf16.msra.mxu0 %v6317
    %6928 = vmatprep.subr.bf16.mxu0 0
    %6929 = vmatpush1.bf16.msra.mxu0 %v6318
    %6930 = vmatprep.subr.bf16.mxu0 0
    %6931 = vmatpush1.bf16.msra.mxu0 %v6319
    %6932 = vmatprep.subr.bf16.mxu0 0
    %6933 = vmatpush1.bf16.msra.mxu0 %v6320
    %6934 = vmatprep.subr.bf16.mxu0 0
    %6935 = vmatpush1.bf16.msra.mxu0 %v6321
    %6936 = vmatprep.subr.bf16.mxu0 0
    %6937 = vmatpush1.bf16.msra.mxu0 %v6322
    %6938 = vmatprep.mubr.bf16.mxu0 %v5371
    %6939 = vmatmul.mubr.bf16.gmra.mrb[0].mxu0 %v5370
    %v6940 = vpop.f32.mrb[0].mxu0
    %v6941 = vadd.f32 %v6876, %v6940
    %v6942 = vpop.f32.mrb[0].mxu0
    %v6943 = vpop.f32.mrb[0].mxu0
    %v6944 = vadd.f32 %v6879, %v6943
    %v6945 = vpop.f32.mrb[0].mxu0
    %6946 = vmatprep.mubr.bf16.mxu0 %v5387
    %6947 = vmatmul.mubr.bf16.gmra.mrb[0].mxu0 %v5386
    %v6948 = vpop.f32.mrb[0].mxu0
    %v6949 = vadd.f32 %v6884, %v6948
    %v6950 = vpop.f32.mrb[0].mxu0
    %v6951 = vpop.f32.mrb[0].mxu0
    %v6952 = vadd.f32 %v6887, %v6951
    %v6953 = vpop.f32.mrb[0].mxu0
    %6954 = vmatprep.mubr.bf16.mxu0 %v5403
    %6955 = vmatmul.mubr.bf16.gmra.mrb[0].mxu0 %v5402
    %v6956 = vpop.f32.mrb[0].mxu0
    %v6957 = vadd.f32 %v6892, %v6956
    %v6958 = vpop.f32.mrb[0].mxu0
    %v6959 = vpop.f32.mrb[0].mxu0
    %v6960 = vadd.f32 %v6895, %v6959
    %v6961 = vpop.f32.mrb[0].mxu0
    %6962 = vmatprep.mubr.bf16.mxu0 %v5419
    %6963 = vmatmul.mubr.bf16.gmra.mrb[0].mxu0 %v5418
    %v6964 = vpop.f32.mrb[0].mxu0
    %v6965 = vadd.f32 %v6900, %v6964
    %v6966 = vpop.f32.mrb[0].mxu0
    %v6967 = vpop.f32.mrb[0].mxu0
    %v6968 = vadd.f32 %v6903, %v6967
    %v6969 = vpop.f32.mrb[0].mxu0
    %6970 = vdwg.mxu0
    %v6971 = vadd.f32 %v4152, %v6941
    %v6972 = vadd.f32 %v4153, %v6944
    %v6973 = vadd.f32 %v4154, %v6949
    %v6974 = vadd.f32 %v4155, %v6952
    %v6975 = vadd.f32 %v4156, %v6957
    %v6976 = vadd.f32 %v4157, %v6960
    %v6977 = vadd.f32 %v4158, %v6965
    %v6978 = vadd.f32 %v4159, %v6968
    %v6979 = vld [vmem:[%s11] sm:$0x1]
    %v6980 = vld [vmem:[%s12] sm:$0x1]
    %v6981 = vsel %vm118, %v6971, 0.0
    %6982 = vadd.xlane.f32.xlu0 %v6981
    %v6983 = vpop.xlane.xlu0 %6982
    %v6984 = vsel %vm118, %v6972, 0.0
    %6985 = vadd.xlane.f32.xlu0 %v6984
    %v6986 = vpop.xlane.xlu0 %6985
    %v6987 = vsel %vm118, %v6973, 0.0
    %6988 = vadd.xlane.f32.xlu0 %v6987
    %v6989 = vpop.xlane.xlu0 %6988
    %v6990 = vsel %vm118, %v6974, 0.0
    %6991 = vadd.xlane.f32.xlu0 %v6990
    %v6992 = vpop.xlane.xlu0 %6991
    %v6993 = vsel %vm118, %v6975, 0.0
    %6994 = vadd.xlane.f32.xlu0 %v6993
    %v6995 = vpop.xlane.xlu0 %6994
    %v6996 = vsel %vm118, %v6976, 0.0
    %6997 = vadd.xlane.f32.xlu0 %v6996
    %v6998 = vpop.xlane.xlu0 %6997
    %v6999 = vsel %vm118, %v6977, 0.0
    %7000 = vadd.xlane.f32.xlu0 %v6999
    %v7001 = vpop.xlane.xlu0 %7000
    %v7002 = vsel %vm118, %v6978, 0.0
    %7003 = vadd.xlane.f32.xlu0 %v7002
    %v7004 = vpop.xlane.xlu0 %7003
    %v7005 = vmul.f32 %v6983, %v4051
    %v7006 = vmul.f32 %v6986, %v4051
    %v7007 = vmul.f32 %v6989, %v4051
    %v7008 = vmul.f32 %v6992, %v4051
    %v7009 = vmul.f32 %v6995, %v4051
    %v7010 = vmul.f32 %v6998, %v4051
    %v7011 = vmul.f32 %v7001, %v4051
    %v7012 = vmul.f32 %v7004, %v4051
    %v7013 = vsub.f32 %v6971, %v7005
    %v7014 = vsub.f32 %v6972, %v7006
    %v7015 = vsub.f32 %v6973, %v7007
    %v7016 = vsub.f32 %v6974, %v7008
    %v7017 = vsub.f32 %v6975, %v7009
    %v7018 = vsub.f32 %v6976, %v7010
    %v7019 = vsub.f32 %v6977, %v7011
    %v7020 = vsub.f32 %v6978, %v7012
    %v7021 = vmul.f32 %v7013, %v7013
    %v7022 = vmul.f32 %v7014, %v7014
    %v7023 = vmul.f32 %v7015, %v7015
    %v7024 = vmul.f32 %v7016, %v7016
    %v7025 = vmul.f32 %v7017, %v7017
    %v7026 = vmul.f32 %v7018, %v7018
    %v7027 = vmul.f32 %v7019, %v7019
    %v7028 = vmul.f32 %v7020, %v7020
    %v7029 = vsel %vm118, %v7021, 0.0
    %7030 = vadd.xlane.f32.xlu0 %v7029
    %v7031 = vpop.xlane.xlu0 %7030
    %v7032 = vsel %vm118, %v7022, 0.0
    %7033 = vadd.xlane.f32.xlu0 %v7032
    %v7034 = vpop.xlane.xlu0 %7033
    %v7035 = vsel %vm118, %v7023, 0.0
    %7036 = vadd.xlane.f32.xlu0 %v7035
    %v7037 = vpop.xlane.xlu0 %7036
    %v7038 = vsel %vm118, %v7024, 0.0
    %7039 = vadd.xlane.f32.xlu0 %v7038
    %v7040 = vpop.xlane.xlu0 %7039
    %v7041 = vsel %vm118, %v7025, 0.0
    %7042 = vadd.xlane.f32.xlu0 %v7041
    %v7043 = vpop.xlane.xlu0 %7042
    %v7044 = vsel %vm118, %v7026, 0.0
    %7045 = vadd.xlane.f32.xlu0 %v7044
    %v7046 = vpop.xlane.xlu0 %7045
    %v7047 = vsel %vm118, %v7027, 0.0
    %7048 = vadd.xlane.f32.xlu0 %v7047
    %v7049 = vpop.xlane.xlu0 %7048
    %v7050 = vsel %vm118, %v7028, 0.0
    %7051 = vadd.xlane.f32.xlu0 %v7050
    %v7052 = vpop.xlane.xlu0 %7051
    %v7053 = vmul.f32 %v7031, %v4051
    %v7054 = vmul.f32 %v7034, %v4051
    %v7055 = vmul.f32 %v7037, %v4051
    %v7056 = vmul.f32 %v7040, %v4051
    %v7057 = vmul.f32 %v7043, %v4051
    %v7058 = vmul.f32 %v7046, %v4051
    %v7059 = vmul.f32 %v7049, %v4051
    %v7060 = vmul.f32 %v7052, %v4051
    %v7061 = vadd.f32 %v7053, 1e-05
    %v7062 = vadd.f32 %v7054, 1e-05
    %v7063 = vadd.f32 %v7055, 1e-05
    %v7064 = vadd.f32 %v7056, 1e-05
    %v7065 = vadd.f32 %v7057, 1e-05
    %v7066 = vadd.f32 %v7058, 1e-05
    %v7067 = vadd.f32 %v7059, 1e-05
    %v7068 = vadd.f32 %v7060, 1e-05
    %v7069 = vrsqrt.pop %v7061
    %v7070 = vrsqrt.pop %v7062
    %v7071 = vrsqrt.pop %v7063
    %v7072 = vrsqrt.pop %v7064
    %v7073 = vrsqrt.pop %v7065
    %v7074 = vrsqrt.pop %v7066
    %v7075 = vrsqrt.pop %v7067
    %v7076 = vrsqrt.pop %v7068
    %v7077 = vmul.f32 %v7013, %v7069
    %v7078 = vmul.f32 %v7014, %v7070
    %v7079 = vmul.f32 %v7015, %v7071
    %v7080 = vmul.f32 %v7016, %v7072
    %v7081 = vmul.f32 %v7017, %v7073
    %v7082 = vmul.f32 %v7018, %v7074
    %v7083 = vmul.f32 %v7019, %v7075
    %v7084 = vmul.f32 %v7020, %v7076
    %v7086 = vlaneseq
    %v7087 = vshrl.u32 %v7086, 7
    %v7088 = vsub.s32 0, %v7087
    %v7089 = vrot.slane %v6979, %v7088
    %v7091 = vmul.f32 %v7077, %v7089
    %v7092 = vmul.f32 %v7078, %v7089
    %v7093 = vmul.f32 %v7079, %v7089
    %v7094 = vmul.f32 %v7080, %v7089
    %v7095 = vmul.f32 %v7081, %v7089
    %v7096 = vmul.f32 %v7082, %v7089
    %v7097 = vmul.f32 %v7083, %v7089
    %v7098 = vmul.f32 %v7084, %v7089
    %v7100 = vlaneseq
    %v7101 = vshrl.u32 %v7100, 7
    %v7102 = vsub.s32 0, %v7101
    %v7103 = vrot.slane %v6980, %v7102
    %v7105 = vadd.f32 %v7091, %v7103
    %v7106 = vadd.f32 %v7092, %v7103
    %v7107 = vadd.f32 %v7093, %v7103
    %v7108 = vadd.f32 %v7094, %v7103
    %v7109 = vadd.f32 %v7095, %v7103
    %v7110 = vadd.f32 %v7096, %v7103
    %v7111 = vadd.f32 %v7097, %v7103
    %v7112 = vadd.f32 %v7098, %v7103
    %v7113 = vpack.c.bf16 %v7105, %v7105
    %v7114 = vpack.c.bf16 %v7106, %v7106
    %v7115 = vpack.c.bf16 %v7107, %v7107
    %v7116 = vpack.c.bf16 %v7108, %v7108
    %v7117 = vpack.c.bf16 %v7109, %v7109
    %v7118 = vpack.c.bf16 %v7110, %v7110
    %v7119 = vpack.c.bf16 %v7111, %v7111
    %v7120 = vpack.c.bf16 %v7112, %v7112
    %vm7121 = vcmask 519168
    %7122 = vst.msk [vmem:[#allocation2] sm:$0xf] %vm7121, %v7113
    %7123 = vst.msk [vmem:[#allocation2 + $0x4] sm:$0xf] %vm7121, %v7114
    %7124 = vst.msk [vmem:[#allocation2 + $0x8] sm:$0xf] %vm7121, %v7115
    %7125 = vst.msk [vmem:[#allocation2 + $0xc] sm:$0xf] %vm7121, %v7116
    %7126 = vst.msk [vmem:[#allocation2 + $0x10] sm:$0xf] %vm7121, %v7117
    %7127 = vst.msk [vmem:[#allocation2 + $0x14] sm:$0xf] %vm7121, %v7118
    %7128 = vst.msk [vmem:[#allocation2 + $0x18] sm:$0xf] %vm7121, %v7119
    %7129 = vst.msk [vmem:[#allocation2 + $0x1c] sm:$0xf] %vm7121, %v7120
    // Predicated region
    $region54: #{tpu_custom_call.1} parent=1 // pred_check
      _
    $region55: #{tpu_custom_call.1} parent=1 // pred_check_branch
      %7131 = sbr.rel (0) target = $region57
    $region56: #{tpu_custom_call.1} parent=1 // pred_region
      %s7133 = ssub.s32 512, 512
      %7134 = vsyncadd [#allocation3], %s7133
      %s7135 = sshll.u32 [#allocation2], 4
      %s7136 = int_to_ptr.vmem [resolvable:$true] %s7135
      %7141 = dma.vmem_to_hbm [thread:$0]  %s7136, 512, %s13, [#allocation3], 64, 64, 4
    $region57: #{tpu_custom_call.1} parent=1 // pred_fallthru
      _
    // Predicated region
    $region58: #{tpu_custom_call.1} parent=1 // pred_check
      _
    $region59: #{tpu_custom_call.1} parent=1 // pred_check_branch
      %7143 = sbr.rel (0) target = $region61
    $region60: #{tpu_custom_call.1} parent=1 // pred_region
      %7144 = dma.done [#allocation3], 512
    $region61: #{tpu_custom_call.1} parent=1 // pred_fallthru
      _
    %7145 = vsyncpa [#allocation3], 1

</llo_original>
